<compile_context>
chip_gen: v6e
topology: v6e:2x2x1
jax: 0.10.0
libtpu: 0.0.40
codegen_flags: <defaults>
</compile_context>

<pallas_src>
import functools
import math

import jax
import jax.numpy as jnp
from jax.experimental import pallas as pl
from jax.experimental.pallas import tpu as pltpu


def _round_up(x, m):
    return ((x + m - 1) // m) * m


def _const_spec(shape):
    return pl.BlockSpec(shape, lambda *_: (0,) * len(shape))


def _vmem_limit_bytes():
    # 3/4 of physical VMEM, capped at 100 MiB: ~96 MiB on v5e/v6e (128 MiB),
    # ~48 MiB on v7x (64 MiB). Conservative fallback if the query fails.
    try:
        cap = int(pltpu.get_tpu_info().vmem_capacity_bytes)
    except Exception:  # noqa: BLE001
        cap = 64 * 1024 * 1024
    return max(32 * 1024 * 1024, min(cap * 3 // 4, 100 * 1024 * 1024))


# ----------------------------------------------------------------------------
# Kernel 1: Feat_Process_Layer  --  fc2(ReLU(fc1(x)))
# ----------------------------------------------------------------------------
def _mlp2_kernel(x_ref, w1_ref, b1_ref, w2_ref, b2_ref, o_ref):
    h = jnp.maximum(
        jnp.dot(x_ref[...], w1_ref[...], preferred_element_type=jnp.float32)
        + b1_ref[...], 0.0).astype(jnp.bfloat16)
    o_ref[...] = (
        jnp.dot(h, w2_ref[...], preferred_element_type=jnp.float32) + b2_ref[...]
    ).astype(o_ref.dtype)


def feat_process(x, w1, b1, w2, b2, tile_m=512):
    M = x.shape[0]
    din_p = w1.shape[0]
    d_p = w2.shape[1]
    tile = min(tile_m, _round_up(M, 8))
    Mp = _round_up(M, tile)
    xp = jnp.pad(x.astype(jnp.bfloat16), ((0, Mp - M), (0, din_p - x.shape[1])))
    out = pl.pallas_call(
        _mlp2_kernel,
        out_shape=jax.ShapeDtypeStruct((Mp, d_p), jnp.bfloat16),
        grid=(Mp // tile,),
        in_specs=[
            pl.BlockSpec((tile, din_p), lambda i: (i, 0)),
            _const_spec(w1.shape), _const_spec(b1.shape),
            _const_spec(w2.shape), _const_spec(b2.shape),
        ],
        out_specs=pl.BlockSpec((tile, d_p), lambda i: (i, 0)),
        compiler_params=pltpu.CompilerParams(
            dimension_semantics=("parallel",),
            vmem_limit_bytes=_vmem_limit_bytes(),
        ),
    )(xp, w1, b1, w2, b2)
    return out[:M]


# ----------------------------------------------------------------------------
# Kernel 2: one temporal-graph-attention layer, tiled over edges.
#   Per edge tile: fused q / (k|v) projections -> head-block scores (scale folded
#   into s_blk) -> exp with a running global max (online rescale) -> scatter of both
#   the weighted values and the softmax denominator into lane-dense per-node
#   accumulators with one in-kernel [N, tile_e] one-hot bf16 matmul each.
#   At the last tile: normalize and apply the merge MLP.
# ----------------------------------------------------------------------------
def _tgat_layer_kernel(
    h_ref, hsrc_ref, hdst_ref, efphi_ref, ebias_ref, src_ref,
    wq_ref, qc_ref, wkvh_ref, wkvet_ref, bkv_ref, s_ref, cpad_ref,
    wma_ref, wmh_ref, bm1_ref, wm2_ref, bm2_ref,
    o_ref,
    agg_scr, den_scr, m_scr,
):
    t = pl.program_id(0)
    nt = pl.num_programs(0)
    N = h_ref.shape[0]
    TE = hsrc_ref.shape[0]
    Dp = wq_ref.shape[1]

    @pl.when(t == 0)
    def _():
        agg_scr[...] = jnp.zeros_like(agg_scr)
        den_scr[...] = jnp.zeros_like(den_scr)
        m_scr[...] = jnp.full_like(m_scr, -1e30)

    hsrc = hsrc_ref[...]                                             # [TE, Dp] bf16
    hdst = hdst_ref[...]                                             # [TE, Dp] bf16
    efphi = efphi_ref[...]                                           # [TE, 2Dp] bf16

    # q = h_src @ Wq_h + (time term at dt=0 + bias), all folded into qc.
    q = jnp.dot(hsrc, wq_ref[...], preferred_element_type=jnp.float32) + qc_ref[...]
    # Fused K/V projection: [k | v] = hdst @ [Wk_h|Wv_h] + [ef|phi] @ W_et + [bk|bv].
    kv = (jnp.dot(hdst, wkvh_ref[...], preferred_element_type=jnp.float32)
          + jnp.dot(efphi, wkvet_ref[...], preferred_element_type=jnp.float32)
          + bkv_ref[...])                                            # [TE, 2Dp] f32
    k = kv[:, :Dp]
    v = kv[:, Dp:]

    # Head-block scores expanded across each head's columns (scale folded into s_blk);
    # padded edges (ebias) and padded feature columns (cpad) are pushed to -1e30.
    qk = (q * k).astype(jnp.bfloat16)
    scores = (jnp.dot(qk, s_ref[...], preferred_element_type=jnp.float32)
              + ebias_ref[...] + cpad_ref[...])                      # [TE, Dp]

    # Online softmax with a single running global max (the shared shift cancels in the
    # per-node agg/denominator ratio). Rescale is O(N*Dp) VPU work -- cheap vs the
    # scatter matmul -- so it is done unconditionally.
    m_old = m_scr[...]                                               # [1, 1]
    m_new = jnp.maximum(m_old, jnp.max(scores, keepdims=True))
    r = jnp.exp(m_old - m_new)
    agg_scr[...] = agg_scr[...] * r
    den_scr[...] = den_scr[...] * r
    m_scr[...] = m_new

    p = jnp.exp(scores - m_new)                                      # [TE, Dp] f32
    p_bf = p.astype(jnp.bfloat16)
    pv = (p * v).astype(jnp.bfloat16)                                # [TE, Dp]

    # Scatter into per-node accumulators via an in-kernel one-hot [N, TE] matmul.
    # Padded edges carry src == N (sentinel) -> all-zero one-hot column.
    src_row = src_ref[...]                                           # [1, TE] i32
    node_iota = jax.lax.broadcasted_iota(jnp.int32, (N, TE), 0)
    A = (node_iota == src_row).astype(jnp.bfloat16)                  # [N, TE]

    agg_scr[...] += jnp.dot(A, pv, preferred_element_type=jnp.float32)    # [N, Dp]
    den_scr[...] += jnp.dot(A, p_bf, preferred_element_type=jnp.float32)  # [N, Dp]

    @pl.when(t == nt - 1)
    def _():
        denom = jnp.maximum(den_scr[...], 1e-10)
        # Nodes with no incident edge end up with agg == 0.
        agg = (agg_scr[...] * pl.reciprocal(denom, approx=True)).astype(jnp.bfloat16)
        h = h_ref[...]
        m1 = (jnp.dot(agg, wma_ref[...], preferred_element_type=jnp.float32)
              + jnp.dot(h, wmh_ref[...], preferred_element_type=jnp.float32)
              + bm1_ref[...])
        m1 = jnp.maximum(m1, 0.0).astype(jnp.bfloat16)
        out = jnp.dot(m1, wm2_ref[...], preferred_element_type=jnp.float32) + bm2_ref[...]
        o_ref[...] = out.astype(o_ref.dtype)


def tgat_attention_layer(h, hsrc, hdst, efphi, ebias, src_row, cpad, lp, tile_e):
    Np, Dp = h.shape
    Ep = hsrc.shape[0]
    assert Ep % tile_e == 0 and tile_e % 128 == 0
    n_tiles = Ep // tile_e

    args = (h, hsrc, hdst, efphi, ebias, src_row,
            lp["wq"], lp["q_const"], lp["w_kv_h"], lp["w_kv_et"], lp["b_kv"],
            lp["s_blk"], cpad,
            lp["wm_a"], lp["wm_h"], lp["bm1"], lp["wm2"], lp["bm2"])

    in_specs = [
        pl.BlockSpec((Np, Dp), lambda t: (0, 0)),             # h (resident)
        pl.BlockSpec((tile_e, Dp), lambda t: (t, 0)),         # h[src] per tile
        pl.BlockSpec((tile_e, Dp), lambda t: (t, 0)),         # h[dst] per tile
        pl.BlockSpec((tile_e, 2 * Dp), lambda t: (t, 0)),     # [edge_feat | phi] per tile
        pl.BlockSpec((tile_e, 1), lambda t: (t, 0)),          # pad-edge bias per tile
        pl.BlockSpec((1, tile_e), lambda t: (0, t)),          # src indices (lane-dense)
    ] + [_const_spec(a.shape) for a in args[6:]]

    return pl.pallas_call(
        _tgat_layer_kernel,
        out_shape=jax.ShapeDtypeStruct((Np, Dp), jnp.bfloat16),
        grid=(n_tiles,),
        in_specs=in_specs,
        out_specs=pl.BlockSpec((Np, Dp), lambda t: (0, 0)),
        scratch_shapes=[
            pltpu.VMEM((Np, Dp), jnp.float32),   # weighted-value accumulator
            pltpu.VMEM((Np, Dp), jnp.float32),   # softmax denominator accumulator
            pltpu.VMEM((1, 1), jnp.float32),     # running global max
        ],
        compiler_params=pltpu.CompilerParams(
            dimension_semantics=("arbitrary",),
            vmem_limit_bytes=_vmem_limit_bytes(),
        ),
    )(*args)


# ----------------------------------------------------------------------------
# Kernel 3: MergeLayer_output (affinity score head), x1 == x2 == center embedding,
# so fc1's two input blocks are pre-summed at init -> single matmul.
# ----------------------------------------------------------------------------
def _affinity_kernel(x_ref, w1_ref, b1_ref, w2_ref, b2_ref, w3_ref, b3_ref, o_ref):
    x = x_ref[...]
    h1 = jnp.maximum(
        jnp.dot(x, w1_ref[...], preferred_element_type=jnp.float32) + b1_ref[...],
        0.0).astype(jnp.bfloat16)
    h2 = jnp.maximum(
        jnp.dot(h1, w2_ref[...], preferred_element_type=jnp.float32) + b2_ref[...],
        0.0).astype(jnp.bfloat16)
    o_ref[...] = (
        jnp.dot(h2, w3_ref[...], preferred_element_type=jnp.float32) + b3_ref[...]
    ).astype(o_ref.dtype)


def affinity_score(x, w1s, b1, w2, b2, w3, b3):
    Bp = x.shape[0]
    args = (x.astype(jnp.bfloat16), w1s, b1, w2, b2, w3, b3)
    return pl.pallas_call(
        _affinity_kernel,
        out_shape=jax.ShapeDtypeStruct((Bp, 1), jnp.float32),
        grid=(1,),
        in_specs=[_const_spec(a.shape) for a in args],
        out_specs=_const_spec((Bp, 1)),
        compiler_params=pltpu.CompilerParams(vmem_limit_bytes=_vmem_limit_bytes()),
    )(*args)


# ----------------------------------------------------------------------------
# Parameter construction (deterministic, PyTorch-Linear-style init), zero-padded to
# lane-dense shapes (Dp = round_up(D, 128)) -- mathematically identical to the
# D-dimensional model since all padded weight rows/columns and biases are zero.
# ----------------------------------------------------------------------------
def _linear(key, fan_in, fan_out):
    kw, kb = jax.random.split(key)
    bound = 1.0 / math.sqrt(fan_in)
    w = jax.random.uniform(kw, (fan_in, fan_out), jnp.float32, -bound, bound)
    b = jax.random.uniform(kb, (1, fan_out), jnp.float32, -bound, bound)
    return w, b


def init_params(key, input_dim, dims, n_heads, n_layers):
    D = dims
    assert D % n_heads == 0
    dh = D // n_heads
    Dp = _round_up(max(D, 128), 128)
    Din_p = _round_up(max(input_dim, 128), 128)
    D2 = max(D // 2, 1)
    D2p = _round_up(max(D2, 128), 128)
    scale = 1.0 / math.sqrt(dh)

    keys = iter(jax.random.split(key, 64))

    # TimeEncode fixed basis (as in the reference TGAT implementation).
    tw = (1.0 / (10.0 ** jnp.linspace(0.0, 9.0, D))).reshape(1, D).astype(jnp.float32)
    tb = jnp.zeros((1, D), jnp.float32)

    def pad(a, r, c):
        return jnp.pad(a, ((0, r - a.shape[0]), (0, c - a.shape[1])))

    def fp():
        w1, b1 = _linear(next(keys), input_dim, D)
        w2, b2 = _linear(next(keys), D, D)
        return (pad(w1, Din_p, Dp).astype(jnp.bfloat16), pad(b1, 1, Dp),
                pad(w2, Dp, Dp).astype(jnp.bfloat16), pad(b2, 1, Dp))

    # Head-block score matrix with the attention scale folded in; padded rows/cols = 0.
    head = jnp.arange(D) // dh
    s_blk = (head[:, None] == head[None, :]).astype(jnp.float32) * scale
    s_blk = pad(s_blk, Dp, Dp).astype(jnp.bfloat16)
    # Column bias pushing padded feature columns out of the softmax max.
    cpad = jnp.where(jnp.arange(Dp) < D, 0.0, -1e30).astype(jnp.float32).reshape(1, Dp)

    layers = []
    for _ in range(n_layers):
        wq, bq = _linear(next(keys), 2 * D, D)
        wk, bk = _linear(next(keys), 3 * D, D)
        wv, bv = _linear(next(keys), 3 * D, D)
        wm1, bm1 = _linear(next(keys), 2 * D, D)
        wm2, bm2 = _linear(next(keys), D, D)
        # Query time term for dt=0: phi_0 = cos(tb) is constant -> fold into a bias row.
        q_const = jnp.cos(tb) @ wq[D:] + bq                                   # [1, D]
        w_kv_h = jnp.concatenate([pad(wk[:D], Dp, Dp), pad(wv[:D], Dp, Dp)], axis=1)
        w_kv_et = jnp.concatenate([
            jnp.concatenate([pad(wk[D:2 * D], Dp, Dp), pad(wv[D:2 * D], Dp, Dp)], axis=1),
            jnp.concatenate([pad(wk[2 * D:], Dp, Dp), pad(wv[2 * D:], Dp, Dp)], axis=1),
        ], axis=0)
        layers.append(dict(
            wq=pad(wq[:D], Dp, Dp).astype(jnp.bfloat16),
            q_const=pad(q_const, 1, Dp),
            w_kv_h=w_kv_h.astype(jnp.bfloat16),
            w_kv_et=w_kv_et.astype(jnp.bfloat16),
            b_kv=jnp.concatenate([pad(bk, 1, Dp), pad(bv, 1, Dp)], axis=1),
            s_blk=s_blk,
            wm_a=pad(wm1[:D], Dp, Dp).astype(jnp.bfloat16),
            wm_h=pad(wm1[D:], Dp, Dp).astype(jnp.bfloat16),
            bm1=pad(bm1, 1, Dp),
            wm2=pad(wm2, Dp, Dp).astype(jnp.bfloat16),
            bm2=pad(bm2, 1, Dp),
        ))

    # MergeLayer_output: fc1(2D->D), fc2(D->D//2), fc3(D//2->1); dropout = identity (eval).
    # x1 == x2 -> pre-sum the two fc1 input blocks.
    w1, b1 = _linear(next(keys), 2 * D, D)
    w2, b2 = _linear(next(keys), D, D2)
    w3, b3 = _linear(next(keys), D2, 1)
    aff = (pad(w1[:D] + w1[D:], Dp, Dp).astype(jnp.bfloat16), pad(b1, 1, Dp),
           pad(w2, Dp, D2p).astype(jnp.bfloat16), pad(b2, 1, D2p),
           pad(w3, D2p, 1).astype(jnp.bfloat16), b3)

    return dict(node_fp=fp(), edge_fp=fp(), tw=tw, tb=tb, cpad=cpad,
                layers=layers, affinity=aff)


# ----------------------------------------------------------------------------
# Forward pass == TGAT.forward
# ----------------------------------------------------------------------------
def tgat_forward(params, src_org_edge_feat, src_edge_to_time, src_center_node_idx,
                 src_neigh_edge, src_node_features, n_heads, n_layers, tile_e=512):
    D = params["tw"].shape[1]
    Dp = params["cpad"].shape[1]
    assert D % n_heads == 0
    N = src_node_features.shape[0]
    E = src_org_edge_feat.shape[0]

    # compute_temporal_embeddings: feature-processing MLPs (Pallas).
    node_h = feat_process(src_node_features, *params["node_fp"])   # [N, Dp] bf16
    edge_h = feat_process(src_org_edge_feat, *params["edge_fp"])   # [E, Dp] bf16

    Np = _round_up(N, 8)
    if Np > N:
        node_h = jnp.pad(node_h, ((0, Np - N), (0, 0)))

    # Edge-side padding to a multiple of the edge tile.  Padded edges get src == Np
    # (never matches a node in the in-kernel one-hot) and a -1e30 score bias.
    Ep = _round_up(max(E, tile_e), tile_e)
    pad_e = Ep - E
    src = src_neigh_edge[:, 0].astype(jnp.int32)
    dst = src_neigh_edge[:, 1].astype(jnp.int32)
    src_scatter = jnp.pad(src, (0, pad_e), constant_values=Np).reshape(1, Ep)
    src_gather = jnp.pad(jnp.clip(src, 0, N - 1), (0, pad_e))
    dst_gather = jnp.pad(jnp.clip(dst, 0, N - 1), (0, pad_e))
    dt = jnp.pad(src_edge_to_time.astype(jnp.float32), (0, pad_e)).reshape(Ep, 1)

    # Layer-invariant per-edge operand: [edge_feat | TimeEncode(dt)], bf16, lane-padded.
    phi = jnp.cos(dt * params["tw"] + params["tb"])                 # [Ep, D]
    phi = jnp.pad(phi, ((0, 0), (0, Dp - D)))
    efphi = jnp.concatenate(
        [jnp.pad(edge_h, ((0, pad_e), (0, 0))), phi.astype(jnp.bfloat16)], axis=1)
    ebias = jnp.where(jnp.arange(Ep) < E, 0.0, -1e30).astype(jnp.float32).reshape(Ep, 1)

    h = node_h
    for l in range(n_layers):
        # Index-based gather of node states onto edges (XLA glue; O(E*Dp)).
        hsrc = jnp.take(h, src_gather, axis=0)
        hdst = jnp.take(h, dst_gather, axis=0)
        h = tgat_attention_layer(h, hsrc, hdst, efphi, ebias, src_scatter,
                                 params["cpad"], params["layers"][l], tile_e)

    # affinity_score(center, center)
    B = src_center_node_idx.shape[0]
    Bp = _round_up(max(B, 8), 8)
    center = jnp.take(h, src_center_node_idx, axis=0)
    center = jnp.pad(center, ((0, Bp - B), (0, 0)))
    return affinity_score(center, *params["affinity"])[:B]


if __name__ == "__main__":
    key = jax.random.PRNGKey(0)
    N, E, F_IN, D, HEADS, N_LAYERS, B = 64, 1200, 16, 32, 2, 2, 4

    k_nf, k_ef, k_t, k_e, kp = jax.random.split(key, 5)
    src_node_features = jax.random.normal(k_nf, (N, F_IN), jnp.float32)
    src_org_edge_feat = jax.random.normal(k_ef, (E, F_IN), jnp.float32)
    src_edge_to_time = jax.random.uniform(k_t, (E,), jnp.float32, 0.0, 100.0)
    src_neigh_edge = jax.random.randint(k_e, (E, 2), 0, N, jnp.int32)
    src_center_node_idx = jnp.arange(B, dtype=jnp.int32)

    params = init_params(kp, F_IN, D, HEADS, N_LAYERS)

    fwd = jax.jit(functools.partial(tgat_forward, n_heads=HEADS,
                                    n_layers=N_LAYERS, tile_e=512))
    score = fwd(params, src_org_edge_feat, src_edge_to_time,
                src_center_node_idx, src_neigh_edge, src_node_features)
    score = jax.block_until_ready(score)
    assert score.shape == (B, 1) and score.dtype == jnp.float32
    print("KERNEL_OK")
</pallas_src>

<mosaic_0001>
module attributes {stable_mosaic.version = 11 : i64} {
  func.func @_mlp2_kernel(%arg0: i32, %arg1: memref<64x128xbf16, #tpu.memory_space<vmem>>, %arg2: memref<128x128xbf16, #tpu.memory_space<vmem>>, %arg3: memref<1x128xf32, #tpu.memory_space<vmem>>, %arg4: memref<128x128xbf16, #tpu.memory_space<vmem>>, %arg5: memref<1x128xf32, #tpu.memory_space<vmem>>, %arg6: memref<64x128xbf16, #tpu.memory_space<vmem>>) attributes {dimension_semantics = [#tpu.dimension_semantics<parallel>], iteration_bounds = array<i64: 1>, scalar_prefetch = 0 : i64, scratch_operands = 0 : i64, tpu.core_type = #tpu.core_type<tc>, window_params = [{transform_indices = @transform_0, window_bounds = array<i64: 64, 128>}, {pipeline_mode = #tpu.pipeline_mode<synchronous>, transform_indices = @transform_1, window_bounds = array<i64: 128, 128>}, {pipeline_mode = #tpu.pipeline_mode<synchronous>, transform_indices = @transform_2, window_bounds = array<i64: 1, 128>}, {pipeline_mode = #tpu.pipeline_mode<synchronous>, transform_indices = @transform_3, window_bounds = array<i64: 128, 128>}, {pipeline_mode = #tpu.pipeline_mode<synchronous>, transform_indices = @transform_4, window_bounds = array<i64: 1, 128>}, {transform_indices = @transform_5, window_bounds = array<i64: 64, 128>}]} {
    %c0 = arith.constant 0 : index
    %c0_0 = arith.constant 0 : index
    %0 = vector.load %arg1[%c0, %c0_0] : memref<64x128xbf16, #tpu.memory_space<vmem>>, vector<64x128xbf16>
    %c0_1 = arith.constant 0 : index
    %c0_2 = arith.constant 0 : index
    %1 = vector.load %arg2[%c0_1, %c0_2] : memref<128x128xbf16, #tpu.memory_space<vmem>>, vector<128x128xbf16>
    %cst = arith.constant dense<0.000000e+00> : vector<64x128xf32>
    %2 = tpu.matmul %0, %1, %cst {dimension_numbers = #tpu.dot_dimension_numbers<[1], [0], [0], [1], [0, 0, 1, 1], [], []>} : vector<64x128xbf16>, vector<128x128xbf16>, vector<64x128xf32> -> vector<64x128xf32>
    %c0_3 = arith.constant 0 : index
    %c0_4 = arith.constant 0 : index
    %3 = vector.load %arg3[%c0_3, %c0_4] : memref<1x128xf32, #tpu.memory_space<vmem>>, vector<1x128xf32>
    %4 = vector.broadcast %3 : vector<1x128xf32> to vector<64x128xf32>
    %5 = arith.addf %2, %4 : vector<64x128xf32>
    %cst_5 = arith.constant 0.000000e+00 : f32
    %6 = vector.broadcast %cst_5 : f32 to vector<64x128xf32>
    %7 = arith.maximumf %5, %6 : vector<64x128xf32>
    %8 = arith.truncf %7 : vector<64x128xf32> to vector<64x128xbf16>
    %c0_6 = arith.constant 0 : index
    %c0_7 = arith.constant 0 : index
    %9 = vector.load %arg4[%c0_6, %c0_7] : memref<128x128xbf16, #tpu.memory_space<vmem>>, vector<128x128xbf16>
    %cst_8 = arith.constant dense<0.000000e+00> : vector<64x128xf32>
    %10 = tpu.matmul %8, %9, %cst_8 {dimension_numbers = #tpu.dot_dimension_numbers<[1], [0], [0], [1], [0, 0, 1, 1], [], []>} : vector<64x128xbf16>, vector<128x128xbf16>, vector<64x128xf32> -> vector<64x128xf32>
    %c0_9 = arith.constant 0 : index
    %c0_10 = arith.constant 0 : index
    %11 = vector.load %arg5[%c0_9, %c0_10] : memref<1x128xf32, #tpu.memory_space<vmem>>, vector<1x128xf32>
    %12 = vector.broadcast %11 : vector<1x128xf32> to vector<64x128xf32>
    %13 = arith.addf %10, %12 : vector<64x128xf32>
    %14 = arith.truncf %13 : vector<64x128xf32> to vector<64x128xbf16>
    %c0_11 = arith.constant 0 : index
    %c0_12 = arith.constant 0 : index
    %15 = vector.load %arg6[%c0_11, %c0_12] : memref<64x128xbf16, #tpu.memory_space<vmem>>, vector<64x128xbf16>
    tpu.vector_store %arg6[%c0_11, %c0_12], %14 {strides = array<i32>} : memref<64x128xbf16, #tpu.memory_space<vmem>>, vector<64x128xbf16>,
    return
  }
  func.func @transform_0(%arg0: i32) -> (i32, i32) {
    %c0_i32 = arith.constant 0 : i32
    %c0_i32_0 = arith.constant 0 : i32
    return %arg0, %c0_i32 : i32, i32
  }
  func.func @transform_1(%arg0: i32) -> (i32, i32) {
    %c0_i32 = arith.constant 0 : i32
    %c0_i32_0 = arith.constant 0 : i32
    %c0_i32_1 = arith.constant 0 : i32
    return %c0_i32, %c0_i32_0 : i32, i32
  }
  func.func @transform_2(%arg0: i32) -> (i32, i32) {
    %c0_i32 = arith.constant 0 : i32
    %c0_i32_0 = arith.constant 0 : i32
    %c0_i32_1 = arith.constant 0 : i32
    return %c0_i32, %c0_i32_0 : i32, i32
  }
  func.func @transform_3(%arg0: i32) -> (i32, i32) {
    %c0_i32 = arith.constant 0 : i32
    %c0_i32_0 = arith.constant 0 : i32
    %c0_i32_1 = arith.constant 0 : i32
    return %c0_i32, %c0_i32_0 : i32, i32
  }
  func.func @transform_4(%arg0: i32) -> (i32, i32) {
    %c0_i32 = arith.constant 0 : i32
    %c0_i32_0 = arith.constant 0 : i32
    %c0_i32_1 = arith.constant 0 : i32
    return %c0_i32, %c0_i32_0 : i32, i32
  }
  func.func @transform_5(%arg0: i32) -> (i32, i32) {
    %c0_i32 = arith.constant 0 : i32
    %c0_i32_0 = arith.constant 0 : i32
    return %arg0, %c0_i32 : i32, i32
  }
}

module attributes {stable_mosaic.version = 11 : i64} {
  func.func @_mlp2_kernel(%arg0: i32, %arg1: memref<512x128xbf16, #tpu.memory_space<vmem>>, %arg2: memref<128x128xbf16, #tpu.memory_space<vmem>>, %arg3: memref<1x128xf32, #tpu.memory_space<vmem>>, %arg4: memref<128x128xbf16, #tpu.memory_space<vmem>>, %arg5: memref<1x128xf32, #tpu.memory_space<vmem>>, %arg6: memref<512x128xbf16, #tpu.memory_space<vmem>>) attributes {dimension_semantics = [#tpu.dimension_semantics<parallel>], iteration_bounds = array<i64: 3>, scalar_prefetch = 0 : i64, scratch_operands = 0 : i64, tpu.core_type = #tpu.core_type<tc>, window_params = [{transform_indices = @transform_0, window_bounds = array<i64: 512, 128>}, {pipeline_mode = #tpu.pipeline_mode<synchronous>, transform_indices = @transform_1, window_bounds = array<i64: 128, 128>}, {pipeline_mode = #tpu.pipeline_mode<synchronous>, transform_indices = @transform_2, window_bounds = array<i64: 1, 128>}, {pipeline_mode = #tpu.pipeline_mode<synchronous>, transform_indices = @transform_3, window_bounds = array<i64: 128, 128>}, {pipeline_mode = #tpu.pipeline_mode<synchronous>, transform_indices = @transform_4, window_bounds = array<i64: 1, 128>}, {transform_indices = @transform_5, window_bounds = array<i64: 512, 128>}]} {
    %c0 = arith.constant 0 : index
    %c0_0 = arith.constant 0 : index
    %0 = vector.load %arg1[%c0, %c0_0] : memref<512x128xbf16, #tpu.memory_space<vmem>>, vector<512x128xbf16>
    %c0_1 = arith.constant 0 : index
    %c0_2 = arith.constant 0 : index
    %1 = vector.load %arg2[%c0_1, %c0_2] : memref<128x128xbf16, #tpu.memory_space<vmem>>, vector<128x128xbf16>
    %cst = arith.constant dense<0.000000e+00> : vector<512x128xf32>
    %2 = tpu.matmul %0, %1, %cst {dimension_numbers = #tpu.dot_dimension_numbers<[1], [0], [0], [1], [0, 0, 1, 1], [], []>} : vector<512x128xbf16>, vector<128x128xbf16>, vector<512x128xf32> -> vector<512x128xf32>
    %c0_3 = arith.constant 0 : index
    %c0_4 = arith.constant 0 : index
    %3 = vector.load %arg3[%c0_3, %c0_4] : memref<1x128xf32, #tpu.memory_space<vmem>>, vector<1x128xf32>
    %4 = vector.broadcast %3 : vector<1x128xf32> to vector<512x128xf32>
    %5 = arith.addf %2, %4 : vector<512x128xf32>
    %cst_5 = arith.constant 0.000000e+00 : f32
    %6 = vector.broadcast %cst_5 : f32 to vector<512x128xf32>
    %7 = arith.maximumf %5, %6 : vector<512x128xf32>
    %8 = arith.truncf %7 : vector<512x128xf32> to vector<512x128xbf16>
    %c0_6 = arith.constant 0 : index
    %c0_7 = arith.constant 0 : index
    %9 = vector.load %arg4[%c0_6, %c0_7] : memref<128x128xbf16, #tpu.memory_space<vmem>>, vector<128x128xbf16>
    %cst_8 = arith.constant dense<0.000000e+00> : vector<512x128xf32>
    %10 = tpu.matmul %8, %9, %cst_8 {dimension_numbers = #tpu.dot_dimension_numbers<[1], [0], [0], [1], [0, 0, 1, 1], [], []>} : vector<512x128xbf16>, vector<128x128xbf16>, vector<512x128xf32> -> vector<512x128xf32>
    %c0_9 = arith.constant 0 : index
    %c0_10 = arith.constant 0 : index
    %11 = vector.load %arg5[%c0_9, %c0_10] : memref<1x128xf32, #tpu.memory_space<vmem>>, vector<1x128xf32>
    %12 = vector.broadcast %11 : vector<1x128xf32> to vector<512x128xf32>
    %13 = arith.addf %10, %12 : vector<512x128xf32>
    %14 = arith.truncf %13 : vector<512x128xf32> to vector<512x128xbf16>
    %c0_11 = arith.constant 0 : index
    %c0_12 = arith.constant 0 : index
    %15 = vector.load %arg6[%c0_11, %c0_12] : memref<512x128xbf16, #tpu.memory_space<vmem>>, vector<512x128xbf16>
    tpu.vector_store %arg6[%c0_11, %c0_12], %14 {strides = array<i32>} : memref<512x128xbf16, #tpu.memory_space<vmem>>, vector<512x128xbf16>,
    return
  }
  func.func @transform_0(%arg0: i32) -> (i32, i32) {
    %c0_i32 = arith.constant 0 : i32
    %c0_i32_0 = arith.constant 0 : i32
    return %arg0, %c0_i32 : i32, i32
  }
  func.func @transform_1(%arg0: i32) -> (i32, i32) {
    %c0_i32 = arith.constant 0 : i32
    %c0_i32_0 = arith.constant 0 : i32
    %c0_i32_1 = arith.constant 0 : i32
    return %c0_i32, %c0_i32_0 : i32, i32
  }
  func.func @transform_2(%arg0: i32) -> (i32, i32) {
    %c0_i32 = arith.constant 0 : i32
    %c0_i32_0 = arith.constant 0 : i32
    %c0_i32_1 = arith.constant 0 : i32
    return %c0_i32, %c0_i32_0 : i32, i32
  }
  func.func @transform_3(%arg0: i32) -> (i32, i32) {
    %c0_i32 = arith.constant 0 : i32
    %c0_i32_0 = arith.constant 0 : i32
    %c0_i32_1 = arith.constant 0 : i32
    return %c0_i32, %c0_i32_0 : i32, i32
  }
  func.func @transform_4(%arg0: i32) -> (i32, i32) {
    %c0_i32 = arith.constant 0 : i32
    %c0_i32_0 = arith.constant 0 : i32
    %c0_i32_1 = arith.constant 0 : i32
    return %c0_i32, %c0_i32_0 : i32, i32
  }
  func.func @transform_5(%arg0: i32) -> (i32, i32) {
    %c0_i32 = arith.constant 0 : i32
    %c0_i32_0 = arith.constant 0 : i32
    return %arg0, %c0_i32 : i32, i32
  }
}

module attributes {stable_mosaic.version = 11 : i64} {
  func.func @_tgat_layer_kernel(%arg0: i32, %arg1: memref<64x128xbf16, #tpu.memory_space<vmem>>, %arg2: memref<512x128xbf16, #tpu.memory_space<vmem>>, %arg3: memref<512x128xbf16, #tpu.memory_space<vmem>>, %arg4: memref<512x256xbf16, #tpu.memory_space<vmem>>, %arg5: memref<512x1xf32, #tpu.memory_space<vmem>>, %arg6: memref<1x512xi32, #tpu.memory_space<vmem>>, %arg7: memref<128x128xbf16, #tpu.memory_space<vmem>>, %arg8: memref<1x128xf32, #tpu.memory_space<vmem>>, %arg9: memref<128x256xbf16, #tpu.memory_space<vmem>>, %arg10: memref<256x256xbf16, #tpu.memory_space<vmem>>, %arg11: memref<1x256xf32, #tpu.memory_space<vmem>>, %arg12: memref<128x128xbf16, #tpu.memory_space<vmem>>, %arg13: memref<1x128xf32, #tpu.memory_space<vmem>>, %arg14: memref<128x128xbf16, #tpu.memory_space<vmem>>, %arg15: memref<128x128xbf16, #tpu.memory_space<vmem>>, %arg16: memref<1x128xf32, #tpu.memory_space<vmem>>, %arg17: memref<128x128xbf16, #tpu.memory_space<vmem>>, %arg18: memref<1x128xf32, #tpu.memory_space<vmem>>, %arg19: memref<64x128xbf16, #tpu.memory_space<vmem>>, %arg20: memref<64x128xf32, #tpu.memory_space<vmem>>, %arg21: memref<64x128xf32, #tpu.memory_space<vmem>>, %arg22: memref<1x1xf32, #tpu.memory_space<vmem>>) attributes {dimension_semantics = [#tpu.dimension_semantics<arbitrary>], iteration_bounds = array<i64: 3>, scalar_prefetch = 0 : i64, scratch_operands = 3 : i64, tpu.core_type = #tpu.core_type<tc>, window_params = [{pipeline_mode = #tpu.pipeline_mode<synchronous>, transform_indices = @transform_0, window_bounds = array<i64: 64, 128>}, {transform_indices = @transform_1, window_bounds = array<i64: 512, 128>}, {transform_indices = @transform_2, window_bounds = array<i64: 512, 128>}, {transform_indices = @transform_3, window_bounds = array<i64: 512, 256>}, {transform_indices = @transform_4, window_bounds = array<i64: 512, 1>}, {transform_indices = @transform_5, window_bounds = array<i64: 1, 512>}, {pipeline_mode = #tpu.pipeline_mode<synchronous>, transform_indices = @transform_6, window_bounds = array<i64: 128, 128>}, {pipeline_mode = #tpu.pipeline_mode<synchronous>, transform_indices = @transform_7, window_bounds = array<i64: 1, 128>}, {pipeline_mode = #tpu.pipeline_mode<synchronous>, transform_indices = @transform_8, window_bounds = array<i64: 128, 256>}, {pipeline_mode = #tpu.pipeline_mode<synchronous>, transform_indices = @transform_9, window_bounds = array<i64: 256, 256>}, {pipeline_mode = #tpu.pipeline_mode<synchronous>, transform_indices = @transform_10, window_bounds = array<i64: 1, 256>}, {pipeline_mode = #tpu.pipeline_mode<synchronous>, transform_indices = @transform_11, window_bounds = array<i64: 128, 128>}, {pipeline_mode = #tpu.pipeline_mode<synchronous>, transform_indices = @transform_12, window_bounds = array<i64: 1, 128>}, {pipeline_mode = #tpu.pipeline_mode<synchronous>, transform_indices = @transform_13, window_bounds = array<i64: 128, 128>}, {pipeline_mode = #tpu.pipeline_mode<synchronous>, transform_indices = @transform_14, window_bounds = array<i64: 128, 128>}, {pipeline_mode = #tpu.pipeline_mode<synchronous>, transform_indices = @transform_15, window_bounds = array<i64: 1, 128>}, {pipeline_mode = #tpu.pipeline_mode<synchronous>, transform_indices = @transform_16, window_bounds = array<i64: 128, 128>}, {pipeline_mode = #tpu.pipeline_mode<synchronous>, transform_indices = @transform_17, window_bounds = array<i64: 1, 128>}, {pipeline_mode = #tpu.pipeline_mode<synchronous>, transform_indices = @transform_18, window_bounds = array<i64: 64, 128>}]} {
    %c0_i32 = arith.constant 0 : i32
    %0 = arith.cmpi eq, %arg0, %c0_i32 : i32
    %1 = arith.extui %0 : i1 to i32
    %c0_i32_0 = arith.constant 0 : i32
    %2 = arith.cmpi ne, %1, %c0_i32_0 : i32
    scf.if %2 {
      %cst_51 = arith.constant 0.000000e+00 : f32
      %73 = vector.broadcast %cst_51 : f32 to vector<64x128xf32>
      %c0_52 = arith.constant 0 : index
      %c0_53 = arith.constant 0 : index
      %74 = vector.load %arg20[%c0_52, %c0_53] : memref<64x128xf32, #tpu.memory_space<vmem>>, vector<64x128xf32>
      tpu.vector_store %arg20[%c0_52, %c0_53], %73 {strides = array<i32>} : memref<64x128xf32, #tpu.memory_space<vmem>>, vector<64x128xf32>,
      %cst_54 = arith.constant 0.000000e+00 : f32
      %75 = vector.broadcast %cst_54 : f32 to vector<64x128xf32>
      %c0_55 = arith.constant 0 : index
      %c0_56 = arith.constant 0 : index
      %76 = vector.load %arg21[%c0_55, %c0_56] : memref<64x128xf32, #tpu.memory_space<vmem>>, vector<64x128xf32>
      tpu.vector_store %arg21[%c0_55, %c0_56], %75 {strides = array<i32>} : memref<64x128xf32, #tpu.memory_space<vmem>>, vector<64x128xf32>,
      %cst_57 = arith.constant -1.000000e+30 : f32
      %77 = vector.broadcast %cst_57 : f32 to vector<1x1xf32>
      %c0_58 = arith.constant 0 : index
      %c0_59 = arith.constant 0 : index
      %78 = vector.load %arg22[%c0_58, %c0_59] : memref<1x1xf32, #tpu.memory_space<vmem>>, vector<1x1xf32>
      tpu.vector_store %arg22[%c0_58, %c0_59], %77 {strides = array<i32>} : memref<1x1xf32, #tpu.memory_space<vmem>>, vector<1x1xf32>,
    } else {
    }
    %c0 = arith.constant 0 : index
    %c0_1 = arith.constant 0 : index
    %3 = vector.load %arg2[%c0, %c0_1] : memref<512x128xbf16, #tpu.memory_space<vmem>>, vector<512x128xbf16>
    %c0_2 = arith.constant 0 : index
    %c0_3 = arith.constant 0 : index
    %4 = vector.load %arg3[%c0_2, %c0_3] : memref<512x128xbf16, #tpu.memory_space<vmem>>, vector<512x128xbf16>
    %c0_4 = arith.constant 0 : index
    %c0_5 = arith.constant 0 : index
    %5 = vector.load %arg4[%c0_4, %c0_5] : memref<512x256xbf16, #tpu.memory_space<vmem>>, vector<512x256xbf16>
    %c0_6 = arith.constant 0 : index
    %c0_7 = arith.constant 0 : index
    %6 = vector.load %arg7[%c0_6, %c0_7] : memref<128x128xbf16, #tpu.memory_space<vmem>>, vector<128x128xbf16>
    %cst = arith.constant dense<0.000000e+00> : vector<512x128xf32>
    %7 = tpu.matmul %3, %6, %cst {dimension_numbers = #tpu.dot_dimension_numbers<[1], [0], [0], [1], [0, 0, 1, 1], [], []>} : vector<512x128xbf16>, vector<128x128xbf16>, vector<512x128xf32> -> vector<512x128xf32>
    %c0_8 = arith.constant 0 : index
    %c0_9 = arith.constant 0 : index
    %8 = vector.load %arg8[%c0_8, %c0_9] : memref<1x128xf32, #tpu.memory_space<vmem>>, vector<1x128xf32>
    %9 = vector.broadcast %8 : vector<1x128xf32> to vector<512x128xf32>
    %10 = arith.addf %7, %9 : vector<512x128xf32>
    %c0_10 = arith.constant 0 : index
    %c0_11 = arith.constant 0 : index
    %11 = vector.load %arg9[%c0_10, %c0_11] : memref<128x256xbf16, #tpu.memory_space<vmem>>, vector<128x256xbf16>
    %cst_12 = arith.constant dense<0.000000e+00> : vector<512x256xf32>
    %12 = tpu.matmul %4, %11, %cst_12 {dimension_numbers = #tpu.dot_dimension_numbers<[1], [0], [0], [1], [0, 0, 1, 1], [], []>} : vector<512x128xbf16>, vector<128x256xbf16>, vector<512x256xf32> -> vector<512x256xf32>
    %c0_13 = arith.constant 0 : index
    %c0_14 = arith.constant 0 : index
    %13 = vector.load %arg10[%c0_13, %c0_14] : memref<256x256xbf16, #tpu.memory_space<vmem>>, vector<256x256xbf16>
    %cst_15 = arith.constant dense<0.000000e+00> : vector<512x256xf32>
    %14 = tpu.matmul %5, %13, %cst_15 {dimension_numbers = #tpu.dot_dimension_numbers<[1], [0], [0], [1], [0, 0, 1, 1], [], []>} : vector<512x256xbf16>, vector<256x256xbf16>, vector<512x256xf32> -> vector<512x256xf32>
    %15 = arith.addf %12, %14 : vector<512x256xf32>
    %c0_16 = arith.constant 0 : index
    %c0_17 = arith.constant 0 : index
    %16 = vector.load %arg11[%c0_16, %c0_17] : memref<1x256xf32, #tpu.memory_space<vmem>>, vector<1x256xf32>
    %17 = vector.broadcast %16 : vector<1x256xf32> to vector<512x256xf32>
    %18 = arith.addf %15, %17 : vector<512x256xf32>
    %19 = vector.extract_strided_slice %18 {offsets = [0, 0], sizes = [512, 128], strides = [1, 1]} : vector<512x256xf32> to vector<512x128xf32>
    %20 = vector.extract_strided_slice %18 {offsets = [0, 128], sizes = [512, 128], strides = [1, 1]} : vector<512x256xf32> to vector<512x128xf32>
    %21 = arith.mulf %10, %19 : vector<512x128xf32>
    %22 = arith.truncf %21 : vector<512x128xf32> to vector<512x128xbf16>
    %c0_18 = arith.constant 0 : index
    %c0_19 = arith.constant 0 : index
    %23 = vector.load %arg12[%c0_18, %c0_19] : memref<128x128xbf16, #tpu.memory_space<vmem>>, vector<128x128xbf16>
    %cst_20 = arith.constant dense<0.000000e+00> : vector<512x128xf32>
    %24 = tpu.matmul %22, %23, %cst_20 {dimension_numbers = #tpu.dot_dimension_numbers<[1], [0], [0], [1], [0, 0, 1, 1], [], []>} : vector<512x128xbf16>, vector<128x128xbf16>, vector<512x128xf32> -> vector<512x128xf32>
    %c0_21 = arith.constant 0 : index
    %c0_22 = arith.constant 0 : index
    %25 = vector.load %arg5[%c0_21, %c0_22] : memref<512x1xf32, #tpu.memory_space<vmem>>, vector<512x1xf32>
    %26 = vector.broadcast %25 : vector<512x1xf32> to vector<512x128xf32>
    %27 = arith.addf %24, %26 : vector<512x128xf32>
    %c0_23 = arith.constant 0 : index
    %c0_24 = arith.constant 0 : index
    %28 = vector.load %arg13[%c0_23, %c0_24] : memref<1x128xf32, #tpu.memory_space<vmem>>, vector<1x128xf32>
    %29 = vector.broadcast %28 : vector<1x128xf32> to vector<512x128xf32>
    %30 = arith.addf %27, %29 : vector<512x128xf32>
    %c0_25 = arith.constant 0 : index
    %c0_26 = arith.constant 0 : index
    %31 = vector.load %arg22[%c0_25, %c0_26] : memref<1x1xf32, #tpu.memory_space<vmem>>, vector<1x1xf32>
    %32 = vector.shape_cast %30 : vector<512x128xf32> to vector<1x512x128xf32>
    %cst_27 = arith.constant dense<0xFF800000> : vector<1xf32>
    %33 = vector.multi_reduction <maximumf>, %32, %cst_27 [1, 2] : vector<1x512x128xf32> to vector<1xf32>
    %34 = vector.shape_cast %33 : vector<1xf32> to vector<1x1x1xf32>
    %35 = vector.extract %34[0, 0, 0] : f32 from vector<1x1x1xf32>
    %36 = vector.broadcast %35 : f32 to vector<1x1xf32>
    %37 = arith.maximumf %31, %36 : vector<1x1xf32>
    %38 = arith.subf %31, %37 : vector<1x1xf32>
    %39 = math.exp %38 : vector<1x1xf32>
    %c0_28 = arith.constant 0 : index
    %c0_29 = arith.constant 0 : index
    %40 = vector.load %arg20[%c0_28, %c0_29] : memref<64x128xf32, #tpu.memory_space<vmem>>, vector<64x128xf32>
    %41 = vector.broadcast %39 : vector<1x1xf32> to vector<64x128xf32>
    %42 = arith.mulf %40, %41 : vector<64x128xf32>
    %c0_30 = arith.constant 0 : index
    %c0_31 = arith.constant 0 : index
    %43 = vector.load %arg20[%c0_30, %c0_31] : memref<64x128xf32, #tpu.memory_space<vmem>>, vector<64x128xf32>
    tpu.vector_store %arg20[%c0_30, %c0_31], %42 {strides = array<i32>} : memref<64x128xf32, #tpu.memory_space<vmem>>, vector<64x128xf32>,
    %c0_32 = arith.constant 0 : index
    %c0_33 = arith.constant 0 : index
    %44 = vector.load %arg21[%c0_32, %c0_33] : memref<64x128xf32, #tpu.memory_space<vmem>>, vector<64x128xf32>
    %45 = vector.broadcast %39 : vector<1x1xf32> to vector<64x128xf32>
    %46 = arith.mulf %44, %45 : vector<64x128xf32>
    %c0_34 = arith.constant 0 : index
    %c0_35 = arith.constant 0 : index
    %47 = vector.load %arg21[%c0_34, %c0_35] : memref<64x128xf32, #tpu.memory_space<vmem>>, vector<64x128xf32>
    tpu.vector_store %arg21[%c0_34, %c0_35], %46 {strides = array<i32>} : memref<64x128xf32, #tpu.memory_space<vmem>>, vector<64x128xf32>,
    %c0_36 = arith.constant 0 : index
    %c0_37 = arith.constant 0 : index
    %48 = vector.load %arg22[%c0_36, %c0_37] : memref<1x1xf32, #tpu.memory_space<vmem>>, vector<1x1xf32>
    tpu.vector_store %arg22[%c0_36, %c0_37], %37 {strides = array<i32>} : memref<1x1xf32, #tpu.memory_space<vmem>>, vector<1x1xf32>,
    %49 = vector.broadcast %37 : vector<1x1xf32> to vector<512x128xf32>
    %50 = arith.subf %30, %49 : vector<512x128xf32>
    %51 = math.exp %50 : vector<512x128xf32>
    %52 = arith.truncf %51 : vector<512x128xf32> to vector<512x128xbf16>
    %53 = arith.mulf %51, %20 : vector<512x128xf32>
    %54 = arith.truncf %53 : vector<512x128xf32> to vector<512x128xbf16>
    %c0_38 = arith.constant 0 : index
    %c0_39 = arith.constant 0 : index
    %55 = vector.load %arg6[%c0_38, %c0_39] : memref<1x512xi32, #tpu.memory_space<vmem>>, vector<1x512xi32>
    %56 = tpu.iota {dimensions = array<i32: 0>} : vector<64x512xi32>
    %57 = vector.broadcast %55 : vector<1x512xi32> to vector<64x512xi32>
    %58 = arith.cmpi eq, %56, %57 : vector<64x512xi32>
    %59 = arith.extui %58 : vector<64x512xi1> to vector<64x512xi32>
    %60 = arith.sitofp %59 : vector<64x512xi32> to vector<64x512xf32>
    %61 = arith.truncf %60 : vector<64x512xf32> to vector<64x512xbf16>
    %c0_40 = arith.constant 0 : index
    %c0_41 = arith.constant 0 : index
    %62 = vector.load %arg20[%c0_40, %c0_41] : memref<64x128xf32, #tpu.memory_space<vmem>>, vector<64x128xf32>
    %cst_42 = arith.constant dense<0.000000e+00> : vector<64x128xf32>
    %63 = tpu.matmul %61, %54, %cst_42 {dimension_numbers = #tpu.dot_dimension_numbers<[1], [0], [0], [1], [0, 0, 1, 1], [], []>} : vector<64x512xbf16>, vector<512x128xbf16>, vector<64x128xf32> -> vector<64x128xf32>
    %64 = arith.addf %62, %63 : vector<64x128xf32>
    %c0_43 = arith.constant 0 : index
    %c0_44 = arith.constant 0 : index
    %65 = vector.load %arg20[%c0_43, %c0_44] : memref<64x128xf32, #tpu.memory_space<vmem>>, vector<64x128xf32>
    tpu.vector_store %arg20[%c0_43, %c0_44], %64 {strides = array<i32>} : memref<64x128xf32, #tpu.memory_space<vmem>>, vector<64x128xf32>,
    %c0_45 = arith.constant 0 : index
    %c0_46 = arith.constant 0 : index
    %66 = vector.load %arg21[%c0_45, %c0_46] : memref<64x128xf32, #tpu.memory_space<vmem>>, vector<64x128xf32>
    %cst_47 = arith.constant dense<0.000000e+00> : vector<64x128xf32>
    %67 = tpu.matmul %61, %52, %cst_47 {dimension_numbers = #tpu.dot_dimension_numbers<[1], [0], [0], [1], [0, 0, 1, 1], [], []>} : vector<64x512xbf16>, vector<512x128xbf16>, vector<64x128xf32> -> vector<64x128xf32>
    %68 = arith.addf %66, %67 : vector<64x128xf32>
    %c0_48 = arith.constant 0 : index
    %c0_49 = arith.constant 0 : index
    %69 = vector.load %arg21[%c0_48, %c0_49] : memref<64x128xf32, #tpu.memory_space<vmem>>, vector<64x128xf32>
    tpu.vector_store %arg21[%c0_48, %c0_49], %68 {strides = array<i32>} : memref<64x128xf32, #tpu.memory_space<vmem>>, vector<64x128xf32>,
    %c2_i32 = arith.constant 2 : i32
    %70 = arith.cmpi eq, %arg0, %c2_i32 : i32
    %71 = arith.extui %70 : i1 to i32
    %c0_i32_50 = arith.constant 0 : i32
    %72 = arith.cmpi ne, %71, %c0_i32_50 : i32
    scf.if %72 {
      %c0_51 = arith.constant 0 : index
      %c0_52 = arith.constant 0 : index
      %73 = vector.load %arg21[%c0_51, %c0_52] : memref<64x128xf32, #tpu.memory_space<vmem>>, vector<64x128xf32>
      %cst_53 = arith.constant 1.000000e-10 : f32
      %74 = vector.broadcast %cst_53 : f32 to vector<64x128xf32>
      %75 = arith.maximumf %73, %74 : vector<64x128xf32>
      %c0_54 = arith.constant 0 : index
      %c0_55 = arith.constant 0 : index
      %76 = vector.load %arg20[%c0_54, %c0_55] : memref<64x128xf32, #tpu.memory_space<vmem>>, vector<64x128xf32>
      %77 = tpu.reciprocal %75 {approx = true} : vector<64x128xf32> -> vector<64x128xf32>
      %78 = arith.mulf %76, %77 : vector<64x128xf32>
      %79 = arith.truncf %78 : vector<64x128xf32> to vector<64x128xbf16>
      %c0_56 = arith.constant 0 : index
      %c0_57 = arith.constant 0 : index
      %80 = vector.load %arg1[%c0_56, %c0_57] : memref<64x128xbf16, #tpu.memory_space<vmem>>, vector<64x128xbf16>
      %c0_58 = arith.constant 0 : index
      %c0_59 = arith.constant 0 : index
      %81 = vector.load %arg14[%c0_58, %c0_59] : memref<128x128xbf16, #tpu.memory_space<vmem>>, vector<128x128xbf16>
      %cst_60 = arith.constant dense<0.000000e+00> : vector<64x128xf32>
      %82 = tpu.matmul %79, %81, %cst_60 {dimension_numbers = #tpu.dot_dimension_numbers<[1], [0], [0], [1], [0, 0, 1, 1], [], []>} : vector<64x128xbf16>, vector<128x128xbf16>, vector<64x128xf32> -> vector<64x128xf32>
      %c0_61 = arith.constant 0 : index
      %c0_62 = arith.constant 0 : index
      %83 = vector.load %arg15[%c0_61, %c0_62] : memref<128x128xbf16, #tpu.memory_space<vmem>>, vector<128x128xbf16>
      %cst_63 = arith.constant dense<0.000000e+00> : vector<64x128xf32>
      %84 = tpu.matmul %80, %83, %cst_63 {dimension_numbers = #tpu.dot_dimension_numbers<[1], [0], [0], [1], [0, 0, 1, 1], [], []>} : vector<64x128xbf16>, vector<128x128xbf16>, vector<64x128xf32> -> vector<64x128xf32>
      %85 = arith.addf %82, %84 : vector<64x128xf32>
      %c0_64 = arith.constant 0 : index
      %c0_65 = arith.constant 0 : index
      %86 = vector.load %arg16[%c0_64, %c0_65] : memref<1x128xf32, #tpu.memory_space<vmem>>, vector<1x128xf32>
      %87 = vector.broadcast %86 : vector<1x128xf32> to vector<64x128xf32>
      %88 = arith.addf %85, %87 : vector<64x128xf32>
      %cst_66 = arith.constant 0.000000e+00 : f32
      %89 = vector.broadcast %cst_66 : f32 to vector<64x128xf32>
      %90 = arith.maximumf %88, %89 : vector<64x128xf32>
      %91 = arith.truncf %90 : vector<64x128xf32> to vector<64x128xbf16>
      %c0_67 = arith.constant 0 : index
      %c0_68 = arith.constant 0 : index
      %92 = vector.load %arg17[%c0_67, %c0_68] : memref<128x128xbf16, #tpu.memory_space<vmem>>, vector<128x128xbf16>
      %cst_69 = arith.constant dense<0.000000e+00> : vector<64x128xf32>
      %93 = tpu.matmul %91, %92, %cst_69 {dimension_numbers = #tpu.dot_dimension_numbers<[1], [0], [0], [1], [0, 0, 1, 1], [], []>} : vector<64x128xbf16>, vector<128x128xbf16>, vector<64x128xf32> -> vector<64x128xf32>
      %c0_70 = arith.constant 0 : index
      %c0_71 = arith.constant 0 : index
      %94 = vector.load %arg18[%c0_70, %c0_71] : memref<1x128xf32, #tpu.memory_space<vmem>>, vector<1x128xf32>
      %95 = vector.broadcast %94 : vector<1x128xf32> to vector<64x128xf32>
      %96 = arith.addf %93, %95 : vector<64x128xf32>
      %97 = arith.truncf %96 : vector<64x128xf32> to vector<64x128xbf16>
      %c0_72 = arith.constant 0 : index
      %c0_73 = arith.constant 0 : index
      %98 = vector.load %arg19[%c0_72, %c0_73] : memref<64x128xbf16, #tpu.memory_space<vmem>>, vector<64x128xbf16>
      tpu.vector_store %arg19[%c0_72, %c0_73], %97 {strides = array<i32>} : memref<64x128xbf16, #tpu.memory_space<vmem>>, vector<64x128xbf16>,
    } else {
    }
    return
  }
  func.func @transform_0(%arg0: i32) -> (i32, i32) {
    %c0_i32 = arith.constant 0 : i32
    %c0_i32_0 = arith.constant 0 : i32
    %c0_i32_1 = arith.constant 0 : i32
    return %c0_i32, %c0_i32_0 : i32, i32
  }
  func.func @transform_1(%arg0: i32) -> (i32, i32) {
    %c0_i32 = arith.constant 0 : i32
    %c0_i32_0 = arith.constant 0 : i32
    return %arg0, %c0_i32 : i32, i32
  }
  func.func @transform_2(%arg0: i32) -> (i32, i32) {
    %c0_i32 = arith.constant 0 : i32
    %c0_i32_0 = arith.constant 0 : i32
    return %arg0, %c0_i32 : i32, i32
  }
  func.func @transform_3(%arg0: i32) -> (i32, i32) {
    %c0_i32 = arith.constant 0 : i32
    %c0_i32_0 = arith.constant 0 : i32
    return %arg0, %c0_i32 : i32, i32
  }
  func.func @transform_4(%arg0: i32) -> (i32, i32) {
    %c0_i32 = arith.constant 0 : i32
    %c0_i32_0 = arith.constant 0 : i32
    return %arg0, %c0_i32 : i32, i32
  }
  func.func @transform_5(%arg0: i32) -> (i32, i32) {
    %c0_i32 = arith.constant 0 : i32
    %c0_i32_0 = arith.constant 0 : i32
    return %c0_i32, %arg0 : i32, i32
  }
  func.func @transform_6(%arg0: i32) -> (i32, i32) {
    %c0_i32 = arith.constant 0 : i32
    %c0_i32_0 = arith.constant 0 : i32
    %c0_i32_1 = arith.constant 0 : i32
    return %c0_i32, %c0_i32_0 : i32, i32
  }
  func.func @transform_7(%arg0: i32) -> (i32, i32) {
    %c0_i32 = arith.constant 0 : i32
    %c0_i32_0 = arith.constant 0 : i32
    %c0_i32_1 = arith.constant 0 : i32
    return %c0_i32, %c0_i32_0 : i32, i32
  }
  func.func @transform_8(%arg0: i32) -> (i32, i32) {
    %c0_i32 = arith.constant 0 : i32
    %c0_i32_0 = arith.constant 0 : i32
    %c0_i32_1 = arith.constant 0 : i32
    return %c0_i32, %c0_i32_0 : i32, i32
  }
  func.func @transform_9(%arg0: i32) -> (i32, i32) {
    %c0_i32 = arith.constant 0 : i32
    %c0_i32_0 = arith.constant 0 : i32
    %c0_i32_1 = arith.constant 0 : i32
    return %c0_i32, %c0_i32_0 : i32, i32
  }
  func.func @transform_10(%arg0: i32) -> (i32, i32) {
    %c0_i32 = arith.constant 0 : i32
    %c0_i32_0 = arith.constant 0 : i32
    %c0_i32_1 = arith.constant 0 : i32
    return %c0_i32, %c0_i32_0 : i32, i32
  }
  func.func @transform_11(%arg0: i32) -> (i32, i32) {
    %c0_i32 = arith.constant 0 : i32
    %c0_i32_0 = arith.constant 0 : i32
    %c0_i32_1 = arith.constant 0 : i32
    return %c0_i32, %c0_i32_0 : i32, i32
  }
  func.func @transform_12(%arg0: i32) -> (i32, i32) {
    %c0_i32 = arith.constant 0 : i32
    %c0_i32_0 = arith.constant 0 : i32
    %c0_i32_1 = arith.constant 0 : i32
    return %c0_i32, %c0_i32_0 : i32, i32
  }
  func.func @transform_13(%arg0: i32) -> (i32, i32) {
    %c0_i32 = arith.constant 0 : i32
    %c0_i32_0 = arith.constant 0 : i32
    %c0_i32_1 = arith.constant 0 : i32
    return %c0_i32, %c0_i32_0 : i32, i32
  }
  func.func @transform_14(%arg0: i32) -> (i32, i32) {
    %c0_i32 = arith.constant 0 : i32
    %c0_i32_0 = arith.constant 0 : i32
    %c0_i32_1 = arith.constant 0 : i32
    return %c0_i32, %c0_i32_0 : i32, i32
  }
  func.func @transform_15(%arg0: i32) -> (i32, i32) {
    %c0_i32 = arith.constant 0 : i32
    %c0_i32_0 = arith.constant 0 : i32
    %c0_i32_1 = arith.constant 0 : i32
    return %c0_i32, %c0_i32_0 : i32, i32
  }
  func.func @transform_16(%arg0: i32) -> (i32, i32) {
    %c0_i32 = arith.constant 0 : i32
    %c0_i32_0 = arith.constant 0 : i32
    %c0_i32_1 = arith.constant 0 : i32
    return %c0_i32, %c0_i32_0 : i32, i32
  }
  func.func @transform_17(%arg0: i32) -> (i32, i32) {
    %c0_i32 = arith.constant 0 : i32
    %c0_i32_0 = arith.constant 0 : i32
    %c0_i32_1 = arith.constant 0 : i32
    return %c0_i32, %c0_i32_0 : i32, i32
  }
  func.func @transform_18(%arg0: i32) -> (i32, i32) {
    %c0_i32 = arith.constant 0 : i32
    %c0_i32_0 = arith.constant 0 : i32
    %c0_i32_1 = arith.constant 0 : i32
    return %c0_i32, %c0_i32_0 : i32, i32
  }
}

module attributes {stable_mosaic.version = 11 : i64} {
  func.func @_affinity_kernel(%arg0: i32, %arg1: memref<8x128xbf16, #tpu.memory_space<vmem>>, %arg2: memref<128x128xbf16, #tpu.memory_space<vmem>>, %arg3: memref<1x128xf32, #tpu.memory_space<vmem>>, %arg4: memref<128x128xbf16, #tpu.memory_space<vmem>>, %arg5: memref<1x128xf32, #tpu.memory_space<vmem>>, %arg6: memref<128x1xbf16, #tpu.memory_space<vmem>>, %arg7: memref<1x1xf32, #tpu.memory_space<vmem>>, %arg8: memref<8x1xf32, #tpu.memory_space<vmem>>) attributes {dimension_semantics = [#tpu.dimension_semantics<arbitrary>], iteration_bounds = array<i64: 1>, scalar_prefetch = 0 : i64, scratch_operands = 0 : i64, tpu.core_type = #tpu.core_type<tc>, window_params = [{pipeline_mode = #tpu.pipeline_mode<synchronous>, transform_indices = @transform_0, window_bounds = array<i64: 8, 128>}, {pipeline_mode = #tpu.pipeline_mode<synchronous>, transform_indices = @transform_1, window_bounds = array<i64: 128, 128>}, {pipeline_mode = #tpu.pipeline_mode<synchronous>, transform_indices = @transform_2, window_bounds = array<i64: 1, 128>}, {pipeline_mode = #tpu.pipeline_mode<synchronous>, transform_indices = @transform_3, window_bounds = array<i64: 128, 128>}, {pipeline_mode = #tpu.pipeline_mode<synchronous>, transform_indices = @transform_4, window_bounds = array<i64: 1, 128>}, {pipeline_mode = #tpu.pipeline_mode<synchronous>, transform_indices = @transform_5, window_bounds = array<i64: 128, 1>}, {pipeline_mode = #tpu.pipeline_mode<synchronous>, transform_indices = @transform_6, window_bounds = array<i64: 1, 1>}, {pipeline_mode = #tpu.pipeline_mode<synchronous>, transform_indices = @transform_7, window_bounds = array<i64: 8, 1>}]} {
    %c0 = arith.constant 0 : index
    %c0_0 = arith.constant 0 : index
    %0 = vector.load %arg1[%c0, %c0_0] : memref<8x128xbf16, #tpu.memory_space<vmem>>, vector<8x128xbf16>
    %c0_1 = arith.constant 0 : index
    %c0_2 = arith.constant 0 : index
    %1 = vector.load %arg2[%c0_1, %c0_2] : memref<128x128xbf16, #tpu.memory_space<vmem>>, vector<128x128xbf16>
    %cst = arith.constant dense<0.000000e+00> : vector<8x128xf32>
    %2 = tpu.matmul %0, %1, %cst {dimension_numbers = #tpu.dot_dimension_numbers<[1], [0], [0], [1], [0, 0, 1, 1], [], []>} : vector<8x128xbf16>, vector<128x128xbf16>, vector<8x128xf32> -> vector<8x128xf32>
    %c0_3 = arith.constant 0 : index
    %c0_4 = arith.constant 0 : index
    %3 = vector.load %arg3[%c0_3, %c0_4] : memref<1x128xf32, #tpu.memory_space<vmem>>, vector<1x128xf32>
    %4 = vector.broadcast %3 : vector<1x128xf32> to vector<8x128xf32>
    %5 = arith.addf %2, %4 : vector<8x128xf32>
    %cst_5 = arith.constant 0.000000e+00 : f32
    %6 = vector.broadcast %cst_5 : f32 to vector<8x128xf32>
    %7 = arith.maximumf %5, %6 : vector<8x128xf32>
    %8 = arith.truncf %7 : vector<8x128xf32> to vector<8x128xbf16>
    %c0_6 = arith.constant 0 : index
    %c0_7 = arith.constant 0 : index
    %9 = vector.load %arg4[%c0_6, %c0_7] : memref<128x128xbf16, #tpu.memory_space<vmem>>, vector<128x128xbf16>
    %cst_8 = arith.constant dense<0.000000e+00> : vector<8x128xf32>
    %10 = tpu.matmul %8, %9, %cst_8 {dimension_numbers = #tpu.dot_dimension_numbers<[1], [0], [0], [1], [0, 0, 1, 1], [], []>} : vector<8x128xbf16>, vector<128x128xbf16>, vector<8x128xf32> -> vector<8x128xf32>
    %c0_9 = arith.constant 0 : index
    %c0_10 = arith.constant 0 : index
    %11 = vector.load %arg5[%c0_9, %c0_10] : memref<1x128xf32, #tpu.memory_space<vmem>>, vector<1x128xf32>
    %12 = vector.broadcast %11 : vector<1x128xf32> to vector<8x128xf32>
    %13 = arith.addf %10, %12 : vector<8x128xf32>
    %cst_11 = arith.constant 0.000000e+00 : f32
    %14 = vector.broadcast %cst_11 : f32 to vector<8x128xf32>
    %15 = arith.maximumf %13, %14 : vector<8x128xf32>
    %16 = arith.truncf %15 : vector<8x128xf32> to vector<8x128xbf16>
    %c0_12 = arith.constant 0 : index
    %c0_13 = arith.constant 0 : index
    %17 = vector.load %arg6[%c0_12, %c0_13] : memref<128x1xbf16, #tpu.memory_space<vmem>>, vector<128x1xbf16>
    %cst_14 = arith.constant dense<0.000000e+00> : vector<8x1xf32>
    %18 = tpu.matmul %16, %17, %cst_14 {dimension_numbers = #tpu.dot_dimension_numbers<[1], [0], [0], [1], [0, 0, 1, 1], [], []>} : vector<8x128xbf16>, vector<128x1xbf16>, vector<8x1xf32> -> vector<8x1xf32>
    %c0_15 = arith.constant 0 : index
    %c0_16 = arith.constant 0 : index
    %19 = vector.load %arg7[%c0_15, %c0_16] : memref<1x1xf32, #tpu.memory_space<vmem>>, vector<1x1xf32>
    %20 = vector.broadcast %19 : vector<1x1xf32> to vector<8x1xf32>
    %21 = arith.addf %18, %20 : vector<8x1xf32>
    %c0_17 = arith.constant 0 : index
    %c0_18 = arith.constant 0 : index
    %22 = vector.load %arg8[%c0_17, %c0_18] : memref<8x1xf32, #tpu.memory_space<vmem>>, vector<8x1xf32>
    tpu.vector_store %arg8[%c0_17, %c0_18], %21 {strides = array<i32>} : memref<8x1xf32, #tpu.memory_space<vmem>>, vector<8x1xf32>,
    return
  }
  func.func @transform_0(%arg0: i32) -> (i32, i32) {
    %c0_i32 = arith.constant 0 : i32
    %c0_i32_0 = arith.constant 0 : i32
    %c0_i32_1 = arith.constant 0 : i32
    return %c0_i32, %c0_i32_0 : i32, i32
  }
  func.func @transform_1(%arg0: i32) -> (i32, i32) {
    %c0_i32 = arith.constant 0 : i32
    %c0_i32_0 = arith.constant 0 : i32
    %c0_i32_1 = arith.constant 0 : i32
    return %c0_i32, %c0_i32_0 : i32, i32
  }
  func.func @transform_2(%arg0: i32) -> (i32, i32) {
    %c0_i32 = arith.constant 0 : i32
    %c0_i32_0 = arith.constant 0 : i32
    %c0_i32_1 = arith.constant 0 : i32
    return %c0_i32, %c0_i32_0 : i32, i32
  }
  func.func @transform_3(%arg0: i32) -> (i32, i32) {
    %c0_i32 = arith.constant 0 : i32
    %c0_i32_0 = arith.constant 0 : i32
    %c0_i32_1 = arith.constant 0 : i32
    return %c0_i32, %c0_i32_0 : i32, i32
  }
  func.func @transform_4(%arg0: i32) -> (i32, i32) {
    %c0_i32 = arith.constant 0 : i32
    %c0_i32_0 = arith.constant 0 : i32
    %c0_i32_1 = arith.constant 0 : i32
    return %c0_i32, %c0_i32_0 : i32, i32
  }
  func.func @transform_5(%arg0: i32) -> (i32, i32) {
    %c0_i32 = arith.constant 0 : i32
    %c0_i32_0 = arith.constant 0 : i32
    %c0_i32_1 = arith.constant 0 : i32
    return %c0_i32, %c0_i32_0 : i32, i32
  }
  func.func @transform_6(%arg0: i32) -> (i32, i32) {
    %c0_i32 = arith.constant 0 : i32
    %c0_i32_0 = arith.constant 0 : i32
    %c0_i32_1 = arith.constant 0 : i32
    return %c0_i32, %c0_i32_0 : i32, i32
  }
  func.func @transform_7(%arg0: i32) -> (i32, i32) {
    %c0_i32 = arith.constant 0 : i32
    %c0_i32_0 = arith.constant 0 : i32
    %c0_i32_1 = arith.constant 0 : i32
    return %c0_i32, %c0_i32_0 : i32, i32
  }
}

</mosaic_0001>

<llo_original>
// kernel: tgat_forward.5
$region0: #{tgat_forward.5}
  #allocation0 [shape = 'u32[]', space=smem, size = 0x4, offset = 0x4, fixed_abs, tag = 'smem constant byte address 0x4 - core index']
  #allocation1 [shape = 'u32[144,128]{1,0:T(1,128)}', space=vmem, size = 0x12000, scoped, tag = 'internal scratch']
  %s0 = inlined_call_operand.vmem [shape: bf16[64,128], index: 0, kind: input, shape index: {}]
  %s1 = inlined_call_operand.hbm [shape: bf16[128,128], index: 1, kind: input, shape index: {}]
  %s2 = inlined_call_operand.hbm [shape: f32[1,128], index: 2, kind: input, shape index: {}]
  %s3 = inlined_call_operand.hbm [shape: bf16[128,128], index: 3, kind: input, shape index: {}]
  %s4 = inlined_call_operand.hbm [shape: f32[1,128], index: 4, kind: input, shape index: {}]
  %s5 = inlined_call_operand.vmem [shape: bf16[64,128], index: 5, kind: output, shape index: {}]
  %s6 = sld [smem:[#allocation0]]
  $region46: #{tgat_forward.5} parent=0
    _
  %s8 = ssub.s32 1, %s6
  %s9 = scalar_select 0, %s8, %s6
  $region1: #{tgat_forward.5} parent=0
    #allocation2 [shape = 'u8[32768]{0}', space=vmem, size = 0x8000, scoped, tag = 'input window, operand 1, single buffered']
    #allocation3 [shape = 's32[1]{0}', space=sflag, size = 0x4, scoped, tag = 'scoped memory for tgat_forward.5']
    #allocation4 [shape = 'u8[512]{0}', space=vmem, size = 0x400, scoped, tag = 'input window, operand 2, single buffered']
    #allocation5 [shape = 's32[1]{0}', space=sflag, size = 0x4, scoped, tag = 'scoped memory for tgat_forward.5']
    #allocation6 [shape = 'u8[32768]{0}', space=vmem, size = 0x8000, scoped, tag = 'input window, operand 3, single buffered']
    #allocation7 [shape = 'u8[512]{0}', space=vmem, size = 0x400, scoped, tag = 'input window, operand 4, single buffered']
    #allocation8 [shape = 's32[1]{0}', space=sflag, size = 0x4, scoped, tag = 'scoped memory for tgat_forward.5']
    %10 = vsyncpa [#allocation3], 0
    %11 = vsyncpa [#allocation5], 0
    %12 = vsyncpa [#allocation8], 0
    // Predicated region
    $region2: #{tgat_forward.5} parent=1 // pred_check
      _
    $region3: #{tgat_forward.5} parent=1 // pred_check_branch
      %14 = sbr.rel (0) target = $region5
    $region4: #{tgat_forward.5} parent=1 // pred_region
      _
    $region5: #{tgat_forward.5} parent=1 // pred_fallthru
      _
    // Predicated region
    $region6: #{tgat_forward.5} parent=1 // pred_check
      _
    $region7: #{tgat_forward.5} parent=1 // pred_check_branch
      %16 = sbr.rel (0) target = $region9
    $region8: #{tgat_forward.5} parent=1 // pred_region
      %s18 = ssub.s32 1024, 1024
      %19 = vsyncadd [#allocation3], %s18
      %s20 = sshll.u32 [#allocation2], 4
      %s21 = int_to_ptr.vmem [resolvable:$true] %s20
      %26 = dma.hbm_to_vmem [thread:$0]  %s1, 1024, %s21, [#allocation3], 64, 64, 4
    $region9: #{tgat_forward.5} parent=1 // pred_fallthru
      _
    // Predicated region
    $region10: #{tgat_forward.5} parent=1 // pred_check
      _
    $region11: #{tgat_forward.5} parent=1 // pred_check_branch
      %28 = sbr.rel (0) target = $region13
    $region12: #{tgat_forward.5} parent=1 // pred_region
      %s30 = ssub.s32 16, 16
      %31 = vsyncadd [#allocation5], %s30
      %s33 = sshll.u32 [#allocation4], 4
      %s34 = int_to_ptr.vmem [resolvable:$true] %s33
      %36 = dma.hbm_to_vmem [thread:$0]  %s2, 16, %s34, [#allocation5]
    $region13: #{tgat_forward.5} parent=1 // pred_fallthru
      _
    // Predicated region
    $region14: #{tgat_forward.5} parent=1 // pred_check
      _
    $region15: #{tgat_forward.5} parent=1 // pred_check_branch
      %38 = sbr.rel (0) target = $region17
    $region16: #{tgat_forward.5} parent=1 // pred_region
      %s40 = ssub.s32 1024, 1024
      %41 = vsyncadd [#allocation5], %s40
      %s42 = sshll.u32 [#allocation6], 4
      %s43 = int_to_ptr.vmem [resolvable:$true] %s42
      %48 = dma.hbm_to_vmem [thread:$0]  %s3, 1024, %s43, [#allocation5], 64, 64, 4
    $region17: #{tgat_forward.5} parent=1 // pred_fallthru
      _
    // Predicated region
    $region18: #{tgat_forward.5} parent=1 // pred_check
      _
    $region19: #{tgat_forward.5} parent=1 // pred_check_branch
      %50 = sbr.rel (0) target = $region21
    $region20: #{tgat_forward.5} parent=1 // pred_region
      %s52 = ssub.s32 16, 16
      %53 = vsyncadd [#allocation8], %s52
      %s55 = sshll.u32 [#allocation7], 4
      %s56 = int_to_ptr.vmem [resolvable:$true] %s55
      %58 = dma.hbm_to_vmem [thread:$0]  %s4, 16, %s56, [#allocation8]
    $region21: #{tgat_forward.5} parent=1 // pred_fallthru
      _
    // Predicated region
    $region22: #{tgat_forward.5} parent=1 // pred_check
      _
    $region23: #{tgat_forward.5} parent=1 // pred_check_branch
      %60 = sbr.rel (0) target = $region25
    $region24: #{tgat_forward.5} parent=1 // pred_region
      %61 = dma.done [#allocation3], 1024
    $region25: #{tgat_forward.5} parent=1 // pred_fallthru
      _
    // Predicated region
    $region26: #{tgat_forward.5} parent=1 // pred_check
      _
    $region27: #{tgat_forward.5} parent=1 // pred_check_branch
      %63 = sbr.rel (0) target = $region29
    $region28: #{tgat_forward.5} parent=1 // pred_region
      %64 = dma.done [#allocation5], 16
    $region29: #{tgat_forward.5} parent=1 // pred_fallthru
      _
    // Predicated region
    $region30: #{tgat_forward.5} parent=1 // pred_check
      _
    $region31: #{tgat_forward.5} parent=1 // pred_check_branch
      %66 = sbr.rel (0) target = $region33
    $region32: #{tgat_forward.5} parent=1 // pred_region
      %67 = dma.done [#allocation5], 1024
    $region33: #{tgat_forward.5} parent=1 // pred_fallthru
      _
    // Predicated region
    $region34: #{tgat_forward.5} parent=1 // pred_check
      _
    $region35: #{tgat_forward.5} parent=1 // pred_check_branch
      %69 = sbr.rel (0) target = $region37
    $region36: #{tgat_forward.5} parent=1 // pred_region
      %70 = dma.done [#allocation8], 16
    $region37: #{tgat_forward.5} parent=1 // pred_fallthru
      _
    %v72 = vld [vmem:[%s0] sm:$0xf]
    %v73 = vld [vmem:[%s0 + $0x4] sm:$0xf]
    %v74 = vld [vmem:[%s0 + $0x8] sm:$0xf]
    %v75 = vld [vmem:[%s0 + $0xc] sm:$0xf]
    %v76 = vld [vmem:[%s0 + $0x10] sm:$0xf]
    %v77 = vld [vmem:[%s0 + $0x14] sm:$0xf]
    %v78 = vld [vmem:[%s0 + $0x18] sm:$0xf]
    %v79 = vld [vmem:[%s0 + $0x1c] sm:$0xf]
    %v80 = vld [vmem:[#allocation2] sm:$0xf]
    %v81 = vld [vmem:[#allocation2 + $0x4] sm:$0xf]
    %v82 = vld [vmem:[#allocation2 + $0x8] sm:$0xf]
    %v83 = vld [vmem:[#allocation2 + $0xc] sm:$0xf]
    %v84 = vld [vmem:[#allocation2 + $0x10] sm:$0xf]
    %v85 = vld [vmem:[#allocation2 + $0x14] sm:$0xf]
    %v86 = vld [vmem:[#allocation2 + $0x18] sm:$0xf]
    %v87 = vld [vmem:[#allocation2 + $0x1c] sm:$0xf]
    %v88 = vld [vmem:[#allocation2 + $0x20] sm:$0xf]
    %v89 = vld [vmem:[#allocation2 + $0x24] sm:$0xf]
    %v90 = vld [vmem:[#allocation2 + $0x28] sm:$0xf]
    %v91 = vld [vmem:[#allocation2 + $0x2c] sm:$0xf]
    %v92 = vld [vmem:[#allocation2 + $0x30] sm:$0xf]
    %v93 = vld [vmem:[#allocation2 + $0x34] sm:$0xf]
    %v94 = vld [vmem:[#allocation2 + $0x38] sm:$0xf]
    %v95 = vld [vmem:[#allocation2 + $0x3c] sm:$0xf]
    %v96 = vld [vmem:[#allocation4] sm:$0x1]
    %v98 = vlaneseq
    %v99 = vshrl.u32 %v98, 7
    %v100 = vsub.s32 0, %v99
    %v101 = vrot.slane %v96, %v100
    %v111 = vunpack.c.l.b16 %v72
    %v112 = vunpack.c.l.b16 %v73
    %v113 = vunpack.c.l.b16 %v74
    %v114 = vunpack.c.l.b16 %v75
    %v115 = vunpack.c.l.b16 %v76
    %v116 = vunpack.c.l.b16 %v77
    %v117 = vunpack.c.l.b16 %v78
    %v118 = vunpack.c.l.b16 %v79
    %v119 = vpack.c.b16 %v112, %v111
    %v120 = vpack.c.b16 %v114, %v113
    %v121 = vpack.c.b16 %v116, %v115
    %v122 = vpack.c.b16 %v118, %v117
    %v143 = vunpack.c.l.b16 %v80
    %v144 = vunpack.c.l.b16 %v81
    %v145 = vunpack.c.l.b16 %v82
    %v146 = vunpack.c.l.b16 %v83
    %v147 = vunpack.c.l.b16 %v84
    %v148 = vunpack.c.l.b16 %v85
    %v149 = vunpack.c.l.b16 %v86
    %v150 = vunpack.c.l.b16 %v87
    %v151 = vunpack.c.l.b16 %v88
    %v152 = vunpack.c.l.b16 %v89
    %v153 = vunpack.c.l.b16 %v90
    %v154 = vunpack.c.l.b16 %v91
    %v155 = vunpack.c.l.b16 %v92
    %v156 = vunpack.c.l.b16 %v93
    %v157 = vunpack.c.l.b16 %v94
    %v158 = vunpack.c.l.b16 %v95
    %v159 = vpack.c.b16 %v144, %v143
    %v160 = vpack.c.b16 %v146, %v145
    %v161 = vpack.c.b16 %v148, %v147
    %v162 = vpack.c.b16 %v150, %v149
    %v163 = vpack.c.b16 %v152, %v151
    %v164 = vpack.c.b16 %v154, %v153
    %v165 = vpack.c.b16 %v156, %v155
    %v166 = vpack.c.b16 %v158, %v157
    %175 = vmatprep.subr.bf16.mxu0 0
    %176 = vmatpush1.bf16.msra.mxu0 %v166
    %177 = vmatprep.subr.bf16.mxu0 0
    %178 = vmatpush1.bf16.msra.mxu0 %v165
    %179 = vmatprep.subr.bf16.mxu0 0
    %180 = vmatpush1.bf16.msra.mxu0 %v164
    %181 = vmatprep.subr.bf16.mxu0 0
    %182 = vmatpush1.bf16.msra.mxu0 %v163
    %183 = vmatprep.subr.bf16.mxu0 0
    %184 = vmatpush1.bf16.msra.mxu0 %v162
    %185 = vmatprep.subr.bf16.mxu0 0
    %186 = vmatpush1.bf16.msra.mxu0 %v161
    %187 = vmatprep.subr.bf16.mxu0 0
    %188 = vmatpush1.bf16.msra.mxu0 %v160
    %189 = vmatprep.subr.bf16.mxu0 0
    %190 = vmatpush1.bf16.msra.mxu0 %v159
    %191 = vmatprep.subr.bf16.mxu0 0
    %192 = vmatpush2.bf16.msra.mxu0 0
    %193 = vmatprep.subr.bf16.mxu0 0
    %194 = vmatpush2.bf16.msra.mxu0 0
    %195 = vmatprep.subr.bf16.mxu0 0
    %196 = vmatpush2.bf16.msra.mxu0 0
    %197 = vmatprep.subr.bf16.mxu0 0
    %198 = vmatpush2.bf16.msra.mxu0 0
    %199 = vmatprep.subr.bf16.mxu0 0
    %200 = vmatpush2.bf16.msra.mxu0 0
    %201 = vmatprep.subr.bf16.mxu0 0
    %202 = vmatpush2.bf16.msra.mxu0 0
    %203 = vmatprep.subr.bf16.mxu0 0
    %204 = vmatpush2.bf16.msra.mxu0 0
    %205 = vmatprep.subr.bf16.mxu0 0
    %206 = vmatpush2.bf16.msra.mxu0 0
    %207 = vmatprep.mubr.bf16.mxu0 0
    %208 = vmatmul.mubr.bf16.gmra.mxu0 %v119
    %v209 = vpop.f32.mrf.mxu0
    %v210 = vadd.f32 %v101, %v209
    %v211 = vpop.f32.mrf.mxu0
    %v212 = vpop.f32.mrf.mxu0
    %v213 = vadd.f32 %v101, %v212
    %v214 = vpop.f32.mrf.mxu0
    %215 = vmatprep.mubr.bf16.mxu0 0
    %216 = vmatmul.mubr.bf16.gmra.mxu0 %v120
    %v217 = vpop.f32.mrf.mxu0
    %v218 = vadd.f32 %v101, %v217
    %v219 = vpop.f32.mrf.mxu0
    %v220 = vpop.f32.mrf.mxu0
    %v221 = vadd.f32 %v101, %v220
    %v222 = vpop.f32.mrf.mxu0
    %223 = vmatprep.mubr.bf16.mxu0 0
    %224 = vmatmul.mubr.bf16.gmra.mxu0 %v121
    %v225 = vpop.f32.mrf.mxu0
    %v226 = vadd.f32 %v101, %v225
    %v227 = vpop.f32.mrf.mxu0
    %v228 = vpop.f32.mrf.mxu0
    %v229 = vadd.f32 %v101, %v228
    %v230 = vpop.f32.mrf.mxu0
    %231 = vmatprep.mubr.bf16.mxu0 0
    %232 = vmatmul.mubr.bf16.gmra.mxu0 %v122
    %v233 = vpop.f32.mrf.mxu0
    %v234 = vadd.f32 %v101, %v233
    %v235 = vpop.f32.mrf.mxu0
    %v236 = vpop.f32.mrf.mxu0
    %v237 = vadd.f32 %v101, %v236
    %v238 = vpop.f32.mrf.mxu0
    %239 = vdwg.mxu0
    %v240 = vmax.f32 %v210, 0.0
    %v241 = vmax.f32 %v213, 0.0
    %v242 = vmax.f32 %v218, 0.0
    %v243 = vmax.f32 %v221, 0.0
    %v244 = vmax.f32 %v226, 0.0
    %v245 = vmax.f32 %v229, 0.0
    %v246 = vmax.f32 %v234, 0.0
    %v247 = vmax.f32 %v237, 0.0
    %v248 = vpack.c.bf16 %v241, %v240
    %v249 = vpack.c.bf16 %v243, %v242
    %v250 = vpack.c.bf16 %v245, %v244
    %v251 = vpack.c.bf16 %v247, %v246
    %v252 = vld [vmem:[#allocation6] sm:$0xf]
    %v253 = vld [vmem:[#allocation6 + $0x4] sm:$0xf]
    %v254 = vld [vmem:[#allocation6 + $0x8] sm:$0xf]
    %v255 = vld [vmem:[#allocation6 + $0xc] sm:$0xf]
    %v256 = vld [vmem:[#allocation6 + $0x10] sm:$0xf]
    %v257 = vld [vmem:[#allocation6 + $0x14] sm:$0xf]
    %v258 = vld [vmem:[#allocation6 + $0x18] sm:$0xf]
    %v259 = vld [vmem:[#allocation6 + $0x1c] sm:$0xf]
    %v260 = vld [vmem:[#allocation6 + $0x20] sm:$0xf]
    %v261 = vld [vmem:[#allocation6 + $0x24] sm:$0xf]
    %v262 = vld [vmem:[#allocation6 + $0x28] sm:$0xf]
    %v263 = vld [vmem:[#allocation6 + $0x2c] sm:$0xf]
    %v264 = vld [vmem:[#allocation6 + $0x30] sm:$0xf]
    %v265 = vld [vmem:[#allocation6 + $0x34] sm:$0xf]
    %v266 = vld [vmem:[#allocation6 + $0x38] sm:$0xf]
    %v267 = vld [vmem:[#allocation6 + $0x3c] sm:$0xf]
    %v268 = vld [vmem:[#allocation7] sm:$0x1]
    %v270 = vlaneseq
    %v271 = vshrl.u32 %v270, 7
    %v272 = vsub.s32 0, %v271
    %v273 = vrot.slane %v268, %v272
    %v291 = vunpack.c.l.b16 %v252
    %v292 = vunpack.c.l.b16 %v253
    %v293 = vunpack.c.l.b16 %v254
    %v294 = vunpack.c.l.b16 %v255
    %v295 = vunpack.c.l.b16 %v256
    %v296 = vunpack.c.l.b16 %v257
    %v297 = vunpack.c.l.b16 %v258
    %v298 = vunpack.c.l.b16 %v259
    %v299 = vunpack.c.l.b16 %v260
    %v300 = vunpack.c.l.b16 %v261
    %v301 = vunpack.c.l.b16 %v262
    %v302 = vunpack.c.l.b16 %v263
    %v303 = vunpack.c.l.b16 %v264
    %v304 = vunpack.c.l.b16 %v265
    %v305 = vunpack.c.l.b16 %v266
    %v306 = vunpack.c.l.b16 %v267
    %v307 = vpack.c.b16 %v292, %v291
    %v308 = vpack.c.b16 %v294, %v293
    %v309 = vpack.c.b16 %v296, %v295
    %v310 = vpack.c.b16 %v298, %v297
    %v311 = vpack.c.b16 %v300, %v299
    %v312 = vpack.c.b16 %v302, %v301
    %v313 = vpack.c.b16 %v304, %v303
    %v314 = vpack.c.b16 %v306, %v305
    %323 = vmatprep.subr.bf16.mxu0 0
    %324 = vmatpush1.bf16.msra.mxu0 %v314
    %325 = vmatprep.subr.bf16.mxu0 0
    %326 = vmatpush1.bf16.msra.mxu0 %v313
    %327 = vmatprep.subr.bf16.mxu0 0
    %328 = vmatpush1.bf16.msra.mxu0 %v312
    %329 = vmatprep.subr.bf16.mxu0 0
    %330 = vmatpush1.bf16.msra.mxu0 %v311
    %331 = vmatprep.subr.bf16.mxu0 0
    %332 = vmatpush1.bf16.msra.mxu0 %v310
    %333 = vmatprep.subr.bf16.mxu0 0
    %334 = vmatpush1.bf16.msra.mxu0 %v309
    %335 = vmatprep.subr.bf16.mxu0 0
    %336 = vmatpush1.bf16.msra.mxu0 %v308
    %337 = vmatprep.subr.bf16.mxu0 0
    %338 = vmatpush1.bf16.msra.mxu0 %v307
    %339 = vmatprep.subr.bf16.mxu0 0
    %340 = vmatpush2.bf16.msra.mxu0 0
    %341 = vmatprep.subr.bf16.mxu0 0
    %342 = vmatpush2.bf16.msra.mxu0 0
    %343 = vmatprep.subr.bf16.mxu0 0
    %344 = vmatpush2.bf16.msra.mxu0 0
    %345 = vmatprep.subr.bf16.mxu0 0
    %346 = vmatpush2.bf16.msra.mxu0 0
    %347 = vmatprep.subr.bf16.mxu0 0
    %348 = vmatpush2.bf16.msra.mxu0 0
    %349 = vmatprep.subr.bf16.mxu0 0
    %350 = vmatpush2.bf16.msra.mxu0 0
    %351 = vmatprep.subr.bf16.mxu0 0
    %352 = vmatpush2.bf16.msra.mxu0 0
    %353 = vmatprep.subr.bf16.mxu0 0
    %354 = vmatpush2.bf16.msra.mxu0 0
    %355 = vmatprep.mubr.bf16.mxu0 0
    %356 = vmatmul.mubr.bf16.gmra.mxu0 %v248
    %v357 = vpop.f32.mrf.mxu0
    %v358 = vadd.f32 %v273, %v357
    %v359 = vpop.f32.mrf.mxu0
    %v360 = vpop.f32.mrf.mxu0
    %v361 = vadd.f32 %v273, %v360
    %v362 = vpop.f32.mrf.mxu0
    %363 = vmatprep.mubr.bf16.mxu0 0
    %364 = vmatmul.mubr.bf16.gmra.mxu0 %v249
    %v365 = vpop.f32.mrf.mxu0
    %v366 = vadd.f32 %v273, %v365
    %v367 = vpop.f32.mrf.mxu0
    %v368 = vpop.f32.mrf.mxu0
    %v369 = vadd.f32 %v273, %v368
    %v370 = vpop.f32.mrf.mxu0
    %371 = vmatprep.mubr.bf16.mxu0 0
    %372 = vmatmul.mubr.bf16.gmra.mxu0 %v250
    %v373 = vpop.f32.mrf.mxu0
    %v374 = vadd.f32 %v273, %v373
    %v375 = vpop.f32.mrf.mxu0
    %v376 = vpop.f32.mrf.mxu0
    %v377 = vadd.f32 %v273, %v376
    %v378 = vpop.f32.mrf.mxu0
    %379 = vmatprep.mubr.bf16.mxu0 0
    %380 = vmatmul.mubr.bf16.gmra.mxu0 %v251
    %v381 = vpop.f32.mrf.mxu0
    %v382 = vadd.f32 %v273, %v381
    %v383 = vpop.f32.mrf.mxu0
    %v384 = vpop.f32.mrf.mxu0
    %v385 = vadd.f32 %v273, %v384
    %v386 = vpop.f32.mrf.mxu0
    %387 = vdwg.mxu0
    %v388 = vpack.c.bf16 %v361, %v358
    %v389 = vpack.c.bf16 %v369, %v366
    %v390 = vpack.c.bf16 %v377, %v374
    %v391 = vpack.c.bf16 %v385, %v382
    %v396 = vunpack.c.l.b16 %v388
    %v397 = vunpack.c.h.b16 %v388
    %v398 = vunpack.c.l.b16 %v389
    %v399 = vunpack.c.h.b16 %v389
    %v400 = vunpack.c.l.b16 %v390
    %v401 = vunpack.c.h.b16 %v390
    %v402 = vunpack.c.l.b16 %v391
    %v403 = vunpack.c.h.b16 %v391
    %v404 = vpack.c.b16 %v396, %v396
    %v405 = vpack.c.b16 %v397, %v397
    %v406 = vpack.c.b16 %v398, %v398
    %v407 = vpack.c.b16 %v399, %v399
    %v408 = vpack.c.b16 %v400, %v400
    %v409 = vpack.c.b16 %v401, %v401
    %v410 = vpack.c.b16 %v402, %v402
    %v411 = vpack.c.b16 %v403, %v403
    %420 = vst [vmem:[%s5] sm:$0xf] %v404
    %421 = vst [vmem:[%s5 + $0x4] sm:$0xf] %v405
    %422 = vst [vmem:[%s5 + $0x8] sm:$0xf] %v406
    %423 = vst [vmem:[%s5 + $0xc] sm:$0xf] %v407
    %424 = vst [vmem:[%s5 + $0x10] sm:$0xf] %v408
    %425 = vst [vmem:[%s5 + $0x14] sm:$0xf] %v409
    %426 = vst [vmem:[%s5 + $0x18] sm:$0xf] %v410
    %427 = vst [vmem:[%s5 + $0x1c] sm:$0xf] %v411
    // Predicated region
    $region38: #{tgat_forward.5} parent=1 // pred_check
      _
    $region39: #{tgat_forward.5} parent=1 // pred_check_branch
      %429 = sbr.rel (0) target = $region41
    $region40: #{tgat_forward.5} parent=1 // pred_region
      _
    $region41: #{tgat_forward.5} parent=1 // pred_fallthru
      _
    // Predicated region
    $region42: #{tgat_forward.5} parent=1 // pred_check
      _
    $region43: #{tgat_forward.5} parent=1 // pred_check_branch
      %431 = sbr.rel (0) target = $region45
    $region44: #{tgat_forward.5} parent=1 // pred_region
      _
    $region45: #{tgat_forward.5} parent=1 // pred_fallthru
      _
    %432 = vsyncpa [#allocation3], 1
    %433 = vsyncpa [#allocation5], 1
    %434 = vsyncpa [#allocation8], 1

// kernel: tgat_forward.6
$region0: #{tgat_forward.6}
  #allocation0 [shape = 'u32[]', space=smem, size = 0x4, offset = 0x4, fixed_abs, tag = 'smem constant byte address 0x4 - core index']
  #allocation1 [shape = 'u32[144,128]{1,0:T(1,128)}', space=vmem, size = 0x12000, scoped, tag = 'internal scratch']
  %s0 = inlined_call_operand.vmem [shape: bf16[1536,128], index: 0, kind: input, shape index: {}]
  %s1 = inlined_call_operand.vmem [shape: bf16[128,128], index: 1, kind: input, shape index: {}]
  %s2 = inlined_call_operand.vmem [shape: f32[1,128], index: 2, kind: input, shape index: {}]
  %s3 = inlined_call_operand.vmem [shape: bf16[128,128], index: 3, kind: input, shape index: {}]
  %s4 = inlined_call_operand.vmem [shape: f32[1,128], index: 4, kind: input, shape index: {}]
  %s5 = inlined_call_operand.vmem [shape: bf16[1536,128], index: 5, kind: output, shape index: {}]
  %s6 = sld [smem:[#allocation0]]
  $region53: #{tgat_forward.6} parent=0
    _
  %s8 = ssub.s32 1, %s6
  %s9 = scalar_select 0, %s8, %s6
  loop: start=0, step=1, limit=5
  $region2: #{tgat_forward.6} parent=0 // loop_pre_header
    _
  $region3: #{tgat_forward.6} parent=0 // loop_header
    %s11 = sphi 0, %s15
    %p12 = scmp.ge.s32.totalorder %s11, 5
    %s21 = sphi 0, %s23
    %s24 = sphi 0, %s21
    %s25 = sphi 0, %s24
    %s41 = sphi 0, %s25
    %s45 = sphi 0, %s45
    %s47 = sphi 0, %s45
    %s48 = sphi 0, %s47
    %s62 = sphi 0, %s48
    %s66 = sphi 0, %s66
    %s68 = sphi 0, %s66
    %s69 = sphi 0, %s68
    %s83 = sphi 0, %s69
    %s87 = sphi 0, %s87
    %s89 = sphi 0, %s87
    %s90 = sphi 0, %s89
    %s104 = sphi 0, %s90
    %s108 = sphi 0, %s108
    %s110 = sphi 0, %s108
    %s111 = sphi 0, %s110
    %s125 = sphi 0, %s111
    %s131 = sphi 0, %s133
    %s134 = sphi 0, %s131
    %s135 = sphi 0, %s134
    %s151 = sphi 0, %s135
  $region4: #{tgat_forward.6} parent=0 // loop_header_branch
    %14 = sbr.rel (%p12) target = $region8
  $region5: #{tgat_forward.6} parent=0 // loop_body
    %s16 = ssub.s32 %s11, 1
    %s17 = ssub.s32 %s11, 2
    %s18 = sadd.s32 %s11, 1
    %s19 = ssub.s32 %s11, %s18
    %p20 = scmp.eq.s32.totalorder %s19, 0
    %s22 = sadd.s32 %s21, 1
    %s23 = scalar_select %p20, %s21, %s22
    %p26 = pneg %p20
    %p27 = scmp.eq.s32.totalorder %s11, 2
    %p28 = por %p26, %p27
    %p29 = scmp.ne.s32.totalorder %s21, %s24
    %p30 = scmp.eq.s32.totalorder %s11, 0
    %p31 = por %p29, %p30
    %p32 = scmp.ne.s32.totalorder %s21, %s24
    %p33 = scmp.eq.s32.totalorder %s16, 2
    %p34 = por %p32, %p33
    %p35 = scmp.ne.s32.totalorder %s24, %s25
    %p36 = scmp.eq.s32.totalorder %s16, 0
    %p37 = por %p35, %p36
    %p38 = scmp.ne.s32.totalorder %s24, %s25
    %p39 = scmp.eq.s32.totalorder %s17, 2
    %p40 = por %p38, %p39
    %p42 = scmp.ne.s32.totalorder %s25, %s41
    %p43 = scmp.eq.s32.totalorder %s17, 0
    %p44 = por %p42, %p43
    %s46 = sadd.s32 %s45, 1
    %p49 = scmp.eq.s32.totalorder %s11, 2
    %p50 = scmp.ne.s32.totalorder %s45, %s47
    %p51 = scmp.eq.s32.totalorder %s11, 0
    %p52 = por %p50, %p51
    %p53 = scmp.ne.s32.totalorder %s45, %s47
    %p54 = scmp.eq.s32.totalorder %s16, 2
    %p55 = por %p53, %p54
    %p56 = scmp.ne.s32.totalorder %s47, %s48
    %p57 = scmp.eq.s32.totalorder %s16, 0
    %p58 = por %p56, %p57
    %p59 = scmp.ne.s32.totalorder %s47, %s48
    %p60 = scmp.eq.s32.totalorder %s17, 2
    %p61 = por %p59, %p60
    %p63 = scmp.ne.s32.totalorder %s48, %s62
    %p64 = scmp.eq.s32.totalorder %s17, 0
    %p65 = por %p63, %p64
    %s67 = sadd.s32 %s66, 1
    %p70 = scmp.eq.s32.totalorder %s11, 2
    %p71 = scmp.ne.s32.totalorder %s66, %s68
    %p72 = scmp.eq.s32.totalorder %s11, 0
    %p73 = por %p71, %p72
    %p74 = scmp.ne.s32.totalorder %s66, %s68
    %p75 = scmp.eq.s32.totalorder %s16, 2
    %p76 = por %p74, %p75
    %p77 = scmp.ne.s32.totalorder %s68, %s69
    %p78 = scmp.eq.s32.totalorder %s16, 0
    %p79 = por %p77, %p78
    %p80 = scmp.ne.s32.totalorder %s68, %s69
    %p81 = scmp.eq.s32.totalorder %s17, 2
    %p82 = por %p80, %p81
    %p84 = scmp.ne.s32.totalorder %s69, %s83
    %p85 = scmp.eq.s32.totalorder %s17, 0
    %p86 = por %p84, %p85
    %s88 = sadd.s32 %s87, 1
    %p91 = scmp.eq.s32.totalorder %s11, 2
    %p92 = scmp.ne.s32.totalorder %s87, %s89
    %p93 = scmp.eq.s32.totalorder %s11, 0
    %p94 = por %p92, %p93
    %p95 = scmp.ne.s32.totalorder %s87, %s89
    %p96 = scmp.eq.s32.totalorder %s16, 2
    %p97 = por %p95, %p96
    %p98 = scmp.ne.s32.totalorder %s89, %s90
    %p99 = scmp.eq.s32.totalorder %s16, 0
    %p100 = por %p98, %p99
    %p101 = scmp.ne.s32.totalorder %s89, %s90
    %p102 = scmp.eq.s32.totalorder %s17, 2
    %p103 = por %p101, %p102
    %p105 = scmp.ne.s32.totalorder %s90, %s104
    %p106 = scmp.eq.s32.totalorder %s17, 0
    %p107 = por %p105, %p106
    %s109 = sadd.s32 %s108, 1
    %p112 = scmp.eq.s32.totalorder %s11, 2
    %p113 = scmp.ne.s32.totalorder %s108, %s110
    %p114 = scmp.eq.s32.totalorder %s11, 0
    %p115 = por %p113, %p114
    %p116 = scmp.ne.s32.totalorder %s108, %s110
    %p117 = scmp.eq.s32.totalorder %s16, 2
    %p118 = por %p116, %p117
    %p119 = scmp.ne.s32.totalorder %s110, %s111
    %p120 = scmp.eq.s32.totalorder %s16, 0
    %p121 = por %p119, %p120
    %p122 = scmp.ne.s32.totalorder %s110, %s111
    %p123 = scmp.eq.s32.totalorder %s17, 2
    %p124 = por %p122, %p123
    %p126 = scmp.ne.s32.totalorder %s111, %s125
    %p127 = scmp.eq.s32.totalorder %s17, 0
    %p128 = por %p126, %p127
    %s129 = ssub.s32 %s11, %s18
    %p130 = scmp.eq.s32.totalorder %s129, 0
    %s132 = sadd.s32 %s131, 1
    %s133 = scalar_select %p130, %s131, %s132
    %p136 = pneg %p130
    %p137 = scmp.eq.s32.totalorder %s11, 2
    %p138 = por %p136, %p137
    %p139 = scmp.ne.s32.totalorder %s131, %s134
    %p140 = scmp.eq.s32.totalorder %s11, 0
    %p141 = por %p139, %p140
    %p142 = scmp.ne.s32.totalorder %s131, %s134
    %p143 = scmp.eq.s32.totalorder %s16, 2
    %p144 = por %p142, %p143
    %p145 = scmp.ne.s32.totalorder %s134, %s135
    %p146 = scmp.eq.s32.totalorder %s16, 0
    %p147 = por %p145, %p146
    %p148 = scmp.ne.s32.totalorder %s134, %s135
    %p149 = scmp.eq.s32.totalorder %s17, 2
    %p150 = por %p148, %p149
    %p152 = scmp.ne.s32.totalorder %s135, %s151
    %p153 = scmp.eq.s32.totalorder %s17, 0
    %p154 = por %p152, %p153
    %p155 = scmp.le.s32.totalorder 1, %s11
    %p156 = scmp.lt.s32.totalorder %s11, 4
    %p157 = pnand %p155, %p156
    %p158 = pneg %p157
    // Predicated region
    $region9: #{tgat_forward.6} parent=5 // pred_check
      _
    $region10: #{tgat_forward.6} parent=5 // pred_check_branch
      %160 = sbr.rel (%p157) target = $region12
    $region11: #{tgat_forward.6} parent=5 // pred_region
      %s161 = ssub.s32 %s11, 1
      // Predicated region
      $region13: #{tgat_forward.6} parent=11 // pred_check
        %p162 = pneg %p58
      $region14: #{tgat_forward.6} parent=11 // pred_check_branch
        %164 = sbr.rel (%p162) target = $region16
      $region15: #{tgat_forward.6} parent=11 // pred_region
        _
      $region16: #{tgat_forward.6} parent=11 // pred_fallthru
        _
      // Predicated region
      $region17: #{tgat_forward.6} parent=11 // pred_check
        %p165 = pneg %p79
      $region18: #{tgat_forward.6} parent=11 // pred_check_branch
        %167 = sbr.rel (%p165) target = $region20
      $region19: #{tgat_forward.6} parent=11 // pred_region
        _
      $region20: #{tgat_forward.6} parent=11 // pred_fallthru
        _
      // Predicated region
      $region21: #{tgat_forward.6} parent=11 // pred_check
        %p168 = pneg %p100
      $region22: #{tgat_forward.6} parent=11 // pred_check_branch
        %170 = sbr.rel (%p168) target = $region24
      $region23: #{tgat_forward.6} parent=11 // pred_region
        _
      $region24: #{tgat_forward.6} parent=11 // pred_fallthru
        _
      // Predicated region
      $region25: #{tgat_forward.6} parent=11 // pred_check
        %p171 = pneg %p121
      $region26: #{tgat_forward.6} parent=11 // pred_check_branch
        %173 = sbr.rel (%p171) target = $region28
      $region27: #{tgat_forward.6} parent=11 // pred_region
        _
      $region28: #{tgat_forward.6} parent=11 // pred_fallthru
        _
    $region12: #{tgat_forward.6} parent=5 // pred_fallthru
      _
    %p174 = scmp.lt.s32.totalorder %s11, 3
    // Predicated region
    $region29: #{tgat_forward.6} parent=5 // pred_check
      %p175 = pneg %p174
    $region30: #{tgat_forward.6} parent=5 // pred_check_branch
      %177 = sbr.rel (%p175) target = $region32
    $region31: #{tgat_forward.6} parent=5 // pred_region
      // Predicated region
      $region33: #{tgat_forward.6} parent=31 // pred_check
        %p178 = pneg %p31
      $region34: #{tgat_forward.6} parent=31 // pred_check_branch
        %180 = sbr.rel (%p178) target = $region36
      $region35: #{tgat_forward.6} parent=31 // pred_region
        %s181 = smul.u32 64, %s11
        %p182 = scmp.lt.s32.totalorder %s181, 191
        %s183 = scalar_select %p182, %s181, 191
        %s184 = smul.addr %s183, 4
        %s185 = scalar_lea.vmem %s0, %s184
        %s186 = smul.u32 64, %s11
      $region36: #{tgat_forward.6} parent=31 // pred_fallthru
        _
    $region32: #{tgat_forward.6} parent=5 // pred_fallthru
      _
    %p187 = scmp.le.s32.totalorder 1, %s11
    %p188 = scmp.lt.s32.totalorder %s11, 4
    %p189 = pnand %p187, %p188
    %p190 = pneg %p189
    // Predicated region
    $region37: #{tgat_forward.6} parent=5 // pred_check
      _
    $region38: #{tgat_forward.6} parent=5 // pred_check_branch
      %192 = sbr.rel (%p189) target = $region40
    $region39: #{tgat_forward.6} parent=5 // pred_region
      %s193 = ssub.s32 %s11, 1
      %s194 = smul.u32 64, %s16
      %p195 = scmp.lt.s32.totalorder %s194, 191
      %s196 = scalar_select %p195, %s194, 191
      %s197 = smul.addr %s196, 4
      %s198 = scalar_lea.vmem %s0, %s197
      %p199 = pneg %p37
      %p200 = pneg %p34
      %p201 = pneg %p58
      %p202 = pneg %p55
      %p203 = pneg %p79
      %p204 = pneg %p76
      %p205 = pneg %p100
      %p206 = pneg %p97
      %p207 = pneg %p121
      %p208 = pneg %p118
      %p209 = pneg %p147
      %p210 = pneg %p144
      %s211 = smul.u32 64, %s16
      %p212 = scmp.lt.s32.totalorder %s211, 191
      %s213 = scalar_select %p212, %s211, 191
      %s214 = smul.addr %s213, 4
      %s215 = scalar_lea.vmem %s5, %s214
      %s216 = smul.u32 64, %s16
      %p217 = scmp.lt.s32.totalorder %s216, 191
      %s218 = scalar_select %p217, %s216, 191
      %s219 = smul.addr %s218, 4
      %s220 = scalar_lea.vmem %s0, %s219
      %s221 = smul.u32 64, %s16
      %s222 = smul.u32 64, %s16
      %p223 = scmp.lt.s32.totalorder %s222, 191
      %s224 = scalar_select %p223, %s222, 191
      %s225 = smul.addr %s224, 4
      %s226 = scalar_lea.vmem %s5, %s225
      %s227 = smul.u32 64, %s16
      %v229 = vld [vmem:[%s220] sm:$0xf]
      %v230 = vld [vmem:[%s220 + $0x4] sm:$0xf]
      %v231 = vld [vmem:[%s220 + $0x8] sm:$0xf]
      %v232 = vld [vmem:[%s220 + $0xc] sm:$0xf]
      %v233 = vld [vmem:[%s220 + $0x10] sm:$0xf]
      %v234 = vld [vmem:[%s220 + $0x14] sm:$0xf]
      %v235 = vld [vmem:[%s220 + $0x18] sm:$0xf]
      %v236 = vld [vmem:[%s220 + $0x1c] sm:$0xf]
      %v237 = vld [vmem:[%s220 + $0x20] sm:$0xf]
      %v238 = vld [vmem:[%s220 + $0x24] sm:$0xf]
      %v239 = vld [vmem:[%s220 + $0x28] sm:$0xf]
      %v240 = vld [vmem:[%s220 + $0x2c] sm:$0xf]
      %v241 = vld [vmem:[%s220 + $0x30] sm:$0xf]
      %v242 = vld [vmem:[%s220 + $0x34] sm:$0xf]
      %v243 = vld [vmem:[%s220 + $0x38] sm:$0xf]
      %v244 = vld [vmem:[%s220 + $0x3c] sm:$0xf]
      %v245 = vld [vmem:[%s220 + $0x40] sm:$0xf]
      %v246 = vld [vmem:[%s220 + $0x44] sm:$0xf]
      %v247 = vld [vmem:[%s220 + $0x48] sm:$0xf]
      %v248 = vld [vmem:[%s220 + $0x4c] sm:$0xf]
      %v249 = vld [vmem:[%s220 + $0x50] sm:$0xf]
      %v250 = vld [vmem:[%s220 + $0x54] sm:$0xf]
      %v251 = vld [vmem:[%s220 + $0x58] sm:$0xf]
      %v252 = vld [vmem:[%s220 + $0x5c] sm:$0xf]
      %v253 = vld [vmem:[%s220 + $0x60] sm:$0xf]
      %v254 = vld [vmem:[%s220 + $0x64] sm:$0xf]
      %v255 = vld [vmem:[%s220 + $0x68] sm:$0xf]
      %v256 = vld [vmem:[%s220 + $0x6c] sm:$0xf]
      %v257 = vld [vmem:[%s220 + $0x70] sm:$0xf]
      %v258 = vld [vmem:[%s220 + $0x74] sm:$0xf]
      %v259 = vld [vmem:[%s220 + $0x78] sm:$0xf]
      %v260 = vld [vmem:[%s220 + $0x7c] sm:$0xf]
      %v261 = vld [vmem:[%s220 + $0x80] sm:$0xf]
      %v262 = vld [vmem:[%s220 + $0x84] sm:$0xf]
      %v263 = vld [vmem:[%s220 + $0x88] sm:$0xf]
      %v264 = vld [vmem:[%s220 + $0x8c] sm:$0xf]
      %v265 = vld [vmem:[%s220 + $0x90] sm:$0xf]
      %v266 = vld [vmem:[%s220 + $0x94] sm:$0xf]
      %v267 = vld [vmem:[%s220 + $0x98] sm:$0xf]
      %v268 = vld [vmem:[%s220 + $0x9c] sm:$0xf]
      %v269 = vld [vmem:[%s220 + $0xa0] sm:$0xf]
      %v270 = vld [vmem:[%s220 + $0xa4] sm:$0xf]
      %v271 = vld [vmem:[%s220 + $0xa8] sm:$0xf]
      %v272 = vld [vmem:[%s220 + $0xac] sm:$0xf]
      %v273 = vld [vmem:[%s220 + $0xb0] sm:$0xf]
      %v274 = vld [vmem:[%s220 + $0xb4] sm:$0xf]
      %v275 = vld [vmem:[%s220 + $0xb8] sm:$0xf]
      %v276 = vld [vmem:[%s220 + $0xbc] sm:$0xf]
      %v277 = vld [vmem:[%s220 + $0xc0] sm:$0xf]
      %v278 = vld [vmem:[%s220 + $0xc4] sm:$0xf]
      %v279 = vld [vmem:[%s220 + $0xc8] sm:$0xf]
      %v280 = vld [vmem:[%s220 + $0xcc] sm:$0xf]
      %v281 = vld [vmem:[%s220 + $0xd0] sm:$0xf]
      %v282 = vld [vmem:[%s220 + $0xd4] sm:$0xf]
      %v283 = vld [vmem:[%s220 + $0xd8] sm:$0xf]
      %v284 = vld [vmem:[%s220 + $0xdc] sm:$0xf]
      %v285 = vld [vmem:[%s220 + $0xe0] sm:$0xf]
      %v286 = vld [vmem:[%s220 + $0xe4] sm:$0xf]
      %v287 = vld [vmem:[%s220 + $0xe8] sm:$0xf]
      %v288 = vld [vmem:[%s220 + $0xec] sm:$0xf]
      %v289 = vld [vmem:[%s220 + $0xf0] sm:$0xf]
      %v290 = vld [vmem:[%s220 + $0xf4] sm:$0xf]
      %v291 = vld [vmem:[%s220 + $0xf8] sm:$0xf]
      %v292 = vld [vmem:[%s220 + $0xfc] sm:$0xf]
      %v293 = vld [vmem:[%s1] sm:$0xf]
      %v294 = vld [vmem:[%s1 + $0x4] sm:$0xf]
      %v295 = vld [vmem:[%s1 + $0x8] sm:$0xf]
      %v296 = vld [vmem:[%s1 + $0xc] sm:$0xf]
      %v297 = vld [vmem:[%s1 + $0x10] sm:$0xf]
      %v298 = vld [vmem:[%s1 + $0x14] sm:$0xf]
      %v299 = vld [vmem:[%s1 + $0x18] sm:$0xf]
      %v300 = vld [vmem:[%s1 + $0x1c] sm:$0xf]
      %v301 = vld [vmem:[%s1 + $0x20] sm:$0xf]
      %v302 = vld [vmem:[%s1 + $0x24] sm:$0xf]
      %v303 = vld [vmem:[%s1 + $0x28] sm:$0xf]
      %v304 = vld [vmem:[%s1 + $0x2c] sm:$0xf]
      %v305 = vld [vmem:[%s1 + $0x30] sm:$0xf]
      %v306 = vld [vmem:[%s1 + $0x34] sm:$0xf]
      %v307 = vld [vmem:[%s1 + $0x38] sm:$0xf]
      %v308 = vld [vmem:[%s1 + $0x3c] sm:$0xf]
      %v309 = vld [vmem:[%s2] sm:$0x1]
      %v311 = vlaneseq
      %v312 = vshrl.u32 %v311, 7
      %v313 = vsub.s32 0, %v312
      %v314 = vrot.slane %v309, %v313
      %v380 = vunpack.c.l.b16 %v229
      %v381 = vunpack.c.l.b16 %v230
      %v382 = vunpack.c.l.b16 %v231
      %v383 = vunpack.c.l.b16 %v232
      %v384 = vunpack.c.l.b16 %v233
      %v385 = vunpack.c.l.b16 %v234
      %v386 = vunpack.c.l.b16 %v235
      %v387 = vunpack.c.l.b16 %v236
      %v388 = vunpack.c.l.b16 %v237
      %v389 = vunpack.c.l.b16 %v238
      %v390 = vunpack.c.l.b16 %v239
      %v391 = vunpack.c.l.b16 %v240
      %v392 = vunpack.c.l.b16 %v241
      %v393 = vunpack.c.l.b16 %v242
      %v394 = vunpack.c.l.b16 %v243
      %v395 = vunpack.c.l.b16 %v244
      %v396 = vunpack.c.l.b16 %v245
      %v397 = vunpack.c.l.b16 %v246
      %v398 = vunpack.c.l.b16 %v247
      %v399 = vunpack.c.l.b16 %v248
      %v400 = vunpack.c.l.b16 %v249
      %v401 = vunpack.c.l.b16 %v250
      %v402 = vunpack.c.l.b16 %v251
      %v403 = vunpack.c.l.b16 %v252
      %v404 = vunpack.c.l.b16 %v253
      %v405 = vunpack.c.l.b16 %v254
      %v406 = vunpack.c.l.b16 %v255
      %v407 = vunpack.c.l.b16 %v256
      %v408 = vunpack.c.l.b16 %v257
      %v409 = vunpack.c.l.b16 %v258
      %v410 = vunpack.c.l.b16 %v259
      %v411 = vunpack.c.l.b16 %v260
      %v412 = vunpack.c.l.b16 %v261
      %v413 = vunpack.c.l.b16 %v262
      %v414 = vunpack.c.l.b16 %v263
      %v415 = vunpack.c.l.b16 %v264
      %v416 = vunpack.c.l.b16 %v265
      %v417 = vunpack.c.l.b16 %v266
      %v418 = vunpack.c.l.b16 %v267
      %v419 = vunpack.c.l.b16 %v268
      %v420 = vunpack.c.l.b16 %v269
      %v421 = vunpack.c.l.b16 %v270
      %v422 = vunpack.c.l.b16 %v271
      %v423 = vunpack.c.l.b16 %v272
      %v424 = vunpack.c.l.b16 %v273
      %v425 = vunpack.c.l.b16 %v274
      %v426 = vunpack.c.l.b16 %v275
      %v427 = vunpack.c.l.b16 %v276
      %v428 = vunpack.c.l.b16 %v277
      %v429 = vunpack.c.l.b16 %v278
      %v430 = vunpack.c.l.b16 %v279
      %v431 = vunpack.c.l.b16 %v280
      %v432 = vunpack.c.l.b16 %v281
      %v433 = vunpack.c.l.b16 %v282
      %v434 = vunpack.c.l.b16 %v283
      %v435 = vunpack.c.l.b16 %v284
      %v436 = vunpack.c.l.b16 %v285
      %v437 = vunpack.c.l.b16 %v286
      %v438 = vunpack.c.l.b16 %v287
      %v439 = vunpack.c.l.b16 %v288
      %v440 = vunpack.c.l.b16 %v289
      %v441 = vunpack.c.l.b16 %v290
      %v442 = vunpack.c.l.b16 %v291
      %v443 = vunpack.c.l.b16 %v292
      %v444 = vpack.c.b16 %v381, %v380
      %v445 = vpack.c.b16 %v383, %v382
      %v446 = vpack.c.b16 %v385, %v384
      %v447 = vpack.c.b16 %v387, %v386
      %v448 = vpack.c.b16 %v389, %v388
      %v449 = vpack.c.b16 %v391, %v390
      %v450 = vpack.c.b16 %v393, %v392
      %v451 = vpack.c.b16 %v395, %v394
      %v452 = vpack.c.b16 %v397, %v396
      %v453 = vpack.c.b16 %v399, %v398
      %v454 = vpack.c.b16 %v401, %v400
      %v455 = vpack.c.b16 %v403, %v402
      %v456 = vpack.c.b16 %v405, %v404
      %v457 = vpack.c.b16 %v407, %v406
      %v458 = vpack.c.b16 %v409, %v408
      %v459 = vpack.c.b16 %v411, %v410
      %v460 = vpack.c.b16 %v413, %v412
      %v461 = vpack.c.b16 %v415, %v414
      %v462 = vpack.c.b16 %v417, %v416
      %v463 = vpack.c.b16 %v419, %v418
      %v464 = vpack.c.b16 %v421, %v420
      %v465 = vpack.c.b16 %v423, %v422
      %v466 = vpack.c.b16 %v425, %v424
      %v467 = vpack.c.b16 %v427, %v426
      %v468 = vpack.c.b16 %v429, %v428
      %v469 = vpack.c.b16 %v431, %v430
      %v470 = vpack.c.b16 %v433, %v432
      %v471 = vpack.c.b16 %v435, %v434
      %v472 = vpack.c.b16 %v437, %v436
      %v473 = vpack.c.b16 %v439, %v438
      %v474 = vpack.c.b16 %v441, %v440
      %v475 = vpack.c.b16 %v443, %v442
      %v524 = vunpack.c.l.b16 %v293
      %v525 = vunpack.c.l.b16 %v294
      %v526 = vunpack.c.l.b16 %v295
      %v527 = vunpack.c.l.b16 %v296
      %v528 = vunpack.c.l.b16 %v297
      %v529 = vunpack.c.l.b16 %v298
      %v530 = vunpack.c.l.b16 %v299
      %v531 = vunpack.c.l.b16 %v300
      %v532 = vunpack.c.l.b16 %v301
      %v533 = vunpack.c.l.b16 %v302
      %v534 = vunpack.c.l.b16 %v303
      %v535 = vunpack.c.l.b16 %v304
      %v536 = vunpack.c.l.b16 %v305
      %v537 = vunpack.c.l.b16 %v306
      %v538 = vunpack.c.l.b16 %v307
      %v539 = vunpack.c.l.b16 %v308
      %v540 = vpack.c.b16 %v525, %v524
      %v541 = vpack.c.b16 %v527, %v526
      %v542 = vpack.c.b16 %v529, %v528
      %v543 = vpack.c.b16 %v531, %v530
      %v544 = vpack.c.b16 %v533, %v532
      %v545 = vpack.c.b16 %v535, %v534
      %v546 = vpack.c.b16 %v537, %v536
      %v547 = vpack.c.b16 %v539, %v538
      %556 = vmatprep.subr.bf16.mxu0 0
      %557 = vmatpush1.bf16.msra.mxu0 %v547
      %558 = vmatprep.subr.bf16.mxu0 0
      %559 = vmatpush1.bf16.msra.mxu0 %v546
      %560 = vmatprep.subr.bf16.mxu0 0
      %561 = vmatpush1.bf16.msra.mxu0 %v545
      %562 = vmatprep.subr.bf16.mxu0 0
      %563 = vmatpush1.bf16.msra.mxu0 %v544
      %564 = vmatprep.subr.bf16.mxu0 0
      %565 = vmatpush1.bf16.msra.mxu0 %v543
      %566 = vmatprep.subr.bf16.mxu0 0
      %567 = vmatpush1.bf16.msra.mxu0 %v542
      %568 = vmatprep.subr.bf16.mxu0 0
      %569 = vmatpush1.bf16.msra.mxu0 %v541
      %570 = vmatprep.subr.bf16.mxu0 0
      %571 = vmatpush1.bf16.msra.mxu0 %v540
      %572 = vmatprep.subr.bf16.mxu0 0
      %573 = vmatpush2.bf16.msra.mxu0 0
      %574 = vmatprep.subr.bf16.mxu0 0
      %575 = vmatpush2.bf16.msra.mxu0 0
      %576 = vmatprep.subr.bf16.mxu0 0
      %577 = vmatpush2.bf16.msra.mxu0 0
      %578 = vmatprep.subr.bf16.mxu0 0
      %579 = vmatpush2.bf16.msra.mxu0 0
      %580 = vmatprep.subr.bf16.mxu0 0
      %581 = vmatpush2.bf16.msra.mxu0 0
      %582 = vmatprep.subr.bf16.mxu0 0
      %583 = vmatpush2.bf16.msra.mxu0 0
      %584 = vmatprep.subr.bf16.mxu0 0
      %585 = vmatpush2.bf16.msra.mxu0 0
      %586 = vmatprep.subr.bf16.mxu0 0
      %587 = vmatpush2.bf16.msra.mxu0 0
      %588 = vmatprep.mubr.bf16.mxu0 0
      %589 = vmatmul.mubr.bf16.gmra.mxu0 %v444
      %v590 = vpop.f32.mrf.mxu0
      %v591 = vadd.f32 %v314, %v590
      %v592 = vpop.f32.mrf.mxu0
      %v593 = vpop.f32.mrf.mxu0
      %v594 = vadd.f32 %v314, %v593
      %v595 = vpop.f32.mrf.mxu0
      %596 = vmatprep.mubr.bf16.mxu0 0
      %597 = vmatmul.mubr.bf16.gmra.mxu0 %v445
      %v598 = vpop.f32.mrf.mxu0
      %v599 = vadd.f32 %v314, %v598
      %v600 = vpop.f32.mrf.mxu0
      %v601 = vpop.f32.mrf.mxu0
      %v602 = vadd.f32 %v314, %v601
      %v603 = vpop.f32.mrf.mxu0
      %604 = vmatprep.mubr.bf16.mxu0 0
      %605 = vmatmul.mubr.bf16.gmra.mxu0 %v446
      %v606 = vpop.f32.mrf.mxu0
      %v607 = vadd.f32 %v314, %v606
      %v608 = vpop.f32.mrf.mxu0
      %v609 = vpop.f32.mrf.mxu0
      %v610 = vadd.f32 %v314, %v609
      %v611 = vpop.f32.mrf.mxu0
      %612 = vmatprep.mubr.bf16.mxu0 0
      %613 = vmatmul.mubr.bf16.gmra.mxu0 %v447
      %v614 = vpop.f32.mrf.mxu0
      %v615 = vadd.f32 %v314, %v614
      %v616 = vpop.f32.mrf.mxu0
      %v617 = vpop.f32.mrf.mxu0
      %v618 = vadd.f32 %v314, %v617
      %v619 = vpop.f32.mrf.mxu0
      %620 = vmatprep.mubr.bf16.mxu0 0
      %621 = vmatmul.mubr.bf16.gmra.mxu0 %v448
      %v622 = vpop.f32.mrf.mxu0
      %v623 = vadd.f32 %v314, %v622
      %v624 = vpop.f32.mrf.mxu0
      %v625 = vpop.f32.mrf.mxu0
      %v626 = vadd.f32 %v314, %v625
      %v627 = vpop.f32.mrf.mxu0
      %628 = vmatprep.mubr.bf16.mxu0 0
      %629 = vmatmul.mubr.bf16.gmra.mxu0 %v449
      %v630 = vpop.f32.mrf.mxu0
      %v631 = vadd.f32 %v314, %v630
      %v632 = vpop.f32.mrf.mxu0
      %v633 = vpop.f32.mrf.mxu0
      %v634 = vadd.f32 %v314, %v633
      %v635 = vpop.f32.mrf.mxu0
      %636 = vmatprep.mubr.bf16.mxu0 0
      %637 = vmatmul.mubr.bf16.gmra.mxu0 %v450
      %v638 = vpop.f32.mrf.mxu0
      %v639 = vadd.f32 %v314, %v638
      %v640 = vpop.f32.mrf.mxu0
      %v641 = vpop.f32.mrf.mxu0
      %v642 = vadd.f32 %v314, %v641
      %v643 = vpop.f32.mrf.mxu0
      %644 = vmatprep.mubr.bf16.mxu0 0
      %645 = vmatmul.mubr.bf16.gmra.mxu0 %v451
      %v646 = vpop.f32.mrf.mxu0
      %v647 = vadd.f32 %v314, %v646
      %v648 = vpop.f32.mrf.mxu0
      %v649 = vpop.f32.mrf.mxu0
      %v650 = vadd.f32 %v314, %v649
      %v651 = vpop.f32.mrf.mxu0
      %652 = vmatprep.mubr.bf16.mxu0 0
      %653 = vmatmul.mubr.bf16.gmra.mxu0 %v452
      %v654 = vpop.f32.mrf.mxu0
      %v655 = vadd.f32 %v314, %v654
      %v656 = vpop.f32.mrf.mxu0
      %v657 = vpop.f32.mrf.mxu0
      %v658 = vadd.f32 %v314, %v657
      %v659 = vpop.f32.mrf.mxu0
      %660 = vmatprep.mubr.bf16.mxu0 0
      %661 = vmatmul.mubr.bf16.gmra.mxu0 %v453
      %v662 = vpop.f32.mrf.mxu0
      %v663 = vadd.f32 %v314, %v662
      %v664 = vpop.f32.mrf.mxu0
      %v665 = vpop.f32.mrf.mxu0
      %v666 = vadd.f32 %v314, %v665
      %v667 = vpop.f32.mrf.mxu0
      %668 = vmatprep.mubr.bf16.mxu0 0
      %669 = vmatmul.mubr.bf16.gmra.mxu0 %v454
      %v670 = vpop.f32.mrf.mxu0
      %v671 = vadd.f32 %v314, %v670
      %v672 = vpop.f32.mrf.mxu0
      %v673 = vpop.f32.mrf.mxu0
      %v674 = vadd.f32 %v314, %v673
      %v675 = vpop.f32.mrf.mxu0
      %676 = vmatprep.mubr.bf16.mxu0 0
      %677 = vmatmul.mubr.bf16.gmra.mxu0 %v455
      %v678 = vpop.f32.mrf.mxu0
      %v679 = vadd.f32 %v314, %v678
      %v680 = vpop.f32.mrf.mxu0
      %v681 = vpop.f32.mrf.mxu0
      %v682 = vadd.f32 %v314, %v681
      %v683 = vpop.f32.mrf.mxu0
      %684 = vmatprep.mubr.bf16.mxu0 0
      %685 = vmatmul.mubr.bf16.gmra.mxu0 %v456
      %v686 = vpop.f32.mrf.mxu0
      %v687 = vadd.f32 %v314, %v686
      %v688 = vpop.f32.mrf.mxu0
      %v689 = vpop.f32.mrf.mxu0
      %v690 = vadd.f32 %v314, %v689
      %v691 = vpop.f32.mrf.mxu0
      %692 = vmatprep.mubr.bf16.mxu0 0
      %693 = vmatmul.mubr.bf16.gmra.mxu0 %v457
      %v694 = vpop.f32.mrf.mxu0
      %v695 = vadd.f32 %v314, %v694
      %v696 = vpop.f32.mrf.mxu0
      %v697 = vpop.f32.mrf.mxu0
      %v698 = vadd.f32 %v314, %v697
      %v699 = vpop.f32.mrf.mxu0
      %700 = vmatprep.mubr.bf16.mxu0 0
      %701 = vmatmul.mubr.bf16.gmra.mxu0 %v458
      %v702 = vpop.f32.mrf.mxu0
      %v703 = vadd.f32 %v314, %v702
      %v704 = vpop.f32.mrf.mxu0
      %v705 = vpop.f32.mrf.mxu0
      %v706 = vadd.f32 %v314, %v705
      %v707 = vpop.f32.mrf.mxu0
      %708 = vmatprep.mubr.bf16.mxu0 0
      %709 = vmatmul.mubr.bf16.gmra.mxu0 %v459
      %v710 = vpop.f32.mrf.mxu0
      %v711 = vadd.f32 %v314, %v710
      %v712 = vpop.f32.mrf.mxu0
      %v713 = vpop.f32.mrf.mxu0
      %v714 = vadd.f32 %v314, %v713
      %v715 = vpop.f32.mrf.mxu0
      %716 = vmatprep.mubr.bf16.mxu0 0
      %717 = vmatmul.mubr.bf16.gmra.mxu0 %v460
      %v718 = vpop.f32.mrf.mxu0
      %v719 = vadd.f32 %v314, %v718
      %v720 = vpop.f32.mrf.mxu0
      %v721 = vpop.f32.mrf.mxu0
      %v722 = vadd.f32 %v314, %v721
      %v723 = vpop.f32.mrf.mxu0
      %724 = vmatprep.mubr.bf16.mxu0 0
      %725 = vmatmul.mubr.bf16.gmra.mxu0 %v461
      %v726 = vpop.f32.mrf.mxu0
      %v727 = vadd.f32 %v314, %v726
      %v728 = vpop.f32.mrf.mxu0
      %v729 = vpop.f32.mrf.mxu0
      %v730 = vadd.f32 %v314, %v729
      %v731 = vpop.f32.mrf.mxu0
      %732 = vmatprep.mubr.bf16.mxu0 0
      %733 = vmatmul.mubr.bf16.gmra.mxu0 %v462
      %v734 = vpop.f32.mrf.mxu0
      %v735 = vadd.f32 %v314, %v734
      %v736 = vpop.f32.mrf.mxu0
      %v737 = vpop.f32.mrf.mxu0
      %v738 = vadd.f32 %v314, %v737
      %v739 = vpop.f32.mrf.mxu0
      %740 = vmatprep.mubr.bf16.mxu0 0
      %741 = vmatmul.mubr.bf16.gmra.mxu0 %v463
      %v742 = vpop.f32.mrf.mxu0
      %v743 = vadd.f32 %v314, %v742
      %v744 = vpop.f32.mrf.mxu0
      %v745 = vpop.f32.mrf.mxu0
      %v746 = vadd.f32 %v314, %v745
      %v747 = vpop.f32.mrf.mxu0
      %748 = vmatprep.mubr.bf16.mxu0 0
      %749 = vmatmul.mubr.bf16.gmra.mxu0 %v464
      %v750 = vpop.f32.mrf.mxu0
      %v751 = vadd.f32 %v314, %v750
      %v752 = vpop.f32.mrf.mxu0
      %v753 = vpop.f32.mrf.mxu0
      %v754 = vadd.f32 %v314, %v753
      %v755 = vpop.f32.mrf.mxu0
      %756 = vmatprep.mubr.bf16.mxu0 0
      %757 = vmatmul.mubr.bf16.gmra.mxu0 %v465
      %v758 = vpop.f32.mrf.mxu0
      %v759 = vadd.f32 %v314, %v758
      %v760 = vpop.f32.mrf.mxu0
      %v761 = vpop.f32.mrf.mxu0
      %v762 = vadd.f32 %v314, %v761
      %v763 = vpop.f32.mrf.mxu0
      %764 = vmatprep.mubr.bf16.mxu0 0
      %765 = vmatmul.mubr.bf16.gmra.mxu0 %v466
      %v766 = vpop.f32.mrf.mxu0
      %v767 = vadd.f32 %v314, %v766
      %v768 = vpop.f32.mrf.mxu0
      %v769 = vpop.f32.mrf.mxu0
      %v770 = vadd.f32 %v314, %v769
      %v771 = vpop.f32.mrf.mxu0
      %772 = vmatprep.mubr.bf16.mxu0 0
      %773 = vmatmul.mubr.bf16.gmra.mxu0 %v467
      %v774 = vpop.f32.mrf.mxu0
      %v775 = vadd.f32 %v314, %v774
      %v776 = vpop.f32.mrf.mxu0
      %v777 = vpop.f32.mrf.mxu0
      %v778 = vadd.f32 %v314, %v777
      %v779 = vpop.f32.mrf.mxu0
      %780 = vmatprep.mubr.bf16.mxu0 0
      %781 = vmatmul.mubr.bf16.gmra.mxu0 %v468
      %v782 = vpop.f32.mrf.mxu0
      %v783 = vadd.f32 %v314, %v782
      %v784 = vpop.f32.mrf.mxu0
      %v785 = vpop.f32.mrf.mxu0
      %v786 = vadd.f32 %v314, %v785
      %v787 = vpop.f32.mrf.mxu0
      %788 = vmatprep.mubr.bf16.mxu0 0
      %789 = vmatmul.mubr.bf16.gmra.mxu0 %v469
      %v790 = vpop.f32.mrf.mxu0
      %v791 = vadd.f32 %v314, %v790
      %v792 = vpop.f32.mrf.mxu0
      %v793 = vpop.f32.mrf.mxu0
      %v794 = vadd.f32 %v314, %v793
      %v795 = vpop.f32.mrf.mxu0
      %796 = vmatprep.mubr.bf16.mxu0 0
      %797 = vmatmul.mubr.bf16.gmra.mxu0 %v470
      %v798 = vpop.f32.mrf.mxu0
      %v799 = vadd.f32 %v314, %v798
      %v800 = vpop.f32.mrf.mxu0
      %v801 = vpop.f32.mrf.mxu0
      %v802 = vadd.f32 %v314, %v801
      %v803 = vpop.f32.mrf.mxu0
      %804 = vmatprep.mubr.bf16.mxu0 0
      %805 = vmatmul.mubr.bf16.gmra.mxu0 %v471
      %v806 = vpop.f32.mrf.mxu0
      %v807 = vadd.f32 %v314, %v806
      %v808 = vpop.f32.mrf.mxu0
      %v809 = vpop.f32.mrf.mxu0
      %v810 = vadd.f32 %v314, %v809
      %v811 = vpop.f32.mrf.mxu0
      %812 = vmatprep.mubr.bf16.mxu0 0
      %813 = vmatmul.mubr.bf16.gmra.mxu0 %v472
      %v814 = vpop.f32.mrf.mxu0
      %v815 = vadd.f32 %v314, %v814
      %v816 = vpop.f32.mrf.mxu0
      %v817 = vpop.f32.mrf.mxu0
      %v818 = vadd.f32 %v314, %v817
      %v819 = vpop.f32.mrf.mxu0
      %820 = vmatprep.mubr.bf16.mxu0 0
      %821 = vmatmul.mubr.bf16.gmra.mxu0 %v473
      %v822 = vpop.f32.mrf.mxu0
      %v823 = vadd.f32 %v314, %v822
      %v824 = vpop.f32.mrf.mxu0
      %v825 = vpop.f32.mrf.mxu0
      %v826 = vadd.f32 %v314, %v825
      %v827 = vpop.f32.mrf.mxu0
      %828 = vmatprep.mubr.bf16.mxu0 0
      %829 = vmatmul.mubr.bf16.gmra.mxu0 %v474
      %v830 = vpop.f32.mrf.mxu0
      %v831 = vadd.f32 %v314, %v830
      %v832 = vpop.f32.mrf.mxu0
      %v833 = vpop.f32.mrf.mxu0
      %v834 = vadd.f32 %v314, %v833
      %v835 = vpop.f32.mrf.mxu0
      %836 = vmatprep.mubr.bf16.mxu0 0
      %837 = vmatmul.mubr.bf16.gmra.mxu0 %v475
      %v838 = vpop.f32.mrf.mxu0
      %v839 = vadd.f32 %v314, %v838
      %v840 = vpop.f32.mrf.mxu0
      %v841 = vpop.f32.mrf.mxu0
      %v842 = vadd.f32 %v314, %v841
      %v843 = vpop.f32.mrf.mxu0
      %844 = vdwg.mxu0
      %v845 = vmax.f32 %v591, 0.0
      %v846 = vmax.f32 %v594, 0.0
      %v847 = vmax.f32 %v599, 0.0
      %v848 = vmax.f32 %v602, 0.0
      %v849 = vmax.f32 %v607, 0.0
      %v850 = vmax.f32 %v610, 0.0
      %v851 = vmax.f32 %v615, 0.0
      %v852 = vmax.f32 %v618, 0.0
      %v853 = vmax.f32 %v623, 0.0
      %v854 = vmax.f32 %v626, 0.0
      %v855 = vmax.f32 %v631, 0.0
      %v856 = vmax.f32 %v634, 0.0
      %v857 = vmax.f32 %v639, 0.0
      %v858 = vmax.f32 %v642, 0.0
      %v859 = vmax.f32 %v647, 0.0
      %v860 = vmax.f32 %v650, 0.0
      %v861 = vmax.f32 %v655, 0.0
      %v862 = vmax.f32 %v658, 0.0
      %v863 = vmax.f32 %v663, 0.0
      %v864 = vmax.f32 %v666, 0.0
      %v865 = vmax.f32 %v671, 0.0
      %v866 = vmax.f32 %v674, 0.0
      %v867 = vmax.f32 %v679, 0.0
      %v868 = vmax.f32 %v682, 0.0
      %v869 = vmax.f32 %v687, 0.0
      %v870 = vmax.f32 %v690, 0.0
      %v871 = vmax.f32 %v695, 0.0
      %v872 = vmax.f32 %v698, 0.0
      %v873 = vmax.f32 %v703, 0.0
      %v874 = vmax.f32 %v706, 0.0
      %v875 = vmax.f32 %v711, 0.0
      %v876 = vmax.f32 %v714, 0.0
      %v877 = vmax.f32 %v719, 0.0
      %v878 = vmax.f32 %v722, 0.0
      %v879 = vmax.f32 %v727, 0.0
      %v880 = vmax.f32 %v730, 0.0
      %v881 = vmax.f32 %v735, 0.0
      %v882 = vmax.f32 %v738, 0.0
      %v883 = vmax.f32 %v743, 0.0
      %v884 = vmax.f32 %v746, 0.0
      %v885 = vmax.f32 %v751, 0.0
      %v886 = vmax.f32 %v754, 0.0
      %v887 = vmax.f32 %v759, 0.0
      %v888 = vmax.f32 %v762, 0.0
      %v889 = vmax.f32 %v767, 0.0
      %v890 = vmax.f32 %v770, 0.0
      %v891 = vmax.f32 %v775, 0.0
      %v892 = vmax.f32 %v778, 0.0
      %v893 = vmax.f32 %v783, 0.0
      %v894 = vmax.f32 %v786, 0.0
      %v895 = vmax.f32 %v791, 0.0
      %v896 = vmax.f32 %v794, 0.0
      %v897 = vmax.f32 %v799, 0.0
      %v898 = vmax.f32 %v802, 0.0
      %v899 = vmax.f32 %v807, 0.0
      %v900 = vmax.f32 %v810, 0.0
      %v901 = vmax.f32 %v815, 0.0
      %v902 = vmax.f32 %v818, 0.0
      %v903 = vmax.f32 %v823, 0.0
      %v904 = vmax.f32 %v826, 0.0
      %v905 = vmax.f32 %v831, 0.0
      %v906 = vmax.f32 %v834, 0.0
      %v907 = vmax.f32 %v839, 0.0
      %v908 = vmax.f32 %v842, 0.0
      %v909 = vpack.c.bf16 %v846, %v845
      %v910 = vpack.c.bf16 %v848, %v847
      %v911 = vpack.c.bf16 %v850, %v849
      %v912 = vpack.c.bf16 %v852, %v851
      %v913 = vpack.c.bf16 %v854, %v853
      %v914 = vpack.c.bf16 %v856, %v855
      %v915 = vpack.c.bf16 %v858, %v857
      %v916 = vpack.c.bf16 %v860, %v859
      %v917 = vpack.c.bf16 %v862, %v861
      %v918 = vpack.c.bf16 %v864, %v863
      %v919 = vpack.c.bf16 %v866, %v865
      %v920 = vpack.c.bf16 %v868, %v867
      %v921 = vpack.c.bf16 %v870, %v869
      %v922 = vpack.c.bf16 %v872, %v871
      %v923 = vpack.c.bf16 %v874, %v873
      %v924 = vpack.c.bf16 %v876, %v875
      %v925 = vpack.c.bf16 %v878, %v877
      %v926 = vpack.c.bf16 %v880, %v879
      %v927 = vpack.c.bf16 %v882, %v881
      %v928 = vpack.c.bf16 %v884, %v883
      %v929 = vpack.c.bf16 %v886, %v885
      %v930 = vpack.c.bf16 %v888, %v887
      %v931 = vpack.c.bf16 %v890, %v889
      %v932 = vpack.c.bf16 %v892, %v891
      %v933 = vpack.c.bf16 %v894, %v893
      %v934 = vpack.c.bf16 %v896, %v895
      %v935 = vpack.c.bf16 %v898, %v897
      %v936 = vpack.c.bf16 %v900, %v899
      %v937 = vpack.c.bf16 %v902, %v901
      %v938 = vpack.c.bf16 %v904, %v903
      %v939 = vpack.c.bf16 %v906, %v905
      %v940 = vpack.c.bf16 %v908, %v907
      %v941 = vld [vmem:[%s3] sm:$0xf]
      %v942 = vld [vmem:[%s3 + $0x4] sm:$0xf]
      %v943 = vld [vmem:[%s3 + $0x8] sm:$0xf]
      %v944 = vld [vmem:[%s3 + $0xc] sm:$0xf]
      %v945 = vld [vmem:[%s3 + $0x10] sm:$0xf]
      %v946 = vld [vmem:[%s3 + $0x14] sm:$0xf]
      %v947 = vld [vmem:[%s3 + $0x18] sm:$0xf]
      %v948 = vld [vmem:[%s3 + $0x1c] sm:$0xf]
      %v949 = vld [vmem:[%s3 + $0x20] sm:$0xf]
      %v950 = vld [vmem:[%s3 + $0x24] sm:$0xf]
      %v951 = vld [vmem:[%s3 + $0x28] sm:$0xf]
      %v952 = vld [vmem:[%s3 + $0x2c] sm:$0xf]
      %v953 = vld [vmem:[%s3 + $0x30] sm:$0xf]
      %v954 = vld [vmem:[%s3 + $0x34] sm:$0xf]
      %v955 = vld [vmem:[%s3 + $0x38] sm:$0xf]
      %v956 = vld [vmem:[%s3 + $0x3c] sm:$0xf]
      %v957 = vld [vmem:[%s4] sm:$0x1]
      %v959 = vlaneseq
      %v960 = vshrl.u32 %v959, 7
      %v961 = vsub.s32 0, %v960
      %v962 = vrot.slane %v957, %v961
      %v980 = vunpack.c.l.b16 %v941
      %v981 = vunpack.c.l.b16 %v942
      %v982 = vunpack.c.l.b16 %v943
      %v983 = vunpack.c.l.b16 %v944
      %v984 = vunpack.c.l.b16 %v945
      %v985 = vunpack.c.l.b16 %v946
      %v986 = vunpack.c.l.b16 %v947
      %v987 = vunpack.c.l.b16 %v948
      %v988 = vunpack.c.l.b16 %v949
      %v989 = vunpack.c.l.b16 %v950
      %v990 = vunpack.c.l.b16 %v951
      %v991 = vunpack.c.l.b16 %v952
      %v992 = vunpack.c.l.b16 %v953
      %v993 = vunpack.c.l.b16 %v954
      %v994 = vunpack.c.l.b16 %v955
      %v995 = vunpack.c.l.b16 %v956
      %v996 = vpack.c.b16 %v981, %v980
      %v997 = vpack.c.b16 %v983, %v982
      %v998 = vpack.c.b16 %v985, %v984
      %v999 = vpack.c.b16 %v987, %v986
      %v1000 = vpack.c.b16 %v989, %v988
      %v1001 = vpack.c.b16 %v991, %v990
      %v1002 = vpack.c.b16 %v993, %v992
      %v1003 = vpack.c.b16 %v995, %v994
      %1012 = vmatprep.subr.bf16.mxu0 0
      %1013 = vmatpush1.bf16.msra.mxu0 %v1003
      %1014 = vmatprep.subr.bf16.mxu0 0
      %1015 = vmatpush1.bf16.msra.mxu0 %v1002
      %1016 = vmatprep.subr.bf16.mxu0 0
      %1017 = vmatpush1.bf16.msra.mxu0 %v1001
      %1018 = vmatprep.subr.bf16.mxu0 0
      %1019 = vmatpush1.bf16.msra.mxu0 %v1000
      %1020 = vmatprep.subr.bf16.mxu0 0
      %1021 = vmatpush1.bf16.msra.mxu0 %v999
      %1022 = vmatprep.subr.bf16.mxu0 0
      %1023 = vmatpush1.bf16.msra.mxu0 %v998
      %1024 = vmatprep.subr.bf16.mxu0 0
      %1025 = vmatpush1.bf16.msra.mxu0 %v997
      %1026 = vmatprep.subr.bf16.mxu0 0
      %1027 = vmatpush1.bf16.msra.mxu0 %v996
      %1028 = vmatprep.subr.bf16.mxu0 0
      %1029 = vmatpush2.bf16.msra.mxu0 0
      %1030 = vmatprep.subr.bf16.mxu0 0
      %1031 = vmatpush2.bf16.msra.mxu0 0
      %1032 = vmatprep.subr.bf16.mxu0 0
      %1033 = vmatpush2.bf16.msra.mxu0 0
      %1034 = vmatprep.subr.bf16.mxu0 0
      %1035 = vmatpush2.bf16.msra.mxu0 0
      %1036 = vmatprep.subr.bf16.mxu0 0
      %1037 = vmatpush2.bf16.msra.mxu0 0
      %1038 = vmatprep.subr.bf16.mxu0 0
      %1039 = vmatpush2.bf16.msra.mxu0 0
      %1040 = vmatprep.subr.bf16.mxu0 0
      %1041 = vmatpush2.bf16.msra.mxu0 0
      %1042 = vmatprep.subr.bf16.mxu0 0
      %1043 = vmatpush2.bf16.msra.mxu0 0
      %1044 = vmatprep.mubr.bf16.mxu0 0
      %1045 = vmatmul.mubr.bf16.gmra.mxu0 %v909
      %v1046 = vpop.f32.mrf.mxu0
      %v1047 = vadd.f32 %v962, %v1046
      %v1048 = vpop.f32.mrf.mxu0
      %v1049 = vpop.f32.mrf.mxu0
      %v1050 = vadd.f32 %v962, %v1049
      %v1051 = vpop.f32.mrf.mxu0
      %1052 = vmatprep.mubr.bf16.mxu0 0
      %1053 = vmatmul.mubr.bf16.gmra.mxu0 %v910
      %v1054 = vpop.f32.mrf.mxu0
      %v1055 = vadd.f32 %v962, %v1054
      %v1056 = vpop.f32.mrf.mxu0
      %v1057 = vpop.f32.mrf.mxu0
      %v1058 = vadd.f32 %v962, %v1057
      %v1059 = vpop.f32.mrf.mxu0
      %1060 = vmatprep.mubr.bf16.mxu0 0
      %1061 = vmatmul.mubr.bf16.gmra.mxu0 %v911
      %v1062 = vpop.f32.mrf.mxu0
      %v1063 = vadd.f32 %v962, %v1062
      %v1064 = vpop.f32.mrf.mxu0
      %v1065 = vpop.f32.mrf.mxu0
      %v1066 = vadd.f32 %v962, %v1065
      %v1067 = vpop.f32.mrf.mxu0
      %1068 = vmatprep.mubr.bf16.mxu0 0
      %1069 = vmatmul.mubr.bf16.gmra.mxu0 %v912
      %v1070 = vpop.f32.mrf.mxu0
      %v1071 = vadd.f32 %v962, %v1070
      %v1072 = vpop.f32.mrf.mxu0
      %v1073 = vpop.f32.mrf.mxu0
      %v1074 = vadd.f32 %v962, %v1073
      %v1075 = vpop.f32.mrf.mxu0
      %1076 = vmatprep.mubr.bf16.mxu0 0
      %1077 = vmatmul.mubr.bf16.gmra.mxu0 %v913
      %v1078 = vpop.f32.mrf.mxu0
      %v1079 = vadd.f32 %v962, %v1078
      %v1080 = vpop.f32.mrf.mxu0
      %v1081 = vpop.f32.mrf.mxu0
      %v1082 = vadd.f32 %v962, %v1081
      %v1083 = vpop.f32.mrf.mxu0
      %1084 = vmatprep.mubr.bf16.mxu0 0
      %1085 = vmatmul.mubr.bf16.gmra.mxu0 %v914
      %v1086 = vpop.f32.mrf.mxu0
      %v1087 = vadd.f32 %v962, %v1086
      %v1088 = vpop.f32.mrf.mxu0
      %v1089 = vpop.f32.mrf.mxu0
      %v1090 = vadd.f32 %v962, %v1089
      %v1091 = vpop.f32.mrf.mxu0
      %1092 = vmatprep.mubr.bf16.mxu0 0
      %1093 = vmatmul.mubr.bf16.gmra.mxu0 %v915
      %v1094 = vpop.f32.mrf.mxu0
      %v1095 = vadd.f32 %v962, %v1094
      %v1096 = vpop.f32.mrf.mxu0
      %v1097 = vpop.f32.mrf.mxu0
      %v1098 = vadd.f32 %v962, %v1097
      %v1099 = vpop.f32.mrf.mxu0
      %1100 = vmatprep.mubr.bf16.mxu0 0
      %1101 = vmatmul.mubr.bf16.gmra.mxu0 %v916
      %v1102 = vpop.f32.mrf.mxu0
      %v1103 = vadd.f32 %v962, %v1102
      %v1104 = vpop.f32.mrf.mxu0
      %v1105 = vpop.f32.mrf.mxu0
      %v1106 = vadd.f32 %v962, %v1105
      %v1107 = vpop.f32.mrf.mxu0
      %1108 = vmatprep.mubr.bf16.mxu0 0
      %1109 = vmatmul.mubr.bf16.gmra.mxu0 %v917
      %v1110 = vpop.f32.mrf.mxu0
      %v1111 = vadd.f32 %v962, %v1110
      %v1112 = vpop.f32.mrf.mxu0
      %v1113 = vpop.f32.mrf.mxu0
      %v1114 = vadd.f32 %v962, %v1113
      %v1115 = vpop.f32.mrf.mxu0
      %1116 = vmatprep.mubr.bf16.mxu0 0
      %1117 = vmatmul.mubr.bf16.gmra.mxu0 %v918
      %v1118 = vpop.f32.mrf.mxu0
      %v1119 = vadd.f32 %v962, %v1118
      %v1120 = vpop.f32.mrf.mxu0
      %v1121 = vpop.f32.mrf.mxu0
      %v1122 = vadd.f32 %v962, %v1121
      %v1123 = vpop.f32.mrf.mxu0
      %1124 = vmatprep.mubr.bf16.mxu0 0
      %1125 = vmatmul.mubr.bf16.gmra.mxu0 %v919
      %v1126 = vpop.f32.mrf.mxu0
      %v1127 = vadd.f32 %v962, %v1126
      %v1128 = vpop.f32.mrf.mxu0
      %v1129 = vpop.f32.mrf.mxu0
      %v1130 = vadd.f32 %v962, %v1129
      %v1131 = vpop.f32.mrf.mxu0
      %1132 = vmatprep.mubr.bf16.mxu0 0
      %1133 = vmatmul.mubr.bf16.gmra.mxu0 %v920
      %v1134 = vpop.f32.mrf.mxu0
      %v1135 = vadd.f32 %v962, %v1134
      %v1136 = vpop.f32.mrf.mxu0
      %v1137 = vpop.f32.mrf.mxu0
      %v1138 = vadd.f32 %v962, %v1137
      %v1139 = vpop.f32.mrf.mxu0
      %1140 = vmatprep.mubr.bf16.mxu0 0
      %1141 = vmatmul.mubr.bf16.gmra.mxu0 %v921
      %v1142 = vpop.f32.mrf.mxu0
      %v1143 = vadd.f32 %v962, %v1142
      %v1144 = vpop.f32.mrf.mxu0
      %v1145 = vpop.f32.mrf.mxu0
      %v1146 = vadd.f32 %v962, %v1145
      %v1147 = vpop.f32.mrf.mxu0
      %1148 = vmatprep.mubr.bf16.mxu0 0
      %1149 = vmatmul.mubr.bf16.gmra.mxu0 %v922
      %v1150 = vpop.f32.mrf.mxu0
      %v1151 = vadd.f32 %v962, %v1150
      %v1152 = vpop.f32.mrf.mxu0
      %v1153 = vpop.f32.mrf.mxu0
      %v1154 = vadd.f32 %v962, %v1153
      %v1155 = vpop.f32.mrf.mxu0
      %1156 = vmatprep.mubr.bf16.mxu0 0
      %1157 = vmatmul.mubr.bf16.gmra.mxu0 %v923
      %v1158 = vpop.f32.mrf.mxu0
      %v1159 = vadd.f32 %v962, %v1158
      %v1160 = vpop.f32.mrf.mxu0
      %v1161 = vpop.f32.mrf.mxu0
      %v1162 = vadd.f32 %v962, %v1161
      %v1163 = vpop.f32.mrf.mxu0
      %1164 = vmatprep.mubr.bf16.mxu0 0
      %1165 = vmatmul.mubr.bf16.gmra.mxu0 %v924
      %v1166 = vpop.f32.mrf.mxu0
      %v1167 = vadd.f32 %v962, %v1166
      %v1168 = vpop.f32.mrf.mxu0
      %v1169 = vpop.f32.mrf.mxu0
      %v1170 = vadd.f32 %v962, %v1169
      %v1171 = vpop.f32.mrf.mxu0
      %1172 = vmatprep.mubr.bf16.mxu0 0
      %1173 = vmatmul.mubr.bf16.gmra.mxu0 %v925
      %v1174 = vpop.f32.mrf.mxu0
      %v1175 = vadd.f32 %v962, %v1174
      %v1176 = vpop.f32.mrf.mxu0
      %v1177 = vpop.f32.mrf.mxu0
      %v1178 = vadd.f32 %v962, %v1177
      %v1179 = vpop.f32.mrf.mxu0
      %1180 = vmatprep.mubr.bf16.mxu0 0
      %1181 = vmatmul.mubr.bf16.gmra.mxu0 %v926
      %v1182 = vpop.f32.mrf.mxu0
      %v1183 = vadd.f32 %v962, %v1182
      %v1184 = vpop.f32.mrf.mxu0
      %v1185 = vpop.f32.mrf.mxu0
      %v1186 = vadd.f32 %v962, %v1185
      %v1187 = vpop.f32.mrf.mxu0
      %1188 = vmatprep.mubr.bf16.mxu0 0
      %1189 = vmatmul.mubr.bf16.gmra.mxu0 %v927
      %v1190 = vpop.f32.mrf.mxu0
      %v1191 = vadd.f32 %v962, %v1190
      %v1192 = vpop.f32.mrf.mxu0
      %v1193 = vpop.f32.mrf.mxu0
      %v1194 = vadd.f32 %v962, %v1193
      %v1195 = vpop.f32.mrf.mxu0
      %1196 = vmatprep.mubr.bf16.mxu0 0
      %1197 = vmatmul.mubr.bf16.gmra.mxu0 %v928
      %v1198 = vpop.f32.mrf.mxu0
      %v1199 = vadd.f32 %v962, %v1198
      %v1200 = vpop.f32.mrf.mxu0
      %v1201 = vpop.f32.mrf.mxu0
      %v1202 = vadd.f32 %v962, %v1201
      %v1203 = vpop.f32.mrf.mxu0
      %1204 = vmatprep.mubr.bf16.mxu0 0
      %1205 = vmatmul.mubr.bf16.gmra.mxu0 %v929
      %v1206 = vpop.f32.mrf.mxu0
      %v1207 = vadd.f32 %v962, %v1206
      %v1208 = vpop.f32.mrf.mxu0
      %v1209 = vpop.f32.mrf.mxu0
      %v1210 = vadd.f32 %v962, %v1209
      %v1211 = vpop.f32.mrf.mxu0
      %1212 = vmatprep.mubr.bf16.mxu0 0
      %1213 = vmatmul.mubr.bf16.gmra.mxu0 %v930
      %v1214 = vpop.f32.mrf.mxu0
      %v1215 = vadd.f32 %v962, %v1214
      %v1216 = vpop.f32.mrf.mxu0
      %v1217 = vpop.f32.mrf.mxu0
      %v1218 = vadd.f32 %v962, %v1217
      %v1219 = vpop.f32.mrf.mxu0
      %1220 = vmatprep.mubr.bf16.mxu0 0
      %1221 = vmatmul.mubr.bf16.gmra.mxu0 %v931
      %v1222 = vpop.f32.mrf.mxu0
      %v1223 = vadd.f32 %v962, %v1222
      %v1224 = vpop.f32.mrf.mxu0
      %v1225 = vpop.f32.mrf.mxu0
      %v1226 = vadd.f32 %v962, %v1225
      %v1227 = vpop.f32.mrf.mxu0
      %1228 = vmatprep.mubr.bf16.mxu0 0
      %1229 = vmatmul.mubr.bf16.gmra.mxu0 %v932
      %v1230 = vpop.f32.mrf.mxu0
      %v1231 = vadd.f32 %v962, %v1230
      %v1232 = vpop.f32.mrf.mxu0
      %v1233 = vpop.f32.mrf.mxu0
      %v1234 = vadd.f32 %v962, %v1233
      %v1235 = vpop.f32.mrf.mxu0
      %1236 = vmatprep.mubr.bf16.mxu0 0
      %1237 = vmatmul.mubr.bf16.gmra.mxu0 %v933
      %v1238 = vpop.f32.mrf.mxu0
      %v1239 = vadd.f32 %v962, %v1238
      %v1240 = vpop.f32.mrf.mxu0
      %v1241 = vpop.f32.mrf.mxu0
      %v1242 = vadd.f32 %v962, %v1241
      %v1243 = vpop.f32.mrf.mxu0
      %1244 = vmatprep.mubr.bf16.mxu0 0
      %1245 = vmatmul.mubr.bf16.gmra.mxu0 %v934
      %v1246 = vpop.f32.mrf.mxu0
      %v1247 = vadd.f32 %v962, %v1246
      %v1248 = vpop.f32.mrf.mxu0
      %v1249 = vpop.f32.mrf.mxu0
      %v1250 = vadd.f32 %v962, %v1249
      %v1251 = vpop.f32.mrf.mxu0
      %1252 = vmatprep.mubr.bf16.mxu0 0
      %1253 = vmatmul.mubr.bf16.gmra.mxu0 %v935
      %v1254 = vpop.f32.mrf.mxu0
      %v1255 = vadd.f32 %v962, %v1254
      %v1256 = vpop.f32.mrf.mxu0
      %v1257 = vpop.f32.mrf.mxu0
      %v1258 = vadd.f32 %v962, %v1257
      %v1259 = vpop.f32.mrf.mxu0
      %1260 = vmatprep.mubr.bf16.mxu0 0
      %1261 = vmatmul.mubr.bf16.gmra.mxu0 %v936
      %v1262 = vpop.f32.mrf.mxu0
      %v1263 = vadd.f32 %v962, %v1262
      %v1264 = vpop.f32.mrf.mxu0
      %v1265 = vpop.f32.mrf.mxu0
      %v1266 = vadd.f32 %v962, %v1265
      %v1267 = vpop.f32.mrf.mxu0
      %1268 = vmatprep.mubr.bf16.mxu0 0
      %1269 = vmatmul.mubr.bf16.gmra.mxu0 %v937
      %v1270 = vpop.f32.mrf.mxu0
      %v1271 = vadd.f32 %v962, %v1270
      %v1272 = vpop.f32.mrf.mxu0
      %v1273 = vpop.f32.mrf.mxu0
      %v1274 = vadd.f32 %v962, %v1273
      %v1275 = vpop.f32.mrf.mxu0
      %1276 = vmatprep.mubr.bf16.mxu0 0
      %1277 = vmatmul.mubr.bf16.gmra.mxu0 %v938
      %v1278 = vpop.f32.mrf.mxu0
      %v1279 = vadd.f32 %v962, %v1278
      %v1280 = vpop.f32.mrf.mxu0
      %v1281 = vpop.f32.mrf.mxu0
      %v1282 = vadd.f32 %v962, %v1281
      %v1283 = vpop.f32.mrf.mxu0
      %1284 = vmatprep.mubr.bf16.mxu0 0
      %1285 = vmatmul.mubr.bf16.gmra.mxu0 %v939
      %v1286 = vpop.f32.mrf.mxu0
      %v1287 = vadd.f32 %v962, %v1286
      %v1288 = vpop.f32.mrf.mxu0
      %v1289 = vpop.f32.mrf.mxu0
      %v1290 = vadd.f32 %v962, %v1289
      %v1291 = vpop.f32.mrf.mxu0
      %1292 = vmatprep.mubr.bf16.mxu0 0
      %1293 = vmatmul.mubr.bf16.gmra.mxu0 %v940
      %v1294 = vpop.f32.mrf.mxu0
      %v1295 = vadd.f32 %v962, %v1294
      %v1296 = vpop.f32.mrf.mxu0
      %v1297 = vpop.f32.mrf.mxu0
      %v1298 = vadd.f32 %v962, %v1297
      %v1299 = vpop.f32.mrf.mxu0
      %1300 = vdwg.mxu0
      %v1301 = vpack.c.bf16 %v1050, %v1047
      %v1302 = vpack.c.bf16 %v1058, %v1055
      %v1303 = vpack.c.bf16 %v1066, %v1063
      %v1304 = vpack.c.bf16 %v1074, %v1071
      %v1305 = vpack.c.bf16 %v1082, %v1079
      %v1306 = vpack.c.bf16 %v1090, %v1087
      %v1307 = vpack.c.bf16 %v1098, %v1095
      %v1308 = vpack.c.bf16 %v1106, %v1103
      %v1309 = vpack.c.bf16 %v1114, %v1111
      %v1310 = vpack.c.bf16 %v1122, %v1119
      %v1311 = vpack.c.bf16 %v1130, %v1127
      %v1312 = vpack.c.bf16 %v1138, %v1135
      %v1313 = vpack.c.bf16 %v1146, %v1143
      %v1314 = vpack.c.bf16 %v1154, %v1151
      %v1315 = vpack.c.bf16 %v1162, %v1159
      %v1316 = vpack.c.bf16 %v1170, %v1167
      %v1317 = vpack.c.bf16 %v1178, %v1175
      %v1318 = vpack.c.bf16 %v1186, %v1183
      %v1319 = vpack.c.bf16 %v1194, %v1191
      %v1320 = vpack.c.bf16 %v1202, %v1199
      %v1321 = vpack.c.bf16 %v1210, %v1207
      %v1322 = vpack.c.bf16 %v1218, %v1215
      %v1323 = vpack.c.bf16 %v1226, %v1223
      %v1324 = vpack.c.bf16 %v1234, %v1231
      %v1325 = vpack.c.bf16 %v1242, %v1239
      %v1326 = vpack.c.bf16 %v1250, %v1247
      %v1327 = vpack.c.bf16 %v1258, %v1255
      %v1328 = vpack.c.bf16 %v1266, %v1263
      %v1329 = vpack.c.bf16 %v1274, %v1271
      %v1330 = vpack.c.bf16 %v1282, %v1279
      %v1331 = vpack.c.bf16 %v1290, %v1287
      %v1332 = vpack.c.bf16 %v1298, %v1295
      %v1365 = vunpack.c.l.b16 %v1301
      %v1366 = vunpack.c.h.b16 %v1301
      %v1367 = vunpack.c.l.b16 %v1302
      %v1368 = vunpack.c.h.b16 %v1302
      %v1369 = vunpack.c.l.b16 %v1303
      %v1370 = vunpack.c.h.b16 %v1303
      %v1371 = vunpack.c.l.b16 %v1304
      %v1372 = vunpack.c.h.b16 %v1304
      %v1373 = vunpack.c.l.b16 %v1305
      %v1374 = vunpack.c.h.b16 %v1305
      %v1375 = vunpack.c.l.b16 %v1306
      %v1376 = vunpack.c.h.b16 %v1306
      %v1377 = vunpack.c.l.b16 %v1307
      %v1378 = vunpack.c.h.b16 %v1307
      %v1379 = vunpack.c.l.b16 %v1308
      %v1380 = vunpack.c.h.b16 %v1308
      %v1381 = vunpack.c.l.b16 %v1309
      %v1382 = vunpack.c.h.b16 %v1309
      %v1383 = vunpack.c.l.b16 %v1310
      %v1384 = vunpack.c.h.b16 %v1310
      %v1385 = vunpack.c.l.b16 %v1311
      %v1386 = vunpack.c.h.b16 %v1311
      %v1387 = vunpack.c.l.b16 %v1312
      %v1388 = vunpack.c.h.b16 %v1312
      %v1389 = vunpack.c.l.b16 %v1313
      %v1390 = vunpack.c.h.b16 %v1313
      %v1391 = vunpack.c.l.b16 %v1314
      %v1392 = vunpack.c.h.b16 %v1314
      %v1393 = vunpack.c.l.b16 %v1315
      %v1394 = vunpack.c.h.b16 %v1315
      %v1395 = vunpack.c.l.b16 %v1316
      %v1396 = vunpack.c.h.b16 %v1316
      %v1397 = vunpack.c.l.b16 %v1317
      %v1398 = vunpack.c.h.b16 %v1317
      %v1399 = vunpack.c.l.b16 %v1318
      %v1400 = vunpack.c.h.b16 %v1318
      %v1401 = vunpack.c.l.b16 %v1319
      %v1402 = vunpack.c.h.b16 %v1319
      %v1403 = vunpack.c.l.b16 %v1320
      %v1404 = vunpack.c.h.b16 %v1320
      %v1405 = vunpack.c.l.b16 %v1321
      %v1406 = vunpack.c.h.b16 %v1321
      %v1407 = vunpack.c.l.b16 %v1322
      %v1408 = vunpack.c.h.b16 %v1322
      %v1409 = vunpack.c.l.b16 %v1323
      %v1410 = vunpack.c.h.b16 %v1323
      %v1411 = vunpack.c.l.b16 %v1324
      %v1412 = vunpack.c.h.b16 %v1324
      %v1413 = vunpack.c.l.b16 %v1325
      %v1414 = vunpack.c.h.b16 %v1325
      %v1415 = vunpack.c.l.b16 %v1326
      %v1416 = vunpack.c.h.b16 %v1326
      %v1417 = vunpack.c.l.b16 %v1327
      %v1418 = vunpack.c.h.b16 %v1327
      %v1419 = vunpack.c.l.b16 %v1328
      %v1420 = vunpack.c.h.b16 %v1328
      %v1421 = vunpack.c.l.b16 %v1329
      %v1422 = vunpack.c.h.b16 %v1329
      %v1423 = vunpack.c.l.b16 %v1330
      %v1424 = vunpack.c.h.b16 %v1330
      %v1425 = vunpack.c.l.b16 %v1331
      %v1426 = vunpack.c.h.b16 %v1331
      %v1427 = vunpack.c.l.b16 %v1332
      %v1428 = vunpack.c.h.b16 %v1332
      %v1429 = vpack.c.b16 %v1365, %v1365
      %v1430 = vpack.c.b16 %v1366, %v1366
      %v1431 = vpack.c.b16 %v1367, %v1367
      %v1432 = vpack.c.b16 %v1368, %v1368
      %v1433 = vpack.c.b16 %v1369, %v1369
      %v1434 = vpack.c.b16 %v1370, %v1370
      %v1435 = vpack.c.b16 %v1371, %v1371
      %v1436 = vpack.c.b16 %v1372, %v1372
      %v1437 = vpack.c.b16 %v1373, %v1373
      %v1438 = vpack.c.b16 %v1374, %v1374
      %v1439 = vpack.c.b16 %v1375, %v1375
      %v1440 = vpack.c.b16 %v1376, %v1376
      %v1441 = vpack.c.b16 %v1377, %v1377
      %v1442 = vpack.c.b16 %v1378, %v1378
      %v1443 = vpack.c.b16 %v1379, %v1379
      %v1444 = vpack.c.b16 %v1380, %v1380
      %v1445 = vpack.c.b16 %v1381, %v1381
      %v1446 = vpack.c.b16 %v1382, %v1382
      %v1447 = vpack.c.b16 %v1383, %v1383
      %v1448 = vpack.c.b16 %v1384, %v1384
      %v1449 = vpack.c.b16 %v1385, %v1385
      %v1450 = vpack.c.b16 %v1386, %v1386
      %v1451 = vpack.c.b16 %v1387, %v1387
      %v1452 = vpack.c.b16 %v1388, %v1388
      %v1453 = vpack.c.b16 %v1389, %v1389
      %v1454 = vpack.c.b16 %v1390, %v1390
      %v1455 = vpack.c.b16 %v1391, %v1391
      %v1456 = vpack.c.b16 %v1392, %v1392
      %v1457 = vpack.c.b16 %v1393, %v1393
      %v1458 = vpack.c.b16 %v1394, %v1394
      %v1459 = vpack.c.b16 %v1395, %v1395
      %v1460 = vpack.c.b16 %v1396, %v1396
      %v1461 = vpack.c.b16 %v1397, %v1397
      %v1462 = vpack.c.b16 %v1398, %v1398
      %v1463 = vpack.c.b16 %v1399, %v1399
      %v1464 = vpack.c.b16 %v1400, %v1400
      %v1465 = vpack.c.b16 %v1401, %v1401
      %v1466 = vpack.c.b16 %v1402, %v1402
      %v1467 = vpack.c.b16 %v1403, %v1403
      %v1468 = vpack.c.b16 %v1404, %v1404
      %v1469 = vpack.c.b16 %v1405, %v1405
      %v1470 = vpack.c.b16 %v1406, %v1406
      %v1471 = vpack.c.b16 %v1407, %v1407
      %v1472 = vpack.c.b16 %v1408, %v1408
      %v1473 = vpack.c.b16 %v1409, %v1409
      %v1474 = vpack.c.b16 %v1410, %v1410
      %v1475 = vpack.c.b16 %v1411, %v1411
      %v1476 = vpack.c.b16 %v1412, %v1412
      %v1477 = vpack.c.b16 %v1413, %v1413
      %v1478 = vpack.c.b16 %v1414, %v1414
      %v1479 = vpack.c.b16 %v1415, %v1415
      %v1480 = vpack.c.b16 %v1416, %v1416
      %v1481 = vpack.c.b16 %v1417, %v1417
      %v1482 = vpack.c.b16 %v1418, %v1418
      %v1483 = vpack.c.b16 %v1419, %v1419
      %v1484 = vpack.c.b16 %v1420, %v1420
      %v1485 = vpack.c.b16 %v1421, %v1421
      %v1486 = vpack.c.b16 %v1422, %v1422
      %v1487 = vpack.c.b16 %v1423, %v1423
      %v1488 = vpack.c.b16 %v1424, %v1424
      %v1489 = vpack.c.b16 %v1425, %v1425
      %v1490 = vpack.c.b16 %v1426, %v1426
      %v1491 = vpack.c.b16 %v1427, %v1427
      %v1492 = vpack.c.b16 %v1428, %v1428
      %1557 = vst [vmem:[%s226] sm:$0xf] %v1429
      %1558 = vst [vmem:[%s226 + $0x4] sm:$0xf] %v1430
      %1559 = vst [vmem:[%s226 + $0x8] sm:$0xf] %v1431
      %1560 = vst [vmem:[%s226 + $0xc] sm:$0xf] %v1432
      %1561 = vst [vmem:[%s226 + $0x10] sm:$0xf] %v1433
      %1562 = vst [vmem:[%s226 + $0x14] sm:$0xf] %v1434
      %1563 = vst [vmem:[%s226 + $0x18] sm:$0xf] %v1435
      %1564 = vst [vmem:[%s226 + $0x1c] sm:$0xf] %v1436
      %1565 = vst [vmem:[%s226 + $0x20] sm:$0xf] %v1437
      %1566 = vst [vmem:[%s226 + $0x24] sm:$0xf] %v1438
      %1567 = vst [vmem:[%s226 + $0x28] sm:$0xf] %v1439
      %1568 = vst [vmem:[%s226 + $0x2c] sm:$0xf] %v1440
      %1569 = vst [vmem:[%s226 + $0x30] sm:$0xf] %v1441
      %1570 = vst [vmem:[%s226 + $0x34] sm:$0xf] %v1442
      %1571 = vst [vmem:[%s226 + $0x38] sm:$0xf] %v1443
      %1572 = vst [vmem:[%s226 + $0x3c] sm:$0xf] %v1444
      %1573 = vst [vmem:[%s226 + $0x40] sm:$0xf] %v1445
      %1574 = vst [vmem:[%s226 + $0x44] sm:$0xf] %v1446
      %1575 = vst [vmem:[%s226 + $0x48] sm:$0xf] %v1447
      %1576 = vst [vmem:[%s226 + $0x4c] sm:$0xf] %v1448
      %1577 = vst [vmem:[%s226 + $0x50] sm:$0xf] %v1449
      %1578 = vst [vmem:[%s226 + $0x54] sm:$0xf] %v1450
      %1579 = vst [vmem:[%s226 + $0x58] sm:$0xf] %v1451
      %1580 = vst [vmem:[%s226 + $0x5c] sm:$0xf] %v1452
      %1581 = vst [vmem:[%s226 + $0x60] sm:$0xf] %v1453
      %1582 = vst [vmem:[%s226 + $0x64] sm:$0xf] %v1454
      %1583 = vst [vmem:[%s226 + $0x68] sm:$0xf] %v1455
      %1584 = vst [vmem:[%s226 + $0x6c] sm:$0xf] %v1456
      %1585 = vst [vmem:[%s226 + $0x70] sm:$0xf] %v1457
      %1586 = vst [vmem:[%s226 + $0x74] sm:$0xf] %v1458
      %1587 = vst [vmem:[%s226 + $0x78] sm:$0xf] %v1459
      %1588 = vst [vmem:[%s226 + $0x7c] sm:$0xf] %v1460
      %1589 = vst [vmem:[%s226 + $0x80] sm:$0xf] %v1461
      %1590 = vst [vmem:[%s226 + $0x84] sm:$0xf] %v1462
      %1591 = vst [vmem:[%s226 + $0x88] sm:$0xf] %v1463
      %1592 = vst [vmem:[%s226 + $0x8c] sm:$0xf] %v1464
      %1593 = vst [vmem:[%s226 + $0x90] sm:$0xf] %v1465
      %1594 = vst [vmem:[%s226 + $0x94] sm:$0xf] %v1466
      %1595 = vst [vmem:[%s226 + $0x98] sm:$0xf] %v1467
      %1596 = vst [vmem:[%s226 + $0x9c] sm:$0xf] %v1468
      %1597 = vst [vmem:[%s226 + $0xa0] sm:$0xf] %v1469
      %1598 = vst [vmem:[%s226 + $0xa4] sm:$0xf] %v1470
      %1599 = vst [vmem:[%s226 + $0xa8] sm:$0xf] %v1471
      %1600 = vst [vmem:[%s226 + $0xac] sm:$0xf] %v1472
      %1601 = vst [vmem:[%s226 + $0xb0] sm:$0xf] %v1473
      %1602 = vst [vmem:[%s226 + $0xb4] sm:$0xf] %v1474
      %1603 = vst [vmem:[%s226 + $0xb8] sm:$0xf] %v1475
      %1604 = vst [vmem:[%s226 + $0xbc] sm:$0xf] %v1476
      %1605 = vst [vmem:[%s226 + $0xc0] sm:$0xf] %v1477
      %1606 = vst [vmem:[%s226 + $0xc4] sm:$0xf] %v1478
      %1607 = vst [vmem:[%s226 + $0xc8] sm:$0xf] %v1479
      %1608 = vst [vmem:[%s226 + $0xcc] sm:$0xf] %v1480
      %1609 = vst [vmem:[%s226 + $0xd0] sm:$0xf] %v1481
      %1610 = vst [vmem:[%s226 + $0xd4] sm:$0xf] %v1482
      %1611 = vst [vmem:[%s226 + $0xd8] sm:$0xf] %v1483
      %1612 = vst [vmem:[%s226 + $0xdc] sm:$0xf] %v1484
      %1613 = vst [vmem:[%s226 + $0xe0] sm:$0xf] %v1485
      %1614 = vst [vmem:[%s226 + $0xe4] sm:$0xf] %v1486
      %1615 = vst [vmem:[%s226 + $0xe8] sm:$0xf] %v1487
      %1616 = vst [vmem:[%s226 + $0xec] sm:$0xf] %v1488
      %1617 = vst [vmem:[%s226 + $0xf0] sm:$0xf] %v1489
      %1618 = vst [vmem:[%s226 + $0xf4] sm:$0xf] %v1490
      %1619 = vst [vmem:[%s226 + $0xf8] sm:$0xf] %v1491
      %1620 = vst [vmem:[%s226 + $0xfc] sm:$0xf] %v1492
      %s1621 = smul.u32 64, %s16
      %p1622 = scmp.lt.s32.totalorder %s1621, 191
      %s1623 = scalar_select %p1622, %s1621, 191
      %s1624 = smul.addr %s1623, 4
      %s1625 = scalar_lea.vmem %s5, %s1624
      // Predicated region
      $region41: #{tgat_forward.6} parent=39 // pred_check
        %p1626 = pneg %p144
      $region42: #{tgat_forward.6} parent=39 // pred_check_branch
        %1628 = sbr.rel (%p1626) target = $region44
      $region43: #{tgat_forward.6} parent=39 // pred_region
        %s1629 = smul.u32 64, %s16
      $region44: #{tgat_forward.6} parent=39 // pred_fallthru
        _
    $region40: #{tgat_forward.6} parent=5 // pred_fallthru
      _
    %p1630 = scmp.le.s32.totalorder 2, %s11
    // Predicated region
    $region45: #{tgat_forward.6} parent=5 // pred_check
      %p1631 = pneg %p1630
    $region46: #{tgat_forward.6} parent=5 // pred_check_branch
      %1633 = sbr.rel (%p1631) target = $region48
    $region47: #{tgat_forward.6} parent=5 // pred_region
      %s1634 = ssub.s32 %s11, 2
      // Predicated region
      $region49: #{tgat_forward.6} parent=47 // pred_check
        %p1635 = pneg %p150
      $region50: #{tgat_forward.6} parent=47 // pred_check_branch
        %1637 = sbr.rel (%p1635) target = $region52
      $region51: #{tgat_forward.6} parent=47 // pred_region
        %s1638 = smul.u32 64, %s17
        %p1639 = scmp.lt.s32.totalorder %s1638, 191
        %s1640 = scalar_select %p1639, %s1638, 191
        %s1641 = smul.addr %s1640, 4
        %s1642 = scalar_lea.vmem %s5, %s1641
      $region52: #{tgat_forward.6} parent=47 // pred_fallthru
        _
    $region48: #{tgat_forward.6} parent=5 // pred_fallthru
      _
  $region6: #{tgat_forward.6} parent=0 // loop_footer
    %s15 = sadd.s32 1, %s11
  $region7: #{tgat_forward.6} parent=0 // loop_footer_branch
    %10 = sbr.rel target = $region3
  $region8: #{tgat_forward.6} parent=0 // loop_exit
    _

// kernel: tgat_forward.9
$region0: #{tgat_forward.9}
  #allocation0 [shape = 'u32[]', space=smem, size = 0x4, offset = 0x4, fixed_abs, tag = 'smem constant byte address 0x4 - core index']
  #allocation1 [shape = 'u32[144,128]{1,0:T(1,128)}', space=vmem, size = 0x12000, scoped, tag = 'internal scratch']
  #allocation2 [shape = 'f32[1,1]{1,0:T(1,128)S(1)}', space=vmem, size = 0x200, scoped, tag = 'scoped memory for tgat_forward.9']
  %s0 = inlined_call_operand.vmem [shape: bf16[8,128], index: 0, kind: input, shape index: {}]
  %s1 = inlined_call_operand.vmem [shape: bf16[128,128], index: 1, kind: input, shape index: {}]
  %s2 = inlined_call_operand.vmem [shape: f32[1,128], index: 2, kind: input, shape index: {}]
  %s3 = inlined_call_operand.vmem [shape: bf16[128,128], index: 3, kind: input, shape index: {}]
  %s4 = inlined_call_operand.vmem [shape: f32[1,128], index: 4, kind: input, shape index: {}]
  %s5 = inlined_call_operand.vmem [shape: bf16[128,1], index: 5, kind: input, shape index: {}]
  %s6 = inlined_call_operand.<no memory space> [shape: f32[1,1], index: 6, kind: input, shape index: {}]
  %s7 = inlined_call_operand.vmem [shape: f32[8,1], index: 7, kind: output, shape index: {}]
  %s8 = sld [smem:[#allocation0]]
  $region38: #{tgat_forward.9} parent=0
    _
  %s10 = ssub.s32 1, %s8
  %s11 = scalar_select 0, %s10, %s8
  %v12 = vstv %s6
  %13 = vst [vmem:[#allocation2] sm:$0x1] %v12
  // Predicated region
  $region2: #{tgat_forward.9} parent=0 // pred_check
    _
  $region3: #{tgat_forward.9} parent=0 // pred_check_branch
    %15 = sbr.rel (0) target = $region5
  $region4: #{tgat_forward.9} parent=0 // pred_region
    _
  $region5: #{tgat_forward.9} parent=0 // pred_fallthru
    _
  // Predicated region
  $region6: #{tgat_forward.9} parent=0 // pred_check
    _
  $region7: #{tgat_forward.9} parent=0 // pred_check_branch
    %17 = sbr.rel (0) target = $region9
  $region8: #{tgat_forward.9} parent=0 // pred_region
    _
  $region9: #{tgat_forward.9} parent=0 // pred_fallthru
    _
  // Predicated region
  $region10: #{tgat_forward.9} parent=0 // pred_check
    _
  $region11: #{tgat_forward.9} parent=0 // pred_check_branch
    %19 = sbr.rel (0) target = $region13
  $region12: #{tgat_forward.9} parent=0 // pred_region
    _
  $region13: #{tgat_forward.9} parent=0 // pred_fallthru
    _
  // Predicated region
  $region14: #{tgat_forward.9} parent=0 // pred_check
    _
  $region15: #{tgat_forward.9} parent=0 // pred_check_branch
    %21 = sbr.rel (0) target = $region17
  $region16: #{tgat_forward.9} parent=0 // pred_region
    _
  $region17: #{tgat_forward.9} parent=0 // pred_fallthru
    _
  // Predicated region
  $region18: #{tgat_forward.9} parent=0 // pred_check
    _
  $region19: #{tgat_forward.9} parent=0 // pred_check_branch
    %23 = sbr.rel (0) target = $region21
  $region20: #{tgat_forward.9} parent=0 // pred_region
    _
  $region21: #{tgat_forward.9} parent=0 // pred_fallthru
    _
  // Predicated region
  $region22: #{tgat_forward.9} parent=0 // pred_check
    _
  $region23: #{tgat_forward.9} parent=0 // pred_check_branch
    %25 = sbr.rel (0) target = $region25
  $region24: #{tgat_forward.9} parent=0 // pred_region
    _
  $region25: #{tgat_forward.9} parent=0 // pred_fallthru
    _
  // Predicated region
  $region26: #{tgat_forward.9} parent=0 // pred_check
    _
  $region27: #{tgat_forward.9} parent=0 // pred_check_branch
    %27 = sbr.rel (0) target = $region29
  $region28: #{tgat_forward.9} parent=0 // pred_region
    _
  $region29: #{tgat_forward.9} parent=0 // pred_fallthru
    _
  %v29 = vld [vmem:[%s0] sm:$0xf]
  %v30 = vld [vmem:[%s1] sm:$0xf]
  %v31 = vld [vmem:[%s1 + $0x4] sm:$0xf]
  %v32 = vld [vmem:[%s1 + $0x8] sm:$0xf]
  %v33 = vld [vmem:[%s1 + $0xc] sm:$0xf]
  %v34 = vld [vmem:[%s1 + $0x10] sm:$0xf]
  %v35 = vld [vmem:[%s1 + $0x14] sm:$0xf]
  %v36 = vld [vmem:[%s1 + $0x18] sm:$0xf]
  %v37 = vld [vmem:[%s1 + $0x1c] sm:$0xf]
  %v38 = vld [vmem:[%s1 + $0x20] sm:$0xf]
  %v39 = vld [vmem:[%s1 + $0x24] sm:$0xf]
  %v40 = vld [vmem:[%s1 + $0x28] sm:$0xf]
  %v41 = vld [vmem:[%s1 + $0x2c] sm:$0xf]
  %v42 = vld [vmem:[%s1 + $0x30] sm:$0xf]
  %v43 = vld [vmem:[%s1 + $0x34] sm:$0xf]
  %v44 = vld [vmem:[%s1 + $0x38] sm:$0xf]
  %v45 = vld [vmem:[%s1 + $0x3c] sm:$0xf]
  %v46 = vld [vmem:[%s2] sm:$0x1]
  %v48 = vlaneseq
  %v49 = vshrl.u32 %v48, 7
  %v50 = vsub.s32 0, %v49
  %v51 = vrot.slane %v46, %v50
  %v69 = vunpack.c.l.b16 %v30
  %v70 = vunpack.c.l.b16 %v31
  %v71 = vunpack.c.l.b16 %v32
  %v72 = vunpack.c.l.b16 %v33
  %v73 = vunpack.c.l.b16 %v34
  %v74 = vunpack.c.l.b16 %v35
  %v75 = vunpack.c.l.b16 %v36
  %v76 = vunpack.c.l.b16 %v37
  %v77 = vunpack.c.l.b16 %v38
  %v78 = vunpack.c.l.b16 %v39
  %v79 = vunpack.c.l.b16 %v40
  %v80 = vunpack.c.l.b16 %v41
  %v81 = vunpack.c.l.b16 %v42
  %v82 = vunpack.c.l.b16 %v43
  %v83 = vunpack.c.l.b16 %v44
  %v84 = vunpack.c.l.b16 %v45
  %v85 = vpack.c.b16 %v70, %v69
  %v86 = vpack.c.b16 %v72, %v71
  %v87 = vpack.c.b16 %v74, %v73
  %v88 = vpack.c.b16 %v76, %v75
  %v89 = vpack.c.b16 %v78, %v77
  %v90 = vpack.c.b16 %v80, %v79
  %v91 = vpack.c.b16 %v82, %v81
  %v92 = vpack.c.b16 %v84, %v83
  %101 = vmatprep.subr.bf16.mxu0 0
  %102 = vmatpush1.bf16.msra.mxu0 %v92
  %103 = vmatprep.subr.bf16.mxu0 0
  %104 = vmatpush1.bf16.msra.mxu0 %v91
  %105 = vmatprep.subr.bf16.mxu0 0
  %106 = vmatpush1.bf16.msra.mxu0 %v90
  %107 = vmatprep.subr.bf16.mxu0 0
  %108 = vmatpush1.bf16.msra.mxu0 %v89
  %109 = vmatprep.subr.bf16.mxu0 0
  %110 = vmatpush1.bf16.msra.mxu0 %v88
  %111 = vmatprep.subr.bf16.mxu0 0
  %112 = vmatpush1.bf16.msra.mxu0 %v87
  %113 = vmatprep.subr.bf16.mxu0 0
  %114 = vmatpush1.bf16.msra.mxu0 %v86
  %115 = vmatprep.subr.bf16.mxu0 0
  %116 = vmatpush1.bf16.msra.mxu0 %v85
  %117 = vmatprep.subr.bf16.mxu0 0
  %118 = vmatpush2.bf16.msra.mxu0 0
  %119 = vmatprep.subr.bf16.mxu0 0
  %120 = vmatpush2.bf16.msra.mxu0 0
  %121 = vmatprep.subr.bf16.mxu0 0
  %122 = vmatpush2.bf16.msra.mxu0 0
  %123 = vmatprep.subr.bf16.mxu0 0
  %124 = vmatpush2.bf16.msra.mxu0 0
  %125 = vmatprep.subr.bf16.mxu0 0
  %126 = vmatpush2.bf16.msra.mxu0 0
  %127 = vmatprep.subr.bf16.mxu0 0
  %128 = vmatpush2.bf16.msra.mxu0 0
  %129 = vmatprep.subr.bf16.mxu0 0
  %130 = vmatpush2.bf16.msra.mxu0 0
  %131 = vmatprep.subr.bf16.mxu0 0
  %132 = vmatpush2.bf16.msra.mxu0 0
  %133 = vmatprep.mubr.bf16.mxu0 0
  %134 = vmatmul.mubr.bf16.gmra.mxu0 %v29
  %v135 = vpop.f32.mrf.mxu0
  %v136 = vadd.f32 %v51, %v135
  %v137 = vpop.f32.mrf.mxu0
  %v138 = vpop.f32.mrf.mxu0
  %v139 = vpop.f32.mrf.mxu0
  %140 = vdwg.mxu0
  %v141 = vmax.f32 %v136, 0.0
  %v142 = vpack.c.bf16 %v141, %v141
  %v143 = vld [vmem:[%s3] sm:$0xf]
  %v144 = vld [vmem:[%s3 + $0x4] sm:$0xf]
  %v145 = vld [vmem:[%s3 + $0x8] sm:$0xf]
  %v146 = vld [vmem:[%s3 + $0xc] sm:$0xf]
  %v147 = vld [vmem:[%s3 + $0x10] sm:$0xf]
  %v148 = vld [vmem:[%s3 + $0x14] sm:$0xf]
  %v149 = vld [vmem:[%s3 + $0x18] sm:$0xf]
  %v150 = vld [vmem:[%s3 + $0x1c] sm:$0xf]
  %v151 = vld [vmem:[%s3 + $0x20] sm:$0xf]
  %v152 = vld [vmem:[%s3 + $0x24] sm:$0xf]
  %v153 = vld [vmem:[%s3 + $0x28] sm:$0xf]
  %v154 = vld [vmem:[%s3 + $0x2c] sm:$0xf]
  %v155 = vld [vmem:[%s3 + $0x30] sm:$0xf]
  %v156 = vld [vmem:[%s3 + $0x34] sm:$0xf]
  %v157 = vld [vmem:[%s3 + $0x38] sm:$0xf]
  %v158 = vld [vmem:[%s3 + $0x3c] sm:$0xf]
  %v159 = vld [vmem:[%s4] sm:$0x1]
  %v161 = vlaneseq
  %v162 = vshrl.u32 %v161, 7
  %v163 = vsub.s32 0, %v162
  %v164 = vrot.slane %v159, %v163
  %v182 = vunpack.c.l.b16 %v143
  %v183 = vunpack.c.l.b16 %v144
  %v184 = vunpack.c.l.b16 %v145
  %v185 = vunpack.c.l.b16 %v146
  %v186 = vunpack.c.l.b16 %v147
  %v187 = vunpack.c.l.b16 %v148
  %v188 = vunpack.c.l.b16 %v149
  %v189 = vunpack.c.l.b16 %v150
  %v190 = vunpack.c.l.b16 %v151
  %v191 = vunpack.c.l.b16 %v152
  %v192 = vunpack.c.l.b16 %v153
  %v193 = vunpack.c.l.b16 %v154
  %v194 = vunpack.c.l.b16 %v155
  %v195 = vunpack.c.l.b16 %v156
  %v196 = vunpack.c.l.b16 %v157
  %v197 = vunpack.c.l.b16 %v158
  %v198 = vpack.c.b16 %v183, %v182
  %v199 = vpack.c.b16 %v185, %v184
  %v200 = vpack.c.b16 %v187, %v186
  %v201 = vpack.c.b16 %v189, %v188
  %v202 = vpack.c.b16 %v191, %v190
  %v203 = vpack.c.b16 %v193, %v192
  %v204 = vpack.c.b16 %v195, %v194
  %v205 = vpack.c.b16 %v197, %v196
  %214 = vmatprep.subr.bf16.mxu0 0
  %215 = vmatpush1.bf16.msra.mxu0 %v205
  %216 = vmatprep.subr.bf16.mxu0 0
  %217 = vmatpush1.bf16.msra.mxu0 %v204
  %218 = vmatprep.subr.bf16.mxu0 0
  %219 = vmatpush1.bf16.msra.mxu0 %v203
  %220 = vmatprep.subr.bf16.mxu0 0
  %221 = vmatpush1.bf16.msra.mxu0 %v202
  %222 = vmatprep.subr.bf16.mxu0 0
  %223 = vmatpush1.bf16.msra.mxu0 %v201
  %224 = vmatprep.subr.bf16.mxu0 0
  %225 = vmatpush1.bf16.msra.mxu0 %v200
  %226 = vmatprep.subr.bf16.mxu0 0
  %227 = vmatpush1.bf16.msra.mxu0 %v199
  %228 = vmatprep.subr.bf16.mxu0 0
  %229 = vmatpush1.bf16.msra.mxu0 %v198
  %230 = vmatprep.subr.bf16.mxu0 0
  %231 = vmatpush2.bf16.msra.mxu0 0
  %232 = vmatprep.subr.bf16.mxu0 0
  %233 = vmatpush2.bf16.msra.mxu0 0
  %234 = vmatprep.subr.bf16.mxu0 0
  %235 = vmatpush2.bf16.msra.mxu0 0
  %236 = vmatprep.subr.bf16.mxu0 0
  %237 = vmatpush2.bf16.msra.mxu0 0
  %238 = vmatprep.subr.bf16.mxu0 0
  %239 = vmatpush2.bf16.msra.mxu0 0
  %240 = vmatprep.subr.bf16.mxu0 0
  %241 = vmatpush2.bf16.msra.mxu0 0
  %242 = vmatprep.subr.bf16.mxu0 0
  %243 = vmatpush2.bf16.msra.mxu0 0
  %244 = vmatprep.subr.bf16.mxu0 0
  %245 = vmatpush2.bf16.msra.mxu0 0
  %246 = vmatprep.mubr.bf16.mxu0 0
  %247 = vmatmul.mubr.bf16.gmra.mxu0 %v142
  %v248 = vpop.f32.mrf.mxu0
  %v249 = vadd.f32 %v164, %v248
  %v250 = vpop.f32.mrf.mxu0
  %v251 = vpop.f32.mrf.mxu0
  %v252 = vpop.f32.mrf.mxu0
  %253 = vdwg.mxu0
  %v254 = vmax.f32 %v249, 0.0
  %v255 = vpack.c.bf16 %v254, %v254
  %v256 = vld [vmem:[%s5] sm:$0xf]
  %v257 = vld [vmem:[%s5 + $0x4] sm:$0xf]
  %v258 = vld [vmem:[%s5 + $0x8] sm:$0xf]
  %v259 = vld [vmem:[%s5 + $0xc] sm:$0xf]
  %v260 = vld [vmem:[%s5 + $0x10] sm:$0xf]
  %v261 = vld [vmem:[%s5 + $0x14] sm:$0xf]
  %v262 = vld [vmem:[%s5 + $0x18] sm:$0xf]
  %v263 = vld [vmem:[%s5 + $0x1c] sm:$0xf]
  %v264 = vld [vmem:[%s5 + $0x20] sm:$0xf]
  %v265 = vld [vmem:[%s5 + $0x24] sm:$0xf]
  %v266 = vld [vmem:[%s5 + $0x28] sm:$0xf]
  %v267 = vld [vmem:[%s5 + $0x2c] sm:$0xf]
  %v268 = vld [vmem:[%s5 + $0x30] sm:$0xf]
  %v269 = vld [vmem:[%s5 + $0x34] sm:$0xf]
  %v270 = vld [vmem:[%s5 + $0x38] sm:$0xf]
  %v271 = vld [vmem:[%s5 + $0x3c] sm:$0xf]
  %v272 = vld [vmem:[#allocation2] sm:$0x1]
  %v274 = vlaneseq
  %v275 = vshrl.u32 %v274, 7
  %v276 = vsub.s32 0, %v275
  %v277 = vrot.slane %v272, %v276
  %v295 = vunpack.c.l.b16 %v256
  %v296 = vunpack.c.l.b16 %v257
  %v297 = vunpack.c.l.b16 %v258
  %v298 = vunpack.c.l.b16 %v259
  %v299 = vunpack.c.l.b16 %v260
  %v300 = vunpack.c.l.b16 %v261
  %v301 = vunpack.c.l.b16 %v262
  %v302 = vunpack.c.l.b16 %v263
  %v303 = vunpack.c.l.b16 %v264
  %v304 = vunpack.c.l.b16 %v265
  %v305 = vunpack.c.l.b16 %v266
  %v306 = vunpack.c.l.b16 %v267
  %v307 = vunpack.c.l.b16 %v268
  %v308 = vunpack.c.l.b16 %v269
  %v309 = vunpack.c.l.b16 %v270
  %v310 = vunpack.c.l.b16 %v271
  %v311 = vpack.c.b16 %v296, %v295
  %v312 = vpack.c.b16 %v298, %v297
  %v313 = vpack.c.b16 %v300, %v299
  %v314 = vpack.c.b16 %v302, %v301
  %v315 = vpack.c.b16 %v304, %v303
  %v316 = vpack.c.b16 %v306, %v305
  %v317 = vpack.c.b16 %v308, %v307
  %v318 = vpack.c.b16 %v310, %v309
  %327 = vmatprep.subr.bf16.mxu0 0
  %328 = vmatpush1.bf16.msra.mxu0 %v318
  %329 = vmatprep.subr.bf16.mxu0 0
  %330 = vmatpush1.bf16.msra.mxu0 %v317
  %331 = vmatprep.subr.bf16.mxu0 0
  %332 = vmatpush1.bf16.msra.mxu0 %v316
  %333 = vmatprep.subr.bf16.mxu0 0
  %334 = vmatpush1.bf16.msra.mxu0 %v315
  %335 = vmatprep.subr.bf16.mxu0 0
  %336 = vmatpush1.bf16.msra.mxu0 %v314
  %337 = vmatprep.subr.bf16.mxu0 0
  %338 = vmatpush1.bf16.msra.mxu0 %v313
  %339 = vmatprep.subr.bf16.mxu0 0
  %340 = vmatpush1.bf16.msra.mxu0 %v312
  %341 = vmatprep.subr.bf16.mxu0 0
  %342 = vmatpush1.bf16.msra.mxu0 %v311
  %343 = vmatprep.subr.bf16.mxu0 0
  %344 = vmatpush2.bf16.msra.mxu0 0
  %345 = vmatprep.subr.bf16.mxu0 0
  %346 = vmatpush2.bf16.msra.mxu0 0
  %347 = vmatprep.subr.bf16.mxu0 0
  %348 = vmatpush2.bf16.msra.mxu0 0
  %349 = vmatprep.subr.bf16.mxu0 0
  %350 = vmatpush2.bf16.msra.mxu0 0
  %351 = vmatprep.subr.bf16.mxu0 0
  %352 = vmatpush2.bf16.msra.mxu0 0
  %353 = vmatprep.subr.bf16.mxu0 0
  %354 = vmatpush2.bf16.msra.mxu0 0
  %355 = vmatprep.subr.bf16.mxu0 0
  %356 = vmatpush2.bf16.msra.mxu0 0
  %357 = vmatprep.subr.bf16.mxu0 0
  %358 = vmatpush2.bf16.msra.mxu0 0
  %359 = vmatprep.mubr.bf16.mxu0 0
  %360 = vmatmul.mubr.bf16.gmra.mxu0 %v255
  %v361 = vpop.f32.mrf.mxu0
  %v362 = vadd.f32 %v277, %v361
  %v363 = vpop.f32.mrf.mxu0
  %v364 = vpop.f32.mrf.mxu0
  %v365 = vpop.f32.mrf.mxu0
  %366 = vdwg.mxu0
  %vm367 = vcmask 7168
  %368 = vst.msk [vmem:[%s7] sm:$0xff] %vm367, %v362
  // Predicated region
  $region30: #{tgat_forward.9} parent=0 // pred_check
    _
  $region31: #{tgat_forward.9} parent=0 // pred_check_branch
    %370 = sbr.rel (0) target = $region33
  $region32: #{tgat_forward.9} parent=0 // pred_region
    _
  $region33: #{tgat_forward.9} parent=0 // pred_fallthru
    _
  // Predicated region
  $region34: #{tgat_forward.9} parent=0 // pred_check
    _
  $region35: #{tgat_forward.9} parent=0 // pred_check_branch
    %372 = sbr.rel (0) target = $region37
  $region36: #{tgat_forward.9} parent=0 // pred_region
    _
  $region37: #{tgat_forward.9} parent=0 // pred_fallthru
    _

// kernel: tgat_forward.7
$region0: #{tgat_forward.7}
  #allocation0 [shape = 'u32[]', space=smem, size = 0x4, offset = 0x4, fixed_abs, tag = 'smem constant byte address 0x4 - core index']
  #allocation1 [shape = 'u32[144,128]{1,0:T(1,128)}', space=vmem, size = 0x12000, scoped, tag = 'internal scratch']
  #allocation2 [shape = 'f32[64,128]{1,0:T(8,128)}', space=vmem, size = 0x8000, scoped, tag = 'scratch operand']
  #allocation3 [shape = 'f32[64,128]{1,0:T(8,128)}', space=vmem, size = 0x8000, scoped, tag = 'scratch operand']
  #allocation4 [shape = 'f32[1,1]{1,0:T(1,128)}', space=vmem, size = 0x200, scoped, tag = 'scratch operand']
  %s0 = inlined_call_operand.vmem [shape: bf16[64,128], index: 0, kind: input, shape index: {}]
  %s1 = inlined_call_operand.vmem [shape: bf16[1536,128], index: 1, kind: input, shape index: {}]
  %s2 = inlined_call_operand.vmem [shape: bf16[1536,128], index: 2, kind: input, shape index: {}]
  %s3 = inlined_call_operand.vmem [shape: bf16[1536,256], index: 3, kind: input, shape index: {}]
  %s4 = inlined_call_operand.vmem [shape: f32[1536,1], index: 4, kind: input, shape index: {}]
  %s5 = inlined_call_operand.vmem [shape: s32[1,1536], index: 5, kind: input, shape index: {}]
  %s6 = inlined_call_operand.vmem [shape: bf16[128,128], index: 6, kind: input, shape index: {}]
  %s7 = inlined_call_operand.vmem [shape: f32[1,128], index: 7, kind: input, shape index: {}]
  %s8 = inlined_call_operand.vmem [shape: bf16[128,256], index: 8, kind: input, shape index: {}]
  %s9 = inlined_call_operand.vmem [shape: bf16[256,256], index: 9, kind: input, shape index: {}]
  %s10 = inlined_call_operand.vmem [shape: f32[1,256], index: 10, kind: input, shape index: {}]
  %s11 = inlined_call_operand.vmem [shape: bf16[128,128], index: 11, kind: input, shape index: {}]
  %s12 = inlined_call_operand.vmem [shape: f32[1,128], index: 12, kind: input, shape index: {}]
  %s13 = inlined_call_operand.vmem [shape: bf16[128,128], index: 13, kind: input, shape index: {}]
  %s14 = inlined_call_operand.vmem [shape: bf16[128,128], index: 14, kind: input, shape index: {}]
  %s15 = inlined_call_operand.vmem [shape: f32[1,128], index: 15, kind: input, shape index: {}]
  %s16 = inlined_call_operand.vmem [shape: bf16[128,128], index: 16, kind: input, shape index: {}]
  %s17 = inlined_call_operand.vmem [shape: f32[1,128], index: 17, kind: input, shape index: {}]
  %s18 = inlined_call_operand.vmem [shape: bf16[64,128], index: 18, kind: output, shape index: {}]
  %s19 = sld [smem:[#allocation0]]
  $region113: #{tgat_forward.7} parent=0
    _
  %s21 = ssub.s32 1, %s19
  %s22 = scalar_select 0, %s21, %s19
  loop: start=0, step=1, limit=5
  $region2: #{tgat_forward.7} parent=0 // loop_pre_header
    _
  $region3: #{tgat_forward.7} parent=0 // loop_header
    %s24 = sphi 0, %s28
    %p25 = scmp.ge.s32.totalorder %s24, 5
    %s32 = sphi 0, %s32
    %s34 = sphi 0, %s32
    %s35 = sphi 0, %s34
    %s49 = sphi 0, %s35
    %s55 = sphi 0, %s57
    %s58 = sphi 0, %s55
    %s59 = sphi 0, %s58
    %s75 = sphi 0, %s59
    %s81 = sphi 0, %s83
    %s84 = sphi 0, %s81
    %s85 = sphi 0, %s84
    %s101 = sphi 0, %s85
    %s107 = sphi 0, %s109
    %s110 = sphi 0, %s107
    %s111 = sphi 0, %s110
    %s127 = sphi 0, %s111
    %s133 = sphi 0, %s135
    %s136 = sphi 0, %s133
    %s137 = sphi 0, %s136
    %s153 = sphi 0, %s137
    %s159 = sphi 0, %s161
    %s162 = sphi 0, %s159
    %s163 = sphi 0, %s162
    %s179 = sphi 0, %s163
    %s183 = sphi 0, %s183
    %s185 = sphi 0, %s183
    %s186 = sphi 0, %s185
    %s200 = sphi 0, %s186
    %s204 = sphi 0, %s204
    %s206 = sphi 0, %s204
    %s207 = sphi 0, %s206
    %s221 = sphi 0, %s207
    %s225 = sphi 0, %s225
    %s227 = sphi 0, %s225
    %s228 = sphi 0, %s227
    %s242 = sphi 0, %s228
    %s246 = sphi 0, %s246
    %s248 = sphi 0, %s246
    %s249 = sphi 0, %s248
    %s263 = sphi 0, %s249
    %s267 = sphi 0, %s267
    %s269 = sphi 0, %s267
    %s270 = sphi 0, %s269
    %s284 = sphi 0, %s270
    %s288 = sphi 0, %s288
    %s290 = sphi 0, %s288
    %s291 = sphi 0, %s290
    %s305 = sphi 0, %s291
    %s309 = sphi 0, %s309
    %s311 = sphi 0, %s309
    %s312 = sphi 0, %s311
    %s326 = sphi 0, %s312
    %s330 = sphi 0, %s330
    %s332 = sphi 0, %s330
    %s333 = sphi 0, %s332
    %s347 = sphi 0, %s333
    %s351 = sphi 0, %s351
    %s353 = sphi 0, %s351
    %s354 = sphi 0, %s353
    %s368 = sphi 0, %s354
    %s372 = sphi 0, %s372
    %s374 = sphi 0, %s372
    %s375 = sphi 0, %s374
    %s389 = sphi 0, %s375
    %s393 = sphi 0, %s393
    %s395 = sphi 0, %s393
    %s396 = sphi 0, %s395
    %s410 = sphi 0, %s396
    %s414 = sphi 0, %s414
    %s416 = sphi 0, %s414
    %s417 = sphi 0, %s416
    %s431 = sphi 0, %s417
    %s435 = sphi 0, %s435
    %s437 = sphi 0, %s435
    %s438 = sphi 0, %s437
    %s452 = sphi 0, %s438
  $region4: #{tgat_forward.7} parent=0 // loop_header_branch
    %27 = sbr.rel (%p25) target = $region8
  $region5: #{tgat_forward.7} parent=0 // loop_body
    %s29 = ssub.s32 %s24, 1
    %s30 = ssub.s32 %s24, 2
    %s31 = sadd.s32 %s24, 1
    %s33 = sadd.s32 %s32, 1
    %p36 = scmp.eq.s32.totalorder %s24, 2
    %p37 = scmp.ne.s32.totalorder %s32, %s34
    %p38 = scmp.eq.s32.totalorder %s24, 0
    %p39 = por %p37, %p38
    %p40 = scmp.ne.s32.totalorder %s32, %s34
    %p41 = scmp.eq.s32.totalorder %s29, 2
    %p42 = por %p40, %p41
    %p43 = scmp.ne.s32.totalorder %s34, %s35
    %p44 = scmp.eq.s32.totalorder %s29, 0
    %p45 = por %p43, %p44
    %p46 = scmp.ne.s32.totalorder %s34, %s35
    %p47 = scmp.eq.s32.totalorder %s30, 2
    %p48 = por %p46, %p47
    %p50 = scmp.ne.s32.totalorder %s35, %s49
    %p51 = scmp.eq.s32.totalorder %s30, 0
    %p52 = por %p50, %p51
    %s53 = ssub.s32 %s24, %s31
    %p54 = scmp.eq.s32.totalorder %s53, 0
    %s56 = sadd.s32 %s55, 1
    %s57 = scalar_select %p54, %s55, %s56
    %p60 = pneg %p54
    %p61 = scmp.eq.s32.totalorder %s24, 2
    %p62 = por %p60, %p61
    %p63 = scmp.ne.s32.totalorder %s55, %s58
    %p64 = scmp.eq.s32.totalorder %s24, 0
    %p65 = por %p63, %p64
    %p66 = scmp.ne.s32.totalorder %s55, %s58
    %p67 = scmp.eq.s32.totalorder %s29, 2
    %p68 = por %p66, %p67
    %p69 = scmp.ne.s32.totalorder %s58, %s59
    %p70 = scmp.eq.s32.totalorder %s29, 0
    %p71 = por %p69, %p70
    %p72 = scmp.ne.s32.totalorder %s58, %s59
    %p73 = scmp.eq.s32.totalorder %s30, 2
    %p74 = por %p72, %p73
    %p76 = scmp.ne.s32.totalorder %s59, %s75
    %p77 = scmp.eq.s32.totalorder %s30, 0
    %p78 = por %p76, %p77
    %s79 = ssub.s32 %s24, %s31
    %p80 = scmp.eq.s32.totalorder %s79, 0
    %s82 = sadd.s32 %s81, 1
    %s83 = scalar_select %p80, %s81, %s82
    %p86 = pneg %p80
    %p87 = scmp.eq.s32.totalorder %s24, 2
    %p88 = por %p86, %p87
    %p89 = scmp.ne.s32.totalorder %s81, %s84
    %p90 = scmp.eq.s32.totalorder %s24, 0
    %p91 = por %p89, %p90
    %p92 = scmp.ne.s32.totalorder %s81, %s84
    %p93 = scmp.eq.s32.totalorder %s29, 2
    %p94 = por %p92, %p93
    %p95 = scmp.ne.s32.totalorder %s84, %s85
    %p96 = scmp.eq.s32.totalorder %s29, 0
    %p97 = por %p95, %p96
    %p98 = scmp.ne.s32.totalorder %s84, %s85
    %p99 = scmp.eq.s32.totalorder %s30, 2
    %p100 = por %p98, %p99
    %p102 = scmp.ne.s32.totalorder %s85, %s101
    %p103 = scmp.eq.s32.totalorder %s30, 0
    %p104 = por %p102, %p103
    %s105 = ssub.s32 %s24, %s31
    %p106 = scmp.eq.s32.totalorder %s105, 0
    %s108 = sadd.s32 %s107, 1
    %s109 = scalar_select %p106, %s107, %s108
    %p112 = pneg %p106
    %p113 = scmp.eq.s32.totalorder %s24, 2
    %p114 = por %p112, %p113
    %p115 = scmp.ne.s32.totalorder %s107, %s110
    %p116 = scmp.eq.s32.totalorder %s24, 0
    %p117 = por %p115, %p116
    %p118 = scmp.ne.s32.totalorder %s107, %s110
    %p119 = scmp.eq.s32.totalorder %s29, 2
    %p120 = por %p118, %p119
    %p121 = scmp.ne.s32.totalorder %s110, %s111
    %p122 = scmp.eq.s32.totalorder %s29, 0
    %p123 = por %p121, %p122
    %p124 = scmp.ne.s32.totalorder %s110, %s111
    %p125 = scmp.eq.s32.totalorder %s30, 2
    %p126 = por %p124, %p125
    %p128 = scmp.ne.s32.totalorder %s111, %s127
    %p129 = scmp.eq.s32.totalorder %s30, 0
    %p130 = por %p128, %p129
    %s131 = ssub.s32 %s24, %s31
    %p132 = scmp.eq.s32.totalorder %s131, 0
    %s134 = sadd.s32 %s133, 1
    %s135 = scalar_select %p132, %s133, %s134
    %p138 = pneg %p132
    %p139 = scmp.eq.s32.totalorder %s24, 2
    %p140 = por %p138, %p139
    %p141 = scmp.ne.s32.totalorder %s133, %s136
    %p142 = scmp.eq.s32.totalorder %s24, 0
    %p143 = por %p141, %p142
    %p144 = scmp.ne.s32.totalorder %s133, %s136
    %p145 = scmp.eq.s32.totalorder %s29, 2
    %p146 = por %p144, %p145
    %p147 = scmp.ne.s32.totalorder %s136, %s137
    %p148 = scmp.eq.s32.totalorder %s29, 0
    %p149 = por %p147, %p148
    %p150 = scmp.ne.s32.totalorder %s136, %s137
    %p151 = scmp.eq.s32.totalorder %s30, 2
    %p152 = por %p150, %p151
    %p154 = scmp.ne.s32.totalorder %s137, %s153
    %p155 = scmp.eq.s32.totalorder %s30, 0
    %p156 = por %p154, %p155
    %s157 = ssub.s32 %s24, %s31
    %p158 = scmp.eq.s32.totalorder %s157, 0
    %s160 = sadd.s32 %s159, 1
    %s161 = scalar_select %p158, %s159, %s160
    %p164 = pneg %p158
    %p165 = scmp.eq.s32.totalorder %s24, 2
    %p166 = por %p164, %p165
    %p167 = scmp.ne.s32.totalorder %s159, %s162
    %p168 = scmp.eq.s32.totalorder %s24, 0
    %p169 = por %p167, %p168
    %p170 = scmp.ne.s32.totalorder %s159, %s162
    %p171 = scmp.eq.s32.totalorder %s29, 2
    %p172 = por %p170, %p171
    %p173 = scmp.ne.s32.totalorder %s162, %s163
    %p174 = scmp.eq.s32.totalorder %s29, 0
    %p175 = por %p173, %p174
    %p176 = scmp.ne.s32.totalorder %s162, %s163
    %p177 = scmp.eq.s32.totalorder %s30, 2
    %p178 = por %p176, %p177
    %p180 = scmp.ne.s32.totalorder %s163, %s179
    %p181 = scmp.eq.s32.totalorder %s30, 0
    %p182 = por %p180, %p181
    %s184 = sadd.s32 %s183, 1
    %p187 = scmp.eq.s32.totalorder %s24, 2
    %p188 = scmp.ne.s32.totalorder %s183, %s185
    %p189 = scmp.eq.s32.totalorder %s24, 0
    %p190 = por %p188, %p189
    %p191 = scmp.ne.s32.totalorder %s183, %s185
    %p192 = scmp.eq.s32.totalorder %s29, 2
    %p193 = por %p191, %p192
    %p194 = scmp.ne.s32.totalorder %s185, %s186
    %p195 = scmp.eq.s32.totalorder %s29, 0
    %p196 = por %p194, %p195
    %p197 = scmp.ne.s32.totalorder %s185, %s186
    %p198 = scmp.eq.s32.totalorder %s30, 2
    %p199 = por %p197, %p198
    %p201 = scmp.ne.s32.totalorder %s186, %s200
    %p202 = scmp.eq.s32.totalorder %s30, 0
    %p203 = por %p201, %p202
    %s205 = sadd.s32 %s204, 1
    %p208 = scmp.eq.s32.totalorder %s24, 2
    %p209 = scmp.ne.s32.totalorder %s204, %s206
    %p210 = scmp.eq.s32.totalorder %s24, 0
    %p211 = por %p209, %p210
    %p212 = scmp.ne.s32.totalorder %s204, %s206
    %p213 = scmp.eq.s32.totalorder %s29, 2
    %p214 = por %p212, %p213
    %p215 = scmp.ne.s32.totalorder %s206, %s207
    %p216 = scmp.eq.s32.totalorder %s29, 0
    %p217 = por %p215, %p216
    %p218 = scmp.ne.s32.totalorder %s206, %s207
    %p219 = scmp.eq.s32.totalorder %s30, 2
    %p220 = por %p218, %p219
    %p222 = scmp.ne.s32.totalorder %s207, %s221
    %p223 = scmp.eq.s32.totalorder %s30, 0
    %p224 = por %p222, %p223
    %s226 = sadd.s32 %s225, 1
    %p229 = scmp.eq.s32.totalorder %s24, 2
    %p230 = scmp.ne.s32.totalorder %s225, %s227
    %p231 = scmp.eq.s32.totalorder %s24, 0
    %p232 = por %p230, %p231
    %p233 = scmp.ne.s32.totalorder %s225, %s227
    %p234 = scmp.eq.s32.totalorder %s29, 2
    %p235 = por %p233, %p234
    %p236 = scmp.ne.s32.totalorder %s227, %s228
    %p237 = scmp.eq.s32.totalorder %s29, 0
    %p238 = por %p236, %p237
    %p239 = scmp.ne.s32.totalorder %s227, %s228
    %p240 = scmp.eq.s32.totalorder %s30, 2
    %p241 = por %p239, %p240
    %p243 = scmp.ne.s32.totalorder %s228, %s242
    %p244 = scmp.eq.s32.totalorder %s30, 0
    %p245 = por %p243, %p244
    %s247 = sadd.s32 %s246, 1
    %p250 = scmp.eq.s32.totalorder %s24, 2
    %p251 = scmp.ne.s32.totalorder %s246, %s248
    %p252 = scmp.eq.s32.totalorder %s24, 0
    %p253 = por %p251, %p252
    %p254 = scmp.ne.s32.totalorder %s246, %s248
    %p255 = scmp.eq.s32.totalorder %s29, 2
    %p256 = por %p254, %p255
    %p257 = scmp.ne.s32.totalorder %s248, %s249
    %p258 = scmp.eq.s32.totalorder %s29, 0
    %p259 = por %p257, %p258
    %p260 = scmp.ne.s32.totalorder %s248, %s249
    %p261 = scmp.eq.s32.totalorder %s30, 2
    %p262 = por %p260, %p261
    %p264 = scmp.ne.s32.totalorder %s249, %s263
    %p265 = scmp.eq.s32.totalorder %s30, 0
    %p266 = por %p264, %p265
    %s268 = sadd.s32 %s267, 1
    %p271 = scmp.eq.s32.totalorder %s24, 2
    %p272 = scmp.ne.s32.totalorder %s267, %s269
    %p273 = scmp.eq.s32.totalorder %s24, 0
    %p274 = por %p272, %p273
    %p275 = scmp.ne.s32.totalorder %s267, %s269
    %p276 = scmp.eq.s32.totalorder %s29, 2
    %p277 = por %p275, %p276
    %p278 = scmp.ne.s32.totalorder %s269, %s270
    %p279 = scmp.eq.s32.totalorder %s29, 0
    %p280 = por %p278, %p279
    %p281 = scmp.ne.s32.totalorder %s269, %s270
    %p282 = scmp.eq.s32.totalorder %s30, 2
    %p283 = por %p281, %p282
    %p285 = scmp.ne.s32.totalorder %s270, %s284
    %p286 = scmp.eq.s32.totalorder %s30, 0
    %p287 = por %p285, %p286
    %s289 = sadd.s32 %s288, 1
    %p292 = scmp.eq.s32.totalorder %s24, 2
    %p293 = scmp.ne.s32.totalorder %s288, %s290
    %p294 = scmp.eq.s32.totalorder %s24, 0
    %p295 = por %p293, %p294
    %p296 = scmp.ne.s32.totalorder %s288, %s290
    %p297 = scmp.eq.s32.totalorder %s29, 2
    %p298 = por %p296, %p297
    %p299 = scmp.ne.s32.totalorder %s290, %s291
    %p300 = scmp.eq.s32.totalorder %s29, 0
    %p301 = por %p299, %p300
    %p302 = scmp.ne.s32.totalorder %s290, %s291
    %p303 = scmp.eq.s32.totalorder %s30, 2
    %p304 = por %p302, %p303
    %p306 = scmp.ne.s32.totalorder %s291, %s305
    %p307 = scmp.eq.s32.totalorder %s30, 0
    %p308 = por %p306, %p307
    %s310 = sadd.s32 %s309, 1
    %p313 = scmp.eq.s32.totalorder %s24, 2
    %p314 = scmp.ne.s32.totalorder %s309, %s311
    %p315 = scmp.eq.s32.totalorder %s24, 0
    %p316 = por %p314, %p315
    %p317 = scmp.ne.s32.totalorder %s309, %s311
    %p318 = scmp.eq.s32.totalorder %s29, 2
    %p319 = por %p317, %p318
    %p320 = scmp.ne.s32.totalorder %s311, %s312
    %p321 = scmp.eq.s32.totalorder %s29, 0
    %p322 = por %p320, %p321
    %p323 = scmp.ne.s32.totalorder %s311, %s312
    %p324 = scmp.eq.s32.totalorder %s30, 2
    %p325 = por %p323, %p324
    %p327 = scmp.ne.s32.totalorder %s312, %s326
    %p328 = scmp.eq.s32.totalorder %s30, 0
    %p329 = por %p327, %p328
    %s331 = sadd.s32 %s330, 1
    %p334 = scmp.eq.s32.totalorder %s24, 2
    %p335 = scmp.ne.s32.totalorder %s330, %s332
    %p336 = scmp.eq.s32.totalorder %s24, 0
    %p337 = por %p335, %p336
    %p338 = scmp.ne.s32.totalorder %s330, %s332
    %p339 = scmp.eq.s32.totalorder %s29, 2
    %p340 = por %p338, %p339
    %p341 = scmp.ne.s32.totalorder %s332, %s333
    %p342 = scmp.eq.s32.totalorder %s29, 0
    %p343 = por %p341, %p342
    %p344 = scmp.ne.s32.totalorder %s332, %s333
    %p345 = scmp.eq.s32.totalorder %s30, 2
    %p346 = por %p344, %p345
    %p348 = scmp.ne.s32.totalorder %s333, %s347
    %p349 = scmp.eq.s32.totalorder %s30, 0
    %p350 = por %p348, %p349
    %s352 = sadd.s32 %s351, 1
    %p355 = scmp.eq.s32.totalorder %s24, 2
    %p356 = scmp.ne.s32.totalorder %s351, %s353
    %p357 = scmp.eq.s32.totalorder %s24, 0
    %p358 = por %p356, %p357
    %p359 = scmp.ne.s32.totalorder %s351, %s353
    %p360 = scmp.eq.s32.totalorder %s29, 2
    %p361 = por %p359, %p360
    %p362 = scmp.ne.s32.totalorder %s353, %s354
    %p363 = scmp.eq.s32.totalorder %s29, 0
    %p364 = por %p362, %p363
    %p365 = scmp.ne.s32.totalorder %s353, %s354
    %p366 = scmp.eq.s32.totalorder %s30, 2
    %p367 = por %p365, %p366
    %p369 = scmp.ne.s32.totalorder %s354, %s368
    %p370 = scmp.eq.s32.totalorder %s30, 0
    %p371 = por %p369, %p370
    %s373 = sadd.s32 %s372, 1
    %p376 = scmp.eq.s32.totalorder %s24, 2
    %p377 = scmp.ne.s32.totalorder %s372, %s374
    %p378 = scmp.eq.s32.totalorder %s24, 0
    %p379 = por %p377, %p378
    %p380 = scmp.ne.s32.totalorder %s372, %s374
    %p381 = scmp.eq.s32.totalorder %s29, 2
    %p382 = por %p380, %p381
    %p383 = scmp.ne.s32.totalorder %s374, %s375
    %p384 = scmp.eq.s32.totalorder %s29, 0
    %p385 = por %p383, %p384
    %p386 = scmp.ne.s32.totalorder %s374, %s375
    %p387 = scmp.eq.s32.totalorder %s30, 2
    %p388 = por %p386, %p387
    %p390 = scmp.ne.s32.totalorder %s375, %s389
    %p391 = scmp.eq.s32.totalorder %s30, 0
    %p392 = por %p390, %p391
    %s394 = sadd.s32 %s393, 1
    %p397 = scmp.eq.s32.totalorder %s24, 2
    %p398 = scmp.ne.s32.totalorder %s393, %s395
    %p399 = scmp.eq.s32.totalorder %s24, 0
    %p400 = por %p398, %p399
    %p401 = scmp.ne.s32.totalorder %s393, %s395
    %p402 = scmp.eq.s32.totalorder %s29, 2
    %p403 = por %p401, %p402
    %p404 = scmp.ne.s32.totalorder %s395, %s396
    %p405 = scmp.eq.s32.totalorder %s29, 0
    %p406 = por %p404, %p405
    %p407 = scmp.ne.s32.totalorder %s395, %s396
    %p408 = scmp.eq.s32.totalorder %s30, 2
    %p409 = por %p407, %p408
    %p411 = scmp.ne.s32.totalorder %s396, %s410
    %p412 = scmp.eq.s32.totalorder %s30, 0
    %p413 = por %p411, %p412
    %s415 = sadd.s32 %s414, 1
    %p418 = scmp.eq.s32.totalorder %s24, 2
    %p419 = scmp.ne.s32.totalorder %s414, %s416
    %p420 = scmp.eq.s32.totalorder %s24, 0
    %p421 = por %p419, %p420
    %p422 = scmp.ne.s32.totalorder %s414, %s416
    %p423 = scmp.eq.s32.totalorder %s29, 2
    %p424 = por %p422, %p423
    %p425 = scmp.ne.s32.totalorder %s416, %s417
    %p426 = scmp.eq.s32.totalorder %s29, 0
    %p427 = por %p425, %p426
    %p428 = scmp.ne.s32.totalorder %s416, %s417
    %p429 = scmp.eq.s32.totalorder %s30, 2
    %p430 = por %p428, %p429
    %p432 = scmp.ne.s32.totalorder %s417, %s431
    %p433 = scmp.eq.s32.totalorder %s30, 0
    %p434 = por %p432, %p433
    %s436 = sadd.s32 %s435, 1
    %p439 = scmp.eq.s32.totalorder %s24, 2
    %p440 = scmp.ne.s32.totalorder %s435, %s437
    %p441 = scmp.eq.s32.totalorder %s24, 0
    %p442 = por %p440, %p441
    %p443 = scmp.ne.s32.totalorder %s435, %s437
    %p444 = scmp.eq.s32.totalorder %s29, 2
    %p445 = por %p443, %p444
    %p446 = scmp.ne.s32.totalorder %s437, %s438
    %p447 = scmp.eq.s32.totalorder %s29, 0
    %p448 = por %p446, %p447
    %p449 = scmp.ne.s32.totalorder %s437, %s438
    %p450 = scmp.eq.s32.totalorder %s30, 2
    %p451 = por %p449, %p450
    %p453 = scmp.ne.s32.totalorder %s438, %s452
    %p454 = scmp.eq.s32.totalorder %s30, 0
    %p455 = por %p453, %p454
    %p456 = scmp.le.s32.totalorder 1, %s24
    %p457 = scmp.lt.s32.totalorder %s24, 4
    %p458 = pnand %p456, %p457
    %p459 = pneg %p458
    // Predicated region
    $region9: #{tgat_forward.7} parent=5 // pred_check
      _
    $region10: #{tgat_forward.7} parent=5 // pred_check_branch
      %461 = sbr.rel (%p458) target = $region12
    $region11: #{tgat_forward.7} parent=5 // pred_region
      %s462 = ssub.s32 %s24, 1
      // Predicated region
      $region13: #{tgat_forward.7} parent=11 // pred_check
        %p463 = pneg %p45
      $region14: #{tgat_forward.7} parent=11 // pred_check_branch
        %465 = sbr.rel (%p463) target = $region16
      $region15: #{tgat_forward.7} parent=11 // pred_region
        _
      $region16: #{tgat_forward.7} parent=11 // pred_fallthru
        _
      // Predicated region
      $region17: #{tgat_forward.7} parent=11 // pred_check
        %p466 = pneg %p196
      $region18: #{tgat_forward.7} parent=11 // pred_check_branch
        %468 = sbr.rel (%p466) target = $region20
      $region19: #{tgat_forward.7} parent=11 // pred_region
        _
      $region20: #{tgat_forward.7} parent=11 // pred_fallthru
        _
      // Predicated region
      $region21: #{tgat_forward.7} parent=11 // pred_check
        %p469 = pneg %p217
      $region22: #{tgat_forward.7} parent=11 // pred_check_branch
        %471 = sbr.rel (%p469) target = $region24
      $region23: #{tgat_forward.7} parent=11 // pred_region
        _
      $region24: #{tgat_forward.7} parent=11 // pred_fallthru
        _
      // Predicated region
      $region25: #{tgat_forward.7} parent=11 // pred_check
        %p472 = pneg %p238
      $region26: #{tgat_forward.7} parent=11 // pred_check_branch
        %474 = sbr.rel (%p472) target = $region28
      $region27: #{tgat_forward.7} parent=11 // pred_region
        _
      $region28: #{tgat_forward.7} parent=11 // pred_fallthru
        _
      // Predicated region
      $region29: #{tgat_forward.7} parent=11 // pred_check
        %p475 = pneg %p259
      $region30: #{tgat_forward.7} parent=11 // pred_check_branch
        %477 = sbr.rel (%p475) target = $region32
      $region31: #{tgat_forward.7} parent=11 // pred_region
        _
      $region32: #{tgat_forward.7} parent=11 // pred_fallthru
        _
      // Predicated region
      $region33: #{tgat_forward.7} parent=11 // pred_check
        %p478 = pneg %p280
      $region34: #{tgat_forward.7} parent=11 // pred_check_branch
        %480 = sbr.rel (%p478) target = $region36
      $region35: #{tgat_forward.7} parent=11 // pred_region
        _
      $region36: #{tgat_forward.7} parent=11 // pred_fallthru
        _
      // Predicated region
      $region37: #{tgat_forward.7} parent=11 // pred_check
        %p481 = pneg %p301
      $region38: #{tgat_forward.7} parent=11 // pred_check_branch
        %483 = sbr.rel (%p481) target = $region40
      $region39: #{tgat_forward.7} parent=11 // pred_region
        _
      $region40: #{tgat_forward.7} parent=11 // pred_fallthru
        _
      // Predicated region
      $region41: #{tgat_forward.7} parent=11 // pred_check
        %p484 = pneg %p322
      $region42: #{tgat_forward.7} parent=11 // pred_check_branch
        %486 = sbr.rel (%p484) target = $region44
      $region43: #{tgat_forward.7} parent=11 // pred_region
        _
      $region44: #{tgat_forward.7} parent=11 // pred_fallthru
        _
      // Predicated region
      $region45: #{tgat_forward.7} parent=11 // pred_check
        %p487 = pneg %p343
      $region46: #{tgat_forward.7} parent=11 // pred_check_branch
        %489 = sbr.rel (%p487) target = $region48
      $region47: #{tgat_forward.7} parent=11 // pred_region
        _
      $region48: #{tgat_forward.7} parent=11 // pred_fallthru
        _
      // Predicated region
      $region49: #{tgat_forward.7} parent=11 // pred_check
        %p490 = pneg %p364
      $region50: #{tgat_forward.7} parent=11 // pred_check_branch
        %492 = sbr.rel (%p490) target = $region52
      $region51: #{tgat_forward.7} parent=11 // pred_region
        _
      $region52: #{tgat_forward.7} parent=11 // pred_fallthru
        _
      // Predicated region
      $region53: #{tgat_forward.7} parent=11 // pred_check
        %p493 = pneg %p385
      $region54: #{tgat_forward.7} parent=11 // pred_check_branch
        %495 = sbr.rel (%p493) target = $region56
      $region55: #{tgat_forward.7} parent=11 // pred_region
        _
      $region56: #{tgat_forward.7} parent=11 // pred_fallthru
        _
      // Predicated region
      $region57: #{tgat_forward.7} parent=11 // pred_check
        %p496 = pneg %p406
      $region58: #{tgat_forward.7} parent=11 // pred_check_branch
        %498 = sbr.rel (%p496) target = $region60
      $region59: #{tgat_forward.7} parent=11 // pred_region
        _
      $region60: #{tgat_forward.7} parent=11 // pred_fallthru
        _
      // Predicated region
      $region61: #{tgat_forward.7} parent=11 // pred_check
        %p499 = pneg %p427
      $region62: #{tgat_forward.7} parent=11 // pred_check_branch
        %501 = sbr.rel (%p499) target = $region64
      $region63: #{tgat_forward.7} parent=11 // pred_region
        _
      $region64: #{tgat_forward.7} parent=11 // pred_fallthru
        _
    $region12: #{tgat_forward.7} parent=5 // pred_fallthru
      _
    %p502 = scmp.lt.s32.totalorder %s24, 3
    // Predicated region
    $region65: #{tgat_forward.7} parent=5 // pred_check
      %p503 = pneg %p502
    $region66: #{tgat_forward.7} parent=5 // pred_check_branch
      %505 = sbr.rel (%p503) target = $region68
    $region67: #{tgat_forward.7} parent=5 // pred_region
      // Predicated region
      $region69: #{tgat_forward.7} parent=67 // pred_check
        %p506 = pneg %p65
      $region70: #{tgat_forward.7} parent=67 // pred_check_branch
        %508 = sbr.rel (%p506) target = $region72
      $region71: #{tgat_forward.7} parent=67 // pred_region
        %s509 = smul.u32 64, %s24
        %p510 = scmp.lt.s32.totalorder %s509, 191
        %s511 = scalar_select %p510, %s509, 191
        %s512 = smul.addr %s511, 4
        %s513 = scalar_lea.vmem %s1, %s512
        %s514 = smul.u32 64, %s24
      $region72: #{tgat_forward.7} parent=67 // pred_fallthru
        _
      // Predicated region
      $region73: #{tgat_forward.7} parent=67 // pred_check
        %p515 = pneg %p91
      $region74: #{tgat_forward.7} parent=67 // pred_check_branch
        %517 = sbr.rel (%p515) target = $region76
      $region75: #{tgat_forward.7} parent=67 // pred_region
        %s518 = smul.u32 64, %s24
        %p519 = scmp.lt.s32.totalorder %s518, 191
        %s520 = scalar_select %p519, %s518, 191
        %s521 = smul.addr %s520, 4
        %s522 = scalar_lea.vmem %s2, %s521
        %s523 = smul.u32 64, %s24
      $region76: #{tgat_forward.7} parent=67 // pred_fallthru
        _
      // Predicated region
      $region77: #{tgat_forward.7} parent=67 // pred_check
        %p524 = pneg %p117
      $region78: #{tgat_forward.7} parent=67 // pred_check_branch
        %526 = sbr.rel (%p524) target = $region80
      $region79: #{tgat_forward.7} parent=67 // pred_region
        %s527 = smul.u32 64, %s24
        %p528 = scmp.lt.s32.totalorder %s527, 191
        %s529 = scalar_select %p528, %s527, 191
        %s530 = smul.addr %s529, 2
        %s531 = smul.addr %s530, 4
        %s532 = scalar_lea.vmem %s3, %s531
        %s533 = smul.u32 64, %s24
      $region80: #{tgat_forward.7} parent=67 // pred_fallthru
        _
      // Predicated region
      $region81: #{tgat_forward.7} parent=67 // pred_check
        %p534 = pneg %p143
      $region82: #{tgat_forward.7} parent=67 // pred_check_branch
        %536 = sbr.rel (%p534) target = $region84
      $region83: #{tgat_forward.7} parent=67 // pred_region
        %s537 = smul.u32 64, %s24
        %p538 = scmp.lt.s32.totalorder %s537, 191
        %s539 = scalar_select %p538, %s537, 191
        %s540 = smul.addr %s539, 8
        %s541 = scalar_lea.vmem %s4, %s540
        %s542 = smul.u32 64, %s24
      $region84: #{tgat_forward.7} parent=67 // pred_fallthru
        _
      // Predicated region
      $region85: #{tgat_forward.7} parent=67 // pred_check
        %p543 = pneg %p169
      $region86: #{tgat_forward.7} parent=67 // pred_check_branch
        %545 = sbr.rel (%p543) target = $region88
      $region87: #{tgat_forward.7} parent=67 // pred_region
        %s546 = smul.u32 4, %s24
        %p547 = scmp.lt.s32.totalorder %s546, 11
        %s548 = scalar_select %p547, %s546, 11
        %s549 = scalar_lea.vmem %s5, %s548
        %s550 = smul.u32 4, %s24
      $region88: #{tgat_forward.7} parent=67 // pred_fallthru
        _
    $region68: #{tgat_forward.7} parent=5 // pred_fallthru
      _
    %p551 = scmp.le.s32.totalorder 1, %s24
    %p552 = scmp.lt.s32.totalorder %s24, 4
    %p553 = pnand %p551, %p552
    %p554 = pneg %p553
    // Predicated region
    $region89: #{tgat_forward.7} parent=5 // pred_check
      _
    $region90: #{tgat_forward.7} parent=5 // pred_check_branch
      %556 = sbr.rel (%p553) target = $region92
    $region91: #{tgat_forward.7} parent=5 // pred_region
      %s557 = ssub.s32 %s24, 1
      %p558 = pneg %p45
      %p559 = pneg %p42
      %s560 = smul.u32 64, %s29
      %p561 = scmp.lt.s32.totalorder %s560, 191
      %s562 = scalar_select %p561, %s560, 191
      %s563 = smul.addr %s562, 4
      %s564 = scalar_lea.vmem %s1, %s563
      %p565 = pneg %p71
      %p566 = pneg %p68
      %s567 = smul.u32 64, %s29
      %p568 = scmp.lt.s32.totalorder %s567, 191
      %s569 = scalar_select %p568, %s567, 191
      %s570 = smul.addr %s569, 4
      %s571 = scalar_lea.vmem %s2, %s570
      %p572 = pneg %p97
      %p573 = pneg %p94
      %s574 = smul.u32 64, %s29
      %p575 = scmp.lt.s32.totalorder %s574, 191
      %s576 = scalar_select %p575, %s574, 191
      %s577 = smul.addr %s576, 2
      %s578 = smul.addr %s577, 4
      %s579 = scalar_lea.vmem %s3, %s578
      %p580 = pneg %p123
      %p581 = pneg %p120
      %s582 = smul.u32 64, %s29
      %p583 = scmp.lt.s32.totalorder %s582, 191
      %s584 = scalar_select %p583, %s582, 191
      %s585 = smul.addr %s584, 8
      %s586 = scalar_lea.vmem %s4, %s585
      %p587 = pneg %p149
      %p588 = pneg %p146
      %s589 = smul.u32 4, %s29
      %p590 = scmp.lt.s32.totalorder %s589, 11
      %s591 = scalar_select %p590, %s589, 11
      %s592 = scalar_lea.vmem %s5, %s591
      %p593 = pneg %p175
      %p594 = pneg %p172
      %p595 = pneg %p196
      %p596 = pneg %p193
      %p597 = pneg %p217
      %p598 = pneg %p214
      %p599 = pneg %p238
      %p600 = pneg %p235
      %p601 = pneg %p259
      %p602 = pneg %p256
      %p603 = pneg %p280
      %p604 = pneg %p277
      %p605 = pneg %p301
      %p606 = pneg %p298
      %p607 = pneg %p322
      %p608 = pneg %p319
      %p609 = pneg %p343
      %p610 = pneg %p340
      %p611 = pneg %p364
      %p612 = pneg %p361
      %p613 = pneg %p385
      %p614 = pneg %p382
      %p615 = pneg %p406
      %p616 = pneg %p403
      %p617 = pneg %p427
      %p618 = pneg %p424
      %p619 = pneg %p448
      %p620 = pneg %p445
      %s621 = smul.u32 64, %s29
      %p622 = scmp.lt.s32.totalorder %s621, 191
      %s623 = scalar_select %p622, %s621, 191
      %s624 = smul.addr %s623, 4
      %s625 = scalar_lea.vmem %s1, %s624
      %s626 = smul.u32 64, %s29
      %s627 = smul.u32 64, %s29
      %p628 = scmp.lt.s32.totalorder %s627, 191
      %s629 = scalar_select %p628, %s627, 191
      %s630 = smul.addr %s629, 4
      %s631 = scalar_lea.vmem %s2, %s630
      %s632 = smul.u32 64, %s29
      %s633 = smul.u32 64, %s29
      %p634 = scmp.lt.s32.totalorder %s633, 191
      %s635 = scalar_select %p634, %s633, 191
      %s636 = smul.addr %s635, 2
      %s637 = smul.addr %s636, 4
      %s638 = scalar_lea.vmem %s3, %s637
      %s639 = smul.u32 64, %s29
      %s640 = smul.u32 64, %s29
      %p641 = scmp.lt.s32.totalorder %s640, 191
      %s642 = scalar_select %p641, %s640, 191
      %s643 = smul.addr %s642, 8
      %s644 = scalar_lea.vmem %s4, %s643
      %s645 = smul.u32 64, %s29
      %s646 = smul.u32 4, %s29
      %p647 = scmp.lt.s32.totalorder %s646, 11
      %s648 = scalar_select %p647, %s646, 11
      %s649 = scalar_lea.vmem %s5, %s648
      %s650 = smul.u32 4, %s29
      %p652 = scmp.eq.s32.totalorder %s29, 0
      // Predicated region
      $region93: #{tgat_forward.7} parent=91 // pred_check
        %p653 = pneg %p652
      $region94: #{tgat_forward.7} parent=91 // pred_check_branch
        %655 = sbr.rel (%p653) target = $region96
      $region95: #{tgat_forward.7} parent=91 // pred_region
        %656 = vst [vmem:[#allocation2] sm:$0xff] 0.0
        %657 = vst [vmem:[#allocation2 + $0x8] sm:$0xff] 0.0
        %658 = vst [vmem:[#allocation2 + $0x10] sm:$0xff] 0.0
        %659 = vst [vmem:[#allocation2 + $0x18] sm:$0xff] 0.0
        %660 = vst [vmem:[#allocation2 + $0x20] sm:$0xff] 0.0
        %661 = vst [vmem:[#allocation2 + $0x28] sm:$0xff] 0.0
        %662 = vst [vmem:[#allocation2 + $0x30] sm:$0xff] 0.0
        %663 = vst [vmem:[#allocation2 + $0x38] sm:$0xff] 0.0
        %664 = vst [vmem:[#allocation3] sm:$0xff] 0.0
        %665 = vst [vmem:[#allocation3 + $0x8] sm:$0xff] 0.0
        %666 = vst [vmem:[#allocation3 + $0x10] sm:$0xff] 0.0
        %667 = vst [vmem:[#allocation3 + $0x18] sm:$0xff] 0.0
        %668 = vst [vmem:[#allocation3 + $0x20] sm:$0xff] 0.0
        %669 = vst [vmem:[#allocation3 + $0x28] sm:$0xff] 0.0
        %670 = vst [vmem:[#allocation3 + $0x30] sm:$0xff] 0.0
        %671 = vst [vmem:[#allocation3 + $0x38] sm:$0xff] 0.0
        %vm672 = vcmask 0
        %673 = vst.msk [vmem:[#allocation4] sm:$0x1] %vm672, -1e+30
      $region96: #{tgat_forward.7} parent=91 // pred_fallthru
        _
      %v674 = vld [vmem:[%s625] sm:$0xf]
      %v675 = vld [vmem:[%s625 + $0x4] sm:$0xf]
      %v676 = vld [vmem:[%s625 + $0x8] sm:$0xf]
      %v677 = vld [vmem:[%s625 + $0xc] sm:$0xf]
      %v678 = vld [vmem:[%s625 + $0x10] sm:$0xf]
      %v679 = vld [vmem:[%s625 + $0x14] sm:$0xf]
      %v680 = vld [vmem:[%s625 + $0x18] sm:$0xf]
      %v681 = vld [vmem:[%s625 + $0x1c] sm:$0xf]
      %v682 = vld [vmem:[%s625 + $0x20] sm:$0xf]
      %v683 = vld [vmem:[%s625 + $0x24] sm:$0xf]
      %v684 = vld [vmem:[%s625 + $0x28] sm:$0xf]
      %v685 = vld [vmem:[%s625 + $0x2c] sm:$0xf]
      %v686 = vld [vmem:[%s625 + $0x30] sm:$0xf]
      %v687 = vld [vmem:[%s625 + $0x34] sm:$0xf]
      %v688 = vld [vmem:[%s625 + $0x38] sm:$0xf]
      %v689 = vld [vmem:[%s625 + $0x3c] sm:$0xf]
      %v690 = vld [vmem:[%s625 + $0x40] sm:$0xf]
      %v691 = vld [vmem:[%s625 + $0x44] sm:$0xf]
      %v692 = vld [vmem:[%s625 + $0x48] sm:$0xf]
      %v693 = vld [vmem:[%s625 + $0x4c] sm:$0xf]
      %v694 = vld [vmem:[%s625 + $0x50] sm:$0xf]
      %v695 = vld [vmem:[%s625 + $0x54] sm:$0xf]
      %v696 = vld [vmem:[%s625 + $0x58] sm:$0xf]
      %v697 = vld [vmem:[%s625 + $0x5c] sm:$0xf]
      %v698 = vld [vmem:[%s625 + $0x60] sm:$0xf]
      %v699 = vld [vmem:[%s625 + $0x64] sm:$0xf]
      %v700 = vld [vmem:[%s625 + $0x68] sm:$0xf]
      %v701 = vld [vmem:[%s625 + $0x6c] sm:$0xf]
      %v702 = vld [vmem:[%s625 + $0x70] sm:$0xf]
      %v703 = vld [vmem:[%s625 + $0x74] sm:$0xf]
      %v704 = vld [vmem:[%s625 + $0x78] sm:$0xf]
      %v705 = vld [vmem:[%s625 + $0x7c] sm:$0xf]
      %v706 = vld [vmem:[%s625 + $0x80] sm:$0xf]
      %v707 = vld [vmem:[%s625 + $0x84] sm:$0xf]
      %v708 = vld [vmem:[%s625 + $0x88] sm:$0xf]
      %v709 = vld [vmem:[%s625 + $0x8c] sm:$0xf]
      %v710 = vld [vmem:[%s625 + $0x90] sm:$0xf]
      %v711 = vld [vmem:[%s625 + $0x94] sm:$0xf]
      %v712 = vld [vmem:[%s625 + $0x98] sm:$0xf]
      %v713 = vld [vmem:[%s625 + $0x9c] sm:$0xf]
      %v714 = vld [vmem:[%s625 + $0xa0] sm:$0xf]
      %v715 = vld [vmem:[%s625 + $0xa4] sm:$0xf]
      %v716 = vld [vmem:[%s625 + $0xa8] sm:$0xf]
      %v717 = vld [vmem:[%s625 + $0xac] sm:$0xf]
      %v718 = vld [vmem:[%s625 + $0xb0] sm:$0xf]
      %v719 = vld [vmem:[%s625 + $0xb4] sm:$0xf]
      %v720 = vld [vmem:[%s625 + $0xb8] sm:$0xf]
      %v721 = vld [vmem:[%s625 + $0xbc] sm:$0xf]
      %v722 = vld [vmem:[%s625 + $0xc0] sm:$0xf]
      %v723 = vld [vmem:[%s625 + $0xc4] sm:$0xf]
      %v724 = vld [vmem:[%s625 + $0xc8] sm:$0xf]
      %v725 = vld [vmem:[%s625 + $0xcc] sm:$0xf]
      %v726 = vld [vmem:[%s625 + $0xd0] sm:$0xf]
      %v727 = vld [vmem:[%s625 + $0xd4] sm:$0xf]
      %v728 = vld [vmem:[%s625 + $0xd8] sm:$0xf]
      %v729 = vld [vmem:[%s625 + $0xdc] sm:$0xf]
      %v730 = vld [vmem:[%s625 + $0xe0] sm:$0xf]
      %v731 = vld [vmem:[%s625 + $0xe4] sm:$0xf]
      %v732 = vld [vmem:[%s625 + $0xe8] sm:$0xf]
      %v733 = vld [vmem:[%s625 + $0xec] sm:$0xf]
      %v734 = vld [vmem:[%s625 + $0xf0] sm:$0xf]
      %v735 = vld [vmem:[%s625 + $0xf4] sm:$0xf]
      %v736 = vld [vmem:[%s625 + $0xf8] sm:$0xf]
      %v737 = vld [vmem:[%s625 + $0xfc] sm:$0xf]
      %v738 = vld [vmem:[%s631] sm:$0xf]
      %v739 = vld [vmem:[%s631 + $0x4] sm:$0xf]
      %v740 = vld [vmem:[%s631 + $0x8] sm:$0xf]
      %v741 = vld [vmem:[%s631 + $0xc] sm:$0xf]
      %v742 = vld [vmem:[%s631 + $0x10] sm:$0xf]
      %v743 = vld [vmem:[%s631 + $0x14] sm:$0xf]
      %v744 = vld [vmem:[%s631 + $0x18] sm:$0xf]
      %v745 = vld [vmem:[%s631 + $0x1c] sm:$0xf]
      %v746 = vld [vmem:[%s631 + $0x20] sm:$0xf]
      %v747 = vld [vmem:[%s631 + $0x24] sm:$0xf]
      %v748 = vld [vmem:[%s631 + $0x28] sm:$0xf]
      %v749 = vld [vmem:[%s631 + $0x2c] sm:$0xf]
      %v750 = vld [vmem:[%s631 + $0x30] sm:$0xf]
      %v751 = vld [vmem:[%s631 + $0x34] sm:$0xf]
      %v752 = vld [vmem:[%s631 + $0x38] sm:$0xf]
      %v753 = vld [vmem:[%s631 + $0x3c] sm:$0xf]
      %v754 = vld [vmem:[%s631 + $0x40] sm:$0xf]
      %v755 = vld [vmem:[%s631 + $0x44] sm:$0xf]
      %v756 = vld [vmem:[%s631 + $0x48] sm:$0xf]
      %v757 = vld [vmem:[%s631 + $0x4c] sm:$0xf]
      %v758 = vld [vmem:[%s631 + $0x50] sm:$0xf]
      %v759 = vld [vmem:[%s631 + $0x54] sm:$0xf]
      %v760 = vld [vmem:[%s631 + $0x58] sm:$0xf]
      %v761 = vld [vmem:[%s631 + $0x5c] sm:$0xf]
      %v762 = vld [vmem:[%s631 + $0x60] sm:$0xf]
      %v763 = vld [vmem:[%s631 + $0x64] sm:$0xf]
      %v764 = vld [vmem:[%s631 + $0x68] sm:$0xf]
      %v765 = vld [vmem:[%s631 + $0x6c] sm:$0xf]
      %v766 = vld [vmem:[%s631 + $0x70] sm:$0xf]
      %v767 = vld [vmem:[%s631 + $0x74] sm:$0xf]
      %v768 = vld [vmem:[%s631 + $0x78] sm:$0xf]
      %v769 = vld [vmem:[%s631 + $0x7c] sm:$0xf]
      %v770 = vld [vmem:[%s631 + $0x80] sm:$0xf]
      %v771 = vld [vmem:[%s631 + $0x84] sm:$0xf]
      %v772 = vld [vmem:[%s631 + $0x88] sm:$0xf]
      %v773 = vld [vmem:[%s631 + $0x8c] sm:$0xf]
      %v774 = vld [vmem:[%s631 + $0x90] sm:$0xf]
      %v775 = vld [vmem:[%s631 + $0x94] sm:$0xf]
      %v776 = vld [vmem:[%s631 + $0x98] sm:$0xf]
      %v777 = vld [vmem:[%s631 + $0x9c] sm:$0xf]
      %v778 = vld [vmem:[%s631 + $0xa0] sm:$0xf]
      %v779 = vld [vmem:[%s631 + $0xa4] sm:$0xf]
      %v780 = vld [vmem:[%s631 + $0xa8] sm:$0xf]
      %v781 = vld [vmem:[%s631 + $0xac] sm:$0xf]
      %v782 = vld [vmem:[%s631 + $0xb0] sm:$0xf]
      %v783 = vld [vmem:[%s631 + $0xb4] sm:$0xf]
      %v784 = vld [vmem:[%s631 + $0xb8] sm:$0xf]
      %v785 = vld [vmem:[%s631 + $0xbc] sm:$0xf]
      %v786 = vld [vmem:[%s631 + $0xc0] sm:$0xf]
      %v787 = vld [vmem:[%s631 + $0xc4] sm:$0xf]
      %v788 = vld [vmem:[%s631 + $0xc8] sm:$0xf]
      %v789 = vld [vmem:[%s631 + $0xcc] sm:$0xf]
      %v790 = vld [vmem:[%s631 + $0xd0] sm:$0xf]
      %v791 = vld [vmem:[%s631 + $0xd4] sm:$0xf]
      %v792 = vld [vmem:[%s631 + $0xd8] sm:$0xf]
      %v793 = vld [vmem:[%s631 + $0xdc] sm:$0xf]
      %v794 = vld [vmem:[%s631 + $0xe0] sm:$0xf]
      %v795 = vld [vmem:[%s631 + $0xe4] sm:$0xf]
      %v796 = vld [vmem:[%s631 + $0xe8] sm:$0xf]
      %v797 = vld [vmem:[%s631 + $0xec] sm:$0xf]
      %v798 = vld [vmem:[%s631 + $0xf0] sm:$0xf]
      %v799 = vld [vmem:[%s631 + $0xf4] sm:$0xf]
      %v800 = vld [vmem:[%s631 + $0xf8] sm:$0xf]
      %v801 = vld [vmem:[%s631 + $0xfc] sm:$0xf]
      %v802 = vld [vmem:[%s638] sm:$0xff]
      %v803 = vld [vmem:[%s638 + $0x8] sm:$0xff]
      %v804 = vld [vmem:[%s638 + $0x10] sm:$0xff]
      %v805 = vld [vmem:[%s638 + $0x18] sm:$0xff]
      %v806 = vld [vmem:[%s638 + $0x20] sm:$0xff]
      %v807 = vld [vmem:[%s638 + $0x28] sm:$0xff]
      %v808 = vld [vmem:[%s638 + $0x30] sm:$0xff]
      %v809 = vld [vmem:[%s638 + $0x38] sm:$0xff]
      %v810 = vld [vmem:[%s638 + $0x40] sm:$0xff]
      %v811 = vld [vmem:[%s638 + $0x48] sm:$0xff]
      %v812 = vld [vmem:[%s638 + $0x50] sm:$0xff]
      %v813 = vld [vmem:[%s638 + $0x58] sm:$0xff]
      %v814 = vld [vmem:[%s638 + $0x60] sm:$0xff]
      %v815 = vld [vmem:[%s638 + $0x68] sm:$0xff]
      %v816 = vld [vmem:[%s638 + $0x70] sm:$0xff]
      %v817 = vld [vmem:[%s638 + $0x78] sm:$0xff]
      %v818 = vld [vmem:[%s638 + $0x80] sm:$0xff]
      %v819 = vld [vmem:[%s638 + $0x88] sm:$0xff]
      %v820 = vld [vmem:[%s638 + $0x90] sm:$0xff]
      %v821 = vld [vmem:[%s638 + $0x98] sm:$0xff]
      %v822 = vld [vmem:[%s638 + $0xa0] sm:$0xff]
      %v823 = vld [vmem:[%s638 + $0xa8] sm:$0xff]
      %v824 = vld [vmem:[%s638 + $0xb0] sm:$0xff]
      %v825 = vld [vmem:[%s638 + $0xb8] sm:$0xff]
      %v826 = vld [vmem:[%s638 + $0xc0] sm:$0xff]
      %v827 = vld [vmem:[%s638 + $0xc8] sm:$0xff]
      %v828 = vld [vmem:[%s638 + $0xd0] sm:$0xff]
      %v829 = vld [vmem:[%s638 + $0xd8] sm:$0xff]
      %v830 = vld [vmem:[%s638 + $0xe0] sm:$0xff]
      %v831 = vld [vmem:[%s638 + $0xe8] sm:$0xff]
      %v832 = vld [vmem:[%s638 + $0xf0] sm:$0xff]
      %v833 = vld [vmem:[%s638 + $0xf8] sm:$0xff]
      %v834 = vld [vmem:[%s638 + $0x100] sm:$0xff]
      %v835 = vld [vmem:[%s638 + $0x108] sm:$0xff]
      %v836 = vld [vmem:[%s638 + $0x110] sm:$0xff]
      %v837 = vld [vmem:[%s638 + $0x118] sm:$0xff]
      %v838 = vld [vmem:[%s638 + $0x120] sm:$0xff]
      %v839 = vld [vmem:[%s638 + $0x128] sm:$0xff]
      %v840 = vld [vmem:[%s638 + $0x130] sm:$0xff]
      %v841 = vld [vmem:[%s638 + $0x138] sm:$0xff]
      %v842 = vld [vmem:[%s638 + $0x140] sm:$0xff]
      %v843 = vld [vmem:[%s638 + $0x148] sm:$0xff]
      %v844 = vld [vmem:[%s638 + $0x150] sm:$0xff]
      %v845 = vld [vmem:[%s638 + $0x158] sm:$0xff]
      %v846 = vld [vmem:[%s638 + $0x160] sm:$0xff]
      %v847 = vld [vmem:[%s638 + $0x168] sm:$0xff]
      %v848 = vld [vmem:[%s638 + $0x170] sm:$0xff]
      %v849 = vld [vmem:[%s638 + $0x178] sm:$0xff]
      %v850 = vld [vmem:[%s638 + $0x180] sm:$0xff]
      %v851 = vld [vmem:[%s638 + $0x188] sm:$0xff]
      %v852 = vld [vmem:[%s638 + $0x190] sm:$0xff]
      %v853 = vld [vmem:[%s638 + $0x198] sm:$0xff]
      %v854 = vld [vmem:[%s638 + $0x1a0] sm:$0xff]
      %v855 = vld [vmem:[%s638 + $0x1a8] sm:$0xff]
      %v856 = vld [vmem:[%s638 + $0x1b0] sm:$0xff]
      %v857 = vld [vmem:[%s638 + $0x1b8] sm:$0xff]
      %v858 = vld [vmem:[%s638 + $0x1c0] sm:$0xff]
      %v859 = vld [vmem:[%s638 + $0x1c8] sm:$0xff]
      %v860 = vld [vmem:[%s638 + $0x1d0] sm:$0xff]
      %v861 = vld [vmem:[%s638 + $0x1d8] sm:$0xff]
      %v862 = vld [vmem:[%s638 + $0x1e0] sm:$0xff]
      %v863 = vld [vmem:[%s638 + $0x1e8] sm:$0xff]
      %v864 = vld [vmem:[%s638 + $0x1f0] sm:$0xff]
      %v865 = vld [vmem:[%s638 + $0x1f8] sm:$0xff]
      %v866 = vld [vmem:[%s6] sm:$0xf]
      %v867 = vld [vmem:[%s6 + $0x4] sm:$0xf]
      %v868 = vld [vmem:[%s6 + $0x8] sm:$0xf]
      %v869 = vld [vmem:[%s6 + $0xc] sm:$0xf]
      %v870 = vld [vmem:[%s6 + $0x10] sm:$0xf]
      %v871 = vld [vmem:[%s6 + $0x14] sm:$0xf]
      %v872 = vld [vmem:[%s6 + $0x18] sm:$0xf]
      %v873 = vld [vmem:[%s6 + $0x1c] sm:$0xf]
      %v874 = vld [vmem:[%s6 + $0x20] sm:$0xf]
      %v875 = vld [vmem:[%s6 + $0x24] sm:$0xf]
      %v876 = vld [vmem:[%s6 + $0x28] sm:$0xf]
      %v877 = vld [vmem:[%s6 + $0x2c] sm:$0xf]
      %v878 = vld [vmem:[%s6 + $0x30] sm:$0xf]
      %v879 = vld [vmem:[%s6 + $0x34] sm:$0xf]
      %v880 = vld [vmem:[%s6 + $0x38] sm:$0xf]
      %v881 = vld [vmem:[%s6 + $0x3c] sm:$0xf]
      %v882 = vld [vmem:[%s7] sm:$0x1]
      %v884 = vlaneseq
      %v885 = vshrl.u32 %v884, 7
      %v886 = vsub.s32 0, %v885
      %v887 = vrot.slane %v882, %v886
      %v953 = vunpack.c.l.b16 %v674
      %v954 = vunpack.c.l.b16 %v675
      %v955 = vunpack.c.l.b16 %v676
      %v956 = vunpack.c.l.b16 %v677
      %v957 = vunpack.c.l.b16 %v678
      %v958 = vunpack.c.l.b16 %v679
      %v959 = vunpack.c.l.b16 %v680
      %v960 = vunpack.c.l.b16 %v681
      %v961 = vunpack.c.l.b16 %v682
      %v962 = vunpack.c.l.b16 %v683
      %v963 = vunpack.c.l.b16 %v684
      %v964 = vunpack.c.l.b16 %v685
      %v965 = vunpack.c.l.b16 %v686
      %v966 = vunpack.c.l.b16 %v687
      %v967 = vunpack.c.l.b16 %v688
      %v968 = vunpack.c.l.b16 %v689
      %v969 = vunpack.c.l.b16 %v690
      %v970 = vunpack.c.l.b16 %v691
      %v971 = vunpack.c.l.b16 %v692
      %v972 = vunpack.c.l.b16 %v693
      %v973 = vunpack.c.l.b16 %v694
      %v974 = vunpack.c.l.b16 %v695
      %v975 = vunpack.c.l.b16 %v696
      %v976 = vunpack.c.l.b16 %v697
      %v977 = vunpack.c.l.b16 %v698
      %v978 = vunpack.c.l.b16 %v699
      %v979 = vunpack.c.l.b16 %v700
      %v980 = vunpack.c.l.b16 %v701
      %v981 = vunpack.c.l.b16 %v702
      %v982 = vunpack.c.l.b16 %v703
      %v983 = vunpack.c.l.b16 %v704
      %v984 = vunpack.c.l.b16 %v705
      %v985 = vunpack.c.l.b16 %v706
      %v986 = vunpack.c.l.b16 %v707
      %v987 = vunpack.c.l.b16 %v708
      %v988 = vunpack.c.l.b16 %v709
      %v989 = vunpack.c.l.b16 %v710
      %v990 = vunpack.c.l.b16 %v711
      %v991 = vunpack.c.l.b16 %v712
      %v992 = vunpack.c.l.b16 %v713
      %v993 = vunpack.c.l.b16 %v714
      %v994 = vunpack.c.l.b16 %v715
      %v995 = vunpack.c.l.b16 %v716
      %v996 = vunpack.c.l.b16 %v717
      %v997 = vunpack.c.l.b16 %v718
      %v998 = vunpack.c.l.b16 %v719
      %v999 = vunpack.c.l.b16 %v720
      %v1000 = vunpack.c.l.b16 %v721
      %v1001 = vunpack.c.l.b16 %v722
      %v1002 = vunpack.c.l.b16 %v723
      %v1003 = vunpack.c.l.b16 %v724
      %v1004 = vunpack.c.l.b16 %v725
      %v1005 = vunpack.c.l.b16 %v726
      %v1006 = vunpack.c.l.b16 %v727
      %v1007 = vunpack.c.l.b16 %v728
      %v1008 = vunpack.c.l.b16 %v729
      %v1009 = vunpack.c.l.b16 %v730
      %v1010 = vunpack.c.l.b16 %v731
      %v1011 = vunpack.c.l.b16 %v732
      %v1012 = vunpack.c.l.b16 %v733
      %v1013 = vunpack.c.l.b16 %v734
      %v1014 = vunpack.c.l.b16 %v735
      %v1015 = vunpack.c.l.b16 %v736
      %v1016 = vunpack.c.l.b16 %v737
      %v1017 = vpack.c.b16 %v954, %v953
      %v1018 = vpack.c.b16 %v956, %v955
      %v1019 = vpack.c.b16 %v958, %v957
      %v1020 = vpack.c.b16 %v960, %v959
      %v1021 = vpack.c.b16 %v962, %v961
      %v1022 = vpack.c.b16 %v964, %v963
      %v1023 = vpack.c.b16 %v966, %v965
      %v1024 = vpack.c.b16 %v968, %v967
      %v1025 = vpack.c.b16 %v970, %v969
      %v1026 = vpack.c.b16 %v972, %v971
      %v1027 = vpack.c.b16 %v974, %v973
      %v1028 = vpack.c.b16 %v976, %v975
      %v1029 = vpack.c.b16 %v978, %v977
      %v1030 = vpack.c.b16 %v980, %v979
      %v1031 = vpack.c.b16 %v982, %v981
      %v1032 = vpack.c.b16 %v984, %v983
      %v1033 = vpack.c.b16 %v986, %v985
      %v1034 = vpack.c.b16 %v988, %v987
      %v1035 = vpack.c.b16 %v990, %v989
      %v1036 = vpack.c.b16 %v992, %v991
      %v1037 = vpack.c.b16 %v994, %v993
      %v1038 = vpack.c.b16 %v996, %v995
      %v1039 = vpack.c.b16 %v998, %v997
      %v1040 = vpack.c.b16 %v1000, %v999
      %v1041 = vpack.c.b16 %v1002, %v1001
      %v1042 = vpack.c.b16 %v1004, %v1003
      %v1043 = vpack.c.b16 %v1006, %v1005
      %v1044 = vpack.c.b16 %v1008, %v1007
      %v1045 = vpack.c.b16 %v1010, %v1009
      %v1046 = vpack.c.b16 %v1012, %v1011
      %v1047 = vpack.c.b16 %v1014, %v1013
      %v1048 = vpack.c.b16 %v1016, %v1015
      %v1097 = vunpack.c.l.b16 %v866
      %v1098 = vunpack.c.l.b16 %v867
      %v1099 = vunpack.c.l.b16 %v868
      %v1100 = vunpack.c.l.b16 %v869
      %v1101 = vunpack.c.l.b16 %v870
      %v1102 = vunpack.c.l.b16 %v871
      %v1103 = vunpack.c.l.b16 %v872
      %v1104 = vunpack.c.l.b16 %v873
      %v1105 = vunpack.c.l.b16 %v874
      %v1106 = vunpack.c.l.b16 %v875
      %v1107 = vunpack.c.l.b16 %v876
      %v1108 = vunpack.c.l.b16 %v877
      %v1109 = vunpack.c.l.b16 %v878
      %v1110 = vunpack.c.l.b16 %v879
      %v1111 = vunpack.c.l.b16 %v880
      %v1112 = vunpack.c.l.b16 %v881
      %v1113 = vpack.c.b16 %v1098, %v1097
      %v1114 = vpack.c.b16 %v1100, %v1099
      %v1115 = vpack.c.b16 %v1102, %v1101
      %v1116 = vpack.c.b16 %v1104, %v1103
      %v1117 = vpack.c.b16 %v1106, %v1105
      %v1118 = vpack.c.b16 %v1108, %v1107
      %v1119 = vpack.c.b16 %v1110, %v1109
      %v1120 = vpack.c.b16 %v1112, %v1111
      %1129 = vmatprep.subr.bf16.mxu0 0
      %1130 = vmatpush1.bf16.msra.mxu0 %v1120
      %1131 = vmatprep.subr.bf16.mxu0 0
      %1132 = vmatpush1.bf16.msra.mxu0 %v1119
      %1133 = vmatprep.subr.bf16.mxu0 0
      %1134 = vmatpush1.bf16.msra.mxu0 %v1118
      %1135 = vmatprep.subr.bf16.mxu0 0
      %1136 = vmatpush1.bf16.msra.mxu0 %v1117
      %1137 = vmatprep.subr.bf16.mxu0 0
      %1138 = vmatpush1.bf16.msra.mxu0 %v1116
      %1139 = vmatprep.subr.bf16.mxu0 0
      %1140 = vmatpush1.bf16.msra.mxu0 %v1115
      %1141 = vmatprep.subr.bf16.mxu0 0
      %1142 = vmatpush1.bf16.msra.mxu0 %v1114
      %1143 = vmatprep.subr.bf16.mxu0 0
      %1144 = vmatpush1.bf16.msra.mxu0 %v1113
      %1145 = vmatprep.subr.bf16.mxu0 0
      %1146 = vmatpush2.bf16.msra.mxu0 0
      %1147 = vmatprep.subr.bf16.mxu0 0
      %1148 = vmatpush2.bf16.msra.mxu0 0
      %1149 = vmatprep.subr.bf16.mxu0 0
      %1150 = vmatpush2.bf16.msra.mxu0 0
      %1151 = vmatprep.subr.bf16.mxu0 0
      %1152 = vmatpush2.bf16.msra.mxu0 0
      %1153 = vmatprep.subr.bf16.mxu0 0
      %1154 = vmatpush2.bf16.msra.mxu0 0
      %1155 = vmatprep.subr.bf16.mxu0 0
      %1156 = vmatpush2.bf16.msra.mxu0 0
      %1157 = vmatprep.subr.bf16.mxu0 0
      %1158 = vmatpush2.bf16.msra.mxu0 0
      %1159 = vmatprep.subr.bf16.mxu0 0
      %1160 = vmatpush2.bf16.msra.mxu0 0
      %1161 = vmatprep.mubr.bf16.mxu0 0
      %1162 = vmatmul.mubr.bf16.gmra.mxu0 %v1017
      %v1163 = vpop.f32.mrf.mxu0
      %v1164 = vadd.f32 %v887, %v1163
      %v1165 = vpop.f32.mrf.mxu0
      %v1166 = vpop.f32.mrf.mxu0
      %v1167 = vadd.f32 %v887, %v1166
      %v1168 = vpop.f32.mrf.mxu0
      %1169 = vmatprep.mubr.bf16.mxu0 0
      %1170 = vmatmul.mubr.bf16.gmra.mxu0 %v1018
      %v1171 = vpop.f32.mrf.mxu0
      %v1172 = vadd.f32 %v887, %v1171
      %v1173 = vpop.f32.mrf.mxu0
      %v1174 = vpop.f32.mrf.mxu0
      %v1175 = vadd.f32 %v887, %v1174
      %v1176 = vpop.f32.mrf.mxu0
      %1177 = vmatprep.mubr.bf16.mxu0 0
      %1178 = vmatmul.mubr.bf16.gmra.mxu0 %v1019
      %v1179 = vpop.f32.mrf.mxu0
      %v1180 = vadd.f32 %v887, %v1179
      %v1181 = vpop.f32.mrf.mxu0
      %v1182 = vpop.f32.mrf.mxu0
      %v1183 = vadd.f32 %v887, %v1182
      %v1184 = vpop.f32.mrf.mxu0
      %1185 = vmatprep.mubr.bf16.mxu0 0
      %1186 = vmatmul.mubr.bf16.gmra.mxu0 %v1020
      %v1187 = vpop.f32.mrf.mxu0
      %v1188 = vadd.f32 %v887, %v1187
      %v1189 = vpop.f32.mrf.mxu0
      %v1190 = vpop.f32.mrf.mxu0
      %v1191 = vadd.f32 %v887, %v1190
      %v1192 = vpop.f32.mrf.mxu0
      %1193 = vmatprep.mubr.bf16.mxu0 0
      %1194 = vmatmul.mubr.bf16.gmra.mxu0 %v1021
      %v1195 = vpop.f32.mrf.mxu0
      %v1196 = vadd.f32 %v887, %v1195
      %v1197 = vpop.f32.mrf.mxu0
      %v1198 = vpop.f32.mrf.mxu0
      %v1199 = vadd.f32 %v887, %v1198
      %v1200 = vpop.f32.mrf.mxu0
      %1201 = vmatprep.mubr.bf16.mxu0 0
      %1202 = vmatmul.mubr.bf16.gmra.mxu0 %v1022
      %v1203 = vpop.f32.mrf.mxu0
      %v1204 = vadd.f32 %v887, %v1203
      %v1205 = vpop.f32.mrf.mxu0
      %v1206 = vpop.f32.mrf.mxu0
      %v1207 = vadd.f32 %v887, %v1206
      %v1208 = vpop.f32.mrf.mxu0
      %1209 = vmatprep.mubr.bf16.mxu0 0
      %1210 = vmatmul.mubr.bf16.gmra.mxu0 %v1023
      %v1211 = vpop.f32.mrf.mxu0
      %v1212 = vadd.f32 %v887, %v1211
      %v1213 = vpop.f32.mrf.mxu0
      %v1214 = vpop.f32.mrf.mxu0
      %v1215 = vadd.f32 %v887, %v1214
      %v1216 = vpop.f32.mrf.mxu0
      %1217 = vmatprep.mubr.bf16.mxu0 0
      %1218 = vmatmul.mubr.bf16.gmra.mxu0 %v1024
      %v1219 = vpop.f32.mrf.mxu0
      %v1220 = vadd.f32 %v887, %v1219
      %v1221 = vpop.f32.mrf.mxu0
      %v1222 = vpop.f32.mrf.mxu0
      %v1223 = vadd.f32 %v887, %v1222
      %v1224 = vpop.f32.mrf.mxu0
      %1225 = vmatprep.mubr.bf16.mxu0 0
      %1226 = vmatmul.mubr.bf16.gmra.mxu0 %v1025
      %v1227 = vpop.f32.mrf.mxu0
      %v1228 = vadd.f32 %v887, %v1227
      %v1229 = vpop.f32.mrf.mxu0
      %v1230 = vpop.f32.mrf.mxu0
      %v1231 = vadd.f32 %v887, %v1230
      %v1232 = vpop.f32.mrf.mxu0
      %1233 = vmatprep.mubr.bf16.mxu0 0
      %1234 = vmatmul.mubr.bf16.gmra.mxu0 %v1026
      %v1235 = vpop.f32.mrf.mxu0
      %v1236 = vadd.f32 %v887, %v1235
      %v1237 = vpop.f32.mrf.mxu0
      %v1238 = vpop.f32.mrf.mxu0
      %v1239 = vadd.f32 %v887, %v1238
      %v1240 = vpop.f32.mrf.mxu0
      %1241 = vmatprep.mubr.bf16.mxu0 0
      %1242 = vmatmul.mubr.bf16.gmra.mxu0 %v1027
      %v1243 = vpop.f32.mrf.mxu0
      %v1244 = vadd.f32 %v887, %v1243
      %v1245 = vpop.f32.mrf.mxu0
      %v1246 = vpop.f32.mrf.mxu0
      %v1247 = vadd.f32 %v887, %v1246
      %v1248 = vpop.f32.mrf.mxu0
      %1249 = vmatprep.mubr.bf16.mxu0 0
      %1250 = vmatmul.mubr.bf16.gmra.mxu0 %v1028
      %v1251 = vpop.f32.mrf.mxu0
      %v1252 = vadd.f32 %v887, %v1251
      %v1253 = vpop.f32.mrf.mxu0
      %v1254 = vpop.f32.mrf.mxu0
      %v1255 = vadd.f32 %v887, %v1254
      %v1256 = vpop.f32.mrf.mxu0
      %1257 = vmatprep.mubr.bf16.mxu0 0
      %1258 = vmatmul.mubr.bf16.gmra.mxu0 %v1029
      %v1259 = vpop.f32.mrf.mxu0
      %v1260 = vadd.f32 %v887, %v1259
      %v1261 = vpop.f32.mrf.mxu0
      %v1262 = vpop.f32.mrf.mxu0
      %v1263 = vadd.f32 %v887, %v1262
      %v1264 = vpop.f32.mrf.mxu0
      %1265 = vmatprep.mubr.bf16.mxu0 0
      %1266 = vmatmul.mubr.bf16.gmra.mxu0 %v1030
      %v1267 = vpop.f32.mrf.mxu0
      %v1268 = vadd.f32 %v887, %v1267
      %v1269 = vpop.f32.mrf.mxu0
      %v1270 = vpop.f32.mrf.mxu0
      %v1271 = vadd.f32 %v887, %v1270
      %v1272 = vpop.f32.mrf.mxu0
      %1273 = vmatprep.mubr.bf16.mxu0 0
      %1274 = vmatmul.mubr.bf16.gmra.mxu0 %v1031
      %v1275 = vpop.f32.mrf.mxu0
      %v1276 = vadd.f32 %v887, %v1275
      %v1277 = vpop.f32.mrf.mxu0
      %v1278 = vpop.f32.mrf.mxu0
      %v1279 = vadd.f32 %v887, %v1278
      %v1280 = vpop.f32.mrf.mxu0
      %1281 = vmatprep.mubr.bf16.mxu0 0
      %1282 = vmatmul.mubr.bf16.gmra.mxu0 %v1032
      %v1283 = vpop.f32.mrf.mxu0
      %v1284 = vadd.f32 %v887, %v1283
      %v1285 = vpop.f32.mrf.mxu0
      %v1286 = vpop.f32.mrf.mxu0
      %v1287 = vadd.f32 %v887, %v1286
      %v1288 = vpop.f32.mrf.mxu0
      %1289 = vmatprep.mubr.bf16.mxu0 0
      %1290 = vmatmul.mubr.bf16.gmra.mxu0 %v1033
      %v1291 = vpop.f32.mrf.mxu0
      %v1292 = vadd.f32 %v887, %v1291
      %v1293 = vpop.f32.mrf.mxu0
      %v1294 = vpop.f32.mrf.mxu0
      %v1295 = vadd.f32 %v887, %v1294
      %v1296 = vpop.f32.mrf.mxu0
      %1297 = vmatprep.mubr.bf16.mxu0 0
      %1298 = vmatmul.mubr.bf16.gmra.mxu0 %v1034
      %v1299 = vpop.f32.mrf.mxu0
      %v1300 = vadd.f32 %v887, %v1299
      %v1301 = vpop.f32.mrf.mxu0
      %v1302 = vpop.f32.mrf.mxu0
      %v1303 = vadd.f32 %v887, %v1302
      %v1304 = vpop.f32.mrf.mxu0
      %1305 = vmatprep.mubr.bf16.mxu0 0
      %1306 = vmatmul.mubr.bf16.gmra.mxu0 %v1035
      %v1307 = vpop.f32.mrf.mxu0
      %v1308 = vadd.f32 %v887, %v1307
      %v1309 = vpop.f32.mrf.mxu0
      %v1310 = vpop.f32.mrf.mxu0
      %v1311 = vadd.f32 %v887, %v1310
      %v1312 = vpop.f32.mrf.mxu0
      %1313 = vmatprep.mubr.bf16.mxu0 0
      %1314 = vmatmul.mubr.bf16.gmra.mxu0 %v1036
      %v1315 = vpop.f32.mrf.mxu0
      %v1316 = vadd.f32 %v887, %v1315
      %v1317 = vpop.f32.mrf.mxu0
      %v1318 = vpop.f32.mrf.mxu0
      %v1319 = vadd.f32 %v887, %v1318
      %v1320 = vpop.f32.mrf.mxu0
      %1321 = vmatprep.mubr.bf16.mxu0 0
      %1322 = vmatmul.mubr.bf16.gmra.mxu0 %v1037
      %v1323 = vpop.f32.mrf.mxu0
      %v1324 = vadd.f32 %v887, %v1323
      %v1325 = vpop.f32.mrf.mxu0
      %v1326 = vpop.f32.mrf.mxu0
      %v1327 = vadd.f32 %v887, %v1326
      %v1328 = vpop.f32.mrf.mxu0
      %1329 = vmatprep.mubr.bf16.mxu0 0
      %1330 = vmatmul.mubr.bf16.gmra.mxu0 %v1038
      %v1331 = vpop.f32.mrf.mxu0
      %v1332 = vadd.f32 %v887, %v1331
      %v1333 = vpop.f32.mrf.mxu0
      %v1334 = vpop.f32.mrf.mxu0
      %v1335 = vadd.f32 %v887, %v1334
      %v1336 = vpop.f32.mrf.mxu0
      %1337 = vmatprep.mubr.bf16.mxu0 0
      %1338 = vmatmul.mubr.bf16.gmra.mxu0 %v1039
      %v1339 = vpop.f32.mrf.mxu0
      %v1340 = vadd.f32 %v887, %v1339
      %v1341 = vpop.f32.mrf.mxu0
      %v1342 = vpop.f32.mrf.mxu0
      %v1343 = vadd.f32 %v887, %v1342
      %v1344 = vpop.f32.mrf.mxu0
      %1345 = vmatprep.mubr.bf16.mxu0 0
      %1346 = vmatmul.mubr.bf16.gmra.mxu0 %v1040
      %v1347 = vpop.f32.mrf.mxu0
      %v1348 = vadd.f32 %v887, %v1347
      %v1349 = vpop.f32.mrf.mxu0
      %v1350 = vpop.f32.mrf.mxu0
      %v1351 = vadd.f32 %v887, %v1350
      %v1352 = vpop.f32.mrf.mxu0
      %1353 = vmatprep.mubr.bf16.mxu0 0
      %1354 = vmatmul.mubr.bf16.gmra.mxu0 %v1041
      %v1355 = vpop.f32.mrf.mxu0
      %v1356 = vadd.f32 %v887, %v1355
      %v1357 = vpop.f32.mrf.mxu0
      %v1358 = vpop.f32.mrf.mxu0
      %v1359 = vadd.f32 %v887, %v1358
      %v1360 = vpop.f32.mrf.mxu0
      %1361 = vmatprep.mubr.bf16.mxu0 0
      %1362 = vmatmul.mubr.bf16.gmra.mxu0 %v1042
      %v1363 = vpop.f32.mrf.mxu0
      %v1364 = vadd.f32 %v887, %v1363
      %v1365 = vpop.f32.mrf.mxu0
      %v1366 = vpop.f32.mrf.mxu0
      %v1367 = vadd.f32 %v887, %v1366
      %v1368 = vpop.f32.mrf.mxu0
      %1369 = vmatprep.mubr.bf16.mxu0 0
      %1370 = vmatmul.mubr.bf16.gmra.mxu0 %v1043
      %v1371 = vpop.f32.mrf.mxu0
      %v1372 = vadd.f32 %v887, %v1371
      %v1373 = vpop.f32.mrf.mxu0
      %v1374 = vpop.f32.mrf.mxu0
      %v1375 = vadd.f32 %v887, %v1374
      %v1376 = vpop.f32.mrf.mxu0
      %1377 = vmatprep.mubr.bf16.mxu0 0
      %1378 = vmatmul.mubr.bf16.gmra.mxu0 %v1044
      %v1379 = vpop.f32.mrf.mxu0
      %v1380 = vadd.f32 %v887, %v1379
      %v1381 = vpop.f32.mrf.mxu0
      %v1382 = vpop.f32.mrf.mxu0
      %v1383 = vadd.f32 %v887, %v1382
      %v1384 = vpop.f32.mrf.mxu0
      %1385 = vmatprep.mubr.bf16.mxu0 0
      %1386 = vmatmul.mubr.bf16.gmra.mxu0 %v1045
      %v1387 = vpop.f32.mrf.mxu0
      %v1388 = vadd.f32 %v887, %v1387
      %v1389 = vpop.f32.mrf.mxu0
      %v1390 = vpop.f32.mrf.mxu0
      %v1391 = vadd.f32 %v887, %v1390
      %v1392 = vpop.f32.mrf.mxu0
      %1393 = vmatprep.mubr.bf16.mxu0 0
      %1394 = vmatmul.mubr.bf16.gmra.mxu0 %v1046
      %v1395 = vpop.f32.mrf.mxu0
      %v1396 = vadd.f32 %v887, %v1395
      %v1397 = vpop.f32.mrf.mxu0
      %v1398 = vpop.f32.mrf.mxu0
      %v1399 = vadd.f32 %v887, %v1398
      %v1400 = vpop.f32.mrf.mxu0
      %1401 = vmatprep.mubr.bf16.mxu0 0
      %1402 = vmatmul.mubr.bf16.gmra.mxu0 %v1047
      %v1403 = vpop.f32.mrf.mxu0
      %v1404 = vadd.f32 %v887, %v1403
      %v1405 = vpop.f32.mrf.mxu0
      %v1406 = vpop.f32.mrf.mxu0
      %v1407 = vadd.f32 %v887, %v1406
      %v1408 = vpop.f32.mrf.mxu0
      %1409 = vmatprep.mubr.bf16.mxu0 0
      %1410 = vmatmul.mubr.bf16.gmra.mxu0 %v1048
      %v1411 = vpop.f32.mrf.mxu0
      %v1412 = vadd.f32 %v887, %v1411
      %v1413 = vpop.f32.mrf.mxu0
      %v1414 = vpop.f32.mrf.mxu0
      %v1415 = vadd.f32 %v887, %v1414
      %v1416 = vpop.f32.mrf.mxu0
      %1417 = vdwg.mxu0
      %v1418 = vld [vmem:[%s8] sm:$0xff]
      %v1419 = vld [vmem:[%s8 + $0x8] sm:$0xff]
      %v1420 = vld [vmem:[%s8 + $0x10] sm:$0xff]
      %v1421 = vld [vmem:[%s8 + $0x18] sm:$0xff]
      %v1422 = vld [vmem:[%s8 + $0x20] sm:$0xff]
      %v1423 = vld [vmem:[%s8 + $0x28] sm:$0xff]
      %v1424 = vld [vmem:[%s8 + $0x30] sm:$0xff]
      %v1425 = vld [vmem:[%s8 + $0x38] sm:$0xff]
      %v1426 = vld [vmem:[%s8 + $0x40] sm:$0xff]
      %v1427 = vld [vmem:[%s8 + $0x48] sm:$0xff]
      %v1428 = vld [vmem:[%s8 + $0x50] sm:$0xff]
      %v1429 = vld [vmem:[%s8 + $0x58] sm:$0xff]
      %v1430 = vld [vmem:[%s8 + $0x60] sm:$0xff]
      %v1431 = vld [vmem:[%s8 + $0x68] sm:$0xff]
      %v1432 = vld [vmem:[%s8 + $0x70] sm:$0xff]
      %v1433 = vld [vmem:[%s8 + $0x78] sm:$0xff]
      %v1434 = vld [vmem:[%s9] sm:$0xff]
      %v1435 = vld [vmem:[%s9 + $0x8] sm:$0xff]
      %v1436 = vld [vmem:[%s9 + $0x10] sm:$0xff]
      %v1437 = vld [vmem:[%s9 + $0x18] sm:$0xff]
      %v1438 = vld [vmem:[%s9 + $0x20] sm:$0xff]
      %v1439 = vld [vmem:[%s9 + $0x28] sm:$0xff]
      %v1440 = vld [vmem:[%s9 + $0x30] sm:$0xff]
      %v1441 = vld [vmem:[%s9 + $0x38] sm:$0xff]
      %v1442 = vld [vmem:[%s9 + $0x40] sm:$0xff]
      %v1443 = vld [vmem:[%s9 + $0x48] sm:$0xff]
      %v1444 = vld [vmem:[%s9 + $0x50] sm:$0xff]
      %v1445 = vld [vmem:[%s9 + $0x58] sm:$0xff]
      %v1446 = vld [vmem:[%s9 + $0x60] sm:$0xff]
      %v1447 = vld [vmem:[%s9 + $0x68] sm:$0xff]
      %v1448 = vld [vmem:[%s9 + $0x70] sm:$0xff]
      %v1449 = vld [vmem:[%s9 + $0x78] sm:$0xff]
      %v1450 = vld [vmem:[%s9 + $0x80] sm:$0xff]
      %v1451 = vld [vmem:[%s9 + $0x88] sm:$0xff]
      %v1452 = vld [vmem:[%s9 + $0x90] sm:$0xff]
      %v1453 = vld [vmem:[%s9 + $0x98] sm:$0xff]
      %v1454 = vld [vmem:[%s9 + $0xa0] sm:$0xff]
      %v1455 = vld [vmem:[%s9 + $0xa8] sm:$0xff]
      %v1456 = vld [vmem:[%s9 + $0xb0] sm:$0xff]
      %v1457 = vld [vmem:[%s9 + $0xb8] sm:$0xff]
      %v1458 = vld [vmem:[%s9 + $0xc0] sm:$0xff]
      %v1459 = vld [vmem:[%s9 + $0xc8] sm:$0xff]
      %v1460 = vld [vmem:[%s9 + $0xd0] sm:$0xff]
      %v1461 = vld [vmem:[%s9 + $0xd8] sm:$0xff]
      %v1462 = vld [vmem:[%s9 + $0xe0] sm:$0xff]
      %v1463 = vld [vmem:[%s9 + $0xe8] sm:$0xff]
      %v1464 = vld [vmem:[%s9 + $0xf0] sm:$0xff]
      %v1465 = vld [vmem:[%s9 + $0xf8] sm:$0xff]
      %v1530 = vunpack.c.l.b16 %v802
      %v1531 = vunpack.c.h.b16 %v802
      %v1532 = vunpack.c.l.b16 %v803
      %v1533 = vunpack.c.h.b16 %v803
      %v1534 = vunpack.c.l.b16 %v804
      %v1535 = vunpack.c.h.b16 %v804
      %v1536 = vunpack.c.l.b16 %v805
      %v1537 = vunpack.c.h.b16 %v805
      %v1538 = vunpack.c.l.b16 %v806
      %v1539 = vunpack.c.h.b16 %v806
      %v1540 = vunpack.c.l.b16 %v807
      %v1541 = vunpack.c.h.b16 %v807
      %v1542 = vunpack.c.l.b16 %v808
      %v1543 = vunpack.c.h.b16 %v808
      %v1544 = vunpack.c.l.b16 %v809
      %v1545 = vunpack.c.h.b16 %v809
      %v1546 = vunpack.c.l.b16 %v810
      %v1547 = vunpack.c.h.b16 %v810
      %v1548 = vunpack.c.l.b16 %v811
      %v1549 = vunpack.c.h.b16 %v811
      %v1550 = vunpack.c.l.b16 %v812
      %v1551 = vunpack.c.h.b16 %v812
      %v1552 = vunpack.c.l.b16 %v813
      %v1553 = vunpack.c.h.b16 %v813
      %v1554 = vunpack.c.l.b16 %v814
      %v1555 = vunpack.c.h.b16 %v814
      %v1556 = vunpack.c.l.b16 %v815
      %v1557 = vunpack.c.h.b16 %v815
      %v1558 = vunpack.c.l.b16 %v816
      %v1559 = vunpack.c.h.b16 %v816
      %v1560 = vunpack.c.l.b16 %v817
      %v1561 = vunpack.c.h.b16 %v817
      %v1562 = vunpack.c.l.b16 %v818
      %v1563 = vunpack.c.h.b16 %v818
      %v1564 = vunpack.c.l.b16 %v819
      %v1565 = vunpack.c.h.b16 %v819
      %v1566 = vunpack.c.l.b16 %v820
      %v1567 = vunpack.c.h.b16 %v820
      %v1568 = vunpack.c.l.b16 %v821
      %v1569 = vunpack.c.h.b16 %v821
      %v1570 = vunpack.c.l.b16 %v822
      %v1571 = vunpack.c.h.b16 %v822
      %v1572 = vunpack.c.l.b16 %v823
      %v1573 = vunpack.c.h.b16 %v823
      %v1574 = vunpack.c.l.b16 %v824
      %v1575 = vunpack.c.h.b16 %v824
      %v1576 = vunpack.c.l.b16 %v825
      %v1577 = vunpack.c.h.b16 %v825
      %v1578 = vunpack.c.l.b16 %v826
      %v1579 = vunpack.c.h.b16 %v826
      %v1580 = vunpack.c.l.b16 %v827
      %v1581 = vunpack.c.h.b16 %v827
      %v1582 = vunpack.c.l.b16 %v828
      %v1583 = vunpack.c.h.b16 %v828
      %v1584 = vunpack.c.l.b16 %v829
      %v1585 = vunpack.c.h.b16 %v829
      %v1586 = vunpack.c.l.b16 %v830
      %v1587 = vunpack.c.h.b16 %v830
      %v1588 = vunpack.c.l.b16 %v831
      %v1589 = vunpack.c.h.b16 %v831
      %v1590 = vunpack.c.l.b16 %v832
      %v1591 = vunpack.c.h.b16 %v832
      %v1592 = vunpack.c.l.b16 %v833
      %v1593 = vunpack.c.h.b16 %v833
      %v1594 = vunpack.c.l.b16 %v834
      %v1595 = vunpack.c.h.b16 %v834
      %v1596 = vunpack.c.l.b16 %v835
      %v1597 = vunpack.c.h.b16 %v835
      %v1598 = vunpack.c.l.b16 %v836
      %v1599 = vunpack.c.h.b16 %v836
      %v1600 = vunpack.c.l.b16 %v837
      %v1601 = vunpack.c.h.b16 %v837
      %v1602 = vunpack.c.l.b16 %v838
      %v1603 = vunpack.c.h.b16 %v838
      %v1604 = vunpack.c.l.b16 %v839
      %v1605 = vunpack.c.h.b16 %v839
      %v1606 = vunpack.c.l.b16 %v840
      %v1607 = vunpack.c.h.b16 %v840
      %v1608 = vunpack.c.l.b16 %v841
      %v1609 = vunpack.c.h.b16 %v841
      %v1610 = vunpack.c.l.b16 %v842
      %v1611 = vunpack.c.h.b16 %v842
      %v1612 = vunpack.c.l.b16 %v843
      %v1613 = vunpack.c.h.b16 %v843
      %v1614 = vunpack.c.l.b16 %v844
      %v1615 = vunpack.c.h.b16 %v844
      %v1616 = vunpack.c.l.b16 %v845
      %v1617 = vunpack.c.h.b16 %v845
      %v1618 = vunpack.c.l.b16 %v846
      %v1619 = vunpack.c.h.b16 %v846
      %v1620 = vunpack.c.l.b16 %v847
      %v1621 = vunpack.c.h.b16 %v847
      %v1622 = vunpack.c.l.b16 %v848
      %v1623 = vunpack.c.h.b16 %v848
      %v1624 = vunpack.c.l.b16 %v849
      %v1625 = vunpack.c.h.b16 %v849
      %v1626 = vunpack.c.l.b16 %v850
      %v1627 = vunpack.c.h.b16 %v850
      %v1628 = vunpack.c.l.b16 %v851
      %v1629 = vunpack.c.h.b16 %v851
      %v1630 = vunpack.c.l.b16 %v852
      %v1631 = vunpack.c.h.b16 %v852
      %v1632 = vunpack.c.l.b16 %v853
      %v1633 = vunpack.c.h.b16 %v853
      %v1634 = vunpack.c.l.b16 %v854
      %v1635 = vunpack.c.h.b16 %v854
      %v1636 = vunpack.c.l.b16 %v855
      %v1637 = vunpack.c.h.b16 %v855
      %v1638 = vunpack.c.l.b16 %v856
      %v1639 = vunpack.c.h.b16 %v856
      %v1640 = vunpack.c.l.b16 %v857
      %v1641 = vunpack.c.h.b16 %v857
      %v1642 = vunpack.c.l.b16 %v858
      %v1643 = vunpack.c.h.b16 %v858
      %v1644 = vunpack.c.l.b16 %v859
      %v1645 = vunpack.c.h.b16 %v859
      %v1646 = vunpack.c.l.b16 %v860
      %v1647 = vunpack.c.h.b16 %v860
      %v1648 = vunpack.c.l.b16 %v861
      %v1649 = vunpack.c.h.b16 %v861
      %v1650 = vunpack.c.l.b16 %v862
      %v1651 = vunpack.c.h.b16 %v862
      %v1652 = vunpack.c.l.b16 %v863
      %v1653 = vunpack.c.h.b16 %v863
      %v1654 = vunpack.c.l.b16 %v864
      %v1655 = vunpack.c.h.b16 %v864
      %v1656 = vunpack.c.l.b16 %v865
      %v1657 = vunpack.c.h.b16 %v865
      %v1658 = vpack.c.b16 %v1532, %v1530
      %v1659 = vpack.c.b16 %v1533, %v1531
      %v1660 = vpack.c.b16 %v1536, %v1534
      %v1661 = vpack.c.b16 %v1537, %v1535
      %v1662 = vpack.c.b16 %v1540, %v1538
      %v1663 = vpack.c.b16 %v1541, %v1539
      %v1664 = vpack.c.b16 %v1544, %v1542
      %v1665 = vpack.c.b16 %v1545, %v1543
      %v1666 = vpack.c.b16 %v1548, %v1546
      %v1667 = vpack.c.b16 %v1549, %v1547
      %v1668 = vpack.c.b16 %v1552, %v1550
      %v1669 = vpack.c.b16 %v1553, %v1551
      %v1670 = vpack.c.b16 %v1556, %v1554
      %v1671 = vpack.c.b16 %v1557, %v1555
      %v1672 = vpack.c.b16 %v1560, %v1558
      %v1673 = vpack.c.b16 %v1561, %v1559
      %v1674 = vpack.c.b16 %v1564, %v1562
      %v1675 = vpack.c.b16 %v1565, %v1563
      %v1676 = vpack.c.b16 %v1568, %v1566
      %v1677 = vpack.c.b16 %v1569, %v1567
      %v1678 = vpack.c.b16 %v1572, %v1570
      %v1679 = vpack.c.b16 %v1573, %v1571
      %v1680 = vpack.c.b16 %v1576, %v1574
      %v1681 = vpack.c.b16 %v1577, %v1575
      %v1682 = vpack.c.b16 %v1580, %v1578
      %v1683 = vpack.c.b16 %v1581, %v1579
      %v1684 = vpack.c.b16 %v1584, %v1582
      %v1685 = vpack.c.b16 %v1585, %v1583
      %v1686 = vpack.c.b16 %v1588, %v1586
      %v1687 = vpack.c.b16 %v1589, %v1587
      %v1688 = vpack.c.b16 %v1592, %v1590
      %v1689 = vpack.c.b16 %v1593, %v1591
      %v1690 = vpack.c.b16 %v1596, %v1594
      %v1691 = vpack.c.b16 %v1597, %v1595
      %v1692 = vpack.c.b16 %v1600, %v1598
      %v1693 = vpack.c.b16 %v1601, %v1599
      %v1694 = vpack.c.b16 %v1604, %v1602
      %v1695 = vpack.c.b16 %v1605, %v1603
      %v1696 = vpack.c.b16 %v1608, %v1606
      %v1697 = vpack.c.b16 %v1609, %v1607
      %v1698 = vpack.c.b16 %v1612, %v1610
      %v1699 = vpack.c.b16 %v1613, %v1611
      %v1700 = vpack.c.b16 %v1616, %v1614
      %v1701 = vpack.c.b16 %v1617, %v1615
      %v1702 = vpack.c.b16 %v1620, %v1618
      %v1703 = vpack.c.b16 %v1621, %v1619
      %v1704 = vpack.c.b16 %v1624, %v1622
      %v1705 = vpack.c.b16 %v1625, %v1623
      %v1706 = vpack.c.b16 %v1628, %v1626
      %v1707 = vpack.c.b16 %v1629, %v1627
      %v1708 = vpack.c.b16 %v1632, %v1630
      %v1709 = vpack.c.b16 %v1633, %v1631
      %v1710 = vpack.c.b16 %v1636, %v1634
      %v1711 = vpack.c.b16 %v1637, %v1635
      %v1712 = vpack.c.b16 %v1640, %v1638
      %v1713 = vpack.c.b16 %v1641, %v1639
      %v1714 = vpack.c.b16 %v1644, %v1642
      %v1715 = vpack.c.b16 %v1645, %v1643
      %v1716 = vpack.c.b16 %v1648, %v1646
      %v1717 = vpack.c.b16 %v1649, %v1647
      %v1718 = vpack.c.b16 %v1652, %v1650
      %v1719 = vpack.c.b16 %v1653, %v1651
      %v1720 = vpack.c.b16 %v1656, %v1654
      %v1721 = vpack.c.b16 %v1657, %v1655
      %v1818 = vunpack.c.l.b16 %v1434
      %v1819 = vunpack.c.h.b16 %v1434
      %v1820 = vunpack.c.l.b16 %v1435
      %v1821 = vunpack.c.h.b16 %v1435
      %v1822 = vunpack.c.l.b16 %v1436
      %v1823 = vunpack.c.h.b16 %v1436
      %v1824 = vunpack.c.l.b16 %v1437
      %v1825 = vunpack.c.h.b16 %v1437
      %v1826 = vunpack.c.l.b16 %v1438
      %v1827 = vunpack.c.h.b16 %v1438
      %v1828 = vunpack.c.l.b16 %v1439
      %v1829 = vunpack.c.h.b16 %v1439
      %v1830 = vunpack.c.l.b16 %v1440
      %v1831 = vunpack.c.h.b16 %v1440
      %v1832 = vunpack.c.l.b16 %v1441
      %v1833 = vunpack.c.h.b16 %v1441
      %v1834 = vunpack.c.l.b16 %v1442
      %v1835 = vunpack.c.h.b16 %v1442
      %v1836 = vunpack.c.l.b16 %v1443
      %v1837 = vunpack.c.h.b16 %v1443
      %v1838 = vunpack.c.l.b16 %v1444
      %v1839 = vunpack.c.h.b16 %v1444
      %v1840 = vunpack.c.l.b16 %v1445
      %v1841 = vunpack.c.h.b16 %v1445
      %v1842 = vunpack.c.l.b16 %v1446
      %v1843 = vunpack.c.h.b16 %v1446
      %v1844 = vunpack.c.l.b16 %v1447
      %v1845 = vunpack.c.h.b16 %v1447
      %v1846 = vunpack.c.l.b16 %v1448
      %v1847 = vunpack.c.h.b16 %v1448
      %v1848 = vunpack.c.l.b16 %v1449
      %v1849 = vunpack.c.h.b16 %v1449
      %v1850 = vunpack.c.l.b16 %v1450
      %v1851 = vunpack.c.h.b16 %v1450
      %v1852 = vunpack.c.l.b16 %v1451
      %v1853 = vunpack.c.h.b16 %v1451
      %v1854 = vunpack.c.l.b16 %v1452
      %v1855 = vunpack.c.h.b16 %v1452
      %v1856 = vunpack.c.l.b16 %v1453
      %v1857 = vunpack.c.h.b16 %v1453
      %v1858 = vunpack.c.l.b16 %v1454
      %v1859 = vunpack.c.h.b16 %v1454
      %v1860 = vunpack.c.l.b16 %v1455
      %v1861 = vunpack.c.h.b16 %v1455
      %v1862 = vunpack.c.l.b16 %v1456
      %v1863 = vunpack.c.h.b16 %v1456
      %v1864 = vunpack.c.l.b16 %v1457
      %v1865 = vunpack.c.h.b16 %v1457
      %v1866 = vunpack.c.l.b16 %v1458
      %v1867 = vunpack.c.h.b16 %v1458
      %v1868 = vunpack.c.l.b16 %v1459
      %v1869 = vunpack.c.h.b16 %v1459
      %v1870 = vunpack.c.l.b16 %v1460
      %v1871 = vunpack.c.h.b16 %v1460
      %v1872 = vunpack.c.l.b16 %v1461
      %v1873 = vunpack.c.h.b16 %v1461
      %v1874 = vunpack.c.l.b16 %v1462
      %v1875 = vunpack.c.h.b16 %v1462
      %v1876 = vunpack.c.l.b16 %v1463
      %v1877 = vunpack.c.h.b16 %v1463
      %v1878 = vunpack.c.l.b16 %v1464
      %v1879 = vunpack.c.h.b16 %v1464
      %v1880 = vunpack.c.l.b16 %v1465
      %v1881 = vunpack.c.h.b16 %v1465
      %v1882 = vpack.c.b16 %v1820, %v1818
      %v1883 = vpack.c.b16 %v1821, %v1819
      %v1884 = vpack.c.b16 %v1824, %v1822
      %v1885 = vpack.c.b16 %v1825, %v1823
      %v1886 = vpack.c.b16 %v1828, %v1826
      %v1887 = vpack.c.b16 %v1829, %v1827
      %v1888 = vpack.c.b16 %v1832, %v1830
      %v1889 = vpack.c.b16 %v1833, %v1831
      %v1890 = vpack.c.b16 %v1836, %v1834
      %v1891 = vpack.c.b16 %v1837, %v1835
      %v1892 = vpack.c.b16 %v1840, %v1838
      %v1893 = vpack.c.b16 %v1841, %v1839
      %v1894 = vpack.c.b16 %v1844, %v1842
      %v1895 = vpack.c.b16 %v1845, %v1843
      %v1896 = vpack.c.b16 %v1848, %v1846
      %v1897 = vpack.c.b16 %v1849, %v1847
      %v1898 = vpack.c.b16 %v1852, %v1850
      %v1899 = vpack.c.b16 %v1853, %v1851
      %v1900 = vpack.c.b16 %v1856, %v1854
      %v1901 = vpack.c.b16 %v1857, %v1855
      %v1902 = vpack.c.b16 %v1860, %v1858
      %v1903 = vpack.c.b16 %v1861, %v1859
      %v1904 = vpack.c.b16 %v1864, %v1862
      %v1905 = vpack.c.b16 %v1865, %v1863
      %v1906 = vpack.c.b16 %v1868, %v1866
      %v1907 = vpack.c.b16 %v1869, %v1867
      %v1908 = vpack.c.b16 %v1872, %v1870
      %v1909 = vpack.c.b16 %v1873, %v1871
      %v1910 = vpack.c.b16 %v1876, %v1874
      %v1911 = vpack.c.b16 %v1877, %v1875
      %v1912 = vpack.c.b16 %v1880, %v1878
      %v1913 = vpack.c.b16 %v1881, %v1879
      %1946 = vmatprep.subr.bf16.mxu0 %v1897
      %1947 = vmatpush1.bf16.msra.mxu0 %v1896
      %1948 = vmatprep.subr.bf16.mxu0 %v1895
      %1949 = vmatpush1.bf16.msra.mxu0 %v1894
      %1950 = vmatprep.subr.bf16.mxu0 %v1893
      %1951 = vmatpush1.bf16.msra.mxu0 %v1892
      %1952 = vmatprep.subr.bf16.mxu0 %v1891
      %1953 = vmatpush1.bf16.msra.mxu0 %v1890
      %1954 = vmatprep.subr.bf16.mxu0 %v1889
      %1955 = vmatpush1.bf16.msra.mxu0 %v1888
      %1956 = vmatprep.subr.bf16.mxu0 %v1887
      %1957 = vmatpush1.bf16.msra.mxu0 %v1886
      %1958 = vmatprep.subr.bf16.mxu0 %v1885
      %1959 = vmatpush1.bf16.msra.mxu0 %v1884
      %1960 = vmatprep.subr.bf16.mxu0 %v1883
      %1961 = vmatpush1.bf16.msra.mxu0 %v1882
      %1962 = vmatprep.subr.bf16.mxu0 %v1913
      %1963 = vmatpush2.bf16.msra.mxu0 %v1912
      %1964 = vmatprep.subr.bf16.mxu0 %v1911
      %1965 = vmatpush2.bf16.msra.mxu0 %v1910
      %1966 = vmatprep.subr.bf16.mxu0 %v1909
      %1967 = vmatpush2.bf16.msra.mxu0 %v1908
      %1968 = vmatprep.subr.bf16.mxu0 %v1907
      %1969 = vmatpush2.bf16.msra.mxu0 %v1906
      %1970 = vmatprep.subr.bf16.mxu0 %v1905
      %1971 = vmatpush2.bf16.msra.mxu0 %v1904
      %1972 = vmatprep.subr.bf16.mxu0 %v1903
      %1973 = vmatpush2.bf16.msra.mxu0 %v1902
      %1974 = vmatprep.subr.bf16.mxu0 %v1901
      %1975 = vmatpush2.bf16.msra.mxu0 %v1900
      %1976 = vmatprep.subr.bf16.mxu0 %v1899
      %1977 = vmatpush2.bf16.msra.mxu0 %v1898
      %1978 = vmatprep.mubr.bf16.mxu0 %v1659
      %1979 = vmatmul.mubr.bf16.gmra.mxu0 %v1658
      %v1980 = vpop.f32.mrf.mxu0
      %v1981 = vadd.f32 0.0, %v1980
      %v1982 = vpop.f32.mrf.mxu0
      %v1983 = vadd.f32 0.0, %v1982
      %v1984 = vpop.f32.mrf.mxu0
      %v1985 = vadd.f32 0.0, %v1984
      %v1986 = vpop.f32.mrf.mxu0
      %v1987 = vadd.f32 0.0, %v1986
      %1988 = vmatprep.mubr.bf16.mxu0 %v1661
      %1989 = vmatmul.mubr.bf16.gmra.mxu0 %v1660
      %v1990 = vpop.f32.mrf.mxu0
      %v1991 = vadd.f32 0.0, %v1990
      %v1992 = vpop.f32.mrf.mxu0
      %v1993 = vadd.f32 0.0, %v1992
      %v1994 = vpop.f32.mrf.mxu0
      %v1995 = vadd.f32 0.0, %v1994
      %v1996 = vpop.f32.mrf.mxu0
      %v1997 = vadd.f32 0.0, %v1996
      %1998 = vmatprep.mubr.bf16.mxu0 %v1663
      %1999 = vmatmul.mubr.bf16.gmra.mxu0 %v1662
      %v2000 = vpop.f32.mrf.mxu0
      %v2001 = vadd.f32 0.0, %v2000
      %v2002 = vpop.f32.mrf.mxu0
      %v2003 = vadd.f32 0.0, %v2002
      %v2004 = vpop.f32.mrf.mxu0
      %v2005 = vadd.f32 0.0, %v2004
      %v2006 = vpop.f32.mrf.mxu0
      %v2007 = vadd.f32 0.0, %v2006
      %2008 = vmatprep.mubr.bf16.mxu0 %v1665
      %2009 = vmatmul.mubr.bf16.gmra.mxu0 %v1664
      %v2010 = vpop.f32.mrf.mxu0
      %v2011 = vadd.f32 0.0, %v2010
      %v2012 = vpop.f32.mrf.mxu0
      %v2013 = vadd.f32 0.0, %v2012
      %v2014 = vpop.f32.mrf.mxu0
      %v2015 = vadd.f32 0.0, %v2014
      %v2016 = vpop.f32.mrf.mxu0
      %v2017 = vadd.f32 0.0, %v2016
      %2018 = vmatprep.mubr.bf16.mxu0 %v1667
      %2019 = vmatmul.mubr.bf16.gmra.mxu0 %v1666
      %v2020 = vpop.f32.mrf.mxu0
      %v2021 = vadd.f32 0.0, %v2020
      %v2022 = vpop.f32.mrf.mxu0
      %v2023 = vadd.f32 0.0, %v2022
      %v2024 = vpop.f32.mrf.mxu0
      %v2025 = vadd.f32 0.0, %v2024
      %v2026 = vpop.f32.mrf.mxu0
      %v2027 = vadd.f32 0.0, %v2026
      %2028 = vmatprep.mubr.bf16.mxu0 %v1669
      %2029 = vmatmul.mubr.bf16.gmra.mxu0 %v1668
      %v2030 = vpop.f32.mrf.mxu0
      %v2031 = vadd.f32 0.0, %v2030
      %v2032 = vpop.f32.mrf.mxu0
      %v2033 = vadd.f32 0.0, %v2032
      %v2034 = vpop.f32.mrf.mxu0
      %v2035 = vadd.f32 0.0, %v2034
      %v2036 = vpop.f32.mrf.mxu0
      %v2037 = vadd.f32 0.0, %v2036
      %2038 = vmatprep.mubr.bf16.mxu0 %v1671
      %2039 = vmatmul.mubr.bf16.gmra.mxu0 %v1670
      %v2040 = vpop.f32.mrf.mxu0
      %v2041 = vadd.f32 0.0, %v2040
      %v2042 = vpop.f32.mrf.mxu0
      %v2043 = vadd.f32 0.0, %v2042
      %v2044 = vpop.f32.mrf.mxu0
      %v2045 = vadd.f32 0.0, %v2044
      %v2046 = vpop.f32.mrf.mxu0
      %v2047 = vadd.f32 0.0, %v2046
      %2048 = vmatprep.mubr.bf16.mxu0 %v1673
      %2049 = vmatmul.mubr.bf16.gmra.mxu0 %v1672
      %v2050 = vpop.f32.mrf.mxu0
      %v2051 = vadd.f32 0.0, %v2050
      %v2052 = vpop.f32.mrf.mxu0
      %v2053 = vadd.f32 0.0, %v2052
      %v2054 = vpop.f32.mrf.mxu0
      %v2055 = vadd.f32 0.0, %v2054
      %v2056 = vpop.f32.mrf.mxu0
      %v2057 = vadd.f32 0.0, %v2056
      %2058 = vmatprep.mubr.bf16.mxu0 %v1675
      %2059 = vmatmul.mubr.bf16.gmra.mxu0 %v1674
      %v2060 = vpop.f32.mrf.mxu0
      %v2061 = vadd.f32 0.0, %v2060
      %v2062 = vpop.f32.mrf.mxu0
      %v2063 = vadd.f32 0.0, %v2062
      %v2064 = vpop.f32.mrf.mxu0
      %v2065 = vadd.f32 0.0, %v2064
      %v2066 = vpop.f32.mrf.mxu0
      %v2067 = vadd.f32 0.0, %v2066
      %2068 = vmatprep.mubr.bf16.mxu0 %v1677
      %2069 = vmatmul.mubr.bf16.gmra.mxu0 %v1676
      %v2070 = vpop.f32.mrf.mxu0
      %v2071 = vadd.f32 0.0, %v2070
      %v2072 = vpop.f32.mrf.mxu0
      %v2073 = vadd.f32 0.0, %v2072
      %v2074 = vpop.f32.mrf.mxu0
      %v2075 = vadd.f32 0.0, %v2074
      %v2076 = vpop.f32.mrf.mxu0
      %v2077 = vadd.f32 0.0, %v2076
      %2078 = vmatprep.mubr.bf16.mxu0 %v1679
      %2079 = vmatmul.mubr.bf16.gmra.mxu0 %v1678
      %v2080 = vpop.f32.mrf.mxu0
      %v2081 = vadd.f32 0.0, %v2080
      %v2082 = vpop.f32.mrf.mxu0
      %v2083 = vadd.f32 0.0, %v2082
      %v2084 = vpop.f32.mrf.mxu0
      %v2085 = vadd.f32 0.0, %v2084
      %v2086 = vpop.f32.mrf.mxu0
      %v2087 = vadd.f32 0.0, %v2086
      %2088 = vmatprep.mubr.bf16.mxu0 %v1681
      %2089 = vmatmul.mubr.bf16.gmra.mxu0 %v1680
      %v2090 = vpop.f32.mrf.mxu0
      %v2091 = vadd.f32 0.0, %v2090
      %v2092 = vpop.f32.mrf.mxu0
      %v2093 = vadd.f32 0.0, %v2092
      %v2094 = vpop.f32.mrf.mxu0
      %v2095 = vadd.f32 0.0, %v2094
      %v2096 = vpop.f32.mrf.mxu0
      %v2097 = vadd.f32 0.0, %v2096
      %2098 = vmatprep.mubr.bf16.mxu0 %v1683
      %2099 = vmatmul.mubr.bf16.gmra.mxu0 %v1682
      %v2100 = vpop.f32.mrf.mxu0
      %v2101 = vadd.f32 0.0, %v2100
      %v2102 = vpop.f32.mrf.mxu0
      %v2103 = vadd.f32 0.0, %v2102
      %v2104 = vpop.f32.mrf.mxu0
      %v2105 = vadd.f32 0.0, %v2104
      %v2106 = vpop.f32.mrf.mxu0
      %v2107 = vadd.f32 0.0, %v2106
      %2108 = vmatprep.mubr.bf16.mxu0 %v1685
      %2109 = vmatmul.mubr.bf16.gmra.mxu0 %v1684
      %v2110 = vpop.f32.mrf.mxu0
      %v2111 = vadd.f32 0.0, %v2110
      %v2112 = vpop.f32.mrf.mxu0
      %v2113 = vadd.f32 0.0, %v2112
      %v2114 = vpop.f32.mrf.mxu0
      %v2115 = vadd.f32 0.0, %v2114
      %v2116 = vpop.f32.mrf.mxu0
      %v2117 = vadd.f32 0.0, %v2116
      %2118 = vmatprep.mubr.bf16.mxu0 %v1687
      %2119 = vmatmul.mubr.bf16.gmra.mxu0 %v1686
      %v2120 = vpop.f32.mrf.mxu0
      %v2121 = vadd.f32 0.0, %v2120
      %v2122 = vpop.f32.mrf.mxu0
      %v2123 = vadd.f32 0.0, %v2122
      %v2124 = vpop.f32.mrf.mxu0
      %v2125 = vadd.f32 0.0, %v2124
      %v2126 = vpop.f32.mrf.mxu0
      %v2127 = vadd.f32 0.0, %v2126
      %2128 = vmatprep.mubr.bf16.mxu0 %v1689
      %2129 = vmatmul.mubr.bf16.gmra.mxu0 %v1688
      %v2130 = vpop.f32.mrf.mxu0
      %v2131 = vadd.f32 0.0, %v2130
      %v2132 = vpop.f32.mrf.mxu0
      %v2133 = vadd.f32 0.0, %v2132
      %v2134 = vpop.f32.mrf.mxu0
      %v2135 = vadd.f32 0.0, %v2134
      %v2136 = vpop.f32.mrf.mxu0
      %v2137 = vadd.f32 0.0, %v2136
      %2138 = vmatprep.mubr.bf16.mxu0 %v1691
      %2139 = vmatmul.mubr.bf16.gmra.mxu0 %v1690
      %v2140 = vpop.f32.mrf.mxu0
      %v2141 = vadd.f32 0.0, %v2140
      %v2142 = vpop.f32.mrf.mxu0
      %v2143 = vadd.f32 0.0, %v2142
      %v2144 = vpop.f32.mrf.mxu0
      %v2145 = vadd.f32 0.0, %v2144
      %v2146 = vpop.f32.mrf.mxu0
      %v2147 = vadd.f32 0.0, %v2146
      %2148 = vmatprep.mubr.bf16.mxu0 %v1693
      %2149 = vmatmul.mubr.bf16.gmra.mxu0 %v1692
      %v2150 = vpop.f32.mrf.mxu0
      %v2151 = vadd.f32 0.0, %v2150
      %v2152 = vpop.f32.mrf.mxu0
      %v2153 = vadd.f32 0.0, %v2152
      %v2154 = vpop.f32.mrf.mxu0
      %v2155 = vadd.f32 0.0, %v2154
      %v2156 = vpop.f32.mrf.mxu0
      %v2157 = vadd.f32 0.0, %v2156
      %2158 = vmatprep.mubr.bf16.mxu0 %v1695
      %2159 = vmatmul.mubr.bf16.gmra.mxu0 %v1694
      %v2160 = vpop.f32.mrf.mxu0
      %v2161 = vadd.f32 0.0, %v2160
      %v2162 = vpop.f32.mrf.mxu0
      %v2163 = vadd.f32 0.0, %v2162
      %v2164 = vpop.f32.mrf.mxu0
      %v2165 = vadd.f32 0.0, %v2164
      %v2166 = vpop.f32.mrf.mxu0
      %v2167 = vadd.f32 0.0, %v2166
      %2168 = vmatprep.mubr.bf16.mxu0 %v1697
      %2169 = vmatmul.mubr.bf16.gmra.mxu0 %v1696
      %v2170 = vpop.f32.mrf.mxu0
      %v2171 = vadd.f32 0.0, %v2170
      %v2172 = vpop.f32.mrf.mxu0
      %v2173 = vadd.f32 0.0, %v2172
      %v2174 = vpop.f32.mrf.mxu0
      %v2175 = vadd.f32 0.0, %v2174
      %v2176 = vpop.f32.mrf.mxu0
      %v2177 = vadd.f32 0.0, %v2176
      %2178 = vmatprep.mubr.bf16.mxu0 %v1699
      %2179 = vmatmul.mubr.bf16.gmra.mxu0 %v1698
      %v2180 = vpop.f32.mrf.mxu0
      %v2181 = vadd.f32 0.0, %v2180
      %v2182 = vpop.f32.mrf.mxu0
      %v2183 = vadd.f32 0.0, %v2182
      %v2184 = vpop.f32.mrf.mxu0
      %v2185 = vadd.f32 0.0, %v2184
      %v2186 = vpop.f32.mrf.mxu0
      %v2187 = vadd.f32 0.0, %v2186
      %2188 = vmatprep.mubr.bf16.mxu0 %v1701
      %2189 = vmatmul.mubr.bf16.gmra.mxu0 %v1700
      %v2190 = vpop.f32.mrf.mxu0
      %v2191 = vadd.f32 0.0, %v2190
      %v2192 = vpop.f32.mrf.mxu0
      %v2193 = vadd.f32 0.0, %v2192
      %v2194 = vpop.f32.mrf.mxu0
      %v2195 = vadd.f32 0.0, %v2194
      %v2196 = vpop.f32.mrf.mxu0
      %v2197 = vadd.f32 0.0, %v2196
      %2198 = vmatprep.mubr.bf16.mxu0 %v1703
      %2199 = vmatmul.mubr.bf16.gmra.mxu0 %v1702
      %v2200 = vpop.f32.mrf.mxu0
      %v2201 = vadd.f32 0.0, %v2200
      %v2202 = vpop.f32.mrf.mxu0
      %v2203 = vadd.f32 0.0, %v2202
      %v2204 = vpop.f32.mrf.mxu0
      %v2205 = vadd.f32 0.0, %v2204
      %v2206 = vpop.f32.mrf.mxu0
      %v2207 = vadd.f32 0.0, %v2206
      %2208 = vmatprep.mubr.bf16.mxu0 %v1705
      %2209 = vmatmul.mubr.bf16.gmra.mxu0 %v1704
      %v2210 = vpop.f32.mrf.mxu0
      %v2211 = vadd.f32 0.0, %v2210
      %v2212 = vpop.f32.mrf.mxu0
      %v2213 = vadd.f32 0.0, %v2212
      %v2214 = vpop.f32.mrf.mxu0
      %v2215 = vadd.f32 0.0, %v2214
      %v2216 = vpop.f32.mrf.mxu0
      %v2217 = vadd.f32 0.0, %v2216
      %2218 = vmatprep.mubr.bf16.mxu0 %v1707
      %2219 = vmatmul.mubr.bf16.gmra.mxu0 %v1706
      %v2220 = vpop.f32.mrf.mxu0
      %v2221 = vadd.f32 0.0, %v2220
      %v2222 = vpop.f32.mrf.mxu0
      %v2223 = vadd.f32 0.0, %v2222
      %v2224 = vpop.f32.mrf.mxu0
      %v2225 = vadd.f32 0.0, %v2224
      %v2226 = vpop.f32.mrf.mxu0
      %v2227 = vadd.f32 0.0, %v2226
      %2228 = vmatprep.mubr.bf16.mxu0 %v1709
      %2229 = vmatmul.mubr.bf16.gmra.mxu0 %v1708
      %v2230 = vpop.f32.mrf.mxu0
      %v2231 = vadd.f32 0.0, %v2230
      %v2232 = vpop.f32.mrf.mxu0
      %v2233 = vadd.f32 0.0, %v2232
      %v2234 = vpop.f32.mrf.mxu0
      %v2235 = vadd.f32 0.0, %v2234
      %v2236 = vpop.f32.mrf.mxu0
      %v2237 = vadd.f32 0.0, %v2236
      %2238 = vmatprep.mubr.bf16.mxu0 %v1711
      %2239 = vmatmul.mubr.bf16.gmra.mxu0 %v1710
      %v2240 = vpop.f32.mrf.mxu0
      %v2241 = vadd.f32 0.0, %v2240
      %v2242 = vpop.f32.mrf.mxu0
      %v2243 = vadd.f32 0.0, %v2242
      %v2244 = vpop.f32.mrf.mxu0
      %v2245 = vadd.f32 0.0, %v2244
      %v2246 = vpop.f32.mrf.mxu0
      %v2247 = vadd.f32 0.0, %v2246
      %2248 = vmatprep.mubr.bf16.mxu0 %v1713
      %2249 = vmatmul.mubr.bf16.gmra.mxu0 %v1712
      %v2250 = vpop.f32.mrf.mxu0
      %v2251 = vadd.f32 0.0, %v2250
      %v2252 = vpop.f32.mrf.mxu0
      %v2253 = vadd.f32 0.0, %v2252
      %v2254 = vpop.f32.mrf.mxu0
      %v2255 = vadd.f32 0.0, %v2254
      %v2256 = vpop.f32.mrf.mxu0
      %v2257 = vadd.f32 0.0, %v2256
      %2258 = vmatprep.mubr.bf16.mxu0 %v1715
      %2259 = vmatmul.mubr.bf16.gmra.mxu0 %v1714
      %v2260 = vpop.f32.mrf.mxu0
      %v2261 = vadd.f32 0.0, %v2260
      %v2262 = vpop.f32.mrf.mxu0
      %v2263 = vadd.f32 0.0, %v2262
      %v2264 = vpop.f32.mrf.mxu0
      %v2265 = vadd.f32 0.0, %v2264
      %v2266 = vpop.f32.mrf.mxu0
      %v2267 = vadd.f32 0.0, %v2266
      %2268 = vmatprep.mubr.bf16.mxu0 %v1717
      %2269 = vmatmul.mubr.bf16.gmra.mxu0 %v1716
      %v2270 = vpop.f32.mrf.mxu0
      %v2271 = vadd.f32 0.0, %v2270
      %v2272 = vpop.f32.mrf.mxu0
      %v2273 = vadd.f32 0.0, %v2272
      %v2274 = vpop.f32.mrf.mxu0
      %v2275 = vadd.f32 0.0, %v2274
      %v2276 = vpop.f32.mrf.mxu0
      %v2277 = vadd.f32 0.0, %v2276
      %2278 = vmatprep.mubr.bf16.mxu0 %v1719
      %2279 = vmatmul.mubr.bf16.gmra.mxu0 %v1718
      %v2280 = vpop.f32.mrf.mxu0
      %v2281 = vadd.f32 0.0, %v2280
      %v2282 = vpop.f32.mrf.mxu0
      %v2283 = vadd.f32 0.0, %v2282
      %v2284 = vpop.f32.mrf.mxu0
      %v2285 = vadd.f32 0.0, %v2284
      %v2286 = vpop.f32.mrf.mxu0
      %v2287 = vadd.f32 0.0, %v2286
      %2288 = vmatprep.mubr.bf16.mxu0 %v1721
      %2289 = vmatmul.mubr.bf16.gmra.mxu0 %v1720
      %v2290 = vpop.f32.mrf.mxu0
      %v2291 = vadd.f32 0.0, %v2290
      %v2292 = vpop.f32.mrf.mxu0
      %v2293 = vadd.f32 0.0, %v2292
      %v2294 = vpop.f32.mrf.mxu0
      %v2295 = vadd.f32 0.0, %v2294
      %v2296 = vpop.f32.mrf.mxu0
      %v2297 = vadd.f32 0.0, %v2296
      %2298 = vdwg.mxu0
      %v2363 = vunpack.c.l.b16 %v738
      %v2364 = vunpack.c.l.b16 %v739
      %v2365 = vunpack.c.l.b16 %v740
      %v2366 = vunpack.c.l.b16 %v741
      %v2367 = vunpack.c.l.b16 %v742
      %v2368 = vunpack.c.l.b16 %v743
      %v2369 = vunpack.c.l.b16 %v744
      %v2370 = vunpack.c.l.b16 %v745
      %v2371 = vunpack.c.l.b16 %v746
      %v2372 = vunpack.c.l.b16 %v747
      %v2373 = vunpack.c.l.b16 %v748
      %v2374 = vunpack.c.l.b16 %v749
      %v2375 = vunpack.c.l.b16 %v750
      %v2376 = vunpack.c.l.b16 %v751
      %v2377 = vunpack.c.l.b16 %v752
      %v2378 = vunpack.c.l.b16 %v753
      %v2379 = vunpack.c.l.b16 %v754
      %v2380 = vunpack.c.l.b16 %v755
      %v2381 = vunpack.c.l.b16 %v756
      %v2382 = vunpack.c.l.b16 %v757
      %v2383 = vunpack.c.l.b16 %v758
      %v2384 = vunpack.c.l.b16 %v759
      %v2385 = vunpack.c.l.b16 %v760
      %v2386 = vunpack.c.l.b16 %v761
      %v2387 = vunpack.c.l.b16 %v762
      %v2388 = vunpack.c.l.b16 %v763
      %v2389 = vunpack.c.l.b16 %v764
      %v2390 = vunpack.c.l.b16 %v765
      %v2391 = vunpack.c.l.b16 %v766
      %v2392 = vunpack.c.l.b16 %v767
      %v2393 = vunpack.c.l.b16 %v768
      %v2394 = vunpack.c.l.b16 %v769
      %v2395 = vunpack.c.l.b16 %v770
      %v2396 = vunpack.c.l.b16 %v771
      %v2397 = vunpack.c.l.b16 %v772
      %v2398 = vunpack.c.l.b16 %v773
      %v2399 = vunpack.c.l.b16 %v774
      %v2400 = vunpack.c.l.b16 %v775
      %v2401 = vunpack.c.l.b16 %v776
      %v2402 = vunpack.c.l.b16 %v777
      %v2403 = vunpack.c.l.b16 %v778
      %v2404 = vunpack.c.l.b16 %v779
      %v2405 = vunpack.c.l.b16 %v780
      %v2406 = vunpack.c.l.b16 %v781
      %v2407 = vunpack.c.l.b16 %v782
      %v2408 = vunpack.c.l.b16 %v783
      %v2409 = vunpack.c.l.b16 %v784
      %v2410 = vunpack.c.l.b16 %v785
      %v2411 = vunpack.c.l.b16 %v786
      %v2412 = vunpack.c.l.b16 %v787
      %v2413 = vunpack.c.l.b16 %v788
      %v2414 = vunpack.c.l.b16 %v789
      %v2415 = vunpack.c.l.b16 %v790
      %v2416 = vunpack.c.l.b16 %v791
      %v2417 = vunpack.c.l.b16 %v792
      %v2418 = vunpack.c.l.b16 %v793
      %v2419 = vunpack.c.l.b16 %v794
      %v2420 = vunpack.c.l.b16 %v795
      %v2421 = vunpack.c.l.b16 %v796
      %v2422 = vunpack.c.l.b16 %v797
      %v2423 = vunpack.c.l.b16 %v798
      %v2424 = vunpack.c.l.b16 %v799
      %v2425 = vunpack.c.l.b16 %v800
      %v2426 = vunpack.c.l.b16 %v801
      %v2427 = vpack.c.b16 %v2364, %v2363
      %v2428 = vpack.c.b16 %v2366, %v2365
      %v2429 = vpack.c.b16 %v2368, %v2367
      %v2430 = vpack.c.b16 %v2370, %v2369
      %v2431 = vpack.c.b16 %v2372, %v2371
      %v2432 = vpack.c.b16 %v2374, %v2373
      %v2433 = vpack.c.b16 %v2376, %v2375
      %v2434 = vpack.c.b16 %v2378, %v2377
      %v2435 = vpack.c.b16 %v2380, %v2379
      %v2436 = vpack.c.b16 %v2382, %v2381
      %v2437 = vpack.c.b16 %v2384, %v2383
      %v2438 = vpack.c.b16 %v2386, %v2385
      %v2439 = vpack.c.b16 %v2388, %v2387
      %v2440 = vpack.c.b16 %v2390, %v2389
      %v2441 = vpack.c.b16 %v2392, %v2391
      %v2442 = vpack.c.b16 %v2394, %v2393
      %v2443 = vpack.c.b16 %v2396, %v2395
      %v2444 = vpack.c.b16 %v2398, %v2397
      %v2445 = vpack.c.b16 %v2400, %v2399
      %v2446 = vpack.c.b16 %v2402, %v2401
      %v2447 = vpack.c.b16 %v2404, %v2403
      %v2448 = vpack.c.b16 %v2406, %v2405
      %v2449 = vpack.c.b16 %v2408, %v2407
      %v2450 = vpack.c.b16 %v2410, %v2409
      %v2451 = vpack.c.b16 %v2412, %v2411
      %v2452 = vpack.c.b16 %v2414, %v2413
      %v2453 = vpack.c.b16 %v2416, %v2415
      %v2454 = vpack.c.b16 %v2418, %v2417
      %v2455 = vpack.c.b16 %v2420, %v2419
      %v2456 = vpack.c.b16 %v2422, %v2421
      %v2457 = vpack.c.b16 %v2424, %v2423
      %v2458 = vpack.c.b16 %v2426, %v2425
      %v2507 = vunpack.c.l.b16 %v1418
      %v2508 = vunpack.c.h.b16 %v1418
      %v2509 = vunpack.c.l.b16 %v1419
      %v2510 = vunpack.c.h.b16 %v1419
      %v2511 = vunpack.c.l.b16 %v1420
      %v2512 = vunpack.c.h.b16 %v1420
      %v2513 = vunpack.c.l.b16 %v1421
      %v2514 = vunpack.c.h.b16 %v1421
      %v2515 = vunpack.c.l.b16 %v1422
      %v2516 = vunpack.c.h.b16 %v1422
      %v2517 = vunpack.c.l.b16 %v1423
      %v2518 = vunpack.c.h.b16 %v1423
      %v2519 = vunpack.c.l.b16 %v1424
      %v2520 = vunpack.c.h.b16 %v1424
      %v2521 = vunpack.c.l.b16 %v1425
      %v2522 = vunpack.c.h.b16 %v1425
      %v2523 = vunpack.c.l.b16 %v1426
      %v2524 = vunpack.c.h.b16 %v1426
      %v2525 = vunpack.c.l.b16 %v1427
      %v2526 = vunpack.c.h.b16 %v1427
      %v2527 = vunpack.c.l.b16 %v1428
      %v2528 = vunpack.c.h.b16 %v1428
      %v2529 = vunpack.c.l.b16 %v1429
      %v2530 = vunpack.c.h.b16 %v1429
      %v2531 = vunpack.c.l.b16 %v1430
      %v2532 = vunpack.c.h.b16 %v1430
      %v2533 = vunpack.c.l.b16 %v1431
      %v2534 = vunpack.c.h.b16 %v1431
      %v2535 = vunpack.c.l.b16 %v1432
      %v2536 = vunpack.c.h.b16 %v1432
      %v2537 = vunpack.c.l.b16 %v1433
      %v2538 = vunpack.c.h.b16 %v1433
      %v2539 = vpack.c.b16 %v2509, %v2507
      %v2540 = vpack.c.b16 %v2510, %v2508
      %v2541 = vpack.c.b16 %v2513, %v2511
      %v2542 = vpack.c.b16 %v2514, %v2512
      %v2543 = vpack.c.b16 %v2517, %v2515
      %v2544 = vpack.c.b16 %v2518, %v2516
      %v2545 = vpack.c.b16 %v2521, %v2519
      %v2546 = vpack.c.b16 %v2522, %v2520
      %v2547 = vpack.c.b16 %v2525, %v2523
      %v2548 = vpack.c.b16 %v2526, %v2524
      %v2549 = vpack.c.b16 %v2529, %v2527
      %v2550 = vpack.c.b16 %v2530, %v2528
      %v2551 = vpack.c.b16 %v2533, %v2531
      %v2552 = vpack.c.b16 %v2534, %v2532
      %v2553 = vpack.c.b16 %v2537, %v2535
      %v2554 = vpack.c.b16 %v2538, %v2536
      %2571 = vmatprep.subr.bf16.mxu0 %v2554
      %2572 = vmatpush1.bf16.msra.mxu0 %v2553
      %2573 = vmatprep.subr.bf16.mxu0 %v2552
      %2574 = vmatpush1.bf16.msra.mxu0 %v2551
      %2575 = vmatprep.subr.bf16.mxu0 %v2550
      %2576 = vmatpush1.bf16.msra.mxu0 %v2549
      %2577 = vmatprep.subr.bf16.mxu0 %v2548
      %2578 = vmatpush1.bf16.msra.mxu0 %v2547
      %2579 = vmatprep.subr.bf16.mxu0 %v2546
      %2580 = vmatpush1.bf16.msra.mxu0 %v2545
      %2581 = vmatprep.subr.bf16.mxu0 %v2544
      %2582 = vmatpush1.bf16.msra.mxu0 %v2543
      %2583 = vmatprep.subr.bf16.mxu0 %v2542
      %2584 = vmatpush1.bf16.msra.mxu0 %v2541
      %2585 = vmatprep.subr.bf16.mxu0 %v2540
      %2586 = vmatpush1.bf16.msra.mxu0 %v2539
      %2587 = vmatprep.subr.bf16.mxu0 0
      %2588 = vmatpush2.bf16.msra.mxu0 0
      %2589 = vmatprep.subr.bf16.mxu0 0
      %2590 = vmatpush2.bf16.msra.mxu0 0
      %2591 = vmatprep.subr.bf16.mxu0 0
      %2592 = vmatpush2.bf16.msra.mxu0 0
      %2593 = vmatprep.subr.bf16.mxu0 0
      %2594 = vmatpush2.bf16.msra.mxu0 0
      %2595 = vmatprep.subr.bf16.mxu0 0
      %2596 = vmatpush2.bf16.msra.mxu0 0
      %2597 = vmatprep.subr.bf16.mxu0 0
      %2598 = vmatpush2.bf16.msra.mxu0 0
      %2599 = vmatprep.subr.bf16.mxu0 0
      %2600 = vmatpush2.bf16.msra.mxu0 0
      %2601 = vmatprep.subr.bf16.mxu0 0
      %2602 = vmatpush2.bf16.msra.mxu0 0
      %2603 = vmatprep.mubr.bf16.mxu0 0
      %2604 = vmatmul.mubr.bf16.gmra.mxu0 %v2427
      %v2605 = vpop.f32.mrf.mxu0
      %v2606 = vadd.f32 %v1981, %v2605
      %v2607 = vpop.f32.mrf.mxu0
      %v2608 = vadd.f32 %v1983, %v2607
      %v2609 = vpop.f32.mrf.mxu0
      %v2610 = vadd.f32 %v1985, %v2609
      %v2611 = vpop.f32.mrf.mxu0
      %v2612 = vadd.f32 %v1987, %v2611
      %2613 = vmatprep.mubr.bf16.mxu0 0
      %2614 = vmatmul.mubr.bf16.gmra.mxu0 %v2428
      %v2615 = vpop.f32.mrf.mxu0
      %v2616 = vadd.f32 %v1991, %v2615
      %v2617 = vpop.f32.mrf.mxu0
      %v2618 = vadd.f32 %v1993, %v2617
      %v2619 = vpop.f32.mrf.mxu0
      %v2620 = vadd.f32 %v1995, %v2619
      %v2621 = vpop.f32.mrf.mxu0
      %v2622 = vadd.f32 %v1997, %v2621
      %2623 = vmatprep.mubr.bf16.mxu0 0
      %2624 = vmatmul.mubr.bf16.gmra.mxu0 %v2429
      %v2625 = vpop.f32.mrf.mxu0
      %v2626 = vadd.f32 %v2001, %v2625
      %v2627 = vpop.f32.mrf.mxu0
      %v2628 = vadd.f32 %v2003, %v2627
      %v2629 = vpop.f32.mrf.mxu0
      %v2630 = vadd.f32 %v2005, %v2629
      %v2631 = vpop.f32.mrf.mxu0
      %v2632 = vadd.f32 %v2007, %v2631
      %2633 = vmatprep.mubr.bf16.mxu0 0
      %2634 = vmatmul.mubr.bf16.gmra.mxu0 %v2430
      %v2635 = vpop.f32.mrf.mxu0
      %v2636 = vadd.f32 %v2011, %v2635
      %v2637 = vpop.f32.mrf.mxu0
      %v2638 = vadd.f32 %v2013, %v2637
      %v2639 = vpop.f32.mrf.mxu0
      %v2640 = vadd.f32 %v2015, %v2639
      %v2641 = vpop.f32.mrf.mxu0
      %v2642 = vadd.f32 %v2017, %v2641
      %2643 = vmatprep.mubr.bf16.mxu0 0
      %2644 = vmatmul.mubr.bf16.gmra.mxu0 %v2431
      %v2645 = vpop.f32.mrf.mxu0
      %v2646 = vadd.f32 %v2021, %v2645
      %v2647 = vpop.f32.mrf.mxu0
      %v2648 = vadd.f32 %v2023, %v2647
      %v2649 = vpop.f32.mrf.mxu0
      %v2650 = vadd.f32 %v2025, %v2649
      %v2651 = vpop.f32.mrf.mxu0
      %v2652 = vadd.f32 %v2027, %v2651
      %2653 = vmatprep.mubr.bf16.mxu0 0
      %2654 = vmatmul.mubr.bf16.gmra.mxu0 %v2432
      %v2655 = vpop.f32.mrf.mxu0
      %v2656 = vadd.f32 %v2031, %v2655
      %v2657 = vpop.f32.mrf.mxu0
      %v2658 = vadd.f32 %v2033, %v2657
      %v2659 = vpop.f32.mrf.mxu0
      %v2660 = vadd.f32 %v2035, %v2659
      %v2661 = vpop.f32.mrf.mxu0
      %v2662 = vadd.f32 %v2037, %v2661
      %2663 = vmatprep.mubr.bf16.mxu0 0
      %2664 = vmatmul.mubr.bf16.gmra.mxu0 %v2433
      %v2665 = vpop.f32.mrf.mxu0
      %v2666 = vadd.f32 %v2041, %v2665
      %v2667 = vpop.f32.mrf.mxu0
      %v2668 = vadd.f32 %v2043, %v2667
      %v2669 = vpop.f32.mrf.mxu0
      %v2670 = vadd.f32 %v2045, %v2669
      %v2671 = vpop.f32.mrf.mxu0
      %v2672 = vadd.f32 %v2047, %v2671
      %2673 = vmatprep.mubr.bf16.mxu0 0
      %2674 = vmatmul.mubr.bf16.gmra.mxu0 %v2434
      %v2675 = vpop.f32.mrf.mxu0
      %v2676 = vadd.f32 %v2051, %v2675
      %v2677 = vpop.f32.mrf.mxu0
      %v2678 = vadd.f32 %v2053, %v2677
      %v2679 = vpop.f32.mrf.mxu0
      %v2680 = vadd.f32 %v2055, %v2679
      %v2681 = vpop.f32.mrf.mxu0
      %v2682 = vadd.f32 %v2057, %v2681
      %2683 = vmatprep.mubr.bf16.mxu0 0
      %2684 = vmatmul.mubr.bf16.gmra.mxu0 %v2435
      %v2685 = vpop.f32.mrf.mxu0
      %v2686 = vadd.f32 %v2061, %v2685
      %v2687 = vpop.f32.mrf.mxu0
      %v2688 = vadd.f32 %v2063, %v2687
      %v2689 = vpop.f32.mrf.mxu0
      %v2690 = vadd.f32 %v2065, %v2689
      %v2691 = vpop.f32.mrf.mxu0
      %v2692 = vadd.f32 %v2067, %v2691
      %2693 = vmatprep.mubr.bf16.mxu0 0
      %2694 = vmatmul.mubr.bf16.gmra.mxu0 %v2436
      %v2695 = vpop.f32.mrf.mxu0
      %v2696 = vadd.f32 %v2071, %v2695
      %v2697 = vpop.f32.mrf.mxu0
      %v2698 = vadd.f32 %v2073, %v2697
      %v2699 = vpop.f32.mrf.mxu0
      %v2700 = vadd.f32 %v2075, %v2699
      %v2701 = vpop.f32.mrf.mxu0
      %v2702 = vadd.f32 %v2077, %v2701
      %2703 = vmatprep.mubr.bf16.mxu0 0
      %2704 = vmatmul.mubr.bf16.gmra.mxu0 %v2437
      %v2705 = vpop.f32.mrf.mxu0
      %v2706 = vadd.f32 %v2081, %v2705
      %v2707 = vpop.f32.mrf.mxu0
      %v2708 = vadd.f32 %v2083, %v2707
      %v2709 = vpop.f32.mrf.mxu0
      %v2710 = vadd.f32 %v2085, %v2709
      %v2711 = vpop.f32.mrf.mxu0
      %v2712 = vadd.f32 %v2087, %v2711
      %2713 = vmatprep.mubr.bf16.mxu0 0
      %2714 = vmatmul.mubr.bf16.gmra.mxu0 %v2438
      %v2715 = vpop.f32.mrf.mxu0
      %v2716 = vadd.f32 %v2091, %v2715
      %v2717 = vpop.f32.mrf.mxu0
      %v2718 = vadd.f32 %v2093, %v2717
      %v2719 = vpop.f32.mrf.mxu0
      %v2720 = vadd.f32 %v2095, %v2719
      %v2721 = vpop.f32.mrf.mxu0
      %v2722 = vadd.f32 %v2097, %v2721
      %2723 = vmatprep.mubr.bf16.mxu0 0
      %2724 = vmatmul.mubr.bf16.gmra.mxu0 %v2439
      %v2725 = vpop.f32.mrf.mxu0
      %v2726 = vadd.f32 %v2101, %v2725
      %v2727 = vpop.f32.mrf.mxu0
      %v2728 = vadd.f32 %v2103, %v2727
      %v2729 = vpop.f32.mrf.mxu0
      %v2730 = vadd.f32 %v2105, %v2729
      %v2731 = vpop.f32.mrf.mxu0
      %v2732 = vadd.f32 %v2107, %v2731
      %2733 = vmatprep.mubr.bf16.mxu0 0
      %2734 = vmatmul.mubr.bf16.gmra.mxu0 %v2440
      %v2735 = vpop.f32.mrf.mxu0
      %v2736 = vadd.f32 %v2111, %v2735
      %v2737 = vpop.f32.mrf.mxu0
      %v2738 = vadd.f32 %v2113, %v2737
      %v2739 = vpop.f32.mrf.mxu0
      %v2740 = vadd.f32 %v2115, %v2739
      %v2741 = vpop.f32.mrf.mxu0
      %v2742 = vadd.f32 %v2117, %v2741
      %2743 = vmatprep.mubr.bf16.mxu0 0
      %2744 = vmatmul.mubr.bf16.gmra.mxu0 %v2441
      %v2745 = vpop.f32.mrf.mxu0
      %v2746 = vadd.f32 %v2121, %v2745
      %v2747 = vpop.f32.mrf.mxu0
      %v2748 = vadd.f32 %v2123, %v2747
      %v2749 = vpop.f32.mrf.mxu0
      %v2750 = vadd.f32 %v2125, %v2749
      %v2751 = vpop.f32.mrf.mxu0
      %v2752 = vadd.f32 %v2127, %v2751
      %2753 = vmatprep.mubr.bf16.mxu0 0
      %2754 = vmatmul.mubr.bf16.gmra.mxu0 %v2442
      %v2755 = vpop.f32.mrf.mxu0
      %v2756 = vadd.f32 %v2131, %v2755
      %v2757 = vpop.f32.mrf.mxu0
      %v2758 = vadd.f32 %v2133, %v2757
      %v2759 = vpop.f32.mrf.mxu0
      %v2760 = vadd.f32 %v2135, %v2759
      %v2761 = vpop.f32.mrf.mxu0
      %v2762 = vadd.f32 %v2137, %v2761
      %2763 = vmatprep.mubr.bf16.mxu0 0
      %2764 = vmatmul.mubr.bf16.gmra.mxu0 %v2443
      %v2765 = vpop.f32.mrf.mxu0
      %v2766 = vadd.f32 %v2141, %v2765
      %v2767 = vpop.f32.mrf.mxu0
      %v2768 = vadd.f32 %v2143, %v2767
      %v2769 = vpop.f32.mrf.mxu0
      %v2770 = vadd.f32 %v2145, %v2769
      %v2771 = vpop.f32.mrf.mxu0
      %v2772 = vadd.f32 %v2147, %v2771
      %2773 = vmatprep.mubr.bf16.mxu0 0
      %2774 = vmatmul.mubr.bf16.gmra.mxu0 %v2444
      %v2775 = vpop.f32.mrf.mxu0
      %v2776 = vadd.f32 %v2151, %v2775
      %v2777 = vpop.f32.mrf.mxu0
      %v2778 = vadd.f32 %v2153, %v2777
      %v2779 = vpop.f32.mrf.mxu0
      %v2780 = vadd.f32 %v2155, %v2779
      %v2781 = vpop.f32.mrf.mxu0
      %v2782 = vadd.f32 %v2157, %v2781
      %2783 = vmatprep.mubr.bf16.mxu0 0
      %2784 = vmatmul.mubr.bf16.gmra.mxu0 %v2445
      %v2785 = vpop.f32.mrf.mxu0
      %v2786 = vadd.f32 %v2161, %v2785
      %v2787 = vpop.f32.mrf.mxu0
      %v2788 = vadd.f32 %v2163, %v2787
      %v2789 = vpop.f32.mrf.mxu0
      %v2790 = vadd.f32 %v2165, %v2789
      %v2791 = vpop.f32.mrf.mxu0
      %v2792 = vadd.f32 %v2167, %v2791
      %2793 = vmatprep.mubr.bf16.mxu0 0
      %2794 = vmatmul.mubr.bf16.gmra.mxu0 %v2446
      %v2795 = vpop.f32.mrf.mxu0
      %v2796 = vadd.f32 %v2171, %v2795
      %v2797 = vpop.f32.mrf.mxu0
      %v2798 = vadd.f32 %v2173, %v2797
      %v2799 = vpop.f32.mrf.mxu0
      %v2800 = vadd.f32 %v2175, %v2799
      %v2801 = vpop.f32.mrf.mxu0
      %v2802 = vadd.f32 %v2177, %v2801
      %2803 = vmatprep.mubr.bf16.mxu0 0
      %2804 = vmatmul.mubr.bf16.gmra.mxu0 %v2447
      %v2805 = vpop.f32.mrf.mxu0
      %v2806 = vadd.f32 %v2181, %v2805
      %v2807 = vpop.f32.mrf.mxu0
      %v2808 = vadd.f32 %v2183, %v2807
      %v2809 = vpop.f32.mrf.mxu0
      %v2810 = vadd.f32 %v2185, %v2809
      %v2811 = vpop.f32.mrf.mxu0
      %v2812 = vadd.f32 %v2187, %v2811
      %2813 = vmatprep.mubr.bf16.mxu0 0
      %2814 = vmatmul.mubr.bf16.gmra.mxu0 %v2448
      %v2815 = vpop.f32.mrf.mxu0
      %v2816 = vadd.f32 %v2191, %v2815
      %v2817 = vpop.f32.mrf.mxu0
      %v2818 = vadd.f32 %v2193, %v2817
      %v2819 = vpop.f32.mrf.mxu0
      %v2820 = vadd.f32 %v2195, %v2819
      %v2821 = vpop.f32.mrf.mxu0
      %v2822 = vadd.f32 %v2197, %v2821
      %2823 = vmatprep.mubr.bf16.mxu0 0
      %2824 = vmatmul.mubr.bf16.gmra.mxu0 %v2449
      %v2825 = vpop.f32.mrf.mxu0
      %v2826 = vadd.f32 %v2201, %v2825
      %v2827 = vpop.f32.mrf.mxu0
      %v2828 = vadd.f32 %v2203, %v2827
      %v2829 = vpop.f32.mrf.mxu0
      %v2830 = vadd.f32 %v2205, %v2829
      %v2831 = vpop.f32.mrf.mxu0
      %v2832 = vadd.f32 %v2207, %v2831
      %2833 = vmatprep.mubr.bf16.mxu0 0
      %2834 = vmatmul.mubr.bf16.gmra.mxu0 %v2450
      %v2835 = vpop.f32.mrf.mxu0
      %v2836 = vadd.f32 %v2211, %v2835
      %v2837 = vpop.f32.mrf.mxu0
      %v2838 = vadd.f32 %v2213, %v2837
      %v2839 = vpop.f32.mrf.mxu0
      %v2840 = vadd.f32 %v2215, %v2839
      %v2841 = vpop.f32.mrf.mxu0
      %v2842 = vadd.f32 %v2217, %v2841
      %2843 = vmatprep.mubr.bf16.mxu0 0
      %2844 = vmatmul.mubr.bf16.gmra.mxu0 %v2451
      %v2845 = vpop.f32.mrf.mxu0
      %v2846 = vadd.f32 %v2221, %v2845
      %v2847 = vpop.f32.mrf.mxu0
      %v2848 = vadd.f32 %v2223, %v2847
      %v2849 = vpop.f32.mrf.mxu0
      %v2850 = vadd.f32 %v2225, %v2849
      %v2851 = vpop.f32.mrf.mxu0
      %v2852 = vadd.f32 %v2227, %v2851
      %2853 = vmatprep.mubr.bf16.mxu0 0
      %2854 = vmatmul.mubr.bf16.gmra.mxu0 %v2452
      %v2855 = vpop.f32.mrf.mxu0
      %v2856 = vadd.f32 %v2231, %v2855
      %v2857 = vpop.f32.mrf.mxu0
      %v2858 = vadd.f32 %v2233, %v2857
      %v2859 = vpop.f32.mrf.mxu0
      %v2860 = vadd.f32 %v2235, %v2859
      %v2861 = vpop.f32.mrf.mxu0
      %v2862 = vadd.f32 %v2237, %v2861
      %2863 = vmatprep.mubr.bf16.mxu0 0
      %2864 = vmatmul.mubr.bf16.gmra.mxu0 %v2453
      %v2865 = vpop.f32.mrf.mxu0
      %v2866 = vadd.f32 %v2241, %v2865
      %v2867 = vpop.f32.mrf.mxu0
      %v2868 = vadd.f32 %v2243, %v2867
      %v2869 = vpop.f32.mrf.mxu0
      %v2870 = vadd.f32 %v2245, %v2869
      %v2871 = vpop.f32.mrf.mxu0
      %v2872 = vadd.f32 %v2247, %v2871
      %2873 = vmatprep.mubr.bf16.mxu0 0
      %2874 = vmatmul.mubr.bf16.gmra.mxu0 %v2454
      %v2875 = vpop.f32.mrf.mxu0
      %v2876 = vadd.f32 %v2251, %v2875
      %v2877 = vpop.f32.mrf.mxu0
      %v2878 = vadd.f32 %v2253, %v2877
      %v2879 = vpop.f32.mrf.mxu0
      %v2880 = vadd.f32 %v2255, %v2879
      %v2881 = vpop.f32.mrf.mxu0
      %v2882 = vadd.f32 %v2257, %v2881
      %2883 = vmatprep.mubr.bf16.mxu0 0
      %2884 = vmatmul.mubr.bf16.gmra.mxu0 %v2455
      %v2885 = vpop.f32.mrf.mxu0
      %v2886 = vadd.f32 %v2261, %v2885
      %v2887 = vpop.f32.mrf.mxu0
      %v2888 = vadd.f32 %v2263, %v2887
      %v2889 = vpop.f32.mrf.mxu0
      %v2890 = vadd.f32 %v2265, %v2889
      %v2891 = vpop.f32.mrf.mxu0
      %v2892 = vadd.f32 %v2267, %v2891
      %2893 = vmatprep.mubr.bf16.mxu0 0
      %2894 = vmatmul.mubr.bf16.gmra.mxu0 %v2456
      %v2895 = vpop.f32.mrf.mxu0
      %v2896 = vadd.f32 %v2271, %v2895
      %v2897 = vpop.f32.mrf.mxu0
      %v2898 = vadd.f32 %v2273, %v2897
      %v2899 = vpop.f32.mrf.mxu0
      %v2900 = vadd.f32 %v2275, %v2899
      %v2901 = vpop.f32.mrf.mxu0
      %v2902 = vadd.f32 %v2277, %v2901
      %2903 = vmatprep.mubr.bf16.mxu0 0
      %2904 = vmatmul.mubr.bf16.gmra.mxu0 %v2457
      %v2905 = vpop.f32.mrf.mxu0
      %v2906 = vadd.f32 %v2281, %v2905
      %v2907 = vpop.f32.mrf.mxu0
      %v2908 = vadd.f32 %v2283, %v2907
      %v2909 = vpop.f32.mrf.mxu0
      %v2910 = vadd.f32 %v2285, %v2909
      %v2911 = vpop.f32.mrf.mxu0
      %v2912 = vadd.f32 %v2287, %v2911
      %2913 = vmatprep.mubr.bf16.mxu0 0
      %2914 = vmatmul.mubr.bf16.gmra.mxu0 %v2458
      %v2915 = vpop.f32.mrf.mxu0
      %v2916 = vadd.f32 %v2291, %v2915
      %v2917 = vpop.f32.mrf.mxu0
      %v2918 = vadd.f32 %v2293, %v2917
      %v2919 = vpop.f32.mrf.mxu0
      %v2920 = vadd.f32 %v2295, %v2919
      %v2921 = vpop.f32.mrf.mxu0
      %v2922 = vadd.f32 %v2297, %v2921
      %2923 = vdwg.mxu0
      %v2924 = vld [vmem:[%s10] sm:$0x3]
      %v2926 = vlaneseq
      %v2927 = vshrl.u32 %v2926, 7
      %v2928 = vsub.s32 0, %v2927
      %v2929 = vrot.slane %v2924, %v2928
      %v2930 = vlaneseq
      %v2931 = vshrl.u32 %v2930, 7
      %v2932 = vsub.s32 1, %v2931
      %v2933 = vrot.slane %v2924, %v2932
      %v2936 = vadd.f32 %v2606, %v2929
      %v2937 = vadd.f32 %v2608, %v2933
      %v2938 = vadd.f32 %v2610, %v2929
      %v2939 = vadd.f32 %v2612, %v2933
      %v2940 = vadd.f32 %v2616, %v2929
      %v2941 = vadd.f32 %v2618, %v2933
      %v2942 = vadd.f32 %v2620, %v2929
      %v2943 = vadd.f32 %v2622, %v2933
      %v2944 = vadd.f32 %v2626, %v2929
      %v2945 = vadd.f32 %v2628, %v2933
      %v2946 = vadd.f32 %v2630, %v2929
      %v2947 = vadd.f32 %v2632, %v2933
      %v2948 = vadd.f32 %v2636, %v2929
      %v2949 = vadd.f32 %v2638, %v2933
      %v2950 = vadd.f32 %v2640, %v2929
      %v2951 = vadd.f32 %v2642, %v2933
      %v2952 = vadd.f32 %v2646, %v2929
      %v2953 = vadd.f32 %v2648, %v2933
      %v2954 = vadd.f32 %v2650, %v2929
      %v2955 = vadd.f32 %v2652, %v2933
      %v2956 = vadd.f32 %v2656, %v2929
      %v2957 = vadd.f32 %v2658, %v2933
      %v2958 = vadd.f32 %v2660, %v2929
      %v2959 = vadd.f32 %v2662, %v2933
      %v2960 = vadd.f32 %v2666, %v2929
      %v2961 = vadd.f32 %v2668, %v2933
      %v2962 = vadd.f32 %v2670, %v2929
      %v2963 = vadd.f32 %v2672, %v2933
      %v2964 = vadd.f32 %v2676, %v2929
      %v2965 = vadd.f32 %v2678, %v2933
      %v2966 = vadd.f32 %v2680, %v2929
      %v2967 = vadd.f32 %v2682, %v2933
      %v2968 = vadd.f32 %v2686, %v2929
      %v2969 = vadd.f32 %v2688, %v2933
      %v2970 = vadd.f32 %v2690, %v2929
      %v2971 = vadd.f32 %v2692, %v2933
      %v2972 = vadd.f32 %v2696, %v2929
      %v2973 = vadd.f32 %v2698, %v2933
      %v2974 = vadd.f32 %v2700, %v2929
      %v2975 = vadd.f32 %v2702, %v2933
      %v2976 = vadd.f32 %v2706, %v2929
      %v2977 = vadd.f32 %v2708, %v2933
      %v2978 = vadd.f32 %v2710, %v2929
      %v2979 = vadd.f32 %v2712, %v2933
      %v2980 = vadd.f32 %v2716, %v2929
      %v2981 = vadd.f32 %v2718, %v2933
      %v2982 = vadd.f32 %v2720, %v2929
      %v2983 = vadd.f32 %v2722, %v2933
      %v2984 = vadd.f32 %v2726, %v2929
      %v2985 = vadd.f32 %v2728, %v2933
      %v2986 = vadd.f32 %v2730, %v2929
      %v2987 = vadd.f32 %v2732, %v2933
      %v2988 = vadd.f32 %v2736, %v2929
      %v2989 = vadd.f32 %v2738, %v2933
      %v2990 = vadd.f32 %v2740, %v2929
      %v2991 = vadd.f32 %v2742, %v2933
      %v2992 = vadd.f32 %v2746, %v2929
      %v2993 = vadd.f32 %v2748, %v2933
      %v2994 = vadd.f32 %v2750, %v2929
      %v2995 = vadd.f32 %v2752, %v2933
      %v2996 = vadd.f32 %v2756, %v2929
      %v2997 = vadd.f32 %v2758, %v2933
      %v2998 = vadd.f32 %v2760, %v2929
      %v2999 = vadd.f32 %v2762, %v2933
      %v3000 = vadd.f32 %v2766, %v2929
      %v3001 = vadd.f32 %v2768, %v2933
      %v3002 = vadd.f32 %v2770, %v2929
      %v3003 = vadd.f32 %v2772, %v2933
      %v3004 = vadd.f32 %v2776, %v2929
      %v3005 = vadd.f32 %v2778, %v2933
      %v3006 = vadd.f32 %v2780, %v2929
      %v3007 = vadd.f32 %v2782, %v2933
      %v3008 = vadd.f32 %v2786, %v2929
      %v3009 = vadd.f32 %v2788, %v2933
      %v3010 = vadd.f32 %v2790, %v2929
      %v3011 = vadd.f32 %v2792, %v2933
      %v3012 = vadd.f32 %v2796, %v2929
      %v3013 = vadd.f32 %v2798, %v2933
      %v3014 = vadd.f32 %v2800, %v2929
      %v3015 = vadd.f32 %v2802, %v2933
      %v3016 = vadd.f32 %v2806, %v2929
      %v3017 = vadd.f32 %v2808, %v2933
      %v3018 = vadd.f32 %v2810, %v2929
      %v3019 = vadd.f32 %v2812, %v2933
      %v3020 = vadd.f32 %v2816, %v2929
      %v3021 = vadd.f32 %v2818, %v2933
      %v3022 = vadd.f32 %v2820, %v2929
      %v3023 = vadd.f32 %v2822, %v2933
      %v3024 = vadd.f32 %v2826, %v2929
      %v3025 = vadd.f32 %v2828, %v2933
      %v3026 = vadd.f32 %v2830, %v2929
      %v3027 = vadd.f32 %v2832, %v2933
      %v3028 = vadd.f32 %v2836, %v2929
      %v3029 = vadd.f32 %v2838, %v2933
      %v3030 = vadd.f32 %v2840, %v2929
      %v3031 = vadd.f32 %v2842, %v2933
      %v3032 = vadd.f32 %v2846, %v2929
      %v3033 = vadd.f32 %v2848, %v2933
      %v3034 = vadd.f32 %v2850, %v2929
      %v3035 = vadd.f32 %v2852, %v2933
      %v3036 = vadd.f32 %v2856, %v2929
      %v3037 = vadd.f32 %v2858, %v2933
      %v3038 = vadd.f32 %v2860, %v2929
      %v3039 = vadd.f32 %v2862, %v2933
      %v3040 = vadd.f32 %v2866, %v2929
      %v3041 = vadd.f32 %v2868, %v2933
      %v3042 = vadd.f32 %v2870, %v2929
      %v3043 = vadd.f32 %v2872, %v2933
      %v3044 = vadd.f32 %v2876, %v2929
      %v3045 = vadd.f32 %v2878, %v2933
      %v3046 = vadd.f32 %v2880, %v2929
      %v3047 = vadd.f32 %v2882, %v2933
      %v3048 = vadd.f32 %v2886, %v2929
      %v3049 = vadd.f32 %v2888, %v2933
      %v3050 = vadd.f32 %v2890, %v2929
      %v3051 = vadd.f32 %v2892, %v2933
      %v3052 = vadd.f32 %v2896, %v2929
      %v3053 = vadd.f32 %v2898, %v2933
      %v3054 = vadd.f32 %v2900, %v2929
      %v3055 = vadd.f32 %v2902, %v2933
      %v3056 = vadd.f32 %v2906, %v2929
      %v3057 = vadd.f32 %v2908, %v2933
      %v3058 = vadd.f32 %v2910, %v2929
      %v3059 = vadd.f32 %v2912, %v2933
      %v3060 = vadd.f32 %v2916, %v2929
      %v3061 = vadd.f32 %v2918, %v2933
      %v3062 = vadd.f32 %v2920, %v2929
      %v3063 = vadd.f32 %v2922, %v2933
      %v3064 = vmul.f32 %v1164, %v2936
      %v3065 = vmul.f32 %v1167, %v2938
      %v3066 = vmul.f32 %v1172, %v2940
      %v3067 = vmul.f32 %v1175, %v2942
      %v3068 = vmul.f32 %v1180, %v2944
      %v3069 = vmul.f32 %v1183, %v2946
      %v3070 = vmul.f32 %v1188, %v2948
      %v3071 = vmul.f32 %v1191, %v2950
      %v3072 = vmul.f32 %v1196, %v2952
      %v3073 = vmul.f32 %v1199, %v2954
      %v3074 = vmul.f32 %v1204, %v2956
      %v3075 = vmul.f32 %v1207, %v2958
      %v3076 = vmul.f32 %v1212, %v2960
      %v3077 = vmul.f32 %v1215, %v2962
      %v3078 = vmul.f32 %v1220, %v2964
      %v3079 = vmul.f32 %v1223, %v2966
      %v3080 = vmul.f32 %v1228, %v2968
      %v3081 = vmul.f32 %v1231, %v2970
      %v3082 = vmul.f32 %v1236, %v2972
      %v3083 = vmul.f32 %v1239, %v2974
      %v3084 = vmul.f32 %v1244, %v2976
      %v3085 = vmul.f32 %v1247, %v2978
      %v3086 = vmul.f32 %v1252, %v2980
      %v3087 = vmul.f32 %v1255, %v2982
      %v3088 = vmul.f32 %v1260, %v2984
      %v3089 = vmul.f32 %v1263, %v2986
      %v3090 = vmul.f32 %v1268, %v2988
      %v3091 = vmul.f32 %v1271, %v2990
      %v3092 = vmul.f32 %v1276, %v2992
      %v3093 = vmul.f32 %v1279, %v2994
      %v3094 = vmul.f32 %v1284, %v2996
      %v3095 = vmul.f32 %v1287, %v2998
      %v3096 = vmul.f32 %v1292, %v3000
      %v3097 = vmul.f32 %v1295, %v3002
      %v3098 = vmul.f32 %v1300, %v3004
      %v3099 = vmul.f32 %v1303, %v3006
      %v3100 = vmul.f32 %v1308, %v3008
      %v3101 = vmul.f32 %v1311, %v3010
      %v3102 = vmul.f32 %v1316, %v3012
      %v3103 = vmul.f32 %v1319, %v3014
      %v3104 = vmul.f32 %v1324, %v3016
      %v3105 = vmul.f32 %v1327, %v3018
      %v3106 = vmul.f32 %v1332, %v3020
      %v3107 = vmul.f32 %v1335, %v3022
      %v3108 = vmul.f32 %v1340, %v3024
      %v3109 = vmul.f32 %v1343, %v3026
      %v3110 = vmul.f32 %v1348, %v3028
      %v3111 = vmul.f32 %v1351, %v3030
      %v3112 = vmul.f32 %v1356, %v3032
      %v3113 = vmul.f32 %v1359, %v3034
      %v3114 = vmul.f32 %v1364, %v3036
      %v3115 = vmul.f32 %v1367, %v3038
      %v3116 = vmul.f32 %v1372, %v3040
      %v3117 = vmul.f32 %v1375, %v3042
      %v3118 = vmul.f32 %v1380, %v3044
      %v3119 = vmul.f32 %v1383, %v3046
      %v3120 = vmul.f32 %v1388, %v3048
      %v3121 = vmul.f32 %v1391, %v3050
      %v3122 = vmul.f32 %v1396, %v3052
      %v3123 = vmul.f32 %v1399, %v3054
      %v3124 = vmul.f32 %v1404, %v3056
      %v3125 = vmul.f32 %v1407, %v3058
      %v3126 = vmul.f32 %v1412, %v3060
      %v3127 = vmul.f32 %v1415, %v3062
      %v3128 = vpack.c.bf16 %v3065, %v3064
      %v3129 = vpack.c.bf16 %v3067, %v3066
      %v3130 = vpack.c.bf16 %v3069, %v3068
      %v3131 = vpack.c.bf16 %v3071, %v3070
      %v3132 = vpack.c.bf16 %v3073, %v3072
      %v3133 = vpack.c.bf16 %v3075, %v3074
      %v3134 = vpack.c.bf16 %v3077, %v3076
      %v3135 = vpack.c.bf16 %v3079, %v3078
      %v3136 = vpack.c.bf16 %v3081, %v3080
      %v3137 = vpack.c.bf16 %v3083, %v3082
      %v3138 = vpack.c.bf16 %v3085, %v3084
      %v3139 = vpack.c.bf16 %v3087, %v3086
      %v3140 = vpack.c.bf16 %v3089, %v3088
      %v3141 = vpack.c.bf16 %v3091, %v3090
      %v3142 = vpack.c.bf16 %v3093, %v3092
      %v3143 = vpack.c.bf16 %v3095, %v3094
      %v3144 = vpack.c.bf16 %v3097, %v3096
      %v3145 = vpack.c.bf16 %v3099, %v3098
      %v3146 = vpack.c.bf16 %v3101, %v3100
      %v3147 = vpack.c.bf16 %v3103, %v3102
      %v3148 = vpack.c.bf16 %v3105, %v3104
      %v3149 = vpack.c.bf16 %v3107, %v3106
      %v3150 = vpack.c.bf16 %v3109, %v3108
      %v3151 = vpack.c.bf16 %v3111, %v3110
      %v3152 = vpack.c.bf16 %v3113, %v3112
      %v3153 = vpack.c.bf16 %v3115, %v3114
      %v3154 = vpack.c.bf16 %v3117, %v3116
      %v3155 = vpack.c.bf16 %v3119, %v3118
      %v3156 = vpack.c.bf16 %v3121, %v3120
      %v3157 = vpack.c.bf16 %v3123, %v3122
      %v3158 = vpack.c.bf16 %v3125, %v3124
      %v3159 = vpack.c.bf16 %v3127, %v3126
      %v3160 = vld [vmem:[%s11] sm:$0xf]
      %v3161 = vld [vmem:[%s11 + $0x4] sm:$0xf]
      %v3162 = vld [vmem:[%s11 + $0x8] sm:$0xf]
      %v3163 = vld [vmem:[%s11 + $0xc] sm:$0xf]
      %v3164 = vld [vmem:[%s11 + $0x10] sm:$0xf]
      %v3165 = vld [vmem:[%s11 + $0x14] sm:$0xf]
      %v3166 = vld [vmem:[%s11 + $0x18] sm:$0xf]
      %v3167 = vld [vmem:[%s11 + $0x1c] sm:$0xf]
      %v3168 = vld [vmem:[%s11 + $0x20] sm:$0xf]
      %v3169 = vld [vmem:[%s11 + $0x24] sm:$0xf]
      %v3170 = vld [vmem:[%s11 + $0x28] sm:$0xf]
      %v3171 = vld [vmem:[%s11 + $0x2c] sm:$0xf]
      %v3172 = vld [vmem:[%s11 + $0x30] sm:$0xf]
      %v3173 = vld [vmem:[%s11 + $0x34] sm:$0xf]
      %v3174 = vld [vmem:[%s11 + $0x38] sm:$0xf]
      %v3175 = vld [vmem:[%s11 + $0x3c] sm:$0xf]
      %v3176 = vld [vmem:[%s644] sm:$0xff]
      %v3177 = vld [vmem:[%s644 + $0x8] sm:$0xff]
      %v3178 = vld [vmem:[%s644 + $0x10] sm:$0xff]
      %v3179 = vld [vmem:[%s644 + $0x18] sm:$0xff]
      %v3180 = vld [vmem:[%s644 + $0x20] sm:$0xff]
      %v3181 = vld [vmem:[%s644 + $0x28] sm:$0xff]
      %v3182 = vld [vmem:[%s644 + $0x30] sm:$0xff]
      %v3183 = vld [vmem:[%s644 + $0x38] sm:$0xff]
      %v3184 = vld [vmem:[%s644 + $0x40] sm:$0xff]
      %v3185 = vld [vmem:[%s644 + $0x48] sm:$0xff]
      %v3186 = vld [vmem:[%s644 + $0x50] sm:$0xff]
      %v3187 = vld [vmem:[%s644 + $0x58] sm:$0xff]
      %v3188 = vld [vmem:[%s644 + $0x60] sm:$0xff]
      %v3189 = vld [vmem:[%s644 + $0x68] sm:$0xff]
      %v3190 = vld [vmem:[%s644 + $0x70] sm:$0xff]
      %v3191 = vld [vmem:[%s644 + $0x78] sm:$0xff]
      %v3192 = vld [vmem:[%s644 + $0x80] sm:$0xff]
      %v3193 = vld [vmem:[%s644 + $0x88] sm:$0xff]
      %v3194 = vld [vmem:[%s644 + $0x90] sm:$0xff]
      %v3195 = vld [vmem:[%s644 + $0x98] sm:$0xff]
      %v3196 = vld [vmem:[%s644 + $0xa0] sm:$0xff]
      %v3197 = vld [vmem:[%s644 + $0xa8] sm:$0xff]
      %v3198 = vld [vmem:[%s644 + $0xb0] sm:$0xff]
      %v3199 = vld [vmem:[%s644 + $0xb8] sm:$0xff]
      %v3200 = vld [vmem:[%s644 + $0xc0] sm:$0xff]
      %v3201 = vld [vmem:[%s644 + $0xc8] sm:$0xff]
      %v3202 = vld [vmem:[%s644 + $0xd0] sm:$0xff]
      %v3203 = vld [vmem:[%s644 + $0xd8] sm:$0xff]
      %v3204 = vld [vmem:[%s644 + $0xe0] sm:$0xff]
      %v3205 = vld [vmem:[%s644 + $0xe8] sm:$0xff]
      %v3206 = vld [vmem:[%s644 + $0xf0] sm:$0xff]
      %v3207 = vld [vmem:[%s644 + $0xf8] sm:$0xff]
      %v3208 = vld [vmem:[%s644 + $0x100] sm:$0xff]
      %v3209 = vld [vmem:[%s644 + $0x108] sm:$0xff]
      %v3210 = vld [vmem:[%s644 + $0x110] sm:$0xff]
      %v3211 = vld [vmem:[%s644 + $0x118] sm:$0xff]
      %v3212 = vld [vmem:[%s644 + $0x120] sm:$0xff]
      %v3213 = vld [vmem:[%s644 + $0x128] sm:$0xff]
      %v3214 = vld [vmem:[%s644 + $0x130] sm:$0xff]
      %v3215 = vld [vmem:[%s644 + $0x138] sm:$0xff]
      %v3216 = vld [vmem:[%s644 + $0x140] sm:$0xff]
      %v3217 = vld [vmem:[%s644 + $0x148] sm:$0xff]
      %v3218 = vld [vmem:[%s644 + $0x150] sm:$0xff]
      %v3219 = vld [vmem:[%s644 + $0x158] sm:$0xff]
      %v3220 = vld [vmem:[%s644 + $0x160] sm:$0xff]
      %v3221 = vld [vmem:[%s644 + $0x168] sm:$0xff]
      %v3222 = vld [vmem:[%s644 + $0x170] sm:$0xff]
      %v3223 = vld [vmem:[%s644 + $0x178] sm:$0xff]
      %v3224 = vld [vmem:[%s644 + $0x180] sm:$0xff]
      %v3225 = vld [vmem:[%s644 + $0x188] sm:$0xff]
      %v3226 = vld [vmem:[%s644 + $0x190] sm:$0xff]
      %v3227 = vld [vmem:[%s644 + $0x198] sm:$0xff]
      %v3228 = vld [vmem:[%s644 + $0x1a0] sm:$0xff]
      %v3229 = vld [vmem:[%s644 + $0x1a8] sm:$0xff]
      %v3230 = vld [vmem:[%s644 + $0x1b0] sm:$0xff]
      %v3231 = vld [vmem:[%s644 + $0x1b8] sm:$0xff]
      %v3232 = vld [vmem:[%s644 + $0x1c0] sm:$0xff]
      %v3233 = vld [vmem:[%s644 + $0x1c8] sm:$0xff]
      %v3234 = vld [vmem:[%s644 + $0x1d0] sm:$0xff]
      %v3235 = vld [vmem:[%s644 + $0x1d8] sm:$0xff]
      %v3236 = vld [vmem:[%s644 + $0x1e0] sm:$0xff]
      %v3237 = vld [vmem:[%s644 + $0x1e8] sm:$0xff]
      %v3238 = vld [vmem:[%s644 + $0x1f0] sm:$0xff]
      %v3239 = vld [vmem:[%s644 + $0x1f8] sm:$0xff]
      %3241 = vset.pattern.permute.xlu0 0
      %3242 = vperm.xlu0 %3241, %v3176
      %v3243 = vpop.permute.xlu0 %3242
      %3246 = vset.pattern.permute.xlu0 0
      %3247 = vperm.xlu0 %3246, %v3177
      %v3248 = vpop.permute.xlu0 %3247
      %3251 = vset.pattern.permute.xlu0 0
      %3252 = vperm.xlu0 %3251, %v3178
      %v3253 = vpop.permute.xlu0 %3252
      %3256 = vset.pattern.permute.xlu0 0
      %3257 = vperm.xlu0 %3256, %v3179
      %v3258 = vpop.permute.xlu0 %3257
      %3261 = vset.pattern.permute.xlu0 0
      %3262 = vperm.xlu0 %3261, %v3180
      %v3263 = vpop.permute.xlu0 %3262
      %3266 = vset.pattern.permute.xlu0 0
      %3267 = vperm.xlu0 %3266, %v3181
      %v3268 = vpop.permute.xlu0 %3267
      %3271 = vset.pattern.permute.xlu0 0
      %3272 = vperm.xlu0 %3271, %v3182
      %v3273 = vpop.permute.xlu0 %3272
      %3276 = vset.pattern.permute.xlu0 0
      %3277 = vperm.xlu0 %3276, %v3183
      %v3278 = vpop.permute.xlu0 %3277
      %3281 = vset.pattern.permute.xlu0 0
      %3282 = vperm.xlu0 %3281, %v3184
      %v3283 = vpop.permute.xlu0 %3282
      %3286 = vset.pattern.permute.xlu0 0
      %3287 = vperm.xlu0 %3286, %v3185
      %v3288 = vpop.permute.xlu0 %3287
      %3291 = vset.pattern.permute.xlu0 0
      %3292 = vperm.xlu0 %3291, %v3186
      %v3293 = vpop.permute.xlu0 %3292
      %3296 = vset.pattern.permute.xlu0 0
      %3297 = vperm.xlu0 %3296, %v3187
      %v3298 = vpop.permute.xlu0 %3297
      %3301 = vset.pattern.permute.xlu0 0
      %3302 = vperm.xlu0 %3301, %v3188
      %v3303 = vpop.permute.xlu0 %3302
      %3306 = vset.pattern.permute.xlu0 0
      %3307 = vperm.xlu0 %3306, %v3189
      %v3308 = vpop.permute.xlu0 %3307
      %3311 = vset.pattern.permute.xlu0 0
      %3312 = vperm.xlu0 %3311, %v3190
      %v3313 = vpop.permute.xlu0 %3312
      %3316 = vset.pattern.permute.xlu0 0
      %3317 = vperm.xlu0 %3316, %v3191
      %v3318 = vpop.permute.xlu0 %3317
      %3321 = vset.pattern.permute.xlu0 0
      %3322 = vperm.xlu0 %3321, %v3192
      %v3323 = vpop.permute.xlu0 %3322
      %3326 = vset.pattern.permute.xlu0 0
      %3327 = vperm.xlu0 %3326, %v3193
      %v3328 = vpop.permute.xlu0 %3327
      %3331 = vset.pattern.permute.xlu0 0
      %3332 = vperm.xlu0 %3331, %v3194
      %v3333 = vpop.permute.xlu0 %3332
      %3336 = vset.pattern.permute.xlu0 0
      %3337 = vperm.xlu0 %3336, %v3195
      %v3338 = vpop.permute.xlu0 %3337
      %3341 = vset.pattern.permute.xlu0 0
      %3342 = vperm.xlu0 %3341, %v3196
      %v3343 = vpop.permute.xlu0 %3342
      %3346 = vset.pattern.permute.xlu0 0
      %3347 = vperm.xlu0 %3346, %v3197
      %v3348 = vpop.permute.xlu0 %3347
      %3351 = vset.pattern.permute.xlu0 0
      %3352 = vperm.xlu0 %3351, %v3198
      %v3353 = vpop.permute.xlu0 %3352
      %3356 = vset.pattern.permute.xlu0 0
      %3357 = vperm.xlu0 %3356, %v3199
      %v3358 = vpop.permute.xlu0 %3357
      %3361 = vset.pattern.permute.xlu0 0
      %3362 = vperm.xlu0 %3361, %v3200
      %v3363 = vpop.permute.xlu0 %3362
      %3366 = vset.pattern.permute.xlu0 0
      %3367 = vperm.xlu0 %3366, %v3201
      %v3368 = vpop.permute.xlu0 %3367
      %3371 = vset.pattern.permute.xlu0 0
      %3372 = vperm.xlu0 %3371, %v3202
      %v3373 = vpop.permute.xlu0 %3372
      %3376 = vset.pattern.permute.xlu0 0
      %3377 = vperm.xlu0 %3376, %v3203
      %v3378 = vpop.permute.xlu0 %3377
      %3381 = vset.pattern.permute.xlu0 0
      %3382 = vperm.xlu0 %3381, %v3204
      %v3383 = vpop.permute.xlu0 %3382
      %3386 = vset.pattern.permute.xlu0 0
      %3387 = vperm.xlu0 %3386, %v3205
      %v3388 = vpop.permute.xlu0 %3387
      %3391 = vset.pattern.permute.xlu0 0
      %3392 = vperm.xlu0 %3391, %v3206
      %v3393 = vpop.permute.xlu0 %3392
      %3396 = vset.pattern.permute.xlu0 0
      %3397 = vperm.xlu0 %3396, %v3207
      %v3398 = vpop.permute.xlu0 %3397
      %3401 = vset.pattern.permute.xlu0 0
      %3402 = vperm.xlu0 %3401, %v3208
      %v3403 = vpop.permute.xlu0 %3402
      %3406 = vset.pattern.permute.xlu0 0
      %3407 = vperm.xlu0 %3406, %v3209
      %v3408 = vpop.permute.xlu0 %3407
      %3411 = vset.pattern.permute.xlu0 0
      %3412 = vperm.xlu0 %3411, %v3210
      %v3413 = vpop.permute.xlu0 %3412
      %3416 = vset.pattern.permute.xlu0 0
      %3417 = vperm.xlu0 %3416, %v3211
      %v3418 = vpop.permute.xlu0 %3417
      %3421 = vset.pattern.permute.xlu0 0
      %3422 = vperm.xlu0 %3421, %v3212
      %v3423 = vpop.permute.xlu0 %3422
      %3426 = vset.pattern.permute.xlu0 0
      %3427 = vperm.xlu0 %3426, %v3213
      %v3428 = vpop.permute.xlu0 %3427
      %3431 = vset.pattern.permute.xlu0 0
      %3432 = vperm.xlu0 %3431, %v3214
      %v3433 = vpop.permute.xlu0 %3432
      %3436 = vset.pattern.permute.xlu0 0
      %3437 = vperm.xlu0 %3436, %v3215
      %v3438 = vpop.permute.xlu0 %3437
      %3441 = vset.pattern.permute.xlu0 0
      %3442 = vperm.xlu0 %3441, %v3216
      %v3443 = vpop.permute.xlu0 %3442
      %3446 = vset.pattern.permute.xlu0 0
      %3447 = vperm.xlu0 %3446, %v3217
      %v3448 = vpop.permute.xlu0 %3447
      %3451 = vset.pattern.permute.xlu0 0
      %3452 = vperm.xlu0 %3451, %v3218
      %v3453 = vpop.permute.xlu0 %3452
      %3456 = vset.pattern.permute.xlu0 0
      %3457 = vperm.xlu0 %3456, %v3219
      %v3458 = vpop.permute.xlu0 %3457
      %3461 = vset.pattern.permute.xlu0 0
      %3462 = vperm.xlu0 %3461, %v3220
      %v3463 = vpop.permute.xlu0 %3462
      %3466 = vset.pattern.permute.xlu0 0
      %3467 = vperm.xlu0 %3466, %v3221
      %v3468 = vpop.permute.xlu0 %3467
      %3471 = vset.pattern.permute.xlu0 0
      %3472 = vperm.xlu0 %3471, %v3222
      %v3473 = vpop.permute.xlu0 %3472
      %3476 = vset.pattern.permute.xlu0 0
      %3477 = vperm.xlu0 %3476, %v3223
      %v3478 = vpop.permute.xlu0 %3477
      %3481 = vset.pattern.permute.xlu0 0
      %3482 = vperm.xlu0 %3481, %v3224
      %v3483 = vpop.permute.xlu0 %3482
      %3486 = vset.pattern.permute.xlu0 0
      %3487 = vperm.xlu0 %3486, %v3225
      %v3488 = vpop.permute.xlu0 %3487
      %3491 = vset.pattern.permute.xlu0 0
      %3492 = vperm.xlu0 %3491, %v3226
      %v3493 = vpop.permute.xlu0 %3492
      %3496 = vset.pattern.permute.xlu0 0
      %3497 = vperm.xlu0 %3496, %v3227
      %v3498 = vpop.permute.xlu0 %3497
      %3501 = vset.pattern.permute.xlu0 0
      %3502 = vperm.xlu0 %3501, %v3228
      %v3503 = vpop.permute.xlu0 %3502
      %3506 = vset.pattern.permute.xlu0 0
      %3507 = vperm.xlu0 %3506, %v3229
      %v3508 = vpop.permute.xlu0 %3507
      %3511 = vset.pattern.permute.xlu0 0
      %3512 = vperm.xlu0 %3511, %v3230
      %v3513 = vpop.permute.xlu0 %3512
      %3516 = vset.pattern.permute.xlu0 0
      %3517 = vperm.xlu0 %3516, %v3231
      %v3518 = vpop.permute.xlu0 %3517
      %3521 = vset.pattern.permute.xlu0 0
      %3522 = vperm.xlu0 %3521, %v3232
      %v3523 = vpop.permute.xlu0 %3522
      %3526 = vset.pattern.permute.xlu0 0
      %3527 = vperm.xlu0 %3526, %v3233
      %v3528 = vpop.permute.xlu0 %3527
      %3531 = vset.pattern.permute.xlu0 0
      %3532 = vperm.xlu0 %3531, %v3234
      %v3533 = vpop.permute.xlu0 %3532
      %3536 = vset.pattern.permute.xlu0 0
      %3537 = vperm.xlu0 %3536, %v3235
      %v3538 = vpop.permute.xlu0 %3537
      %3541 = vset.pattern.permute.xlu0 0
      %3542 = vperm.xlu0 %3541, %v3236
      %v3543 = vpop.permute.xlu0 %3542
      %3546 = vset.pattern.permute.xlu0 0
      %3547 = vperm.xlu0 %3546, %v3237
      %v3548 = vpop.permute.xlu0 %3547
      %3551 = vset.pattern.permute.xlu0 0
      %3552 = vperm.xlu0 %3551, %v3238
      %v3553 = vpop.permute.xlu0 %3552
      %3556 = vset.pattern.permute.xlu0 0
      %3557 = vperm.xlu0 %3556, %v3239
      %v3558 = vpop.permute.xlu0 %3557
      %v3576 = vunpack.c.l.b16 %v3160
      %v3577 = vunpack.c.l.b16 %v3161
      %v3578 = vunpack.c.l.b16 %v3162
      %v3579 = vunpack.c.l.b16 %v3163
      %v3580 = vunpack.c.l.b16 %v3164
      %v3581 = vunpack.c.l.b16 %v3165
      %v3582 = vunpack.c.l.b16 %v3166
      %v3583 = vunpack.c.l.b16 %v3167
      %v3584 = vunpack.c.l.b16 %v3168
      %v3585 = vunpack.c.l.b16 %v3169
      %v3586 = vunpack.c.l.b16 %v3170
      %v3587 = vunpack.c.l.b16 %v3171
      %v3588 = vunpack.c.l.b16 %v3172
      %v3589 = vunpack.c.l.b16 %v3173
      %v3590 = vunpack.c.l.b16 %v3174
      %v3591 = vunpack.c.l.b16 %v3175
      %v3592 = vpack.c.b16 %v3577, %v3576
      %v3593 = vpack.c.b16 %v3579, %v3578
      %v3594 = vpack.c.b16 %v3581, %v3580
      %v3595 = vpack.c.b16 %v3583, %v3582
      %v3596 = vpack.c.b16 %v3585, %v3584
      %v3597 = vpack.c.b16 %v3587, %v3586
      %v3598 = vpack.c.b16 %v3589, %v3588
      %v3599 = vpack.c.b16 %v3591, %v3590
      %3608 = vmatprep.subr.bf16.mxu0 0
      %3609 = vmatpush1.bf16.msra.mxu0 %v3599
      %3610 = vmatprep.subr.bf16.mxu0 0
      %3611 = vmatpush1.bf16.msra.mxu0 %v3598
      %3612 = vmatprep.subr.bf16.mxu0 0
      %3613 = vmatpush1.bf16.msra.mxu0 %v3597
      %3614 = vmatprep.subr.bf16.mxu0 0
      %3615 = vmatpush1.bf16.msra.mxu0 %v3596
      %3616 = vmatprep.subr.bf16.mxu0 0
      %3617 = vmatpush1.bf16.msra.mxu0 %v3595
      %3618 = vmatprep.subr.bf16.mxu0 0
      %3619 = vmatpush1.bf16.msra.mxu0 %v3594
      %3620 = vmatprep.subr.bf16.mxu0 0
      %3621 = vmatpush1.bf16.msra.mxu0 %v3593
      %3622 = vmatprep.subr.bf16.mxu0 0
      %3623 = vmatpush1.bf16.msra.mxu0 %v3592
      %3624 = vmatprep.subr.bf16.mxu0 0
      %3625 = vmatpush2.bf16.msra.mxu0 0
      %3626 = vmatprep.subr.bf16.mxu0 0
      %3627 = vmatpush2.bf16.msra.mxu0 0
      %3628 = vmatprep.subr.bf16.mxu0 0
      %3629 = vmatpush2.bf16.msra.mxu0 0
      %3630 = vmatprep.subr.bf16.mxu0 0
      %3631 = vmatpush2.bf16.msra.mxu0 0
      %3632 = vmatprep.subr.bf16.mxu0 0
      %3633 = vmatpush2.bf16.msra.mxu0 0
      %3634 = vmatprep.subr.bf16.mxu0 0
      %3635 = vmatpush2.bf16.msra.mxu0 0
      %3636 = vmatprep.subr.bf16.mxu0 0
      %3637 = vmatpush2.bf16.msra.mxu0 0
      %3638 = vmatprep.subr.bf16.mxu0 0
      %3639 = vmatpush2.bf16.msra.mxu0 0
      %3640 = vmatprep.mubr.bf16.mxu0 0
      %3641 = vmatmul.mubr.bf16.gmra.mxu0 %v3128
      %v3642 = vpop.f32.mrf.mxu0
      %v3643 = vadd.f32 %v3243, %v3642
      %v3644 = vpop.f32.mrf.mxu0
      %v3645 = vpop.f32.mrf.mxu0
      %v3646 = vadd.f32 %v3248, %v3645
      %v3647 = vpop.f32.mrf.mxu0
      %3648 = vmatprep.mubr.bf16.mxu0 0
      %3649 = vmatmul.mubr.bf16.gmra.mxu0 %v3129
      %v3650 = vpop.f32.mrf.mxu0
      %v3651 = vadd.f32 %v3253, %v3650
      %v3652 = vpop.f32.mrf.mxu0
      %v3653 = vpop.f32.mrf.mxu0
      %v3654 = vadd.f32 %v3258, %v3653
      %v3655 = vpop.f32.mrf.mxu0
      %3656 = vmatprep.mubr.bf16.mxu0 0
      %3657 = vmatmul.mubr.bf16.gmra.mxu0 %v3130
      %v3658 = vpop.f32.mrf.mxu0
      %v3659 = vadd.f32 %v3263, %v3658
      %v3660 = vpop.f32.mrf.mxu0
      %v3661 = vpop.f32.mrf.mxu0
      %v3662 = vadd.f32 %v3268, %v3661
      %v3663 = vpop.f32.mrf.mxu0
      %3664 = vmatprep.mubr.bf16.mxu0 0
      %3665 = vmatmul.mubr.bf16.gmra.mxu0 %v3131
      %v3666 = vpop.f32.mrf.mxu0
      %v3667 = vadd.f32 %v3273, %v3666
      %v3668 = vpop.f32.mrf.mxu0
      %v3669 = vpop.f32.mrf.mxu0
      %v3670 = vadd.f32 %v3278, %v3669
      %v3671 = vpop.f32.mrf.mxu0
      %3672 = vmatprep.mubr.bf16.mxu0 0
      %3673 = vmatmul.mubr.bf16.gmra.mxu0 %v3132
      %v3674 = vpop.f32.mrf.mxu0
      %v3675 = vadd.f32 %v3283, %v3674
      %v3676 = vpop.f32.mrf.mxu0
      %v3677 = vpop.f32.mrf.mxu0
      %v3678 = vadd.f32 %v3288, %v3677
      %v3679 = vpop.f32.mrf.mxu0
      %3680 = vmatprep.mubr.bf16.mxu0 0
      %3681 = vmatmul.mubr.bf16.gmra.mxu0 %v3133
      %v3682 = vpop.f32.mrf.mxu0
      %v3683 = vadd.f32 %v3293, %v3682
      %v3684 = vpop.f32.mrf.mxu0
      %v3685 = vpop.f32.mrf.mxu0
      %v3686 = vadd.f32 %v3298, %v3685
      %v3687 = vpop.f32.mrf.mxu0
      %3688 = vmatprep.mubr.bf16.mxu0 0
      %3689 = vmatmul.mubr.bf16.gmra.mxu0 %v3134
      %v3690 = vpop.f32.mrf.mxu0
      %v3691 = vadd.f32 %v3303, %v3690
      %v3692 = vpop.f32.mrf.mxu0
      %v3693 = vpop.f32.mrf.mxu0
      %v3694 = vadd.f32 %v3308, %v3693
      %v3695 = vpop.f32.mrf.mxu0
      %3696 = vmatprep.mubr.bf16.mxu0 0
      %3697 = vmatmul.mubr.bf16.gmra.mxu0 %v3135
      %v3698 = vpop.f32.mrf.mxu0
      %v3699 = vadd.f32 %v3313, %v3698
      %v3700 = vpop.f32.mrf.mxu0
      %v3701 = vpop.f32.mrf.mxu0
      %v3702 = vadd.f32 %v3318, %v3701
      %v3703 = vpop.f32.mrf.mxu0
      %3704 = vmatprep.mubr.bf16.mxu0 0
      %3705 = vmatmul.mubr.bf16.gmra.mxu0 %v3136
      %v3706 = vpop.f32.mrf.mxu0
      %v3707 = vadd.f32 %v3323, %v3706
      %v3708 = vpop.f32.mrf.mxu0
      %v3709 = vpop.f32.mrf.mxu0
      %v3710 = vadd.f32 %v3328, %v3709
      %v3711 = vpop.f32.mrf.mxu0
      %3712 = vmatprep.mubr.bf16.mxu0 0
      %3713 = vmatmul.mubr.bf16.gmra.mxu0 %v3137
      %v3714 = vpop.f32.mrf.mxu0
      %v3715 = vadd.f32 %v3333, %v3714
      %v3716 = vpop.f32.mrf.mxu0
      %v3717 = vpop.f32.mrf.mxu0
      %v3718 = vadd.f32 %v3338, %v3717
      %v3719 = vpop.f32.mrf.mxu0
      %3720 = vmatprep.mubr.bf16.mxu0 0
      %3721 = vmatmul.mubr.bf16.gmra.mxu0 %v3138
      %v3722 = vpop.f32.mrf.mxu0
      %v3723 = vadd.f32 %v3343, %v3722
      %v3724 = vpop.f32.mrf.mxu0
      %v3725 = vpop.f32.mrf.mxu0
      %v3726 = vadd.f32 %v3348, %v3725
      %v3727 = vpop.f32.mrf.mxu0
      %3728 = vmatprep.mubr.bf16.mxu0 0
      %3729 = vmatmul.mubr.bf16.gmra.mxu0 %v3139
      %v3730 = vpop.f32.mrf.mxu0
      %v3731 = vadd.f32 %v3353, %v3730
      %v3732 = vpop.f32.mrf.mxu0
      %v3733 = vpop.f32.mrf.mxu0
      %v3734 = vadd.f32 %v3358, %v3733
      %v3735 = vpop.f32.mrf.mxu0
      %3736 = vmatprep.mubr.bf16.mxu0 0
      %3737 = vmatmul.mubr.bf16.gmra.mxu0 %v3140
      %v3738 = vpop.f32.mrf.mxu0
      %v3739 = vadd.f32 %v3363, %v3738
      %v3740 = vpop.f32.mrf.mxu0
      %v3741 = vpop.f32.mrf.mxu0
      %v3742 = vadd.f32 %v3368, %v3741
      %v3743 = vpop.f32.mrf.mxu0
      %3744 = vmatprep.mubr.bf16.mxu0 0
      %3745 = vmatmul.mubr.bf16.gmra.mxu0 %v3141
      %v3746 = vpop.f32.mrf.mxu0
      %v3747 = vadd.f32 %v3373, %v3746
      %v3748 = vpop.f32.mrf.mxu0
      %v3749 = vpop.f32.mrf.mxu0
      %v3750 = vadd.f32 %v3378, %v3749
      %v3751 = vpop.f32.mrf.mxu0
      %3752 = vmatprep.mubr.bf16.mxu0 0
      %3753 = vmatmul.mubr.bf16.gmra.mxu0 %v3142
      %v3754 = vpop.f32.mrf.mxu0
      %v3755 = vadd.f32 %v3383, %v3754
      %v3756 = vpop.f32.mrf.mxu0
      %v3757 = vpop.f32.mrf.mxu0
      %v3758 = vadd.f32 %v3388, %v3757
      %v3759 = vpop.f32.mrf.mxu0
      %3760 = vmatprep.mubr.bf16.mxu0 0
      %3761 = vmatmul.mubr.bf16.gmra.mxu0 %v3143
      %v3762 = vpop.f32.mrf.mxu0
      %v3763 = vadd.f32 %v3393, %v3762
      %v3764 = vpop.f32.mrf.mxu0
      %v3765 = vpop.f32.mrf.mxu0
      %v3766 = vadd.f32 %v3398, %v3765
      %v3767 = vpop.f32.mrf.mxu0
      %3768 = vmatprep.mubr.bf16.mxu0 0
      %3769 = vmatmul.mubr.bf16.gmra.mxu0 %v3144
      %v3770 = vpop.f32.mrf.mxu0
      %v3771 = vadd.f32 %v3403, %v3770
      %v3772 = vpop.f32.mrf.mxu0
      %v3773 = vpop.f32.mrf.mxu0
      %v3774 = vadd.f32 %v3408, %v3773
      %v3775 = vpop.f32.mrf.mxu0
      %3776 = vmatprep.mubr.bf16.mxu0 0
      %3777 = vmatmul.mubr.bf16.gmra.mxu0 %v3145
      %v3778 = vpop.f32.mrf.mxu0
      %v3779 = vadd.f32 %v3413, %v3778
      %v3780 = vpop.f32.mrf.mxu0
      %v3781 = vpop.f32.mrf.mxu0
      %v3782 = vadd.f32 %v3418, %v3781
      %v3783 = vpop.f32.mrf.mxu0
      %3784 = vmatprep.mubr.bf16.mxu0 0
      %3785 = vmatmul.mubr.bf16.gmra.mxu0 %v3146
      %v3786 = vpop.f32.mrf.mxu0
      %v3787 = vadd.f32 %v3423, %v3786
      %v3788 = vpop.f32.mrf.mxu0
      %v3789 = vpop.f32.mrf.mxu0
      %v3790 = vadd.f32 %v3428, %v3789
      %v3791 = vpop.f32.mrf.mxu0
      %3792 = vmatprep.mubr.bf16.mxu0 0
      %3793 = vmatmul.mubr.bf16.gmra.mxu0 %v3147
      %v3794 = vpop.f32.mrf.mxu0
      %v3795 = vadd.f32 %v3433, %v3794
      %v3796 = vpop.f32.mrf.mxu0
      %v3797 = vpop.f32.mrf.mxu0
      %v3798 = vadd.f32 %v3438, %v3797
      %v3799 = vpop.f32.mrf.mxu0
      %3800 = vmatprep.mubr.bf16.mxu0 0
      %3801 = vmatmul.mubr.bf16.gmra.mxu0 %v3148
      %v3802 = vpop.f32.mrf.mxu0
      %v3803 = vadd.f32 %v3443, %v3802
      %v3804 = vpop.f32.mrf.mxu0
      %v3805 = vpop.f32.mrf.mxu0
      %v3806 = vadd.f32 %v3448, %v3805
      %v3807 = vpop.f32.mrf.mxu0
      %3808 = vmatprep.mubr.bf16.mxu0 0
      %3809 = vmatmul.mubr.bf16.gmra.mxu0 %v3149
      %v3810 = vpop.f32.mrf.mxu0
      %v3811 = vadd.f32 %v3453, %v3810
      %v3812 = vpop.f32.mrf.mxu0
      %v3813 = vpop.f32.mrf.mxu0
      %v3814 = vadd.f32 %v3458, %v3813
      %v3815 = vpop.f32.mrf.mxu0
      %3816 = vmatprep.mubr.bf16.mxu0 0
      %3817 = vmatmul.mubr.bf16.gmra.mxu0 %v3150
      %v3818 = vpop.f32.mrf.mxu0
      %v3819 = vadd.f32 %v3463, %v3818
      %v3820 = vpop.f32.mrf.mxu0
      %v3821 = vpop.f32.mrf.mxu0
      %v3822 = vadd.f32 %v3468, %v3821
      %v3823 = vpop.f32.mrf.mxu0
      %3824 = vmatprep.mubr.bf16.mxu0 0
      %3825 = vmatmul.mubr.bf16.gmra.mxu0 %v3151
      %v3826 = vpop.f32.mrf.mxu0
      %v3827 = vadd.f32 %v3473, %v3826
      %v3828 = vpop.f32.mrf.mxu0
      %v3829 = vpop.f32.mrf.mxu0
      %v3830 = vadd.f32 %v3478, %v3829
      %v3831 = vpop.f32.mrf.mxu0
      %3832 = vmatprep.mubr.bf16.mxu0 0
      %3833 = vmatmul.mubr.bf16.gmra.mxu0 %v3152
      %v3834 = vpop.f32.mrf.mxu0
      %v3835 = vadd.f32 %v3483, %v3834
      %v3836 = vpop.f32.mrf.mxu0
      %v3837 = vpop.f32.mrf.mxu0
      %v3838 = vadd.f32 %v3488, %v3837
      %v3839 = vpop.f32.mrf.mxu0
      %3840 = vmatprep.mubr.bf16.mxu0 0
      %3841 = vmatmul.mubr.bf16.gmra.mxu0 %v3153
      %v3842 = vpop.f32.mrf.mxu0
      %v3843 = vadd.f32 %v3493, %v3842
      %v3844 = vpop.f32.mrf.mxu0
      %v3845 = vpop.f32.mrf.mxu0
      %v3846 = vadd.f32 %v3498, %v3845
      %v3847 = vpop.f32.mrf.mxu0
      %3848 = vmatprep.mubr.bf16.mxu0 0
      %3849 = vmatmul.mubr.bf16.gmra.mxu0 %v3154
      %v3850 = vpop.f32.mrf.mxu0
      %v3851 = vadd.f32 %v3503, %v3850
      %v3852 = vpop.f32.mrf.mxu0
      %v3853 = vpop.f32.mrf.mxu0
      %v3854 = vadd.f32 %v3508, %v3853
      %v3855 = vpop.f32.mrf.mxu0
      %3856 = vmatprep.mubr.bf16.mxu0 0
      %3857 = vmatmul.mubr.bf16.gmra.mxu0 %v3155
      %v3858 = vpop.f32.mrf.mxu0
      %v3859 = vadd.f32 %v3513, %v3858
      %v3860 = vpop.f32.mrf.mxu0
      %v3861 = vpop.f32.mrf.mxu0
      %v3862 = vadd.f32 %v3518, %v3861
      %v3863 = vpop.f32.mrf.mxu0
      %3864 = vmatprep.mubr.bf16.mxu0 0
      %3865 = vmatmul.mubr.bf16.gmra.mxu0 %v3156
      %v3866 = vpop.f32.mrf.mxu0
      %v3867 = vadd.f32 %v3523, %v3866
      %v3868 = vpop.f32.mrf.mxu0
      %v3869 = vpop.f32.mrf.mxu0
      %v3870 = vadd.f32 %v3528, %v3869
      %v3871 = vpop.f32.mrf.mxu0
      %3872 = vmatprep.mubr.bf16.mxu0 0
      %3873 = vmatmul.mubr.bf16.gmra.mxu0 %v3157
      %v3874 = vpop.f32.mrf.mxu0
      %v3875 = vadd.f32 %v3533, %v3874
      %v3876 = vpop.f32.mrf.mxu0
      %v3877 = vpop.f32.mrf.mxu0
      %v3878 = vadd.f32 %v3538, %v3877
      %v3879 = vpop.f32.mrf.mxu0
      %3880 = vmatprep.mubr.bf16.mxu0 0
      %3881 = vmatmul.mubr.bf16.gmra.mxu0 %v3158
      %v3882 = vpop.f32.mrf.mxu0
      %v3883 = vadd.f32 %v3543, %v3882
      %v3884 = vpop.f32.mrf.mxu0
      %v3885 = vpop.f32.mrf.mxu0
      %v3886 = vadd.f32 %v3548, %v3885
      %v3887 = vpop.f32.mrf.mxu0
      %3888 = vmatprep.mubr.bf16.mxu0 0
      %3889 = vmatmul.mubr.bf16.gmra.mxu0 %v3159
      %v3890 = vpop.f32.mrf.mxu0
      %v3891 = vadd.f32 %v3553, %v3890
      %v3892 = vpop.f32.mrf.mxu0
      %v3893 = vpop.f32.mrf.mxu0
      %v3894 = vadd.f32 %v3558, %v3893
      %v3895 = vpop.f32.mrf.mxu0
      %3896 = vdwg.mxu0
      %v3897 = vld [vmem:[%s12] sm:$0x1]
      %v3899 = vlaneseq
      %v3900 = vshrl.u32 %v3899, 7
      %v3901 = vsub.s32 0, %v3900
      %v3902 = vrot.slane %v3897, %v3901
      %v3904 = vadd.f32 %v3643, %v3902
      %v3905 = vadd.f32 %v3646, %v3902
      %v3906 = vadd.f32 %v3651, %v3902
      %v3907 = vadd.f32 %v3654, %v3902
      %v3908 = vadd.f32 %v3659, %v3902
      %v3909 = vadd.f32 %v3662, %v3902
      %v3910 = vadd.f32 %v3667, %v3902
      %v3911 = vadd.f32 %v3670, %v3902
      %v3912 = vadd.f32 %v3675, %v3902
      %v3913 = vadd.f32 %v3678, %v3902
      %v3914 = vadd.f32 %v3683, %v3902
      %v3915 = vadd.f32 %v3686, %v3902
      %v3916 = vadd.f32 %v3691, %v3902
      %v3917 = vadd.f32 %v3694, %v3902
      %v3918 = vadd.f32 %v3699, %v3902
      %v3919 = vadd.f32 %v3702, %v3902
      %v3920 = vadd.f32 %v3707, %v3902
      %v3921 = vadd.f32 %v3710, %v3902
      %v3922 = vadd.f32 %v3715, %v3902
      %v3923 = vadd.f32 %v3718, %v3902
      %v3924 = vadd.f32 %v3723, %v3902
      %v3925 = vadd.f32 %v3726, %v3902
      %v3926 = vadd.f32 %v3731, %v3902
      %v3927 = vadd.f32 %v3734, %v3902
      %v3928 = vadd.f32 %v3739, %v3902
      %v3929 = vadd.f32 %v3742, %v3902
      %v3930 = vadd.f32 %v3747, %v3902
      %v3931 = vadd.f32 %v3750, %v3902
      %v3932 = vadd.f32 %v3755, %v3902
      %v3933 = vadd.f32 %v3758, %v3902
      %v3934 = vadd.f32 %v3763, %v3902
      %v3935 = vadd.f32 %v3766, %v3902
      %v3936 = vadd.f32 %v3771, %v3902
      %v3937 = vadd.f32 %v3774, %v3902
      %v3938 = vadd.f32 %v3779, %v3902
      %v3939 = vadd.f32 %v3782, %v3902
      %v3940 = vadd.f32 %v3787, %v3902
      %v3941 = vadd.f32 %v3790, %v3902
      %v3942 = vadd.f32 %v3795, %v3902
      %v3943 = vadd.f32 %v3798, %v3902
      %v3944 = vadd.f32 %v3803, %v3902
      %v3945 = vadd.f32 %v3806, %v3902
      %v3946 = vadd.f32 %v3811, %v3902
      %v3947 = vadd.f32 %v3814, %v3902
      %v3948 = vadd.f32 %v3819, %v3902
      %v3949 = vadd.f32 %v3822, %v3902
      %v3950 = vadd.f32 %v3827, %v3902
      %v3951 = vadd.f32 %v3830, %v3902
      %v3952 = vadd.f32 %v3835, %v3902
      %v3953 = vadd.f32 %v3838, %v3902
      %v3954 = vadd.f32 %v3843, %v3902
      %v3955 = vadd.f32 %v3846, %v3902
      %v3956 = vadd.f32 %v3851, %v3902
      %v3957 = vadd.f32 %v3854, %v3902
      %v3958 = vadd.f32 %v3859, %v3902
      %v3959 = vadd.f32 %v3862, %v3902
      %v3960 = vadd.f32 %v3867, %v3902
      %v3961 = vadd.f32 %v3870, %v3902
      %v3962 = vadd.f32 %v3875, %v3902
      %v3963 = vadd.f32 %v3878, %v3902
      %v3964 = vadd.f32 %v3883, %v3902
      %v3965 = vadd.f32 %v3886, %v3902
      %v3966 = vadd.f32 %v3891, %v3902
      %v3967 = vadd.f32 %v3894, %v3902
      %v3968 = vld [vmem:[#allocation4] sm:$0x1]
      %v3969 = vmax.f32 %v3904, %v3908
      %v3970 = vmax.f32 %v3905, %v3909
      %v3971 = vmax.f32 %v3906, %v3910
      %v3972 = vmax.f32 %v3907, %v3911
      %v3973 = vmax.f32 %v3969, %v3912
      %v3974 = vmax.f32 %v3970, %v3913
      %v3975 = vmax.f32 %v3971, %v3914
      %v3976 = vmax.f32 %v3972, %v3915
      %v3977 = vmax.f32 %v3973, %v3916
      %v3978 = vmax.f32 %v3974, %v3917
      %v3979 = vmax.f32 %v3975, %v3918
      %v3980 = vmax.f32 %v3976, %v3919
      %v3981 = vmax.f32 %v3977, %v3920
      %v3982 = vmax.f32 %v3978, %v3921
      %v3983 = vmax.f32 %v3979, %v3922
      %v3984 = vmax.f32 %v3980, %v3923
      %v3985 = vmax.f32 %v3981, %v3924
      %v3986 = vmax.f32 %v3982, %v3925
      %v3987 = vmax.f32 %v3983, %v3926
      %v3988 = vmax.f32 %v3984, %v3927
      %v3989 = vmax.f32 %v3985, %v3928
      %v3990 = vmax.f32 %v3986, %v3929
      %v3991 = vmax.f32 %v3987, %v3930
      %v3992 = vmax.f32 %v3988, %v3931
      %v3993 = vmax.f32 %v3989, %v3932
      %v3994 = vmax.f32 %v3990, %v3933
      %v3995 = vmax.f32 %v3991, %v3934
      %v3996 = vmax.f32 %v3992, %v3935
      %v3997 = vmax.f32 %v3993, %v3936
      %v3998 = vmax.f32 %v3994, %v3937
      %v3999 = vmax.f32 %v3995, %v3938
      %v4000 = vmax.f32 %v3996, %v3939
      %v4001 = vmax.f32 %v3997, %v3940
      %v4002 = vmax.f32 %v3998, %v3941
      %v4003 = vmax.f32 %v3999, %v3942
      %v4004 = vmax.f32 %v4000, %v3943
      %v4005 = vmax.f32 %v4001, %v3944
      %v4006 = vmax.f32 %v4002, %v3945
      %v4007 = vmax.f32 %v4003, %v3946
      %v4008 = vmax.f32 %v4004, %v3947
      %v4009 = vmax.f32 %v4005, %v3948
      %v4010 = vmax.f32 %v4006, %v3949
      %v4011 = vmax.f32 %v4007, %v3950
      %v4012 = vmax.f32 %v4008, %v3951
      %v4013 = vmax.f32 %v4009, %v3952
      %v4014 = vmax.f32 %v4010, %v3953
      %v4015 = vmax.f32 %v4011, %v3954
      %v4016 = vmax.f32 %v4012, %v3955
      %v4017 = vmax.f32 %v4013, %v3956
      %v4018 = vmax.f32 %v4014, %v3957
      %v4019 = vmax.f32 %v4015, %v3958
      %v4020 = vmax.f32 %v4016, %v3959
      %v4021 = vmax.f32 %v4017, %v3960
      %v4022 = vmax.f32 %v4018, %v3961
      %v4023 = vmax.f32 %v4019, %v3962
      %v4024 = vmax.f32 %v4020, %v3963
      %v4025 = vmax.f32 %v4021, %v3964
      %v4026 = vmax.f32 %v4022, %v3965
      %v4027 = vmax.f32 %v4023, %v3966
      %v4028 = vmax.f32 %v4024, %v3967
      %v4029 = vmax.f32 %v4025, %v4026
      %v4030 = vmax.f32 %v4027, %v4028
      %v4031 = vmax.f32 %v4029, %v4030
      %4032 = vmax.xlane.f32.xlu0 %v4031
      %v4033 = vpop.xlane.xlu0 %4032
      %v4034 = vrot.slane %v4033, 4
      %v4035 = vmax.f32 %v4033, %v4034
      %v4036 = vrot.slane %v4035, 2
      %v4037 = vmax.f32 %v4035, %v4036
      %v4038 = vrot.slane %v4037, 1
      %v4039 = vmax.f32 %v4037, %v4038
      %s4040 = vtos %v4039
      %v4041 = vstv %s4040
      %v4042 = vmax.f32 %v3968, %v4041
      %v4043 = vsub.f32 %v3968, %v4042
      %v4044 = vmul.f32 %v4043, 1.442695
      %v4045 = vpow.pop %v4044
      %v4046 = vld [vmem:[#allocation2] sm:$0xff]
      %v4047 = vld [vmem:[#allocation2 + $0x8] sm:$0xff]
      %v4048 = vld [vmem:[#allocation2 + $0x10] sm:$0xff]
      %v4049 = vld [vmem:[#allocation2 + $0x18] sm:$0xff]
      %v4050 = vld [vmem:[#allocation2 + $0x20] sm:$0xff]
      %v4051 = vld [vmem:[#allocation2 + $0x28] sm:$0xff]
      %v4052 = vld [vmem:[#allocation2 + $0x30] sm:$0xff]
      %v4053 = vld [vmem:[#allocation2 + $0x38] sm:$0xff]
      %v4055 = vlaneseq
      %v4056 = vshrl.u32 %v4055, 7
      %v4057 = vsub.s32 0, %v4056
      %v4058 = vrot.slane %v4045, %v4057
      %4059 = vset.pattern.permute.xlu0 0
      %4060 = vperm.xlu0 %4059, %v4058
      %v4061 = vpop.permute.xlu0 %4060
      %v4063 = vmul.f32 %v4046, %v4061
      %v4064 = vmul.f32 %v4047, %v4061
      %v4065 = vmul.f32 %v4048, %v4061
      %v4066 = vmul.f32 %v4049, %v4061
      %v4067 = vmul.f32 %v4050, %v4061
      %v4068 = vmul.f32 %v4051, %v4061
      %v4069 = vmul.f32 %v4052, %v4061
      %v4070 = vmul.f32 %v4053, %v4061
      %4071 = vst [vmem:[#allocation2] sm:$0xff] %v4063
      %4072 = vst [vmem:[#allocation2 + $0x8] sm:$0xff] %v4064
      %4073 = vst [vmem:[#allocation2 + $0x10] sm:$0xff] %v4065
      %4074 = vst [vmem:[#allocation2 + $0x18] sm:$0xff] %v4066
      %4075 = vst [vmem:[#allocation2 + $0x20] sm:$0xff] %v4067
      %4076 = vst [vmem:[#allocation2 + $0x28] sm:$0xff] %v4068
      %4077 = vst [vmem:[#allocation2 + $0x30] sm:$0xff] %v4069
      %4078 = vst [vmem:[#allocation2 + $0x38] sm:$0xff] %v4070
      %v4079 = vld [vmem:[#allocation3] sm:$0xff]
      %v4080 = vld [vmem:[#allocation3 + $0x8] sm:$0xff]
      %v4081 = vld [vmem:[#allocation3 + $0x10] sm:$0xff]
      %v4082 = vld [vmem:[#allocation3 + $0x18] sm:$0xff]
      %v4083 = vld [vmem:[#allocation3 + $0x20] sm:$0xff]
      %v4084 = vld [vmem:[#allocation3 + $0x28] sm:$0xff]
      %v4085 = vld [vmem:[#allocation3 + $0x30] sm:$0xff]
      %v4086 = vld [vmem:[#allocation3 + $0x38] sm:$0xff]
      %v4087 = vmul.f32 %v4079, %v4061
      %v4088 = vmul.f32 %v4080, %v4061
      %v4089 = vmul.f32 %v4081, %v4061
      %v4090 = vmul.f32 %v4082, %v4061
      %v4091 = vmul.f32 %v4083, %v4061
      %v4092 = vmul.f32 %v4084, %v4061
      %v4093 = vmul.f32 %v4085, %v4061
      %v4094 = vmul.f32 %v4086, %v4061
      %4095 = vst [vmem:[#allocation3] sm:$0xff] %v4087
      %4096 = vst [vmem:[#allocation3 + $0x8] sm:$0xff] %v4088
      %4097 = vst [vmem:[#allocation3 + $0x10] sm:$0xff] %v4089
      %4098 = vst [vmem:[#allocation3 + $0x18] sm:$0xff] %v4090
      %4099 = vst [vmem:[#allocation3 + $0x20] sm:$0xff] %v4091
      %4100 = vst [vmem:[#allocation3 + $0x28] sm:$0xff] %v4092
      %4101 = vst [vmem:[#allocation3 + $0x30] sm:$0xff] %v4093
      %4102 = vst [vmem:[#allocation3 + $0x38] sm:$0xff] %v4094
      %vm4103 = vcmask 0
      %4104 = vst.msk [vmem:[#allocation4] sm:$0x1] %vm4103, %v4042
      %v4106 = vlaneseq
      %v4107 = vshrl.u32 %v4106, 7
      %v4108 = vsub.s32 0, %v4107
      %v4109 = vrot.slane %v4042, %v4108
      %4110 = vset.pattern.permute.xlu0 0
      %4111 = vperm.xlu0 %4110, %v4109
      %v4112 = vpop.permute.xlu0 %4111
      %v4114 = vsub.f32 %v3904, %v4112
      %v4115 = vsub.f32 %v3905, %v4112
      %v4116 = vsub.f32 %v3906, %v4112
      %v4117 = vsub.f32 %v3907, %v4112
      %v4118 = vsub.f32 %v3908, %v4112
      %v4119 = vsub.f32 %v3909, %v4112
      %v4120 = vsub.f32 %v3910, %v4112
      %v4121 = vsub.f32 %v3911, %v4112
      %v4122 = vsub.f32 %v3912, %v4112
      %v4123 = vsub.f32 %v3913, %v4112
      %v4124 = vsub.f32 %v3914, %v4112
      %v4125 = vsub.f32 %v3915, %v4112
      %v4126 = vsub.f32 %v3916, %v4112
      %v4127 = vsub.f32 %v3917, %v4112
      %v4128 = vsub.f32 %v3918, %v4112
      %v4129 = vsub.f32 %v3919, %v4112
      %v4130 = vsub.f32 %v3920, %v4112
      %v4131 = vsub.f32 %v3921, %v4112
      %v4132 = vsub.f32 %v3922, %v4112
      %v4133 = vsub.f32 %v3923, %v4112
      %v4134 = vsub.f32 %v3924, %v4112
      %v4135 = vsub.f32 %v3925, %v4112
      %v4136 = vsub.f32 %v3926, %v4112
      %v4137 = vsub.f32 %v3927, %v4112
      %v4138 = vsub.f32 %v3928, %v4112
      %v4139 = vsub.f32 %v3929, %v4112
      %v4140 = vsub.f32 %v3930, %v4112
      %v4141 = vsub.f32 %v3931, %v4112
      %v4142 = vsub.f32 %v3932, %v4112
      %v4143 = vsub.f32 %v3933, %v4112
      %v4144 = vsub.f32 %v3934, %v4112
      %v4145 = vsub.f32 %v3935, %v4112
      %v4146 = vsub.f32 %v3936, %v4112
      %v4147 = vsub.f32 %v3937, %v4112
      %v4148 = vsub.f32 %v3938, %v4112
      %v4149 = vsub.f32 %v3939, %v4112
      %v4150 = vsub.f32 %v3940, %v4112
      %v4151 = vsub.f32 %v3941, %v4112
      %v4152 = vsub.f32 %v3942, %v4112
      %v4153 = vsub.f32 %v3943, %v4112
      %v4154 = vsub.f32 %v3944, %v4112
      %v4155 = vsub.f32 %v3945, %v4112
      %v4156 = vsub.f32 %v3946, %v4112
      %v4157 = vsub.f32 %v3947, %v4112
      %v4158 = vsub.f32 %v3948, %v4112
      %v4159 = vsub.f32 %v3949, %v4112
      %v4160 = vsub.f32 %v3950, %v4112
      %v4161 = vsub.f32 %v3951, %v4112
      %v4162 = vsub.f32 %v3952, %v4112
      %v4163 = vsub.f32 %v3953, %v4112
      %v4164 = vsub.f32 %v3954, %v4112
      %v4165 = vsub.f32 %v3955, %v4112
      %v4166 = vsub.f32 %v3956, %v4112
      %v4167 = vsub.f32 %v3957, %v4112
      %v4168 = vsub.f32 %v3958, %v4112
      %v4169 = vsub.f32 %v3959, %v4112
      %v4170 = vsub.f32 %v3960, %v4112
      %v4171 = vsub.f32 %v3961, %v4112
      %v4172 = vsub.f32 %v3962, %v4112
      %v4173 = vsub.f32 %v3963, %v4112
      %v4174 = vsub.f32 %v3964, %v4112
      %v4175 = vsub.f32 %v3965, %v4112
      %v4176 = vsub.f32 %v3966, %v4112
      %v4177 = vsub.f32 %v3967, %v4112
      %v4178 = vmul.f32 %v4114, 1.442695
      %v4179 = vpow.pop %v4178
      %v4180 = vmul.f32 %v4115, 1.442695
      %v4181 = vpow.pop %v4180
      %v4182 = vmul.f32 %v4116, 1.442695
      %v4183 = vpow.pop %v4182
      %v4184 = vmul.f32 %v4117, 1.442695
      %v4185 = vpow.pop %v4184
      %v4186 = vmul.f32 %v4118, 1.442695
      %v4187 = vpow.pop %v4186
      %v4188 = vmul.f32 %v4119, 1.442695
      %v4189 = vpow.pop %v4188
      %v4190 = vmul.f32 %v4120, 1.442695
      %v4191 = vpow.pop %v4190
      %v4192 = vmul.f32 %v4121, 1.442695
      %v4193 = vpow.pop %v4192
      %v4194 = vmul.f32 %v4122, 1.442695
      %v4195 = vpow.pop %v4194
      %v4196 = vmul.f32 %v4123, 1.442695
      %v4197 = vpow.pop %v4196
      %v4198 = vmul.f32 %v4124, 1.442695
      %v4199 = vpow.pop %v4198
      %v4200 = vmul.f32 %v4125, 1.442695
      %v4201 = vpow.pop %v4200
      %v4202 = vmul.f32 %v4126, 1.442695
      %v4203 = vpow.pop %v4202
      %v4204 = vmul.f32 %v4127, 1.442695
      %v4205 = vpow.pop %v4204
      %v4206 = vmul.f32 %v4128, 1.442695
      %v4207 = vpow.pop %v4206
      %v4208 = vmul.f32 %v4129, 1.442695
      %v4209 = vpow.pop %v4208
      %v4210 = vmul.f32 %v4130, 1.442695
      %v4211 = vpow.pop %v4210
      %v4212 = vmul.f32 %v4131, 1.442695
      %v4213 = vpow.pop %v4212
      %v4214 = vmul.f32 %v4132, 1.442695
      %v4215 = vpow.pop %v4214
      %v4216 = vmul.f32 %v4133, 1.442695
      %v4217 = vpow.pop %v4216
      %v4218 = vmul.f32 %v4134, 1.442695
      %v4219 = vpow.pop %v4218
      %v4220 = vmul.f32 %v4135, 1.442695
      %v4221 = vpow.pop %v4220
      %v4222 = vmul.f32 %v4136, 1.442695
      %v4223 = vpow.pop %v4222
      %v4224 = vmul.f32 %v4137, 1.442695
      %v4225 = vpow.pop %v4224
      %v4226 = vmul.f32 %v4138, 1.442695
      %v4227 = vpow.pop %v4226
      %v4228 = vmul.f32 %v4139, 1.442695
      %v4229 = vpow.pop %v4228
      %v4230 = vmul.f32 %v4140, 1.442695
      %v4231 = vpow.pop %v4230
      %v4232 = vmul.f32 %v4141, 1.442695
      %v4233 = vpow.pop %v4232
      %v4234 = vmul.f32 %v4142, 1.442695
      %v4235 = vpow.pop %v4234
      %v4236 = vmul.f32 %v4143, 1.442695
      %v4237 = vpow.pop %v4236
      %v4238 = vmul.f32 %v4144, 1.442695
      %v4239 = vpow.pop %v4238
      %v4240 = vmul.f32 %v4145, 1.442695
      %v4241 = vpow.pop %v4240
      %v4242 = vmul.f32 %v4146, 1.442695
      %v4243 = vpow.pop %v4242
      %v4244 = vmul.f32 %v4147, 1.442695
      %v4245 = vpow.pop %v4244
      %v4246 = vmul.f32 %v4148, 1.442695
      %v4247 = vpow.pop %v4246
      %v4248 = vmul.f32 %v4149, 1.442695
      %v4249 = vpow.pop %v4248
      %v4250 = vmul.f32 %v4150, 1.442695
      %v4251 = vpow.pop %v4250
      %v4252 = vmul.f32 %v4151, 1.442695
      %v4253 = vpow.pop %v4252
      %v4254 = vmul.f32 %v4152, 1.442695
      %v4255 = vpow.pop %v4254
      %v4256 = vmul.f32 %v4153, 1.442695
      %v4257 = vpow.pop %v4256
      %v4258 = vmul.f32 %v4154, 1.442695
      %v4259 = vpow.pop %v4258
      %v4260 = vmul.f32 %v4155, 1.442695
      %v4261 = vpow.pop %v4260
      %v4262 = vmul.f32 %v4156, 1.442695
      %v4263 = vpow.pop %v4262
      %v4264 = vmul.f32 %v4157, 1.442695
      %v4265 = vpow.pop %v4264
      %v4266 = vmul.f32 %v4158, 1.442695
      %v4267 = vpow.pop %v4266
      %v4268 = vmul.f32 %v4159, 1.442695
      %v4269 = vpow.pop %v4268
      %v4270 = vmul.f32 %v4160, 1.442695
      %v4271 = vpow.pop %v4270
      %v4272 = vmul.f32 %v4161, 1.442695
      %v4273 = vpow.pop %v4272
      %v4274 = vmul.f32 %v4162, 1.442695
      %v4275 = vpow.pop %v4274
      %v4276 = vmul.f32 %v4163, 1.442695
      %v4277 = vpow.pop %v4276
      %v4278 = vmul.f32 %v4164, 1.442695
      %v4279 = vpow.pop %v4278
      %v4280 = vmul.f32 %v4165, 1.442695
      %v4281 = vpow.pop %v4280
      %v4282 = vmul.f32 %v4166, 1.442695
      %v4283 = vpow.pop %v4282
      %v4284 = vmul.f32 %v4167, 1.442695
      %v4285 = vpow.pop %v4284
      %v4286 = vmul.f32 %v4168, 1.442695
      %v4287 = vpow.pop %v4286
      %v4288 = vmul.f32 %v4169, 1.442695
      %v4289 = vpow.pop %v4288
      %v4290 = vmul.f32 %v4170, 1.442695
      %v4291 = vpow.pop %v4290
      %v4292 = vmul.f32 %v4171, 1.442695
      %v4293 = vpow.pop %v4292
      %v4294 = vmul.f32 %v4172, 1.442695
      %v4295 = vpow.pop %v4294
      %v4296 = vmul.f32 %v4173, 1.442695
      %v4297 = vpow.pop %v4296
      %v4298 = vmul.f32 %v4174, 1.442695
      %v4299 = vpow.pop %v4298
      %v4300 = vmul.f32 %v4175, 1.442695
      %v4301 = vpow.pop %v4300
      %v4302 = vmul.f32 %v4176, 1.442695
      %v4303 = vpow.pop %v4302
      %v4304 = vmul.f32 %v4177, 1.442695
      %v4305 = vpow.pop %v4304
      %v4306 = vpack.c.bf16 %v4181, %v4179
      %v4307 = vpack.c.bf16 %v4185, %v4183
      %v4308 = vpack.c.bf16 %v4189, %v4187
      %v4309 = vpack.c.bf16 %v4193, %v4191
      %v4310 = vpack.c.bf16 %v4197, %v4195
      %v4311 = vpack.c.bf16 %v4201, %v4199
      %v4312 = vpack.c.bf16 %v4205, %v4203
      %v4313 = vpack.c.bf16 %v4209, %v4207
      %v4314 = vpack.c.bf16 %v4213, %v4211
      %v4315 = vpack.c.bf16 %v4217, %v4215
      %v4316 = vpack.c.bf16 %v4221, %v4219
      %v4317 = vpack.c.bf16 %v4225, %v4223
      %v4318 = vpack.c.bf16 %v4229, %v4227
      %v4319 = vpack.c.bf16 %v4233, %v4231
      %v4320 = vpack.c.bf16 %v4237, %v4235
      %v4321 = vpack.c.bf16 %v4241, %v4239
      %v4322 = vpack.c.bf16 %v4245, %v4243
      %v4323 = vpack.c.bf16 %v4249, %v4247
      %v4324 = vpack.c.bf16 %v4253, %v4251
      %v4325 = vpack.c.bf16 %v4257, %v4255
      %v4326 = vpack.c.bf16 %v4261, %v4259
      %v4327 = vpack.c.bf16 %v4265, %v4263
      %v4328 = vpack.c.bf16 %v4269, %v4267
      %v4329 = vpack.c.bf16 %v4273, %v4271
      %v4330 = vpack.c.bf16 %v4277, %v4275
      %v4331 = vpack.c.bf16 %v4281, %v4279
      %v4332 = vpack.c.bf16 %v4285, %v4283
      %v4333 = vpack.c.bf16 %v4289, %v4287
      %v4334 = vpack.c.bf16 %v4293, %v4291
      %v4335 = vpack.c.bf16 %v4297, %v4295
      %v4336 = vpack.c.bf16 %v4301, %v4299
      %v4337 = vpack.c.bf16 %v4305, %v4303
      %v4338 = vmul.f32 %v4179, %v2937
      %v4339 = vmul.f32 %v4181, %v2939
      %v4340 = vmul.f32 %v4183, %v2941
      %v4341 = vmul.f32 %v4185, %v2943
      %v4342 = vmul.f32 %v4187, %v2945
      %v4343 = vmul.f32 %v4189, %v2947
      %v4344 = vmul.f32 %v4191, %v2949
      %v4345 = vmul.f32 %v4193, %v2951
      %v4346 = vmul.f32 %v4195, %v2953
      %v4347 = vmul.f32 %v4197, %v2955
      %v4348 = vmul.f32 %v4199, %v2957
      %v4349 = vmul.f32 %v4201, %v2959
      %v4350 = vmul.f32 %v4203, %v2961
      %v4351 = vmul.f32 %v4205, %v2963
      %v4352 = vmul.f32 %v4207, %v2965
      %v4353 = vmul.f32 %v4209, %v2967
      %v4354 = vmul.f32 %v4211, %v2969
      %v4355 = vmul.f32 %v4213, %v2971
      %v4356 = vmul.f32 %v4215, %v2973
      %v4357 = vmul.f32 %v4217, %v2975
      %v4358 = vmul.f32 %v4219, %v2977
      %v4359 = vmul.f32 %v4221, %v2979
      %v4360 = vmul.f32 %v4223, %v2981
      %v4361 = vmul.f32 %v4225, %v2983
      %v4362 = vmul.f32 %v4227, %v2985
      %v4363 = vmul.f32 %v4229, %v2987
      %v4364 = vmul.f32 %v4231, %v2989
      %v4365 = vmul.f32 %v4233, %v2991
      %v4366 = vmul.f32 %v4235, %v2993
      %v4367 = vmul.f32 %v4237, %v2995
      %v4368 = vmul.f32 %v4239, %v2997
      %v4369 = vmul.f32 %v4241, %v2999
      %v4370 = vmul.f32 %v4243, %v3001
      %v4371 = vmul.f32 %v4245, %v3003
      %v4372 = vmul.f32 %v4247, %v3005
      %v4373 = vmul.f32 %v4249, %v3007
      %v4374 = vmul.f32 %v4251, %v3009
      %v4375 = vmul.f32 %v4253, %v3011
      %v4376 = vmul.f32 %v4255, %v3013
      %v4377 = vmul.f32 %v4257, %v3015
      %v4378 = vmul.f32 %v4259, %v3017
      %v4379 = vmul.f32 %v4261, %v3019
      %v4380 = vmul.f32 %v4263, %v3021
      %v4381 = vmul.f32 %v4265, %v3023
      %v4382 = vmul.f32 %v4267, %v3025
      %v4383 = vmul.f32 %v4269, %v3027
      %v4384 = vmul.f32 %v4271, %v3029
      %v4385 = vmul.f32 %v4273, %v3031
      %v4386 = vmul.f32 %v4275, %v3033
      %v4387 = vmul.f32 %v4277, %v3035
      %v4388 = vmul.f32 %v4279, %v3037
      %v4389 = vmul.f32 %v4281, %v3039
      %v4390 = vmul.f32 %v4283, %v3041
      %v4391 = vmul.f32 %v4285, %v3043
      %v4392 = vmul.f32 %v4287, %v3045
      %v4393 = vmul.f32 %v4289, %v3047
      %v4394 = vmul.f32 %v4291, %v3049
      %v4395 = vmul.f32 %v4293, %v3051
      %v4396 = vmul.f32 %v4295, %v3053
      %v4397 = vmul.f32 %v4297, %v3055
      %v4398 = vmul.f32 %v4299, %v3057
      %v4399 = vmul.f32 %v4301, %v3059
      %v4400 = vmul.f32 %v4303, %v3061
      %v4401 = vmul.f32 %v4305, %v3063
      %v4402 = vpack.c.bf16 %v4339, %v4338
      %v4403 = vpack.c.bf16 %v4341, %v4340
      %v4404 = vpack.c.bf16 %v4343, %v4342
      %v4405 = vpack.c.bf16 %v4345, %v4344
      %v4406 = vpack.c.bf16 %v4347, %v4346
      %v4407 = vpack.c.bf16 %v4349, %v4348
      %v4408 = vpack.c.bf16 %v4351, %v4350
      %v4409 = vpack.c.bf16 %v4353, %v4352
      %v4410 = vpack.c.bf16 %v4355, %v4354
      %v4411 = vpack.c.bf16 %v4357, %v4356
      %v4412 = vpack.c.bf16 %v4359, %v4358
      %v4413 = vpack.c.bf16 %v4361, %v4360
      %v4414 = vpack.c.bf16 %v4363, %v4362
      %v4415 = vpack.c.bf16 %v4365, %v4364
      %v4416 = vpack.c.bf16 %v4367, %v4366
      %v4417 = vpack.c.bf16 %v4369, %v4368
      %v4418 = vpack.c.bf16 %v4371, %v4370
      %v4419 = vpack.c.bf16 %v4373, %v4372
      %v4420 = vpack.c.bf16 %v4375, %v4374
      %v4421 = vpack.c.bf16 %v4377, %v4376
      %v4422 = vpack.c.bf16 %v4379, %v4378
      %v4423 = vpack.c.bf16 %v4381, %v4380
      %v4424 = vpack.c.bf16 %v4383, %v4382
      %v4425 = vpack.c.bf16 %v4385, %v4384
      %v4426 = vpack.c.bf16 %v4387, %v4386
      %v4427 = vpack.c.bf16 %v4389, %v4388
      %v4428 = vpack.c.bf16 %v4391, %v4390
      %v4429 = vpack.c.bf16 %v4393, %v4392
      %v4430 = vpack.c.bf16 %v4395, %v4394
      %v4431 = vpack.c.bf16 %v4397, %v4396
      %v4432 = vpack.c.bf16 %v4399, %v4398
      %v4433 = vpack.c.bf16 %v4401, %v4400
      %v4434 = vld [vmem:[%s649] sm:$0xf]
      %v4435 = vlaneseq
      %v4436 = vshrl.u32 %v4435, 7
      %v4437 = vadd.s32 %v4436, 8
      %v4438 = vadd.s32 %v4436, 16
      %v4439 = vadd.s32 %v4436, 24
      %v4440 = vadd.s32 %v4436, 32
      %v4441 = vadd.s32 %v4436, 40
      %v4442 = vadd.s32 %v4436, 48
      %v4443 = vadd.s32 %v4436, 56
      %v4444 = vlaneseq
      %v4445 = vshrl.u32 %v4444, 7
      %v4446 = vsub.s32 0, %v4445
      %v4447 = vrot.slane %v4434, %v4446
      %v4448 = vlaneseq
      %v4449 = vshrl.u32 %v4448, 7
      %v4450 = vsub.s32 1, %v4449
      %v4451 = vrot.slane %v4434, %v4450
      %v4452 = vlaneseq
      %v4453 = vshrl.u32 %v4452, 7
      %v4454 = vsub.s32 2, %v4453
      %v4455 = vrot.slane %v4434, %v4454
      %v4456 = vlaneseq
      %v4457 = vshrl.u32 %v4456, 7
      %v4458 = vsub.s32 3, %v4457
      %v4459 = vrot.slane %v4434, %v4458
      %vm4460 = vcmp.eq.s32.totalorder %v4436, %v4447
      %vm4461 = vcmp.eq.s32.totalorder %v4436, %v4451
      %vm4462 = vcmp.eq.s32.totalorder %v4436, %v4455
      %vm4463 = vcmp.eq.s32.totalorder %v4436, %v4459
      %vm4464 = vcmp.eq.s32.totalorder %v4437, %v4447
      %vm4465 = vcmp.eq.s32.totalorder %v4437, %v4451
      %vm4466 = vcmp.eq.s32.totalorder %v4437, %v4455
      %vm4467 = vcmp.eq.s32.totalorder %v4437, %v4459
      %vm4468 = vcmp.eq.s32.totalorder %v4438, %v4447
      %vm4469 = vcmp.eq.s32.totalorder %v4438, %v4451
      %vm4470 = vcmp.eq.s32.totalorder %v4438, %v4455
      %vm4471 = vcmp.eq.s32.totalorder %v4438, %v4459
      %vm4472 = vcmp.eq.s32.totalorder %v4439, %v4447
      %vm4473 = vcmp.eq.s32.totalorder %v4439, %v4451
      %vm4474 = vcmp.eq.s32.totalorder %v4439, %v4455
      %vm4475 = vcmp.eq.s32.totalorder %v4439, %v4459
      %vm4476 = vcmp.eq.s32.totalorder %v4440, %v4447
      %vm4477 = vcmp.eq.s32.totalorder %v4440, %v4451
      %vm4478 = vcmp.eq.s32.totalorder %v4440, %v4455
      %vm4479 = vcmp.eq.s32.totalorder %v4440, %v4459
      %vm4480 = vcmp.eq.s32.totalorder %v4441, %v4447
      %vm4481 = vcmp.eq.s32.totalorder %v4441, %v4451
      %vm4482 = vcmp.eq.s32.totalorder %v4441, %v4455
      %vm4483 = vcmp.eq.s32.totalorder %v4441, %v4459
      %vm4484 = vcmp.eq.s32.totalorder %v4442, %v4447
      %vm4485 = vcmp.eq.s32.totalorder %v4442, %v4451
      %vm4486 = vcmp.eq.s32.totalorder %v4442, %v4455
      %vm4487 = vcmp.eq.s32.totalorder %v4442, %v4459
      %vm4488 = vcmp.eq.s32.totalorder %v4443, %v4447
      %vm4489 = vcmp.eq.s32.totalorder %v4443, %v4451
      %vm4490 = vcmp.eq.s32.totalorder %v4443, %v4455
      %vm4491 = vcmp.eq.s32.totalorder %v4443, %v4459
      %v4492 = vsel %vm4460, 1, 0
      %v4493 = vsel %vm4461, 1, 0
      %v4494 = vsel %vm4462, 1, 0
      %v4495 = vsel %vm4463, 1, 0
      %v4496 = vsel %vm4464, 1, 0
      %v4497 = vsel %vm4465, 1, 0
      %v4498 = vsel %vm4466, 1, 0
      %v4499 = vsel %vm4467, 1, 0
      %v4500 = vsel %vm4468, 1, 0
      %v4501 = vsel %vm4469, 1, 0
      %v4502 = vsel %vm4470, 1, 0
      %v4503 = vsel %vm4471, 1, 0
      %v4504 = vsel %vm4472, 1, 0
      %v4505 = vsel %vm4473, 1, 0
      %v4506 = vsel %vm4474, 1, 0
      %v4507 = vsel %vm4475, 1, 0
      %v4508 = vsel %vm4476, 1, 0
      %v4509 = vsel %vm4477, 1, 0
      %v4510 = vsel %vm4478, 1, 0
      %v4511 = vsel %vm4479, 1, 0
      %v4512 = vsel %vm4480, 1, 0
      %v4513 = vsel %vm4481, 1, 0
      %v4514 = vsel %vm4482, 1, 0
      %v4515 = vsel %vm4483, 1, 0
      %v4516 = vsel %vm4484, 1, 0
      %v4517 = vsel %vm4485, 1, 0
      %v4518 = vsel %vm4486, 1, 0
      %v4519 = vsel %vm4487, 1, 0
      %v4520 = vsel %vm4488, 1, 0
      %v4521 = vsel %vm4489, 1, 0
      %v4522 = vsel %vm4490, 1, 0
      %v4523 = vsel %vm4491, 1, 0
      %v4524 = vcvt.s32.f32 %v4492
      %v4525 = vcvt.s32.f32 %v4493
      %v4526 = vcvt.s32.f32 %v4494
      %v4527 = vcvt.s32.f32 %v4495
      %v4528 = vcvt.s32.f32 %v4496
      %v4529 = vcvt.s32.f32 %v4497
      %v4530 = vcvt.s32.f32 %v4498
      %v4531 = vcvt.s32.f32 %v4499
      %v4532 = vcvt.s32.f32 %v4500
      %v4533 = vcvt.s32.f32 %v4501
      %v4534 = vcvt.s32.f32 %v4502
      %v4535 = vcvt.s32.f32 %v4503
      %v4536 = vcvt.s32.f32 %v4504
      %v4537 = vcvt.s32.f32 %v4505
      %v4538 = vcvt.s32.f32 %v4506
      %v4539 = vcvt.s32.f32 %v4507
      %v4540 = vcvt.s32.f32 %v4508
      %v4541 = vcvt.s32.f32 %v4509
      %v4542 = vcvt.s32.f32 %v4510
      %v4543 = vcvt.s32.f32 %v4511
      %v4544 = vcvt.s32.f32 %v4512
      %v4545 = vcvt.s32.f32 %v4513
      %v4546 = vcvt.s32.f32 %v4514
      %v4547 = vcvt.s32.f32 %v4515
      %v4548 = vcvt.s32.f32 %v4516
      %v4549 = vcvt.s32.f32 %v4517
      %v4550 = vcvt.s32.f32 %v4518
      %v4551 = vcvt.s32.f32 %v4519
      %v4552 = vcvt.s32.f32 %v4520
      %v4553 = vcvt.s32.f32 %v4521
      %v4554 = vcvt.s32.f32 %v4522
      %v4555 = vcvt.s32.f32 %v4523
      %v4556 = vpack.c.bf16 %v4528, %v4524
      %v4557 = vpack.c.bf16 %v4529, %v4525
      %v4558 = vpack.c.bf16 %v4530, %v4526
      %v4559 = vpack.c.bf16 %v4531, %v4527
      %v4560 = vpack.c.bf16 %v4536, %v4532
      %v4561 = vpack.c.bf16 %v4537, %v4533
      %v4562 = vpack.c.bf16 %v4538, %v4534
      %v4563 = vpack.c.bf16 %v4539, %v4535
      %v4564 = vpack.c.bf16 %v4544, %v4540
      %v4565 = vpack.c.bf16 %v4545, %v4541
      %v4566 = vpack.c.bf16 %v4546, %v4542
      %v4567 = vpack.c.bf16 %v4547, %v4543
      %v4568 = vpack.c.bf16 %v4552, %v4548
      %v4569 = vpack.c.bf16 %v4553, %v4549
      %v4570 = vpack.c.bf16 %v4554, %v4550
      %v4571 = vpack.c.bf16 %v4555, %v4551
      %v4572 = vld [vmem:[#allocation2] sm:$0xff]
      %v4573 = vld [vmem:[#allocation2 + $0x8] sm:$0xff]
      %v4574 = vld [vmem:[#allocation2 + $0x10] sm:$0xff]
      %v4575 = vld [vmem:[#allocation2 + $0x18] sm:$0xff]
      %v4576 = vld [vmem:[#allocation2 + $0x20] sm:$0xff]
      %v4577 = vld [vmem:[#allocation2 + $0x28] sm:$0xff]
      %v4578 = vld [vmem:[#allocation2 + $0x30] sm:$0xff]
      %v4579 = vld [vmem:[#allocation2 + $0x38] sm:$0xff]
      %4580 = vmatprep.subr.bf16.mxu0 0
      %4581 = vmatpush1.bf16.msra.mxu0 %v4409
      %4582 = vmatprep.subr.bf16.mxu0 0
      %4583 = vmatpush1.bf16.msra.mxu0 %v4408
      %4584 = vmatprep.subr.bf16.mxu0 0
      %4585 = vmatpush1.bf16.msra.mxu0 %v4407
      %4586 = vmatprep.subr.bf16.mxu0 0
      %4587 = vmatpush1.bf16.msra.mxu0 %v4406
      %4588 = vmatprep.subr.bf16.mxu0 0
      %4589 = vmatpush1.bf16.msra.mxu0 %v4405
      %4590 = vmatprep.subr.bf16.mxu0 0
      %4591 = vmatpush1.bf16.msra.mxu0 %v4404
      %4592 = vmatprep.subr.bf16.mxu0 0
      %4593 = vmatpush1.bf16.msra.mxu0 %v4403
      %4594 = vmatprep.subr.bf16.mxu0 0
      %4595 = vmatpush1.bf16.msra.mxu0 %v4402
      %4596 = vmatprep.subr.bf16.mxu0 0
      %4597 = vmatpush2.bf16.msra.mxu0 %v4417
      %4598 = vmatprep.subr.bf16.mxu0 0
      %4599 = vmatpush2.bf16.msra.mxu0 %v4416
      %4600 = vmatprep.subr.bf16.mxu0 0
      %4601 = vmatpush2.bf16.msra.mxu0 %v4415
      %4602 = vmatprep.subr.bf16.mxu0 0
      %4603 = vmatpush2.bf16.msra.mxu0 %v4414
      %4604 = vmatprep.subr.bf16.mxu0 0
      %4605 = vmatpush2.bf16.msra.mxu0 %v4413
      %4606 = vmatprep.subr.bf16.mxu0 0
      %4607 = vmatpush2.bf16.msra.mxu0 %v4412
      %4608 = vmatprep.subr.bf16.mxu0 0
      %4609 = vmatpush2.bf16.msra.mxu0 %v4411
      %4610 = vmatprep.subr.bf16.mxu0 0
      %4611 = vmatpush2.bf16.msra.mxu0 %v4410
      %4612 = vmatprep.mubr.bf16.mxu0 %v4557
      %4613 = vmatmul.mubr.bf16.gmra.mxu0 %v4556
      %v4614 = vpop.f32.mrf.mxu0
      %v4615 = vadd.f32 0.0, %v4614
      %v4616 = vpop.f32.mrf.mxu0
      %v4617 = vpop.f32.mrf.mxu0
      %v4618 = vadd.f32 0.0, %v4617
      %v4619 = vpop.f32.mrf.mxu0
      %4620 = vmatprep.mubr.bf16.mxu0 %v4561
      %4621 = vmatmul.mubr.bf16.gmra.mxu0 %v4560
      %v4622 = vpop.f32.mrf.mxu0
      %v4623 = vadd.f32 0.0, %v4622
      %v4624 = vpop.f32.mrf.mxu0
      %v4625 = vpop.f32.mrf.mxu0
      %v4626 = vadd.f32 0.0, %v4625
      %v4627 = vpop.f32.mrf.mxu0
      %4628 = vmatprep.mubr.bf16.mxu0 %v4565
      %4629 = vmatmul.mubr.bf16.gmra.mxu0 %v4564
      %v4630 = vpop.f32.mrf.mxu0
      %v4631 = vadd.f32 0.0, %v4630
      %v4632 = vpop.f32.mrf.mxu0
      %v4633 = vpop.f32.mrf.mxu0
      %v4634 = vadd.f32 0.0, %v4633
      %v4635 = vpop.f32.mrf.mxu0
      %4636 = vmatprep.mubr.bf16.mxu0 %v4569
      %4637 = vmatmul.mubr.bf16.gmra.mxu0 %v4568
      %v4638 = vpop.f32.mrf.mxu0
      %v4639 = vadd.f32 0.0, %v4638
      %v4640 = vpop.f32.mrf.mxu0
      %v4641 = vpop.f32.mrf.mxu0
      %v4642 = vadd.f32 0.0, %v4641
      %v4643 = vpop.f32.mrf.mxu0
      %4644 = vdwg.mxu0
      %4645 = vmatprep.subr.bf16.mxu0 0
      %4646 = vmatpush1.bf16.msra.mxu0 %v4425
      %4647 = vmatprep.subr.bf16.mxu0 0
      %4648 = vmatpush1.bf16.msra.mxu0 %v4424
      %4649 = vmatprep.subr.bf16.mxu0 0
      %4650 = vmatpush1.bf16.msra.mxu0 %v4423
      %4651 = vmatprep.subr.bf16.mxu0 0
      %4652 = vmatpush1.bf16.msra.mxu0 %v4422
      %4653 = vmatprep.subr.bf16.mxu0 0
      %4654 = vmatpush1.bf16.msra.mxu0 %v4421
      %4655 = vmatprep.subr.bf16.mxu0 0
      %4656 = vmatpush1.bf16.msra.mxu0 %v4420
      %4657 = vmatprep.subr.bf16.mxu0 0
      %4658 = vmatpush1.bf16.msra.mxu0 %v4419
      %4659 = vmatprep.subr.bf16.mxu0 0
      %4660 = vmatpush1.bf16.msra.mxu0 %v4418
      %4661 = vmatprep.subr.bf16.mxu0 0
      %4662 = vmatpush2.bf16.msra.mxu0 %v4433
      %4663 = vmatprep.subr.bf16.mxu0 0
      %4664 = vmatpush2.bf16.msra.mxu0 %v4432
      %4665 = vmatprep.subr.bf16.mxu0 0
      %4666 = vmatpush2.bf16.msra.mxu0 %v4431
      %4667 = vmatprep.subr.bf16.mxu0 0
      %4668 = vmatpush2.bf16.msra.mxu0 %v4430
      %4669 = vmatprep.subr.bf16.mxu0 0
      %4670 = vmatpush2.bf16.msra.mxu0 %v4429
      %4671 = vmatprep.subr.bf16.mxu0 0
      %4672 = vmatpush2.bf16.msra.mxu0 %v4428
      %4673 = vmatprep.subr.bf16.mxu0 0
      %4674 = vmatpush2.bf16.msra.mxu0 %v4427
      %4675 = vmatprep.subr.bf16.mxu0 0
      %4676 = vmatpush2.bf16.msra.mxu0 %v4426
      %4677 = vmatprep.mubr.bf16.mxu0 %v4559
      %4678 = vmatmul.mubr.bf16.gmra.mxu0 %v4558
      %v4679 = vpop.f32.mrf.mxu0
      %v4680 = vadd.f32 %v4615, %v4679
      %v4681 = vpop.f32.mrf.mxu0
      %v4682 = vpop.f32.mrf.mxu0
      %v4683 = vadd.f32 %v4618, %v4682
      %v4684 = vpop.f32.mrf.mxu0
      %4685 = vmatprep.mubr.bf16.mxu0 %v4563
      %4686 = vmatmul.mubr.bf16.gmra.mxu0 %v4562
      %v4687 = vpop.f32.mrf.mxu0
      %v4688 = vadd.f32 %v4623, %v4687
      %v4689 = vpop.f32.mrf.mxu0
      %v4690 = vpop.f32.mrf.mxu0
      %v4691 = vadd.f32 %v4626, %v4690
      %v4692 = vpop.f32.mrf.mxu0
      %4693 = vmatprep.mubr.bf16.mxu0 %v4567
      %4694 = vmatmul.mubr.bf16.gmra.mxu0 %v4566
      %v4695 = vpop.f32.mrf.mxu0
      %v4696 = vadd.f32 %v4631, %v4695
      %v4697 = vpop.f32.mrf.mxu0
      %v4698 = vpop.f32.mrf.mxu0
      %v4699 = vadd.f32 %v4634, %v4698
      %v4700 = vpop.f32.mrf.mxu0
      %4701 = vmatprep.mubr.bf16.mxu0 %v4571
      %4702 = vmatmul.mubr.bf16.gmra.mxu0 %v4570
      %v4703 = vpop.f32.mrf.mxu0
      %v4704 = vadd.f32 %v4639, %v4703
      %v4705 = vpop.f32.mrf.mxu0
      %v4706 = vpop.f32.mrf.mxu0
      %v4707 = vadd.f32 %v4642, %v4706
      %v4708 = vpop.f32.mrf.mxu0
      %4709 = vdwg.mxu0
      %v4710 = vadd.f32 %v4572, %v4680
      %v4711 = vadd.f32 %v4573, %v4683
      %v4712 = vadd.f32 %v4574, %v4688
      %v4713 = vadd.f32 %v4575, %v4691
      %v4714 = vadd.f32 %v4576, %v4696
      %v4715 = vadd.f32 %v4577, %v4699
      %v4716 = vadd.f32 %v4578, %v4704
      %v4717 = vadd.f32 %v4579, %v4707
      %4718 = vst [vmem:[#allocation2] sm:$0xff] %v4710
      %4719 = vst [vmem:[#allocation2 + $0x8] sm:$0xff] %v4711
      %4720 = vst [vmem:[#allocation2 + $0x10] sm:$0xff] %v4712
      %4721 = vst [vmem:[#allocation2 + $0x18] sm:$0xff] %v4713
      %4722 = vst [vmem:[#allocation2 + $0x20] sm:$0xff] %v4714
      %4723 = vst [vmem:[#allocation2 + $0x28] sm:$0xff] %v4715
      %4724 = vst [vmem:[#allocation2 + $0x30] sm:$0xff] %v4716
      %4725 = vst [vmem:[#allocation2 + $0x38] sm:$0xff] %v4717
      %v4726 = vld [vmem:[#allocation3] sm:$0xff]
      %v4727 = vld [vmem:[#allocation3 + $0x8] sm:$0xff]
      %v4728 = vld [vmem:[#allocation3 + $0x10] sm:$0xff]
      %v4729 = vld [vmem:[#allocation3 + $0x18] sm:$0xff]
      %v4730 = vld [vmem:[#allocation3 + $0x20] sm:$0xff]
      %v4731 = vld [vmem:[#allocation3 + $0x28] sm:$0xff]
      %v4732 = vld [vmem:[#allocation3 + $0x30] sm:$0xff]
      %v4733 = vld [vmem:[#allocation3 + $0x38] sm:$0xff]
      %4734 = vmatprep.subr.bf16.mxu0 0
      %4735 = vmatpush1.bf16.msra.mxu0 %v4313
      %4736 = vmatprep.subr.bf16.mxu0 0
      %4737 = vmatpush1.bf16.msra.mxu0 %v4312
      %4738 = vmatprep.subr.bf16.mxu0 0
      %4739 = vmatpush1.bf16.msra.mxu0 %v4311
      %4740 = vmatprep.subr.bf16.mxu0 0
      %4741 = vmatpush1.bf16.msra.mxu0 %v4310
      %4742 = vmatprep.subr.bf16.mxu0 0
      %4743 = vmatpush1.bf16.msra.mxu0 %v4309
      %4744 = vmatprep.subr.bf16.mxu0 0
      %4745 = vmatpush1.bf16.msra.mxu0 %v4308
      %4746 = vmatprep.subr.bf16.mxu0 0
      %4747 = vmatpush1.bf16.msra.mxu0 %v4307
      %4748 = vmatprep.subr.bf16.mxu0 0
      %4749 = vmatpush1.bf16.msra.mxu0 %v4306
      %4750 = vmatprep.subr.bf16.mxu0 0
      %4751 = vmatpush2.bf16.msra.mxu0 %v4321
      %4752 = vmatprep.subr.bf16.mxu0 0
      %4753 = vmatpush2.bf16.msra.mxu0 %v4320
      %4754 = vmatprep.subr.bf16.mxu0 0
      %4755 = vmatpush2.bf16.msra.mxu0 %v4319
      %4756 = vmatprep.subr.bf16.mxu0 0
      %4757 = vmatpush2.bf16.msra.mxu0 %v4318
      %4758 = vmatprep.subr.bf16.mxu0 0
      %4759 = vmatpush2.bf16.msra.mxu0 %v4317
      %4760 = vmatprep.subr.bf16.mxu0 0
      %4761 = vmatpush2.bf16.msra.mxu0 %v4316
      %4762 = vmatprep.subr.bf16.mxu0 0
      %4763 = vmatpush2.bf16.msra.mxu0 %v4315
      %4764 = vmatprep.subr.bf16.mxu0 0
      %4765 = vmatpush2.bf16.msra.mxu0 %v4314
      %4766 = vmatprep.mubr.bf16.mxu0 %v4557
      %4767 = vmatmul.mubr.bf16.gmra.mxu0 %v4556
      %v4768 = vpop.f32.mrf.mxu0
      %v4769 = vadd.f32 0.0, %v4768
      %v4770 = vpop.f32.mrf.mxu0
      %v4771 = vpop.f32.mrf.mxu0
      %v4772 = vadd.f32 0.0, %v4771
      %v4773 = vpop.f32.mrf.mxu0
      %4774 = vmatprep.mubr.bf16.mxu0 %v4561
      %4775 = vmatmul.mubr.bf16.gmra.mxu0 %v4560
      %v4776 = vpop.f32.mrf.mxu0
      %v4777 = vadd.f32 0.0, %v4776
      %v4778 = vpop.f32.mrf.mxu0
      %v4779 = vpop.f32.mrf.mxu0
      %v4780 = vadd.f32 0.0, %v4779
      %v4781 = vpop.f32.mrf.mxu0
      %4782 = vmatprep.mubr.bf16.mxu0 %v4565
      %4783 = vmatmul.mubr.bf16.gmra.mxu0 %v4564
      %v4784 = vpop.f32.mrf.mxu0
      %v4785 = vadd.f32 0.0, %v4784
      %v4786 = vpop.f32.mrf.mxu0
      %v4787 = vpop.f32.mrf.mxu0
      %v4788 = vadd.f32 0.0, %v4787
      %v4789 = vpop.f32.mrf.mxu0
      %4790 = vmatprep.mubr.bf16.mxu0 %v4569
      %4791 = vmatmul.mubr.bf16.gmra.mxu0 %v4568
      %v4792 = vpop.f32.mrf.mxu0
      %v4793 = vadd.f32 0.0, %v4792
      %v4794 = vpop.f32.mrf.mxu0
      %v4795 = vpop.f32.mrf.mxu0
      %v4796 = vadd.f32 0.0, %v4795
      %v4797 = vpop.f32.mrf.mxu0
      %4798 = vdwg.mxu0
      %4799 = vmatprep.subr.bf16.mxu0 0
      %4800 = vmatpush1.bf16.msra.mxu0 %v4329
      %4801 = vmatprep.subr.bf16.mxu0 0
      %4802 = vmatpush1.bf16.msra.mxu0 %v4328
      %4803 = vmatprep.subr.bf16.mxu0 0
      %4804 = vmatpush1.bf16.msra.mxu0 %v4327
      %4805 = vmatprep.subr.bf16.mxu0 0
      %4806 = vmatpush1.bf16.msra.mxu0 %v4326
      %4807 = vmatprep.subr.bf16.mxu0 0
      %4808 = vmatpush1.bf16.msra.mxu0 %v4325
      %4809 = vmatprep.subr.bf16.mxu0 0
      %4810 = vmatpush1.bf16.msra.mxu0 %v4324
      %4811 = vmatprep.subr.bf16.mxu0 0
      %4812 = vmatpush1.bf16.msra.mxu0 %v4323
      %4813 = vmatprep.subr.bf16.mxu0 0
      %4814 = vmatpush1.bf16.msra.mxu0 %v4322
      %4815 = vmatprep.subr.bf16.mxu0 0
      %4816 = vmatpush2.bf16.msra.mxu0 %v4337
      %4817 = vmatprep.subr.bf16.mxu0 0
      %4818 = vmatpush2.bf16.msra.mxu0 %v4336
      %4819 = vmatprep.subr.bf16.mxu0 0
      %4820 = vmatpush2.bf16.msra.mxu0 %v4335
      %4821 = vmatprep.subr.bf16.mxu0 0
      %4822 = vmatpush2.bf16.msra.mxu0 %v4334
      %4823 = vmatprep.subr.bf16.mxu0 0
      %4824 = vmatpush2.bf16.msra.mxu0 %v4333
      %4825 = vmatprep.subr.bf16.mxu0 0
      %4826 = vmatpush2.bf16.msra.mxu0 %v4332
      %4827 = vmatprep.subr.bf16.mxu0 0
      %4828 = vmatpush2.bf16.msra.mxu0 %v4331
      %4829 = vmatprep.subr.bf16.mxu0 0
      %4830 = vmatpush2.bf16.msra.mxu0 %v4330
      %4831 = vmatprep.mubr.bf16.mxu0 %v4559
      %4832 = vmatmul.mubr.bf16.gmra.mxu0 %v4558
      %v4833 = vpop.f32.mrf.mxu0
      %v4834 = vadd.f32 %v4769, %v4833
      %v4835 = vpop.f32.mrf.mxu0
      %v4836 = vpop.f32.mrf.mxu0
      %v4837 = vadd.f32 %v4772, %v4836
      %v4838 = vpop.f32.mrf.mxu0
      %4839 = vmatprep.mubr.bf16.mxu0 %v4563
      %4840 = vmatmul.mubr.bf16.gmra.mxu0 %v4562
      %v4841 = vpop.f32.mrf.mxu0
      %v4842 = vadd.f32 %v4777, %v4841
      %v4843 = vpop.f32.mrf.mxu0
      %v4844 = vpop.f32.mrf.mxu0
      %v4845 = vadd.f32 %v4780, %v4844
      %v4846 = vpop.f32.mrf.mxu0
      %4847 = vmatprep.mubr.bf16.mxu0 %v4567
      %4848 = vmatmul.mubr.bf16.gmra.mxu0 %v4566
      %v4849 = vpop.f32.mrf.mxu0
      %v4850 = vadd.f32 %v4785, %v4849
      %v4851 = vpop.f32.mrf.mxu0
      %v4852 = vpop.f32.mrf.mxu0
      %v4853 = vadd.f32 %v4788, %v4852
      %v4854 = vpop.f32.mrf.mxu0
      %4855 = vmatprep.mubr.bf16.mxu0 %v4571
      %4856 = vmatmul.mubr.bf16.gmra.mxu0 %v4570
      %v4857 = vpop.f32.mrf.mxu0
      %v4858 = vadd.f32 %v4793, %v4857
      %v4859 = vpop.f32.mrf.mxu0
      %v4860 = vpop.f32.mrf.mxu0
      %v4861 = vadd.f32 %v4796, %v4860
      %v4862 = vpop.f32.mrf.mxu0
      %4863 = vdwg.mxu0
      %v4864 = vadd.f32 %v4726, %v4834
      %v4865 = vadd.f32 %v4727, %v4837
      %v4866 = vadd.f32 %v4728, %v4842
      %v4867 = vadd.f32 %v4729, %v4845
      %v4868 = vadd.f32 %v4730, %v4850
      %v4869 = vadd.f32 %v4731, %v4853
      %v4870 = vadd.f32 %v4732, %v4858
      %v4871 = vadd.f32 %v4733, %v4861
      %4872 = vst [vmem:[#allocation3] sm:$0xff] %v4864
      %4873 = vst [vmem:[#allocation3 + $0x8] sm:$0xff] %v4865
      %4874 = vst [vmem:[#allocation3 + $0x10] sm:$0xff] %v4866
      %4875 = vst [vmem:[#allocation3 + $0x18] sm:$0xff] %v4867
      %4876 = vst [vmem:[#allocation3 + $0x20] sm:$0xff] %v4868
      %4877 = vst [vmem:[#allocation3 + $0x28] sm:$0xff] %v4869
      %4878 = vst [vmem:[#allocation3 + $0x30] sm:$0xff] %v4870
      %4879 = vst [vmem:[#allocation3 + $0x38] sm:$0xff] %v4871
      %p4880 = scmp.eq.s32.totalorder %s29, 2
      // Predicated region
      $region97: #{tgat_forward.7} parent=91 // pred_check
        %p4881 = pneg %p4880
      $region98: #{tgat_forward.7} parent=91 // pred_check_branch
        %4883 = sbr.rel (%p4881) target = $region100
      $region99: #{tgat_forward.7} parent=91 // pred_region
        %v4884 = vld [vmem:[#allocation3] sm:$0xff]
        %v4885 = vld [vmem:[#allocation3 + $0x8] sm:$0xff]
        %v4886 = vld [vmem:[#allocation3 + $0x10] sm:$0xff]
        %v4887 = vld [vmem:[#allocation3 + $0x18] sm:$0xff]
        %v4888 = vld [vmem:[#allocation3 + $0x20] sm:$0xff]
        %v4889 = vld [vmem:[#allocation3 + $0x28] sm:$0xff]
        %v4890 = vld [vmem:[#allocation3 + $0x30] sm:$0xff]
        %v4891 = vld [vmem:[#allocation3 + $0x38] sm:$0xff]
        %v4892 = vmax.f32 %v4884, 1e-10
        %v4893 = vmax.f32 %v4885, 1e-10
        %v4894 = vmax.f32 %v4886, 1e-10
        %v4895 = vmax.f32 %v4887, 1e-10
        %v4896 = vmax.f32 %v4888, 1e-10
        %v4897 = vmax.f32 %v4889, 1e-10
        %v4898 = vmax.f32 %v4890, 1e-10
        %v4899 = vmax.f32 %v4891, 1e-10
        %v4900 = vld [vmem:[#allocation2] sm:$0xff]
        %v4901 = vld [vmem:[#allocation2 + $0x8] sm:$0xff]
        %v4902 = vld [vmem:[#allocation2 + $0x10] sm:$0xff]
        %v4903 = vld [vmem:[#allocation2 + $0x18] sm:$0xff]
        %v4904 = vld [vmem:[#allocation2 + $0x20] sm:$0xff]
        %v4905 = vld [vmem:[#allocation2 + $0x28] sm:$0xff]
        %v4906 = vld [vmem:[#allocation2 + $0x30] sm:$0xff]
        %v4907 = vld [vmem:[#allocation2 + $0x38] sm:$0xff]
        %v4908 = vrcp.pop %v4892
        %v4909 = vrcp.pop %v4893
        %v4910 = vrcp.pop %v4894
        %v4911 = vrcp.pop %v4895
        %v4912 = vrcp.pop %v4896
        %v4913 = vrcp.pop %v4897
        %v4914 = vrcp.pop %v4898
        %v4915 = vrcp.pop %v4899
        %v4916 = vmul.f32 %v4900, %v4908
        %v4917 = vmul.f32 %v4901, %v4909
        %v4918 = vmul.f32 %v4902, %v4910
        %v4919 = vmul.f32 %v4903, %v4911
        %v4920 = vmul.f32 %v4904, %v4912
        %v4921 = vmul.f32 %v4905, %v4913
        %v4922 = vmul.f32 %v4906, %v4914
        %v4923 = vmul.f32 %v4907, %v4915
        %v4924 = vpack.c.bf16 %v4917, %v4916
        %v4925 = vpack.c.bf16 %v4919, %v4918
        %v4926 = vpack.c.bf16 %v4921, %v4920
        %v4927 = vpack.c.bf16 %v4923, %v4922
        %v4928 = vld [vmem:[%s0] sm:$0xf]
        %v4929 = vld [vmem:[%s0 + $0x4] sm:$0xf]
        %v4930 = vld [vmem:[%s0 + $0x8] sm:$0xf]
        %v4931 = vld [vmem:[%s0 + $0xc] sm:$0xf]
        %v4932 = vld [vmem:[%s0 + $0x10] sm:$0xf]
        %v4933 = vld [vmem:[%s0 + $0x14] sm:$0xf]
        %v4934 = vld [vmem:[%s0 + $0x18] sm:$0xf]
        %v4935 = vld [vmem:[%s0 + $0x1c] sm:$0xf]
        %v4936 = vld [vmem:[%s13] sm:$0xf]
        %v4937 = vld [vmem:[%s13 + $0x4] sm:$0xf]
        %v4938 = vld [vmem:[%s13 + $0x8] sm:$0xf]
        %v4939 = vld [vmem:[%s13 + $0xc] sm:$0xf]
        %v4940 = vld [vmem:[%s13 + $0x10] sm:$0xf]
        %v4941 = vld [vmem:[%s13 + $0x14] sm:$0xf]
        %v4942 = vld [vmem:[%s13 + $0x18] sm:$0xf]
        %v4943 = vld [vmem:[%s13 + $0x1c] sm:$0xf]
        %v4944 = vld [vmem:[%s13 + $0x20] sm:$0xf]
        %v4945 = vld [vmem:[%s13 + $0x24] sm:$0xf]
        %v4946 = vld [vmem:[%s13 + $0x28] sm:$0xf]
        %v4947 = vld [vmem:[%s13 + $0x2c] sm:$0xf]
        %v4948 = vld [vmem:[%s13 + $0x30] sm:$0xf]
        %v4949 = vld [vmem:[%s13 + $0x34] sm:$0xf]
        %v4950 = vld [vmem:[%s13 + $0x38] sm:$0xf]
        %v4951 = vld [vmem:[%s13 + $0x3c] sm:$0xf]
        %v4952 = vld [vmem:[%s14] sm:$0xf]
        %v4953 = vld [vmem:[%s14 + $0x4] sm:$0xf]
        %v4954 = vld [vmem:[%s14 + $0x8] sm:$0xf]
        %v4955 = vld [vmem:[%s14 + $0xc] sm:$0xf]
        %v4956 = vld [vmem:[%s14 + $0x10] sm:$0xf]
        %v4957 = vld [vmem:[%s14 + $0x14] sm:$0xf]
        %v4958 = vld [vmem:[%s14 + $0x18] sm:$0xf]
        %v4959 = vld [vmem:[%s14 + $0x1c] sm:$0xf]
        %v4960 = vld [vmem:[%s14 + $0x20] sm:$0xf]
        %v4961 = vld [vmem:[%s14 + $0x24] sm:$0xf]
        %v4962 = vld [vmem:[%s14 + $0x28] sm:$0xf]
        %v4963 = vld [vmem:[%s14 + $0x2c] sm:$0xf]
        %v4964 = vld [vmem:[%s14 + $0x30] sm:$0xf]
        %v4965 = vld [vmem:[%s14 + $0x34] sm:$0xf]
        %v4966 = vld [vmem:[%s14 + $0x38] sm:$0xf]
        %v4967 = vld [vmem:[%s14 + $0x3c] sm:$0xf]
        %v4976 = vunpack.c.l.b16 %v4928
        %v4977 = vunpack.c.l.b16 %v4929
        %v4978 = vunpack.c.l.b16 %v4930
        %v4979 = vunpack.c.l.b16 %v4931
        %v4980 = vunpack.c.l.b16 %v4932
        %v4981 = vunpack.c.l.b16 %v4933
        %v4982 = vunpack.c.l.b16 %v4934
        %v4983 = vunpack.c.l.b16 %v4935
        %v4984 = vpack.c.b16 %v4977, %v4976
        %v4985 = vpack.c.b16 %v4979, %v4978
        %v4986 = vpack.c.b16 %v4981, %v4980
        %v4987 = vpack.c.b16 %v4983, %v4982
        %v5008 = vunpack.c.l.b16 %v4952
        %v5009 = vunpack.c.l.b16 %v4953
        %v5010 = vunpack.c.l.b16 %v4954
        %v5011 = vunpack.c.l.b16 %v4955
        %v5012 = vunpack.c.l.b16 %v4956
        %v5013 = vunpack.c.l.b16 %v4957
        %v5014 = vunpack.c.l.b16 %v4958
        %v5015 = vunpack.c.l.b16 %v4959
        %v5016 = vunpack.c.l.b16 %v4960
        %v5017 = vunpack.c.l.b16 %v4961
        %v5018 = vunpack.c.l.b16 %v4962
        %v5019 = vunpack.c.l.b16 %v4963
        %v5020 = vunpack.c.l.b16 %v4964
        %v5021 = vunpack.c.l.b16 %v4965
        %v5022 = vunpack.c.l.b16 %v4966
        %v5023 = vunpack.c.l.b16 %v4967
        %v5024 = vpack.c.b16 %v5009, %v5008
        %v5025 = vpack.c.b16 %v5011, %v5010
        %v5026 = vpack.c.b16 %v5013, %v5012
        %v5027 = vpack.c.b16 %v5015, %v5014
        %v5028 = vpack.c.b16 %v5017, %v5016
        %v5029 = vpack.c.b16 %v5019, %v5018
        %v5030 = vpack.c.b16 %v5021, %v5020
        %v5031 = vpack.c.b16 %v5023, %v5022
        %5040 = vmatprep.subr.bf16.mxu0 0
        %5041 = vmatpush1.bf16.msra.mxu0 %v5031
        %5042 = vmatprep.subr.bf16.mxu0 0
        %5043 = vmatpush1.bf16.msra.mxu0 %v5030
        %5044 = vmatprep.subr.bf16.mxu0 0
        %5045 = vmatpush1.bf16.msra.mxu0 %v5029
        %5046 = vmatprep.subr.bf16.mxu0 0
        %5047 = vmatpush1.bf16.msra.mxu0 %v5028
        %5048 = vmatprep.subr.bf16.mxu0 0
        %5049 = vmatpush1.bf16.msra.mxu0 %v5027
        %5050 = vmatprep.subr.bf16.mxu0 0
        %5051 = vmatpush1.bf16.msra.mxu0 %v5026
        %5052 = vmatprep.subr.bf16.mxu0 0
        %5053 = vmatpush1.bf16.msra.mxu0 %v5025
        %5054 = vmatprep.subr.bf16.mxu0 0
        %5055 = vmatpush1.bf16.msra.mxu0 %v5024
        %5056 = vmatprep.subr.bf16.mxu0 0
        %5057 = vmatpush2.bf16.msra.mxu0 0
        %5058 = vmatprep.subr.bf16.mxu0 0
        %5059 = vmatpush2.bf16.msra.mxu0 0
        %5060 = vmatprep.subr.bf16.mxu0 0
        %5061 = vmatpush2.bf16.msra.mxu0 0
        %5062 = vmatprep.subr.bf16.mxu0 0
        %5063 = vmatpush2.bf16.msra.mxu0 0
        %5064 = vmatprep.subr.bf16.mxu0 0
        %5065 = vmatpush2.bf16.msra.mxu0 0
        %5066 = vmatprep.subr.bf16.mxu0 0
        %5067 = vmatpush2.bf16.msra.mxu0 0
        %5068 = vmatprep.subr.bf16.mxu0 0
        %5069 = vmatpush2.bf16.msra.mxu0 0
        %5070 = vmatprep.subr.bf16.mxu0 0
        %5071 = vmatpush2.bf16.msra.mxu0 0
        %5072 = vmatprep.mubr.bf16.mxu0 0
        %5073 = vmatmul.mubr.bf16.gmra.mxu0 %v4984
        %v5074 = vpop.f32.mrf.mxu0
        %v5075 = vadd.f32 0.0, %v5074
        %v5076 = vpop.f32.mrf.mxu0
        %v5077 = vpop.f32.mrf.mxu0
        %v5078 = vadd.f32 0.0, %v5077
        %v5079 = vpop.f32.mrf.mxu0
        %5080 = vmatprep.mubr.bf16.mxu0 0
        %5081 = vmatmul.mubr.bf16.gmra.mxu0 %v4985
        %v5082 = vpop.f32.mrf.mxu0
        %v5083 = vadd.f32 0.0, %v5082
        %v5084 = vpop.f32.mrf.mxu0
        %v5085 = vpop.f32.mrf.mxu0
        %v5086 = vadd.f32 0.0, %v5085
        %v5087 = vpop.f32.mrf.mxu0
        %5088 = vmatprep.mubr.bf16.mxu0 0
        %5089 = vmatmul.mubr.bf16.gmra.mxu0 %v4986
        %v5090 = vpop.f32.mrf.mxu0
        %v5091 = vadd.f32 0.0, %v5090
        %v5092 = vpop.f32.mrf.mxu0
        %v5093 = vpop.f32.mrf.mxu0
        %v5094 = vadd.f32 0.0, %v5093
        %v5095 = vpop.f32.mrf.mxu0
        %5096 = vmatprep.mubr.bf16.mxu0 0
        %5097 = vmatmul.mubr.bf16.gmra.mxu0 %v4987
        %v5098 = vpop.f32.mrf.mxu0
        %v5099 = vadd.f32 0.0, %v5098
        %v5100 = vpop.f32.mrf.mxu0
        %v5101 = vpop.f32.mrf.mxu0
        %v5102 = vadd.f32 0.0, %v5101
        %v5103 = vpop.f32.mrf.mxu0
        %5104 = vdwg.mxu0
        %v5121 = vunpack.c.l.b16 %v4936
        %v5122 = vunpack.c.l.b16 %v4937
        %v5123 = vunpack.c.l.b16 %v4938
        %v5124 = vunpack.c.l.b16 %v4939
        %v5125 = vunpack.c.l.b16 %v4940
        %v5126 = vunpack.c.l.b16 %v4941
        %v5127 = vunpack.c.l.b16 %v4942
        %v5128 = vunpack.c.l.b16 %v4943
        %v5129 = vunpack.c.l.b16 %v4944
        %v5130 = vunpack.c.l.b16 %v4945
        %v5131 = vunpack.c.l.b16 %v4946
        %v5132 = vunpack.c.l.b16 %v4947
        %v5133 = vunpack.c.l.b16 %v4948
        %v5134 = vunpack.c.l.b16 %v4949
        %v5135 = vunpack.c.l.b16 %v4950
        %v5136 = vunpack.c.l.b16 %v4951
        %v5137 = vpack.c.b16 %v5122, %v5121
        %v5138 = vpack.c.b16 %v5124, %v5123
        %v5139 = vpack.c.b16 %v5126, %v5125
        %v5140 = vpack.c.b16 %v5128, %v5127
        %v5141 = vpack.c.b16 %v5130, %v5129
        %v5142 = vpack.c.b16 %v5132, %v5131
        %v5143 = vpack.c.b16 %v5134, %v5133
        %v5144 = vpack.c.b16 %v5136, %v5135
        %5153 = vmatprep.subr.bf16.mxu0 0
        %5154 = vmatpush1.bf16.msra.mxu0 %v5144
        %5155 = vmatprep.subr.bf16.mxu0 0
        %5156 = vmatpush1.bf16.msra.mxu0 %v5143
        %5157 = vmatprep.subr.bf16.mxu0 0
        %5158 = vmatpush1.bf16.msra.mxu0 %v5142
        %5159 = vmatprep.subr.bf16.mxu0 0
        %5160 = vmatpush1.bf16.msra.mxu0 %v5141
        %5161 = vmatprep.subr.bf16.mxu0 0
        %5162 = vmatpush1.bf16.msra.mxu0 %v5140
        %5163 = vmatprep.subr.bf16.mxu0 0
        %5164 = vmatpush1.bf16.msra.mxu0 %v5139
        %5165 = vmatprep.subr.bf16.mxu0 0
        %5166 = vmatpush1.bf16.msra.mxu0 %v5138
        %5167 = vmatprep.subr.bf16.mxu0 0
        %5168 = vmatpush1.bf16.msra.mxu0 %v5137
        %5169 = vmatprep.subr.bf16.mxu0 0
        %5170 = vmatpush2.bf16.msra.mxu0 0
        %5171 = vmatprep.subr.bf16.mxu0 0
        %5172 = vmatpush2.bf16.msra.mxu0 0
        %5173 = vmatprep.subr.bf16.mxu0 0
        %5174 = vmatpush2.bf16.msra.mxu0 0
        %5175 = vmatprep.subr.bf16.mxu0 0
        %5176 = vmatpush2.bf16.msra.mxu0 0
        %5177 = vmatprep.subr.bf16.mxu0 0
        %5178 = vmatpush2.bf16.msra.mxu0 0
        %5179 = vmatprep.subr.bf16.mxu0 0
        %5180 = vmatpush2.bf16.msra.mxu0 0
        %5181 = vmatprep.subr.bf16.mxu0 0
        %5182 = vmatpush2.bf16.msra.mxu0 0
        %5183 = vmatprep.subr.bf16.mxu0 0
        %5184 = vmatpush2.bf16.msra.mxu0 0
        %5185 = vmatprep.mubr.bf16.mxu0 0
        %5186 = vmatmul.mubr.bf16.gmra.mxu0 %v4924
        %v5187 = vpop.f32.mrf.mxu0
        %v5188 = vadd.f32 %v5075, %v5187
        %v5189 = vpop.f32.mrf.mxu0
        %v5190 = vpop.f32.mrf.mxu0
        %v5191 = vadd.f32 %v5078, %v5190
        %v5192 = vpop.f32.mrf.mxu0
        %5193 = vmatprep.mubr.bf16.mxu0 0
        %5194 = vmatmul.mubr.bf16.gmra.mxu0 %v4925
        %v5195 = vpop.f32.mrf.mxu0
        %v5196 = vadd.f32 %v5083, %v5195
        %v5197 = vpop.f32.mrf.mxu0
        %v5198 = vpop.f32.mrf.mxu0
        %v5199 = vadd.f32 %v5086, %v5198
        %v5200 = vpop.f32.mrf.mxu0
        %5201 = vmatprep.mubr.bf16.mxu0 0
        %5202 = vmatmul.mubr.bf16.gmra.mxu0 %v4926
        %v5203 = vpop.f32.mrf.mxu0
        %v5204 = vadd.f32 %v5091, %v5203
        %v5205 = vpop.f32.mrf.mxu0
        %v5206 = vpop.f32.mrf.mxu0
        %v5207 = vadd.f32 %v5094, %v5206
        %v5208 = vpop.f32.mrf.mxu0
        %5209 = vmatprep.mubr.bf16.mxu0 0
        %5210 = vmatmul.mubr.bf16.gmra.mxu0 %v4927
        %v5211 = vpop.f32.mrf.mxu0
        %v5212 = vadd.f32 %v5099, %v5211
        %v5213 = vpop.f32.mrf.mxu0
        %v5214 = vpop.f32.mrf.mxu0
        %v5215 = vadd.f32 %v5102, %v5214
        %v5216 = vpop.f32.mrf.mxu0
        %5217 = vdwg.mxu0
        %v5218 = vld [vmem:[%s15] sm:$0x1]
        %v5220 = vlaneseq
        %v5221 = vshrl.u32 %v5220, 7
        %v5222 = vsub.s32 0, %v5221
        %v5223 = vrot.slane %v5218, %v5222
        %v5225 = vadd.f32 %v5188, %v5223
        %v5226 = vadd.f32 %v5191, %v5223
        %v5227 = vadd.f32 %v5196, %v5223
        %v5228 = vadd.f32 %v5199, %v5223
        %v5229 = vadd.f32 %v5204, %v5223
        %v5230 = vadd.f32 %v5207, %v5223
        %v5231 = vadd.f32 %v5212, %v5223
        %v5232 = vadd.f32 %v5215, %v5223
        %v5233 = vmax.f32 %v5225, 0.0
        %v5234 = vmax.f32 %v5226, 0.0
        %v5235 = vmax.f32 %v5227, 0.0
        %v5236 = vmax.f32 %v5228, 0.0
        %v5237 = vmax.f32 %v5229, 0.0
        %v5238 = vmax.f32 %v5230, 0.0
        %v5239 = vmax.f32 %v5231, 0.0
        %v5240 = vmax.f32 %v5232, 0.0
        %v5241 = vpack.c.bf16 %v5234, %v5233
        %v5242 = vpack.c.bf16 %v5236, %v5235
        %v5243 = vpack.c.bf16 %v5238, %v5237
        %v5244 = vpack.c.bf16 %v5240, %v5239
        %v5245 = vld [vmem:[%s16] sm:$0xf]
        %v5246 = vld [vmem:[%s16 + $0x4] sm:$0xf]
        %v5247 = vld [vmem:[%s16 + $0x8] sm:$0xf]
        %v5248 = vld [vmem:[%s16 + $0xc] sm:$0xf]
        %v5249 = vld [vmem:[%s16 + $0x10] sm:$0xf]
        %v5250 = vld [vmem:[%s16 + $0x14] sm:$0xf]
        %v5251 = vld [vmem:[%s16 + $0x18] sm:$0xf]
        %v5252 = vld [vmem:[%s16 + $0x1c] sm:$0xf]
        %v5253 = vld [vmem:[%s16 + $0x20] sm:$0xf]
        %v5254 = vld [vmem:[%s16 + $0x24] sm:$0xf]
        %v5255 = vld [vmem:[%s16 + $0x28] sm:$0xf]
        %v5256 = vld [vmem:[%s16 + $0x2c] sm:$0xf]
        %v5257 = vld [vmem:[%s16 + $0x30] sm:$0xf]
        %v5258 = vld [vmem:[%s16 + $0x34] sm:$0xf]
        %v5259 = vld [vmem:[%s16 + $0x38] sm:$0xf]
        %v5260 = vld [vmem:[%s16 + $0x3c] sm:$0xf]
        %v5261 = vld [vmem:[%s17] sm:$0x1]
        %v5263 = vlaneseq
        %v5264 = vshrl.u32 %v5263, 7
        %v5265 = vsub.s32 0, %v5264
        %v5266 = vrot.slane %v5261, %v5265
        %v5284 = vunpack.c.l.b16 %v5245
        %v5285 = vunpack.c.l.b16 %v5246
        %v5286 = vunpack.c.l.b16 %v5247
        %v5287 = vunpack.c.l.b16 %v5248
        %v5288 = vunpack.c.l.b16 %v5249
        %v5289 = vunpack.c.l.b16 %v5250
        %v5290 = vunpack.c.l.b16 %v5251
        %v5291 = vunpack.c.l.b16 %v5252
        %v5292 = vunpack.c.l.b16 %v5253
        %v5293 = vunpack.c.l.b16 %v5254
        %v5294 = vunpack.c.l.b16 %v5255
        %v5295 = vunpack.c.l.b16 %v5256
        %v5296 = vunpack.c.l.b16 %v5257
        %v5297 = vunpack.c.l.b16 %v5258
        %v5298 = vunpack.c.l.b16 %v5259
        %v5299 = vunpack.c.l.b16 %v5260
        %v5300 = vpack.c.b16 %v5285, %v5284
        %v5301 = vpack.c.b16 %v5287, %v5286
        %v5302 = vpack.c.b16 %v5289, %v5288
        %v5303 = vpack.c.b16 %v5291, %v5290
        %v5304 = vpack.c.b16 %v5293, %v5292
        %v5305 = vpack.c.b16 %v5295, %v5294
        %v5306 = vpack.c.b16 %v5297, %v5296
        %v5307 = vpack.c.b16 %v5299, %v5298
        %5316 = vmatprep.subr.bf16.mxu0 0
        %5317 = vmatpush1.bf16.msra.mxu0 %v5307
        %5318 = vmatprep.subr.bf16.mxu0 0
        %5319 = vmatpush1.bf16.msra.mxu0 %v5306
        %5320 = vmatprep.subr.bf16.mxu0 0
        %5321 = vmatpush1.bf16.msra.mxu0 %v5305
        %5322 = vmatprep.subr.bf16.mxu0 0
        %5323 = vmatpush1.bf16.msra.mxu0 %v5304
        %5324 = vmatprep.subr.bf16.mxu0 0
        %5325 = vmatpush1.bf16.msra.mxu0 %v5303
        %5326 = vmatprep.subr.bf16.mxu0 0
        %5327 = vmatpush1.bf16.msra.mxu0 %v5302
        %5328 = vmatprep.subr.bf16.mxu0 0
        %5329 = vmatpush1.bf16.msra.mxu0 %v5301
        %5330 = vmatprep.subr.bf16.mxu0 0
        %5331 = vmatpush1.bf16.msra.mxu0 %v5300
        %5332 = vmatprep.subr.bf16.mxu0 0
        %5333 = vmatpush2.bf16.msra.mxu0 0
        %5334 = vmatprep.subr.bf16.mxu0 0
        %5335 = vmatpush2.bf16.msra.mxu0 0
        %5336 = vmatprep.subr.bf16.mxu0 0
        %5337 = vmatpush2.bf16.msra.mxu0 0
        %5338 = vmatprep.subr.bf16.mxu0 0
        %5339 = vmatpush2.bf16.msra.mxu0 0
        %5340 = vmatprep.subr.bf16.mxu0 0
        %5341 = vmatpush2.bf16.msra.mxu0 0
        %5342 = vmatprep.subr.bf16.mxu0 0
        %5343 = vmatpush2.bf16.msra.mxu0 0
        %5344 = vmatprep.subr.bf16.mxu0 0
        %5345 = vmatpush2.bf16.msra.mxu0 0
        %5346 = vmatprep.subr.bf16.mxu0 0
        %5347 = vmatpush2.bf16.msra.mxu0 0
        %5348 = vmatprep.mubr.bf16.mxu0 0
        %5349 = vmatmul.mubr.bf16.gmra.mxu0 %v5241
        %v5350 = vpop.f32.mrf.mxu0
        %v5351 = vadd.f32 %v5266, %v5350
        %v5352 = vpop.f32.mrf.mxu0
        %v5353 = vpop.f32.mrf.mxu0
        %v5354 = vadd.f32 %v5266, %v5353
        %v5355 = vpop.f32.mrf.mxu0
        %5356 = vmatprep.mubr.bf16.mxu0 0
        %5357 = vmatmul.mubr.bf16.gmra.mxu0 %v5242
        %v5358 = vpop.f32.mrf.mxu0
        %v5359 = vadd.f32 %v5266, %v5358
        %v5360 = vpop.f32.mrf.mxu0
        %v5361 = vpop.f32.mrf.mxu0
        %v5362 = vadd.f32 %v5266, %v5361
        %v5363 = vpop.f32.mrf.mxu0
        %5364 = vmatprep.mubr.bf16.mxu0 0
        %5365 = vmatmul.mubr.bf16.gmra.mxu0 %v5243
        %v5366 = vpop.f32.mrf.mxu0
        %v5367 = vadd.f32 %v5266, %v5366
        %v5368 = vpop.f32.mrf.mxu0
        %v5369 = vpop.f32.mrf.mxu0
        %v5370 = vadd.f32 %v5266, %v5369
        %v5371 = vpop.f32.mrf.mxu0
        %5372 = vmatprep.mubr.bf16.mxu0 0
        %5373 = vmatmul.mubr.bf16.gmra.mxu0 %v5244
        %v5374 = vpop.f32.mrf.mxu0
        %v5375 = vadd.f32 %v5266, %v5374
        %v5376 = vpop.f32.mrf.mxu0
        %v5377 = vpop.f32.mrf.mxu0
        %v5378 = vadd.f32 %v5266, %v5377
        %v5379 = vpop.f32.mrf.mxu0
        %5380 = vdwg.mxu0
        %v5381 = vpack.c.bf16 %v5354, %v5351
        %v5382 = vpack.c.bf16 %v5362, %v5359
        %v5383 = vpack.c.bf16 %v5370, %v5367
        %v5384 = vpack.c.bf16 %v5378, %v5375
        %v5389 = vunpack.c.l.b16 %v5381
        %v5390 = vunpack.c.h.b16 %v5381
        %v5391 = vunpack.c.l.b16 %v5382
        %v5392 = vunpack.c.h.b16 %v5382
        %v5393 = vunpack.c.l.b16 %v5383
        %v5394 = vunpack.c.h.b16 %v5383
        %v5395 = vunpack.c.l.b16 %v5384
        %v5396 = vunpack.c.h.b16 %v5384
        %v5397 = vpack.c.b16 %v5389, %v5389
        %v5398 = vpack.c.b16 %v5390, %v5390
        %v5399 = vpack.c.b16 %v5391, %v5391
        %v5400 = vpack.c.b16 %v5392, %v5392
        %v5401 = vpack.c.b16 %v5393, %v5393
        %v5402 = vpack.c.b16 %v5394, %v5394
        %v5403 = vpack.c.b16 %v5395, %v5395
        %v5404 = vpack.c.b16 %v5396, %v5396
        %5413 = vst [vmem:[%s18] sm:$0xf] %v5397
        %5414 = vst [vmem:[%s18 + $0x4] sm:$0xf] %v5398
        %5415 = vst [vmem:[%s18 + $0x8] sm:$0xf] %v5399
        %5416 = vst [vmem:[%s18 + $0xc] sm:$0xf] %v5400
        %5417 = vst [vmem:[%s18 + $0x10] sm:$0xf] %v5401
        %5418 = vst [vmem:[%s18 + $0x14] sm:$0xf] %v5402
        %5419 = vst [vmem:[%s18 + $0x18] sm:$0xf] %v5403
        %5420 = vst [vmem:[%s18 + $0x1c] sm:$0xf] %v5404
      $region100: #{tgat_forward.7} parent=91 // pred_fallthru
        _
      // Predicated region
      $region101: #{tgat_forward.7} parent=91 // pred_check
        %p5421 = pneg %p445
      $region102: #{tgat_forward.7} parent=91 // pred_check_branch
        %5423 = sbr.rel (%p5421) target = $region104
      $region103: #{tgat_forward.7} parent=91 // pred_region
        _
      $region104: #{tgat_forward.7} parent=91 // pred_fallthru
        _
      // Predicated region
      $region105: #{tgat_forward.7} parent=91 // pred_check
        %p5424 = pneg %p445
      $region106: #{tgat_forward.7} parent=91 // pred_check_branch
        %5426 = sbr.rel (%p5424) target = $region108
      $region107: #{tgat_forward.7} parent=91 // pred_region
        _
      $region108: #{tgat_forward.7} parent=91 // pred_fallthru
        _
    $region92: #{tgat_forward.7} parent=5 // pred_fallthru
      _
    %p5427 = scmp.le.s32.totalorder 2, %s24
    // Predicated region
    $region109: #{tgat_forward.7} parent=5 // pred_check
      %p5428 = pneg %p5427
    $region110: #{tgat_forward.7} parent=5 // pred_check_branch
      %5430 = sbr.rel (%p5428) target = $region112
    $region111: #{tgat_forward.7} parent=5 // pred_region
      %s5431 = ssub.s32 %s24, 2
    $region112: #{tgat_forward.7} parent=5 // pred_fallthru
      _
  $region6: #{tgat_forward.7} parent=0 // loop_footer
    %s28 = sadd.s32 1, %s24
  $region7: #{tgat_forward.7} parent=0 // loop_footer_branch
    %23 = sbr.rel target = $region3
  $region8: #{tgat_forward.7} parent=0 // loop_exit
    _

</llo_original>
